<compile_context>
chip_gen: v7x
topology: tpu7x:2x2x1
jax: 0.10.0
libtpu: 0.0.40
codegen_flags: <defaults>
</compile_context>

<pallas_src>
import functools

import jax
import jax.numpy as jnp
import numpy as np
from jax.experimental import pallas as pl
from jax.experimental.pallas import tpu as pltpu


# --------------------------- in-kernel helpers -------------------------------

def _im2col_matmul(load_tap, patch_ref, w_ref, b_ref, hh, ww, cin):
    """Build the (hh*ww, 9*cin) im2col patch matrix in VMEM scratch and do one
    folded-K MXU matmul with the (9*cin, cout) weight.  Returns the biased f32
    pre-activation of shape (hh*ww, cout)."""
    for k in range(9):
        ky, kx = divmod(k, 3)
        tap = load_tap(ky, kx)                                   # (hh, ww, cin)
        patch_ref[:, k * cin:(k + 1) * cin] = tap.reshape(hh * ww, cin)
    return jnp.dot(patch_ref[...], w_ref[...],
                   preferred_element_type=jnp.float32) + b_ref[...]


def _segunet_kernel(xp_ref, w1_ref, b1_ref, w2_ref, b2_ref, w3_ref, b3_ref,
                    w4_ref, b4_ref, o_ref,
                    apad_ref, p1pad_ref, p2pad_ref,
                    patch1_ref, patch2_ref, patch3_ref,
                    *, h, w, cin, cmid):
    h2, w2 = h // 2, w // 2

    # Zero the padded activation buffers so the 1-pixel halo reads as zeros
    # ("same" padding).  Re-done every grid step so the kernel stays correct
    # under any multi-core split of the (parallel) batch axis.
    apad_ref[...] = jnp.zeros_like(apad_ref)
    p1pad_ref[...] = jnp.zeros_like(p1pad_ref)
    p2pad_ref[...] = jnp.zeros_like(p2pad_ref)

    # ---- encoder conv1: cin -> 64, ReLU (reads the zero-padded input block)
    a1 = _im2col_matmul(lambda ky, kx: xp_ref[0, ky:ky + h, kx:kx + w, :],
                        patch1_ref, w1_ref, b1_ref, h, w, cin)
    a1 = jnp.maximum(a1, 0.0)                                    # (h*w, cmid)
    apad_ref[1:h + 1, 1:w + 1, :] = a1.reshape(h, w, cmid)

    # ---- encoder conv2: 64 -> 64, ReLU
    a2 = _im2col_matmul(lambda ky, kx: apad_ref[ky:ky + h, kx:kx + w, :],
                        patch2_ref, w2_ref, b2_ref, h, w, cmid)
    a2 = jnp.maximum(a2, 0.0)                                    # (h*w, cmid)

    # ---- fused 2x2 / stride-2 max-pool written into the padded pooled buffer.
    # Row pairs (H) reduce via a free leading-dim reshape; column pairs (W)
    # reduce via static unit-width slices + single-column stores.
    a2r = a2.reshape(h2, 2, w, cmid)
    hpool = jnp.maximum(a2r[:, 0], a2r[:, 1])                    # (h2, w, cmid)
    for j in range(w2):
        col = jnp.maximum(hpool[:, 2 * j:2 * j + 1, :],
                          hpool[:, 2 * j + 1:2 * j + 2, :])      # (h2, 1, cmid)
        p1pad_ref[1:h2 + 1, 1 + j:2 + j, :] = col

    # ---- decoder conv1: 64 -> 64, ReLU
    a3 = _im2col_matmul(lambda ky, kx: p1pad_ref[ky:ky + h2, kx:kx + w2, :],
                        patch3_ref, w3_ref, b3_ref, h2, w2, cmid)
    a3 = jnp.maximum(a3, 0.0)                                    # (h2*w2, cmid)
    p2pad_ref[1:h2 + 1, 1:w2 + 1, :] = a3.reshape(h2, w2, cmid)

    # ---- decoder conv2: 64 -> cout (lane-padded to 128), Sigmoid (exact)
    a4 = _im2col_matmul(lambda ky, kx: p2pad_ref[ky:ky + h2, kx:kx + w2, :],
                        patch3_ref, w4_ref, b4_ref, h2, w2, cmid)
    o_ref[0] = (1.0 / (1.0 + jnp.exp(-a4))).astype(o_ref.dtype)  # (h2*w2, 128)


# --------------------------- host-side wrapper --------------------------------

def _fold_weight(w):
    # (3, 3, cin, cout) HWIO -> (9*cin, cout), matching im2col column order.
    kh, kw, cin, cout = w.shape
    return w.reshape(kh * kw * cin, cout)


@jax.jit
def caries_segunet_forward(x_nchw, params):
    n, cin, h, w = x_nchw.shape
    cmid = params["w1"].shape[-1]                  # 64
    cout = params["w4"].shape[-1]
    cout_pad = ((cout + 127) // 128) * 128         # lane-dense final store
    h2, w2 = h // 2, w // 2

    x = jnp.transpose(x_nchw, (0, 2, 3, 1)).astype(jnp.float32)   # NCHW -> NHWC
    xp = jnp.pad(x, ((0, 0), (1, 1), (1, 1), (0, 0)))             # zero halo

    w1f = _fold_weight(params["w1"])
    w2f = _fold_weight(params["w2"])
    w3f = _fold_weight(params["w3"])
    w4f = jnp.pad(_fold_weight(params["w4"]), ((0, 0), (0, cout_pad - cout)))
    b1f = params["b1"].reshape(1, cmid)
    b2f = params["b2"].reshape(1, cmid)
    b3f = params["b3"].reshape(1, cmid)
    b4f = jnp.pad(params["b4"], (0, cout_pad - cout)).reshape(1, cout_pad)

    kernel = functools.partial(_segunet_kernel, h=h, w=w, cin=cin, cmid=cmid)

    # TODO(synk): for large H*W add a spatial grid axis with a 1-row halo and
    # re-derive the tile size for v7x's smaller (64 MiB) VMEM.
    out = pl.pallas_call(
        kernel,
        out_shape=jax.ShapeDtypeStruct((n, h2 * w2, cout_pad), jnp.float32),
        grid_spec=pltpu.PrefetchScalarGridSpec(
            num_scalar_prefetch=0,
            grid=(n,),
            in_specs=[
                pl.BlockSpec((1, h + 2, w + 2, cin), lambda i: (i, 0, 0, 0)),
                pl.BlockSpec((9 * cin, cmid), lambda i: (0, 0)),
                pl.BlockSpec((1, cmid), lambda i: (0, 0)),
                pl.BlockSpec((9 * cmid, cmid), lambda i: (0, 0)),
                pl.BlockSpec((1, cmid), lambda i: (0, 0)),
                pl.BlockSpec((9 * cmid, cmid), lambda i: (0, 0)),
                pl.BlockSpec((1, cmid), lambda i: (0, 0)),
                pl.BlockSpec((9 * cmid, cout_pad), lambda i: (0, 0)),
                pl.BlockSpec((1, cout_pad), lambda i: (0, 0)),
            ],
            out_specs=pl.BlockSpec((1, h2 * w2, cout_pad), lambda i: (i, 0, 0)),
            scratch_shapes=[
                pltpu.VMEM((h + 2, w + 2, cmid), jnp.float32),     # conv1 out, padded
                pltpu.VMEM((h2 + 2, w2 + 2, cmid), jnp.float32),   # pooled, padded
                pltpu.VMEM((h2 + 2, w2 + 2, cmid), jnp.float32),   # conv3 out, padded
                pltpu.VMEM((h * w, 9 * cin), jnp.float32),         # im2col conv1
                pltpu.VMEM((h * w, 9 * cmid), jnp.float32),        # im2col conv2
                pltpu.VMEM((h2 * w2, 9 * cmid), jnp.float32),      # im2col conv3/4
            ],
        ),
        compiler_params=pltpu.CompilerParams(
            dimension_semantics=("parallel",)),
    )(xp, w1f, b1f, w2f, b2f, w3f, b3f, w4f, b4f)

    out = out[:, :, :cout].reshape(n, h2, w2, cout)                # drop lane pad
    return jnp.transpose(out, (0, 3, 1, 2))                        # NHWC -> NCHW


# --------------------------- params & reference -------------------------------

def init_params(key, in_channels, out_channels):
    ks = jax.random.split(key, 8)

    def conv_init(kw, kb, cin, cout):
        scale = 1.0 / np.sqrt(cin * 9)
        w = jax.random.uniform(kw, (3, 3, cin, cout), jnp.float32, -scale, scale)
        b = jax.random.uniform(kb, (cout,), jnp.float32, -scale, scale)
        return w, b

    w1, b1 = conv_init(ks[0], ks[1], in_channels, 64)
    w2, b2 = conv_init(ks[2], ks[3], 64, 64)
    w3, b3 = conv_init(ks[4], ks[5], 64, 64)
    w4, b4 = conv_init(ks[6], ks[7], 64, out_channels)
    return dict(w1=w1, b1=b1, w2=w2, b2=b2, w3=w3, b3=b3, w4=w4, b4=b4)


def reference_forward(x_nchw, params):
    """Pure-JAX (XLA) reference with identical semantics, for validation."""
    def conv(x, w, b):
        y = jax.lax.conv_general_dilated(
            x, w, window_strides=(1, 1), padding="SAME",
            dimension_numbers=("NHWC", "HWIO", "NHWC"))
        return y + b
    x = jnp.transpose(x_nchw, (0, 2, 3, 1))
    h = jax.nn.relu(conv(x, params["w1"], params["b1"]))
    h = jax.nn.relu(conv(h, params["w2"], params["b2"]))
    n, hh, ww, c = h.shape
    h = h.reshape(n, hh // 2, 2, ww // 2, 2, c).max(axis=(2, 4))
    h = jax.nn.relu(conv(h, params["w3"], params["b3"]))
    h = jax.nn.sigmoid(conv(h, params["w4"], params["b4"]))
    return jnp.transpose(h, (0, 3, 1, 2))


if __name__ == "__main__":
    key = jax.random.PRNGKey(0)
    k_x, k_p = jax.random.split(key)

    in_channels, out_channels = 4, 2
    x = jax.random.normal(k_x, (2, in_channels, 16, 16), jnp.float32)  # NCHW
    params = init_params(k_p, in_channels, out_channels)

    out = caries_segunet_forward(x, params)
    out = jax.block_until_ready(out)

    ref = jax.block_until_ready(reference_forward(x, params))
    assert out.shape == (2, out_channels, 8, 8), out.shape
    assert np.allclose(np.asarray(out), np.asarray(ref), atol=2e-4, rtol=2e-4)

    print("KERNEL_OK")
</pallas_src>

<mosaic_0001>
module attributes {stable_mosaic.version = 11 : i64} {
  func.func @_segunet_kernel(%arg0: i32, %arg1: memref<1x18x18x4xf32, #tpu.memory_space<vmem>>, %arg2: memref<36x64xf32, #tpu.memory_space<vmem>>, %arg3: memref<1x64xf32, #tpu.memory_space<vmem>>, %arg4: memref<576x64xf32, #tpu.memory_space<vmem>>, %arg5: memref<1x64xf32, #tpu.memory_space<vmem>>, %arg6: memref<576x64xf32, #tpu.memory_space<vmem>>, %arg7: memref<1x64xf32, #tpu.memory_space<vmem>>, %arg8: memref<576x128xf32, #tpu.memory_space<vmem>>, %arg9: memref<1x128xf32, #tpu.memory_space<vmem>>, %arg10: memref<1x64x128xf32, #tpu.memory_space<vmem>>, %arg11: memref<18x18x64xf32, #tpu.memory_space<vmem>>, %arg12: memref<10x10x64xf32, #tpu.memory_space<vmem>>, %arg13: memref<10x10x64xf32, #tpu.memory_space<vmem>>, %arg14: memref<256x36xf32, #tpu.memory_space<vmem>>, %arg15: memref<256x576xf32, #tpu.memory_space<vmem>>, %arg16: memref<64x576xf32, #tpu.memory_space<vmem>>) attributes {dimension_semantics = [#tpu.dimension_semantics<parallel>], iteration_bounds = array<i64: 2>, scalar_prefetch = 0 : i64, scratch_operands = 6 : i64, tpu.core_type = #tpu.core_type<tc>, window_params = [{transform_indices = @transform_0, window_bounds = array<i64: 1, 18, 18, 4>}, {pipeline_mode = #tpu.pipeline_mode<synchronous>, transform_indices = @transform_1, window_bounds = array<i64: 36, 64>}, {pipeline_mode = #tpu.pipeline_mode<synchronous>, transform_indices = @transform_2, window_bounds = array<i64: 1, 64>}, {pipeline_mode = #tpu.pipeline_mode<synchronous>, transform_indices = @transform_3, window_bounds = array<i64: 576, 64>}, {pipeline_mode = #tpu.pipeline_mode<synchronous>, transform_indices = @transform_4, window_bounds = array<i64: 1, 64>}, {pipeline_mode = #tpu.pipeline_mode<synchronous>, transform_indices = @transform_5, window_bounds = array<i64: 576, 64>}, {pipeline_mode = #tpu.pipeline_mode<synchronous>, transform_indices = @transform_6, window_bounds = array<i64: 1, 64>}, {pipeline_mode = #tpu.pipeline_mode<synchronous>, transform_indices = @transform_7, window_bounds = array<i64: 576, 128>}, {pipeline_mode = #tpu.pipeline_mode<synchronous>, transform_indices = @transform_8, window_bounds = array<i64: 1, 128>}, {transform_indices = @transform_9, window_bounds = array<i64: 1, 64, 128>}]} {
    %cst = arith.constant 0.000000e+00 : f32
    %0 = vector.broadcast %cst : f32 to vector<18x18x64xf32>
    %c0 = arith.constant 0 : index
    %c0_0 = arith.constant 0 : index
    %c0_1 = arith.constant 0 : index
    %1 = vector.load %arg11[%c0, %c0_0, %c0_1] : memref<18x18x64xf32, #tpu.memory_space<vmem>>, vector<18x18x64xf32>
    tpu.vector_store %arg11[%c0, %c0_0, %c0_1], %0 {strides = array<i32>} : memref<18x18x64xf32, #tpu.memory_space<vmem>>, vector<18x18x64xf32>,
    %cst_2 = arith.constant 0.000000e+00 : f32
    %2 = vector.broadcast %cst_2 : f32 to vector<10x10x64xf32>
    %c0_3 = arith.constant 0 : index
    %c0_4 = arith.constant 0 : index
    %c0_5 = arith.constant 0 : index
    %3 = vector.load %arg12[%c0_3, %c0_4, %c0_5] : memref<10x10x64xf32, #tpu.memory_space<vmem>>, vector<10x10x64xf32>
    tpu.vector_store %arg12[%c0_3, %c0_4, %c0_5], %2 {strides = array<i32>} : memref<10x10x64xf32, #tpu.memory_space<vmem>>, vector<10x10x64xf32>,
    %cst_6 = arith.constant 0.000000e+00 : f32
    %4 = vector.broadcast %cst_6 : f32 to vector<10x10x64xf32>
    %c0_7 = arith.constant 0 : index
    %c0_8 = arith.constant 0 : index
    %c0_9 = arith.constant 0 : index
    %5 = vector.load %arg13[%c0_7, %c0_8, %c0_9] : memref<10x10x64xf32, #tpu.memory_space<vmem>>, vector<10x10x64xf32>
    tpu.vector_store %arg13[%c0_7, %c0_8, %c0_9], %4 {strides = array<i32>} : memref<10x10x64xf32, #tpu.memory_space<vmem>>, vector<10x10x64xf32>,
    %c0_10 = arith.constant 0 : index
    %c0_11 = arith.constant 0 : index
    %c0_12 = arith.constant 0 : index
    %c0_13 = arith.constant 0 : index
    %6 = vector.load %arg1[%c0_10, %c0_11, %c0_12, %c0_13] : memref<1x18x18x4xf32, #tpu.memory_space<vmem>>, vector<1x16x16x4xf32>
    %7 = vector.shape_cast %6 : vector<1x16x16x4xf32> to vector<16x16x4xf32>
    %8 = vector.shape_cast %7 : vector<16x16x4xf32> to vector<256x4xf32>
    %c0_14 = arith.constant 0 : index
    %c0_15 = arith.constant 0 : index
    %9 = vector.load %arg14[%c0_14, %c0_15] : memref<256x36xf32, #tpu.memory_space<vmem>>, vector<256x4xf32>
    tpu.vector_store %arg14[%c0_14, %c0_15], %8 {strides = array<i32>} : memref<256x36xf32, #tpu.memory_space<vmem>>, vector<256x4xf32>,
    %c0_16 = arith.constant 0 : index
    %c0_17 = arith.constant 0 : index
    %c1 = arith.constant 1 : index
    %c0_18 = arith.constant 0 : index
    %10 = vector.load %arg1[%c0_16, %c0_17, %c1, %c0_18] : memref<1x18x18x4xf32, #tpu.memory_space<vmem>>, vector<1x16x16x4xf32>
    %11 = vector.shape_cast %10 : vector<1x16x16x4xf32> to vector<16x16x4xf32>
    %12 = vector.shape_cast %11 : vector<16x16x4xf32> to vector<256x4xf32>
    %c0_19 = arith.constant 0 : index
    %c4 = arith.constant 4 : index
    %13 = vector.load %arg14[%c0_19, %c4] : memref<256x36xf32, #tpu.memory_space<vmem>>, vector<256x4xf32>
    tpu.vector_store %arg14[%c0_19, %c4], %12 {strides = array<i32>} : memref<256x36xf32, #tpu.memory_space<vmem>>, vector<256x4xf32>,
    %c0_20 = arith.constant 0 : index
    %c0_21 = arith.constant 0 : index
    %c2 = arith.constant 2 : index
    %c0_22 = arith.constant 0 : index
    %14 = vector.load %arg1[%c0_20, %c0_21, %c2, %c0_22] : memref<1x18x18x4xf32, #tpu.memory_space<vmem>>, vector<1x16x16x4xf32>
    %15 = vector.shape_cast %14 : vector<1x16x16x4xf32> to vector<16x16x4xf32>
    %16 = vector.shape_cast %15 : vector<16x16x4xf32> to vector<256x4xf32>
    %c0_23 = arith.constant 0 : index
    %c8 = arith.constant 8 : index
    %17 = vector.load %arg14[%c0_23, %c8] : memref<256x36xf32, #tpu.memory_space<vmem>>, vector<256x4xf32>
    tpu.vector_store %arg14[%c0_23, %c8], %16 {strides = array<i32>} : memref<256x36xf32, #tpu.memory_space<vmem>>, vector<256x4xf32>,
    %c0_24 = arith.constant 0 : index
    %c1_25 = arith.constant 1 : index
    %c0_26 = arith.constant 0 : index
    %c0_27 = arith.constant 0 : index
    %18 = vector.load %arg1[%c0_24, %c1_25, %c0_26, %c0_27] : memref<1x18x18x4xf32, #tpu.memory_space<vmem>>, vector<1x16x16x4xf32>
    %19 = vector.shape_cast %18 : vector<1x16x16x4xf32> to vector<16x16x4xf32>
    %20 = vector.shape_cast %19 : vector<16x16x4xf32> to vector<256x4xf32>
    %c0_28 = arith.constant 0 : index
    %c12 = arith.constant 12 : index
    %21 = vector.load %arg14[%c0_28, %c12] : memref<256x36xf32, #tpu.memory_space<vmem>>, vector<256x4xf32>
    tpu.vector_store %arg14[%c0_28, %c12], %20 {strides = array<i32>} : memref<256x36xf32, #tpu.memory_space<vmem>>, vector<256x4xf32>,
    %c0_29 = arith.constant 0 : index
    %c1_30 = arith.constant 1 : index
    %c1_31 = arith.constant 1 : index
    %c0_32 = arith.constant 0 : index
    %22 = vector.load %arg1[%c0_29, %c1_30, %c1_31, %c0_32] : memref<1x18x18x4xf32, #tpu.memory_space<vmem>>, vector<1x16x16x4xf32>
    %23 = vector.shape_cast %22 : vector<1x16x16x4xf32> to vector<16x16x4xf32>
    %24 = vector.shape_cast %23 : vector<16x16x4xf32> to vector<256x4xf32>
    %c0_33 = arith.constant 0 : index
    %c16 = arith.constant 16 : index
    %25 = vector.load %arg14[%c0_33, %c16] : memref<256x36xf32, #tpu.memory_space<vmem>>, vector<256x4xf32>
    tpu.vector_store %arg14[%c0_33, %c16], %24 {strides = array<i32>} : memref<256x36xf32, #tpu.memory_space<vmem>>, vector<256x4xf32>,
    %c0_34 = arith.constant 0 : index
    %c1_35 = arith.constant 1 : index
    %c2_36 = arith.constant 2 : index
    %c0_37 = arith.constant 0 : index
    %26 = vector.load %arg1[%c0_34, %c1_35, %c2_36, %c0_37] : memref<1x18x18x4xf32, #tpu.memory_space<vmem>>, vector<1x16x16x4xf32>
    %27 = vector.shape_cast %26 : vector<1x16x16x4xf32> to vector<16x16x4xf32>
    %28 = vector.shape_cast %27 : vector<16x16x4xf32> to vector<256x4xf32>
    %c0_38 = arith.constant 0 : index
    %c20 = arith.constant 20 : index
    %29 = vector.load %arg14[%c0_38, %c20] : memref<256x36xf32, #tpu.memory_space<vmem>>, vector<256x4xf32>
    tpu.vector_store %arg14[%c0_38, %c20], %28 {strides = array<i32>} : memref<256x36xf32, #tpu.memory_space<vmem>>, vector<256x4xf32>,
    %c0_39 = arith.constant 0 : index
    %c2_40 = arith.constant 2 : index
    %c0_41 = arith.constant 0 : index
    %c0_42 = arith.constant 0 : index
    %30 = vector.load %arg1[%c0_39, %c2_40, %c0_41, %c0_42] : memref<1x18x18x4xf32, #tpu.memory_space<vmem>>, vector<1x16x16x4xf32>
    %31 = vector.shape_cast %30 : vector<1x16x16x4xf32> to vector<16x16x4xf32>
    %32 = vector.shape_cast %31 : vector<16x16x4xf32> to vector<256x4xf32>
    %c0_43 = arith.constant 0 : index
    %c24 = arith.constant 24 : index
    %33 = vector.load %arg14[%c0_43, %c24] : memref<256x36xf32, #tpu.memory_space<vmem>>, vector<256x4xf32>
    tpu.vector_store %arg14[%c0_43, %c24], %32 {strides = array<i32>} : memref<256x36xf32, #tpu.memory_space<vmem>>, vector<256x4xf32>,
    %c0_44 = arith.constant 0 : index
    %c2_45 = arith.constant 2 : index
    %c1_46 = arith.constant 1 : index
    %c0_47 = arith.constant 0 : index
    %34 = vector.load %arg1[%c0_44, %c2_45, %c1_46, %c0_47] : memref<1x18x18x4xf32, #tpu.memory_space<vmem>>, vector<1x16x16x4xf32>
    %35 = vector.shape_cast %34 : vector<1x16x16x4xf32> to vector<16x16x4xf32>
    %36 = vector.shape_cast %35 : vector<16x16x4xf32> to vector<256x4xf32>
    %c0_48 = arith.constant 0 : index
    %c28 = arith.constant 28 : index
    %37 = vector.load %arg14[%c0_48, %c28] : memref<256x36xf32, #tpu.memory_space<vmem>>, vector<256x4xf32>
    tpu.vector_store %arg14[%c0_48, %c28], %36 {strides = array<i32>} : memref<256x36xf32, #tpu.memory_space<vmem>>, vector<256x4xf32>,
    %c0_49 = arith.constant 0 : index
    %c2_50 = arith.constant 2 : index
    %c2_51 = arith.constant 2 : index
    %c0_52 = arith.constant 0 : index
    %38 = vector.load %arg1[%c0_49, %c2_50, %c2_51, %c0_52] : memref<1x18x18x4xf32, #tpu.memory_space<vmem>>, vector<1x16x16x4xf32>
    %39 = vector.shape_cast %38 : vector<1x16x16x4xf32> to vector<16x16x4xf32>
    %40 = vector.shape_cast %39 : vector<16x16x4xf32> to vector<256x4xf32>
    %c0_53 = arith.constant 0 : index
    %c32 = arith.constant 32 : index
    %41 = vector.load %arg14[%c0_53, %c32] : memref<256x36xf32, #tpu.memory_space<vmem>>, vector<256x4xf32>
    tpu.vector_store %arg14[%c0_53, %c32], %40 {strides = array<i32>} : memref<256x36xf32, #tpu.memory_space<vmem>>, vector<256x4xf32>,
    %c0_54 = arith.constant 0 : index
    %c0_55 = arith.constant 0 : index
    %42 = vector.load %arg14[%c0_54, %c0_55] : memref<256x36xf32, #tpu.memory_space<vmem>>, vector<256x36xf32>
    %c0_56 = arith.constant 0 : index
    %c0_57 = arith.constant 0 : index
    %43 = vector.load %arg2[%c0_56, %c0_57] : memref<36x64xf32, #tpu.memory_space<vmem>>, vector<36x64xf32>
    %cst_58 = arith.constant dense<0.000000e+00> : vector<256x64xf32>
    %44 = tpu.matmul %42, %43, %cst_58 {dimension_numbers = #tpu.dot_dimension_numbers<[1], [0], [0], [1], [0, 0, 1, 1], [], []>} : vector<256x36xf32>, vector<36x64xf32>, vector<256x64xf32> -> vector<256x64xf32>
    %c0_59 = arith.constant 0 : index
    %c0_60 = arith.constant 0 : index
    %45 = vector.load %arg3[%c0_59, %c0_60] : memref<1x64xf32, #tpu.memory_space<vmem>>, vector<1x64xf32>
    %46 = vector.broadcast %45 : vector<1x64xf32> to vector<256x64xf32>
    %47 = arith.addf %44, %46 : vector<256x64xf32>
    %cst_61 = arith.constant 0.000000e+00 : f32
    %48 = vector.broadcast %cst_61 : f32 to vector<256x64xf32>
    %49 = arith.maximumf %47, %48 : vector<256x64xf32>
    %50 = vector.shape_cast %49 : vector<256x64xf32> to vector<16x16x64xf32>
    %c1_62 = arith.constant 1 : index
    %c1_63 = arith.constant 1 : index
    %c0_64 = arith.constant 0 : index
    %51 = vector.load %arg11[%c1_62, %c1_63, %c0_64] : memref<18x18x64xf32, #tpu.memory_space<vmem>>, vector<16x16x64xf32>
    tpu.vector_store %arg11[%c1_62, %c1_63, %c0_64], %50 {strides = array<i32>} : memref<18x18x64xf32, #tpu.memory_space<vmem>>, vector<16x16x64xf32>,
    %c0_65 = arith.constant 0 : index
    %c0_66 = arith.constant 0 : index
    %c0_67 = arith.constant 0 : index
    %52 = vector.load %arg11[%c0_65, %c0_66, %c0_67] : memref<18x18x64xf32, #tpu.memory_space<vmem>>, vector<16x16x64xf32>
    %53 = vector.shape_cast %52 : vector<16x16x64xf32> to vector<256x64xf32>
    %c0_68 = arith.constant 0 : index
    %c0_69 = arith.constant 0 : index
    %54 = vector.load %arg15[%c0_68, %c0_69] : memref<256x576xf32, #tpu.memory_space<vmem>>, vector<256x64xf32>
    tpu.vector_store %arg15[%c0_68, %c0_69], %53 {strides = array<i32>} : memref<256x576xf32, #tpu.memory_space<vmem>>, vector<256x64xf32>,
    %c0_70 = arith.constant 0 : index
    %c1_71 = arith.constant 1 : index
    %c0_72 = arith.constant 0 : index
    %55 = vector.load %arg11[%c0_70, %c1_71, %c0_72] : memref<18x18x64xf32, #tpu.memory_space<vmem>>, vector<16x16x64xf32>
    %56 = vector.shape_cast %55 : vector<16x16x64xf32> to vector<256x64xf32>
    %c0_73 = arith.constant 0 : index
    %c64 = arith.constant 64 : index
    %57 = vector.load %arg15[%c0_73, %c64] : memref<256x576xf32, #tpu.memory_space<vmem>>, vector<256x64xf32>
    tpu.vector_store %arg15[%c0_73, %c64], %56 {strides = array<i32>} : memref<256x576xf32, #tpu.memory_space<vmem>>, vector<256x64xf32>,
    %c0_74 = arith.constant 0 : index
    %c2_75 = arith.constant 2 : index
    %c0_76 = arith.constant 0 : index
    %58 = vector.load %arg11[%c0_74, %c2_75, %c0_76] : memref<18x18x64xf32, #tpu.memory_space<vmem>>, vector<16x16x64xf32>
    %59 = vector.shape_cast %58 : vector<16x16x64xf32> to vector<256x64xf32>
    %c0_77 = arith.constant 0 : index
    %c128 = arith.constant 128 : index
    %60 = vector.load %arg15[%c0_77, %c128] : memref<256x576xf32, #tpu.memory_space<vmem>>, vector<256x64xf32>
    tpu.vector_store %arg15[%c0_77, %c128], %59 {strides = array<i32>} : memref<256x576xf32, #tpu.memory_space<vmem>>, vector<256x64xf32>,
    %c1_78 = arith.constant 1 : index
    %c0_79 = arith.constant 0 : index
    %c0_80 = arith.constant 0 : index
    %61 = vector.load %arg11[%c1_78, %c0_79, %c0_80] : memref<18x18x64xf32, #tpu.memory_space<vmem>>, vector<16x16x64xf32>
    %62 = vector.shape_cast %61 : vector<16x16x64xf32> to vector<256x64xf32>
    %c0_81 = arith.constant 0 : index
    %c192 = arith.constant 192 : index
    %63 = vector.load %arg15[%c0_81, %c192] : memref<256x576xf32, #tpu.memory_space<vmem>>, vector<256x64xf32>
    tpu.vector_store %arg15[%c0_81, %c192], %62 {strides = array<i32>} : memref<256x576xf32, #tpu.memory_space<vmem>>, vector<256x64xf32>,
    %c1_82 = arith.constant 1 : index
    %c1_83 = arith.constant 1 : index
    %c0_84 = arith.constant 0 : index
    %64 = vector.load %arg11[%c1_82, %c1_83, %c0_84] : memref<18x18x64xf32, #tpu.memory_space<vmem>>, vector<16x16x64xf32>
    %65 = vector.shape_cast %64 : vector<16x16x64xf32> to vector<256x64xf32>
    %c0_85 = arith.constant 0 : index
    %c256 = arith.constant 256 : index
    %66 = vector.load %arg15[%c0_85, %c256] : memref<256x576xf32, #tpu.memory_space<vmem>>, vector<256x64xf32>
    tpu.vector_store %arg15[%c0_85, %c256], %65 {strides = array<i32>} : memref<256x576xf32, #tpu.memory_space<vmem>>, vector<256x64xf32>,
    %c1_86 = arith.constant 1 : index
    %c2_87 = arith.constant 2 : index
    %c0_88 = arith.constant 0 : index
    %67 = vector.load %arg11[%c1_86, %c2_87, %c0_88] : memref<18x18x64xf32, #tpu.memory_space<vmem>>, vector<16x16x64xf32>
    %68 = vector.shape_cast %67 : vector<16x16x64xf32> to vector<256x64xf32>
    %c0_89 = arith.constant 0 : index
    %c320 = arith.constant 320 : index
    %69 = vector.load %arg15[%c0_89, %c320] : memref<256x576xf32, #tpu.memory_space<vmem>>, vector<256x64xf32>
    tpu.vector_store %arg15[%c0_89, %c320], %68 {strides = array<i32>} : memref<256x576xf32, #tpu.memory_space<vmem>>, vector<256x64xf32>,
    %c2_90 = arith.constant 2 : index
    %c0_91 = arith.constant 0 : index
    %c0_92 = arith.constant 0 : index
    %70 = vector.load %arg11[%c2_90, %c0_91, %c0_92] : memref<18x18x64xf32, #tpu.memory_space<vmem>>, vector<16x16x64xf32>
    %71 = vector.shape_cast %70 : vector<16x16x64xf32> to vector<256x64xf32>
    %c0_93 = arith.constant 0 : index
    %c384 = arith.constant 384 : index
    %72 = vector.load %arg15[%c0_93, %c384] : memref<256x576xf32, #tpu.memory_space<vmem>>, vector<256x64xf32>
    tpu.vector_store %arg15[%c0_93, %c384], %71 {strides = array<i32>} : memref<256x576xf32, #tpu.memory_space<vmem>>, vector<256x64xf32>,
    %c2_94 = arith.constant 2 : index
    %c1_95 = arith.constant 1 : index
    %c0_96 = arith.constant 0 : index
    %73 = vector.load %arg11[%c2_94, %c1_95, %c0_96] : memref<18x18x64xf32, #tpu.memory_space<vmem>>, vector<16x16x64xf32>
    %74 = vector.shape_cast %73 : vector<16x16x64xf32> to vector<256x64xf32>
    %c0_97 = arith.constant 0 : index
    %c448 = arith.constant 448 : index
    %75 = vector.load %arg15[%c0_97, %c448] : memref<256x576xf32, #tpu.memory_space<vmem>>, vector<256x64xf32>
    tpu.vector_store %arg15[%c0_97, %c448], %74 {strides = array<i32>} : memref<256x576xf32, #tpu.memory_space<vmem>>, vector<256x64xf32>,
    %c2_98 = arith.constant 2 : index
    %c2_99 = arith.constant 2 : index
    %c0_100 = arith.constant 0 : index
    %76 = vector.load %arg11[%c2_98, %c2_99, %c0_100] : memref<18x18x64xf32, #tpu.memory_space<vmem>>, vector<16x16x64xf32>
    %77 = vector.shape_cast %76 : vector<16x16x64xf32> to vector<256x64xf32>
    %c0_101 = arith.constant 0 : index
    %c512 = arith.constant 512 : index
    %78 = vector.load %arg15[%c0_101, %c512] : memref<256x576xf32, #tpu.memory_space<vmem>>, vector<256x64xf32>
    tpu.vector_store %arg15[%c0_101, %c512], %77 {strides = array<i32>} : memref<256x576xf32, #tpu.memory_space<vmem>>, vector<256x64xf32>,
    %c0_102 = arith.constant 0 : index
    %c0_103 = arith.constant 0 : index
    %79 = vector.load %arg15[%c0_102, %c0_103] : memref<256x576xf32, #tpu.memory_space<vmem>>, vector<256x576xf32>
    %c0_104 = arith.constant 0 : index
    %c0_105 = arith.constant 0 : index
    %80 = vector.load %arg4[%c0_104, %c0_105] : memref<576x64xf32, #tpu.memory_space<vmem>>, vector<576x64xf32>
    %cst_106 = arith.constant dense<0.000000e+00> : vector<256x64xf32>
    %81 = tpu.matmul %79, %80, %cst_106 {dimension_numbers = #tpu.dot_dimension_numbers<[1], [0], [0], [1], [0, 0, 1, 1], [], []>} : vector<256x576xf32>, vector<576x64xf32>, vector<256x64xf32> -> vector<256x64xf32>
    %c0_107 = arith.constant 0 : index
    %c0_108 = arith.constant 0 : index
    %82 = vector.load %arg5[%c0_107, %c0_108] : memref<1x64xf32, #tpu.memory_space<vmem>>, vector<1x64xf32>
    %83 = vector.broadcast %82 : vector<1x64xf32> to vector<256x64xf32>
    %84 = arith.addf %81, %83 : vector<256x64xf32>
    %cst_109 = arith.constant 0.000000e+00 : f32
    %85 = vector.broadcast %cst_109 : f32 to vector<256x64xf32>
    %86 = arith.maximumf %84, %85 : vector<256x64xf32>
    %87 = vector.shape_cast %86 : vector<256x64xf32> to vector<8x2x16x64xf32>
    %88 = vector.extract_strided_slice %87 {offsets = [0, 0, 0, 0], sizes = [8, 1, 16, 64], strides = [1, 1, 1, 1]} : vector<8x2x16x64xf32> to vector<8x1x16x64xf32>
    %89 = vector.shape_cast %88 : vector<8x1x16x64xf32> to vector<8x16x64xf32>
    %90 = vector.extract_strided_slice %87 {offsets = [0, 1, 0, 0], sizes = [8, 1, 16, 64], strides = [1, 1, 1, 1]} : vector<8x2x16x64xf32> to vector<8x1x16x64xf32>
    %91 = vector.shape_cast %90 : vector<8x1x16x64xf32> to vector<8x16x64xf32>
    %92 = arith.maximumf %89, %91 : vector<8x16x64xf32>
    %93 = vector.extract_strided_slice %92 {offsets = [0, 0, 0], sizes = [8, 1, 64], strides = [1, 1, 1]} : vector<8x16x64xf32> to vector<8x1x64xf32>
    %94 = vector.extract_strided_slice %92 {offsets = [0, 1, 0], sizes = [8, 1, 64], strides = [1, 1, 1]} : vector<8x16x64xf32> to vector<8x1x64xf32>
    %95 = arith.maximumf %93, %94 : vector<8x1x64xf32>
    %c1_110 = arith.constant 1 : index
    %c1_111 = arith.constant 1 : index
    %c0_112 = arith.constant 0 : index
    %96 = vector.load %arg12[%c1_110, %c1_111, %c0_112] : memref<10x10x64xf32, #tpu.memory_space<vmem>>, vector<8x1x64xf32>
    tpu.vector_store %arg12[%c1_110, %c1_111, %c0_112], %95 {strides = array<i32>} : memref<10x10x64xf32, #tpu.memory_space<vmem>>, vector<8x1x64xf32>,
    %97 = vector.extract_strided_slice %92 {offsets = [0, 2, 0], sizes = [8, 1, 64], strides = [1, 1, 1]} : vector<8x16x64xf32> to vector<8x1x64xf32>
    %98 = vector.extract_strided_slice %92 {offsets = [0, 3, 0], sizes = [8, 1, 64], strides = [1, 1, 1]} : vector<8x16x64xf32> to vector<8x1x64xf32>
    %99 = arith.maximumf %97, %98 : vector<8x1x64xf32>
    %c1_113 = arith.constant 1 : index
    %c2_114 = arith.constant 2 : index
    %c0_115 = arith.constant 0 : index
    %100 = vector.load %arg12[%c1_113, %c2_114, %c0_115] : memref<10x10x64xf32, #tpu.memory_space<vmem>>, vector<8x1x64xf32>
    tpu.vector_store %arg12[%c1_113, %c2_114, %c0_115], %99 {strides = array<i32>} : memref<10x10x64xf32, #tpu.memory_space<vmem>>, vector<8x1x64xf32>,
    %101 = vector.extract_strided_slice %92 {offsets = [0, 4, 0], sizes = [8, 1, 64], strides = [1, 1, 1]} : vector<8x16x64xf32> to vector<8x1x64xf32>
    %102 = vector.extract_strided_slice %92 {offsets = [0, 5, 0], sizes = [8, 1, 64], strides = [1, 1, 1]} : vector<8x16x64xf32> to vector<8x1x64xf32>
    %103 = arith.maximumf %101, %102 : vector<8x1x64xf32>
    %c1_116 = arith.constant 1 : index
    %c3 = arith.constant 3 : index
    %c0_117 = arith.constant 0 : index
    %104 = vector.load %arg12[%c1_116, %c3, %c0_117] : memref<10x10x64xf32, #tpu.memory_space<vmem>>, vector<8x1x64xf32>
    tpu.vector_store %arg12[%c1_116, %c3, %c0_117], %103 {strides = array<i32>} : memref<10x10x64xf32, #tpu.memory_space<vmem>>, vector<8x1x64xf32>,
    %105 = vector.extract_strided_slice %92 {offsets = [0, 6, 0], sizes = [8, 1, 64], strides = [1, 1, 1]} : vector<8x16x64xf32> to vector<8x1x64xf32>
    %106 = vector.extract_strided_slice %92 {offsets = [0, 7, 0], sizes = [8, 1, 64], strides = [1, 1, 1]} : vector<8x16x64xf32> to vector<8x1x64xf32>
    %107 = arith.maximumf %105, %106 : vector<8x1x64xf32>
    %c1_118 = arith.constant 1 : index
    %c4_119 = arith.constant 4 : index
    %c0_120 = arith.constant 0 : index
    %108 = vector.load %arg12[%c1_118, %c4_119, %c0_120] : memref<10x10x64xf32, #tpu.memory_space<vmem>>, vector<8x1x64xf32>
    tpu.vector_store %arg12[%c1_118, %c4_119, %c0_120], %107 {strides = array<i32>} : memref<10x10x64xf32, #tpu.memory_space<vmem>>, vector<8x1x64xf32>,
    %109 = vector.extract_strided_slice %92 {offsets = [0, 8, 0], sizes = [8, 1, 64], strides = [1, 1, 1]} : vector<8x16x64xf32> to vector<8x1x64xf32>
    %110 = vector.extract_strided_slice %92 {offsets = [0, 9, 0], sizes = [8, 1, 64], strides = [1, 1, 1]} : vector<8x16x64xf32> to vector<8x1x64xf32>
    %111 = arith.maximumf %109, %110 : vector<8x1x64xf32>
    %c1_121 = arith.constant 1 : index
    %c5 = arith.constant 5 : index
    %c0_122 = arith.constant 0 : index
    %112 = vector.load %arg12[%c1_121, %c5, %c0_122] : memref<10x10x64xf32, #tpu.memory_space<vmem>>, vector<8x1x64xf32>
    tpu.vector_store %arg12[%c1_121, %c5, %c0_122], %111 {strides = array<i32>} : memref<10x10x64xf32, #tpu.memory_space<vmem>>, vector<8x1x64xf32>,
    %113 = vector.extract_strided_slice %92 {offsets = [0, 10, 0], sizes = [8, 1, 64], strides = [1, 1, 1]} : vector<8x16x64xf32> to vector<8x1x64xf32>
    %114 = vector.extract_strided_slice %92 {offsets = [0, 11, 0], sizes = [8, 1, 64], strides = [1, 1, 1]} : vector<8x16x64xf32> to vector<8x1x64xf32>
    %115 = arith.maximumf %113, %114 : vector<8x1x64xf32>
    %c1_123 = arith.constant 1 : index
    %c6 = arith.constant 6 : index
    %c0_124 = arith.constant 0 : index
    %116 = vector.load %arg12[%c1_123, %c6, %c0_124] : memref<10x10x64xf32, #tpu.memory_space<vmem>>, vector<8x1x64xf32>
    tpu.vector_store %arg12[%c1_123, %c6, %c0_124], %115 {strides = array<i32>} : memref<10x10x64xf32, #tpu.memory_space<vmem>>, vector<8x1x64xf32>,
    %117 = vector.extract_strided_slice %92 {offsets = [0, 12, 0], sizes = [8, 1, 64], strides = [1, 1, 1]} : vector<8x16x64xf32> to vector<8x1x64xf32>
    %118 = vector.extract_strided_slice %92 {offsets = [0, 13, 0], sizes = [8, 1, 64], strides = [1, 1, 1]} : vector<8x16x64xf32> to vector<8x1x64xf32>
    %119 = arith.maximumf %117, %118 : vector<8x1x64xf32>
    %c1_125 = arith.constant 1 : index
    %c7 = arith.constant 7 : index
    %c0_126 = arith.constant 0 : index
    %120 = vector.load %arg12[%c1_125, %c7, %c0_126] : memref<10x10x64xf32, #tpu.memory_space<vmem>>, vector<8x1x64xf32>
    tpu.vector_store %arg12[%c1_125, %c7, %c0_126], %119 {strides = array<i32>} : memref<10x10x64xf32, #tpu.memory_space<vmem>>, vector<8x1x64xf32>,
    %121 = vector.extract_strided_slice %92 {offsets = [0, 14, 0], sizes = [8, 1, 64], strides = [1, 1, 1]} : vector<8x16x64xf32> to vector<8x1x64xf32>
    %122 = vector.extract_strided_slice %92 {offsets = [0, 15, 0], sizes = [8, 1, 64], strides = [1, 1, 1]} : vector<8x16x64xf32> to vector<8x1x64xf32>
    %123 = arith.maximumf %121, %122 : vector<8x1x64xf32>
    %c1_127 = arith.constant 1 : index
    %c8_128 = arith.constant 8 : index
    %c0_129 = arith.constant 0 : index
    %124 = vector.load %arg12[%c1_127, %c8_128, %c0_129] : memref<10x10x64xf32, #tpu.memory_space<vmem>>, vector<8x1x64xf32>
    tpu.vector_store %arg12[%c1_127, %c8_128, %c0_129], %123 {strides = array<i32>} : memref<10x10x64xf32, #tpu.memory_space<vmem>>, vector<8x1x64xf32>,
    %c0_130 = arith.constant 0 : index
    %c0_131 = arith.constant 0 : index
    %c0_132 = arith.constant 0 : index
    %125 = vector.load %arg12[%c0_130, %c0_131, %c0_132] : memref<10x10x64xf32, #tpu.memory_space<vmem>>, vector<8x8x64xf32>
    %126 = vector.shape_cast %125 : vector<8x8x64xf32> to vector<64x64xf32>
    %c0_133 = arith.constant 0 : index
    %c0_134 = arith.constant 0 : index
    %127 = vector.load %arg16[%c0_133, %c0_134] : memref<64x576xf32, #tpu.memory_space<vmem>>, vector<64x64xf32>
    tpu.vector_store %arg16[%c0_133, %c0_134], %126 {strides = array<i32>} : memref<64x576xf32, #tpu.memory_space<vmem>>, vector<64x64xf32>,
    %c0_135 = arith.constant 0 : index
    %c1_136 = arith.constant 1 : index
    %c0_137 = arith.constant 0 : index
    %128 = vector.load %arg12[%c0_135, %c1_136, %c0_137] : memref<10x10x64xf32, #tpu.memory_space<vmem>>, vector<8x8x64xf32>
    %129 = vector.shape_cast %128 : vector<8x8x64xf32> to vector<64x64xf32>
    %c0_138 = arith.constant 0 : index
    %c64_139 = arith.constant 64 : index
    %130 = vector.load %arg16[%c0_138, %c64_139] : memref<64x576xf32, #tpu.memory_space<vmem>>, vector<64x64xf32>
    tpu.vector_store %arg16[%c0_138, %c64_139], %129 {strides = array<i32>} : memref<64x576xf32, #tpu.memory_space<vmem>>, vector<64x64xf32>,
    %c0_140 = arith.constant 0 : index
    %c2_141 = arith.constant 2 : index
    %c0_142 = arith.constant 0 : index
    %131 = vector.load %arg12[%c0_140, %c2_141, %c0_142] : memref<10x10x64xf32, #tpu.memory_space<vmem>>, vector<8x8x64xf32>
    %132 = vector.shape_cast %131 : vector<8x8x64xf32> to vector<64x64xf32>
    %c0_143 = arith.constant 0 : index
    %c128_144 = arith.constant 128 : index
    %133 = vector.load %arg16[%c0_143, %c128_144] : memref<64x576xf32, #tpu.memory_space<vmem>>, vector<64x64xf32>
    tpu.vector_store %arg16[%c0_143, %c128_144], %132 {strides = array<i32>} : memref<64x576xf32, #tpu.memory_space<vmem>>, vector<64x64xf32>,
    %c1_145 = arith.constant 1 : index
    %c0_146 = arith.constant 0 : index
    %c0_147 = arith.constant 0 : index
    %134 = vector.load %arg12[%c1_145, %c0_146, %c0_147] : memref<10x10x64xf32, #tpu.memory_space<vmem>>, vector<8x8x64xf32>
    %135 = vector.shape_cast %134 : vector<8x8x64xf32> to vector<64x64xf32>
    %c0_148 = arith.constant 0 : index
    %c192_149 = arith.constant 192 : index
    %136 = vector.load %arg16[%c0_148, %c192_149] : memref<64x576xf32, #tpu.memory_space<vmem>>, vector<64x64xf32>
    tpu.vector_store %arg16[%c0_148, %c192_149], %135 {strides = array<i32>} : memref<64x576xf32, #tpu.memory_space<vmem>>, vector<64x64xf32>,
    %c1_150 = arith.constant 1 : index
    %c1_151 = arith.constant 1 : index
    %c0_152 = arith.constant 0 : index
    %137 = vector.load %arg12[%c1_150, %c1_151, %c0_152] : memref<10x10x64xf32, #tpu.memory_space<vmem>>, vector<8x8x64xf32>
    %138 = vector.shape_cast %137 : vector<8x8x64xf32> to vector<64x64xf32>
    %c0_153 = arith.constant 0 : index
    %c256_154 = arith.constant 256 : index
    %139 = vector.load %arg16[%c0_153, %c256_154] : memref<64x576xf32, #tpu.memory_space<vmem>>, vector<64x64xf32>
    tpu.vector_store %arg16[%c0_153, %c256_154], %138 {strides = array<i32>} : memref<64x576xf32, #tpu.memory_space<vmem>>, vector<64x64xf32>,
    %c1_155 = arith.constant 1 : index
    %c2_156 = arith.constant 2 : index
    %c0_157 = arith.constant 0 : index
    %140 = vector.load %arg12[%c1_155, %c2_156, %c0_157] : memref<10x10x64xf32, #tpu.memory_space<vmem>>, vector<8x8x64xf32>
    %141 = vector.shape_cast %140 : vector<8x8x64xf32> to vector<64x64xf32>
    %c0_158 = arith.constant 0 : index
    %c320_159 = arith.constant 320 : index
    %142 = vector.load %arg16[%c0_158, %c320_159] : memref<64x576xf32, #tpu.memory_space<vmem>>, vector<64x64xf32>
    tpu.vector_store %arg16[%c0_158, %c320_159], %141 {strides = array<i32>} : memref<64x576xf32, #tpu.memory_space<vmem>>, vector<64x64xf32>,
    %c2_160 = arith.constant 2 : index
    %c0_161 = arith.constant 0 : index
    %c0_162 = arith.constant 0 : index
    %143 = vector.load %arg12[%c2_160, %c0_161, %c0_162] : memref<10x10x64xf32, #tpu.memory_space<vmem>>, vector<8x8x64xf32>
    %144 = vector.shape_cast %143 : vector<8x8x64xf32> to vector<64x64xf32>
    %c0_163 = arith.constant 0 : index
    %c384_164 = arith.constant 384 : index
    %145 = vector.load %arg16[%c0_163, %c384_164] : memref<64x576xf32, #tpu.memory_space<vmem>>, vector<64x64xf32>
    tpu.vector_store %arg16[%c0_163, %c384_164], %144 {strides = array<i32>} : memref<64x576xf32, #tpu.memory_space<vmem>>, vector<64x64xf32>,
    %c2_165 = arith.constant 2 : index
    %c1_166 = arith.constant 1 : index
    %c0_167 = arith.constant 0 : index
    %146 = vector.load %arg12[%c2_165, %c1_166, %c0_167] : memref<10x10x64xf32, #tpu.memory_space<vmem>>, vector<8x8x64xf32>
    %147 = vector.shape_cast %146 : vector<8x8x64xf32> to vector<64x64xf32>
    %c0_168 = arith.constant 0 : index
    %c448_169 = arith.constant 448 : index
    %148 = vector.load %arg16[%c0_168, %c448_169] : memref<64x576xf32, #tpu.memory_space<vmem>>, vector<64x64xf32>
    tpu.vector_store %arg16[%c0_168, %c448_169], %147 {strides = array<i32>} : memref<64x576xf32, #tpu.memory_space<vmem>>, vector<64x64xf32>,
    %c2_170 = arith.constant 2 : index
    %c2_171 = arith.constant 2 : index
    %c0_172 = arith.constant 0 : index
    %149 = vector.load %arg12[%c2_170, %c2_171, %c0_172] : memref<10x10x64xf32, #tpu.memory_space<vmem>>, vector<8x8x64xf32>
    %150 = vector.shape_cast %149 : vector<8x8x64xf32> to vector<64x64xf32>
    %c0_173 = arith.constant 0 : index
    %c512_174 = arith.constant 512 : index
    %151 = vector.load %arg16[%c0_173, %c512_174] : memref<64x576xf32, #tpu.memory_space<vmem>>, vector<64x64xf32>
    tpu.vector_store %arg16[%c0_173, %c512_174], %150 {strides = array<i32>} : memref<64x576xf32, #tpu.memory_space<vmem>>, vector<64x64xf32>,
    %c0_175 = arith.constant 0 : index
    %c0_176 = arith.constant 0 : index
    %152 = vector.load %arg16[%c0_175, %c0_176] : memref<64x576xf32, #tpu.memory_space<vmem>>, vector<64x576xf32>
    %c0_177 = arith.constant 0 : index
    %c0_178 = arith.constant 0 : index
    %153 = vector.load %arg6[%c0_177, %c0_178] : memref<576x64xf32, #tpu.memory_space<vmem>>, vector<576x64xf32>
    %cst_179 = arith.constant dense<0.000000e+00> : vector<64x64xf32>
    %154 = tpu.matmul %152, %153, %cst_179 {dimension_numbers = #tpu.dot_dimension_numbers<[1], [0], [0], [1], [0, 0, 1, 1], [], []>} : vector<64x576xf32>, vector<576x64xf32>, vector<64x64xf32> -> vector<64x64xf32>
    %c0_180 = arith.constant 0 : index
    %c0_181 = arith.constant 0 : index
    %155 = vector.load %arg7[%c0_180, %c0_181] : memref<1x64xf32, #tpu.memory_space<vmem>>, vector<1x64xf32>
    %156 = vector.broadcast %155 : vector<1x64xf32> to vector<64x64xf32>
    %157 = arith.addf %154, %156 : vector<64x64xf32>
    %cst_182 = arith.constant 0.000000e+00 : f32
    %158 = vector.broadcast %cst_182 : f32 to vector<64x64xf32>
    %159 = arith.maximumf %157, %158 : vector<64x64xf32>
    %160 = vector.shape_cast %159 : vector<64x64xf32> to vector<8x8x64xf32>
    %c1_183 = arith.constant 1 : index
    %c1_184 = arith.constant 1 : index
    %c0_185 = arith.constant 0 : index
    %161 = vector.load %arg13[%c1_183, %c1_184, %c0_185] : memref<10x10x64xf32, #tpu.memory_space<vmem>>, vector<8x8x64xf32>
    tpu.vector_store %arg13[%c1_183, %c1_184, %c0_185], %160 {strides = array<i32>} : memref<10x10x64xf32, #tpu.memory_space<vmem>>, vector<8x8x64xf32>,
    %c0_186 = arith.constant 0 : index
    %c0_187 = arith.constant 0 : index
    %c0_188 = arith.constant 0 : index
    %162 = vector.load %arg13[%c0_186, %c0_187, %c0_188] : memref<10x10x64xf32, #tpu.memory_space<vmem>>, vector<8x8x64xf32>
    %163 = vector.shape_cast %162 : vector<8x8x64xf32> to vector<64x64xf32>
    %c0_189 = arith.constant 0 : index
    %c0_190 = arith.constant 0 : index
    %164 = vector.load %arg16[%c0_189, %c0_190] : memref<64x576xf32, #tpu.memory_space<vmem>>, vector<64x64xf32>
    tpu.vector_store %arg16[%c0_189, %c0_190], %163 {strides = array<i32>} : memref<64x576xf32, #tpu.memory_space<vmem>>, vector<64x64xf32>,
    %c0_191 = arith.constant 0 : index
    %c1_192 = arith.constant 1 : index
    %c0_193 = arith.constant 0 : index
    %165 = vector.load %arg13[%c0_191, %c1_192, %c0_193] : memref<10x10x64xf32, #tpu.memory_space<vmem>>, vector<8x8x64xf32>
    %166 = vector.shape_cast %165 : vector<8x8x64xf32> to vector<64x64xf32>
    %c0_194 = arith.constant 0 : index
    %c64_195 = arith.constant 64 : index
    %167 = vector.load %arg16[%c0_194, %c64_195] : memref<64x576xf32, #tpu.memory_space<vmem>>, vector<64x64xf32>
    tpu.vector_store %arg16[%c0_194, %c64_195], %166 {strides = array<i32>} : memref<64x576xf32, #tpu.memory_space<vmem>>, vector<64x64xf32>,
    %c0_196 = arith.constant 0 : index
    %c2_197 = arith.constant 2 : index
    %c0_198 = arith.constant 0 : index
    %168 = vector.load %arg13[%c0_196, %c2_197, %c0_198] : memref<10x10x64xf32, #tpu.memory_space<vmem>>, vector<8x8x64xf32>
    %169 = vector.shape_cast %168 : vector<8x8x64xf32> to vector<64x64xf32>
    %c0_199 = arith.constant 0 : index
    %c128_200 = arith.constant 128 : index
    %170 = vector.load %arg16[%c0_199, %c128_200] : memref<64x576xf32, #tpu.memory_space<vmem>>, vector<64x64xf32>
    tpu.vector_store %arg16[%c0_199, %c128_200], %169 {strides = array<i32>} : memref<64x576xf32, #tpu.memory_space<vmem>>, vector<64x64xf32>,
    %c1_201 = arith.constant 1 : index
    %c0_202 = arith.constant 0 : index
    %c0_203 = arith.constant 0 : index
    %171 = vector.load %arg13[%c1_201, %c0_202, %c0_203] : memref<10x10x64xf32, #tpu.memory_space<vmem>>, vector<8x8x64xf32>
    %172 = vector.shape_cast %171 : vector<8x8x64xf32> to vector<64x64xf32>
    %c0_204 = arith.constant 0 : index
    %c192_205 = arith.constant 192 : index
    %173 = vector.load %arg16[%c0_204, %c192_205] : memref<64x576xf32, #tpu.memory_space<vmem>>, vector<64x64xf32>
    tpu.vector_store %arg16[%c0_204, %c192_205], %172 {strides = array<i32>} : memref<64x576xf32, #tpu.memory_space<vmem>>, vector<64x64xf32>,
    %c1_206 = arith.constant 1 : index
    %c1_207 = arith.constant 1 : index
    %c0_208 = arith.constant 0 : index
    %174 = vector.load %arg13[%c1_206, %c1_207, %c0_208] : memref<10x10x64xf32, #tpu.memory_space<vmem>>, vector<8x8x64xf32>
    %175 = vector.shape_cast %174 : vector<8x8x64xf32> to vector<64x64xf32>
    %c0_209 = arith.constant 0 : index
    %c256_210 = arith.constant 256 : index
    %176 = vector.load %arg16[%c0_209, %c256_210] : memref<64x576xf32, #tpu.memory_space<vmem>>, vector<64x64xf32>
    tpu.vector_store %arg16[%c0_209, %c256_210], %175 {strides = array<i32>} : memref<64x576xf32, #tpu.memory_space<vmem>>, vector<64x64xf32>,
    %c1_211 = arith.constant 1 : index
    %c2_212 = arith.constant 2 : index
    %c0_213 = arith.constant 0 : index
    %177 = vector.load %arg13[%c1_211, %c2_212, %c0_213] : memref<10x10x64xf32, #tpu.memory_space<vmem>>, vector<8x8x64xf32>
    %178 = vector.shape_cast %177 : vector<8x8x64xf32> to vector<64x64xf32>
    %c0_214 = arith.constant 0 : index
    %c320_215 = arith.constant 320 : index
    %179 = vector.load %arg16[%c0_214, %c320_215] : memref<64x576xf32, #tpu.memory_space<vmem>>, vector<64x64xf32>
    tpu.vector_store %arg16[%c0_214, %c320_215], %178 {strides = array<i32>} : memref<64x576xf32, #tpu.memory_space<vmem>>, vector<64x64xf32>,
    %c2_216 = arith.constant 2 : index
    %c0_217 = arith.constant 0 : index
    %c0_218 = arith.constant 0 : index
    %180 = vector.load %arg13[%c2_216, %c0_217, %c0_218] : memref<10x10x64xf32, #tpu.memory_space<vmem>>, vector<8x8x64xf32>
    %181 = vector.shape_cast %180 : vector<8x8x64xf32> to vector<64x64xf32>
    %c0_219 = arith.constant 0 : index
    %c384_220 = arith.constant 384 : index
    %182 = vector.load %arg16[%c0_219, %c384_220] : memref<64x576xf32, #tpu.memory_space<vmem>>, vector<64x64xf32>
    tpu.vector_store %arg16[%c0_219, %c384_220], %181 {strides = array<i32>} : memref<64x576xf32, #tpu.memory_space<vmem>>, vector<64x64xf32>,
    %c2_221 = arith.constant 2 : index
    %c1_222 = arith.constant 1 : index
    %c0_223 = arith.constant 0 : index
    %183 = vector.load %arg13[%c2_221, %c1_222, %c0_223] : memref<10x10x64xf32, #tpu.memory_space<vmem>>, vector<8x8x64xf32>
    %184 = vector.shape_cast %183 : vector<8x8x64xf32> to vector<64x64xf32>
    %c0_224 = arith.constant 0 : index
    %c448_225 = arith.constant 448 : index
    %185 = vector.load %arg16[%c0_224, %c448_225] : memref<64x576xf32, #tpu.memory_space<vmem>>, vector<64x64xf32>
    tpu.vector_store %arg16[%c0_224, %c448_225], %184 {strides = array<i32>} : memref<64x576xf32, #tpu.memory_space<vmem>>, vector<64x64xf32>,
    %c2_226 = arith.constant 2 : index
    %c2_227 = arith.constant 2 : index
    %c0_228 = arith.constant 0 : index
    %186 = vector.load %arg13[%c2_226, %c2_227, %c0_228] : memref<10x10x64xf32, #tpu.memory_space<vmem>>, vector<8x8x64xf32>
    %187 = vector.shape_cast %186 : vector<8x8x64xf32> to vector<64x64xf32>
    %c0_229 = arith.constant 0 : index
    %c512_230 = arith.constant 512 : index
    %188 = vector.load %arg16[%c0_229, %c512_230] : memref<64x576xf32, #tpu.memory_space<vmem>>, vector<64x64xf32>
    tpu.vector_store %arg16[%c0_229, %c512_230], %187 {strides = array<i32>} : memref<64x576xf32, #tpu.memory_space<vmem>>, vector<64x64xf32>,
    %c0_231 = arith.constant 0 : index
    %c0_232 = arith.constant 0 : index
    %189 = vector.load %arg16[%c0_231, %c0_232] : memref<64x576xf32, #tpu.memory_space<vmem>>, vector<64x576xf32>
    %c0_233 = arith.constant 0 : index
    %c0_234 = arith.constant 0 : index
    %190 = vector.load %arg8[%c0_233, %c0_234] : memref<576x128xf32, #tpu.memory_space<vmem>>, vector<576x128xf32>
    %cst_235 = arith.constant dense<0.000000e+00> : vector<64x128xf32>
    %191 = tpu.matmul %189, %190, %cst_235 {dimension_numbers = #tpu.dot_dimension_numbers<[1], [0], [0], [1], [0, 0, 1, 1], [], []>} : vector<64x576xf32>, vector<576x128xf32>, vector<64x128xf32> -> vector<64x128xf32>
    %c0_236 = arith.constant 0 : index
    %c0_237 = arith.constant 0 : index
    %192 = vector.load %arg9[%c0_236, %c0_237] : memref<1x128xf32, #tpu.memory_space<vmem>>, vector<1x128xf32>
    %193 = vector.broadcast %192 : vector<1x128xf32> to vector<64x128xf32>
    %194 = arith.addf %191, %193 : vector<64x128xf32>
    %cst_238 = arith.constant 0.000000e+00 : f32
    %195 = vector.broadcast %cst_238 : f32 to vector<64x128xf32>
    %196 = arith.subf %195, %194 : vector<64x128xf32>
    %197 = math.exp %196 : vector<64x128xf32>
    %cst_239 = arith.constant 1.000000e+00 : f32
    %198 = vector.broadcast %cst_239 : f32 to vector<64x128xf32>
    %199 = arith.addf %198, %197 : vector<64x128xf32>
    %cst_240 = arith.constant 1.000000e+00 : f32
    %200 = vector.broadcast %cst_240 : f32 to vector<64x128xf32>
    %201 = arith.divf %200, %199 : vector<64x128xf32>
    %c0_241 = arith.constant 0 : index
    %c0_242 = arith.constant 0 : index
    %c0_243 = arith.constant 0 : index
    %202 = vector.load %arg10[%c0_241, %c0_242, %c0_243] : memref<1x64x128xf32, #tpu.memory_space<vmem>>, vector<1x64x128xf32>
    %203 = vector.shape_cast %202 : vector<1x64x128xf32> to vector<64x128xf32>
    %204 = vector.shape_cast %201 : vector<64x128xf32> to vector<1x64x128xf32>
    tpu.vector_store %arg10[%c0_241, %c0_242, %c0_243], %204 {strides = array<i32>} : memref<1x64x128xf32, #tpu.memory_space<vmem>>, vector<1x64x128xf32>,
    return
  }
  func.func @transform_0(%arg0: i32) -> (i32, i32, i32, i32) {
    %c0_i32 = arith.constant 0 : i32
    %c0_i32_0 = arith.constant 0 : i32
    %c0_i32_1 = arith.constant 0 : i32
    %c0_i32_2 = arith.constant 0 : i32
    return %arg0, %c0_i32, %c0_i32_0, %c0_i32_1 : i32, i32, i32, i32
  }
  func.func @transform_1(%arg0: i32) -> (i32, i32) {
    %c0_i32 = arith.constant 0 : i32
    %c0_i32_0 = arith.constant 0 : i32
    %c0_i32_1 = arith.constant 0 : i32
    return %c0_i32, %c0_i32_0 : i32, i32
  }
  func.func @transform_2(%arg0: i32) -> (i32, i32) {
    %c0_i32 = arith.constant 0 : i32
    %c0_i32_0 = arith.constant 0 : i32
    %c0_i32_1 = arith.constant 0 : i32
    return %c0_i32, %c0_i32_0 : i32, i32
  }
  func.func @transform_3(%arg0: i32) -> (i32, i32) {
    %c0_i32 = arith.constant 0 : i32
    %c0_i32_0 = arith.constant 0 : i32
    %c0_i32_1 = arith.constant 0 : i32
    return %c0_i32, %c0_i32_0 : i32, i32
  }
  func.func @transform_4(%arg0: i32) -> (i32, i32) {
    %c0_i32 = arith.constant 0 : i32
    %c0_i32_0 = arith.constant 0 : i32
    %c0_i32_1 = arith.constant 0 : i32
    return %c0_i32, %c0_i32_0 : i32, i32
  }
  func.func @transform_5(%arg0: i32) -> (i32, i32) {
    %c0_i32 = arith.constant 0 : i32
    %c0_i32_0 = arith.constant 0 : i32
    %c0_i32_1 = arith.constant 0 : i32
    return %c0_i32, %c0_i32_0 : i32, i32
  }
  func.func @transform_6(%arg0: i32) -> (i32, i32) {
    %c0_i32 = arith.constant 0 : i32
    %c0_i32_0 = arith.constant 0 : i32
    %c0_i32_1 = arith.constant 0 : i32
    return %c0_i32, %c0_i32_0 : i32, i32
  }
  func.func @transform_7(%arg0: i32) -> (i32, i32) {
    %c0_i32 = arith.constant 0 : i32
    %c0_i32_0 = arith.constant 0 : i32
    %c0_i32_1 = arith.constant 0 : i32
    return %c0_i32, %c0_i32_0 : i32, i32
  }
  func.func @transform_8(%arg0: i32) -> (i32, i32) {
    %c0_i32 = arith.constant 0 : i32
    %c0_i32_0 = arith.constant 0 : i32
    %c0_i32_1 = arith.constant 0 : i32
    return %c0_i32, %c0_i32_0 : i32, i32
  }
  func.func @transform_9(%arg0: i32) -> (i32, i32, i32) {
    %c0_i32 = arith.constant 0 : i32
    %c0_i32_0 = arith.constant 0 : i32
    %c0_i32_1 = arith.constant 0 : i32
    return %arg0, %c0_i32, %c0_i32_0 : i32, i32, i32
  }
}

</mosaic_0001>

<llo_original>
// kernel: caries_segunet_forward.1
$region0: #{caries_segunet_forward.1}
  #allocation0 [shape = 'u32[]', space=smem, size = 0x4, offset = 0x4, fixed_abs, tag = 'smem constant byte address 0x4 - core index']
  #allocation1 [shape = 'u32[144,128]{1,0:T(1,128)}', space=vmem, size = 0x12000, scoped, tag = 'internal scratch']
  #allocation2 [shape = 'f32[18,18,64]{2,1,0:T(8,128)}', space=vmem, size = 0x36000, scoped, tag = 'scratch operand']
  #allocation3 [shape = 'f32[10,10,64]{2,1,0:T(8,128)}', space=vmem, size = 0x14000, scoped, tag = 'scratch operand']
  #allocation4 [shape = 'f32[10,10,64]{2,1,0:T(8,128)}', space=vmem, size = 0x14000, scoped, tag = 'scratch operand']
  #allocation5 [shape = 'f32[256,36]{1,0:T(8,128)}', space=vmem, size = 0x20000, scoped, tag = 'scratch operand']
  #allocation6 [shape = 'f32[256,576]{1,0:T(8,128)}', space=vmem, size = 0xa0000, scoped, tag = 'scratch operand']
  #allocation7 [shape = 'f32[64,576]{1,0:T(8,128)}', space=vmem, size = 0x28000, scoped, tag = 'scratch operand']
  %s0 = inlined_call_operand.vmem [shape: f32[2,18,18,4], index: 0, kind: input, shape index: {}]
  %s1 = inlined_call_operand.vmem [shape: f32[36,64], index: 1, kind: input, shape index: {}]
  %s2 = inlined_call_operand.vmem [shape: f32[1,64], index: 2, kind: input, shape index: {}]
  %s3 = inlined_call_operand.vmem [shape: f32[576,64], index: 3, kind: input, shape index: {}]
  %s4 = inlined_call_operand.vmem [shape: f32[1,64], index: 4, kind: input, shape index: {}]
  %s5 = inlined_call_operand.vmem [shape: f32[576,64], index: 5, kind: input, shape index: {}]
  %s6 = inlined_call_operand.vmem [shape: f32[1,64], index: 6, kind: input, shape index: {}]
  %s7 = inlined_call_operand.vmem [shape: f32[576,128], index: 7, kind: input, shape index: {}]
  %s8 = inlined_call_operand.vmem [shape: f32[1,128], index: 8, kind: input, shape index: {}]
  %s9 = inlined_call_operand.vmem [shape: f32[2,64,128], index: 9, kind: output, shape index: {}]
  %s10 = sld [smem:[#allocation0]]
  $region69: #{caries_segunet_forward.1} parent=0
    _
  %s12 = ssub.s32 1, %s10
  %s13 = scalar_select 0, %s12, %s10
  loop: start=0, step=1, limit=4
  $region2: #{caries_segunet_forward.1} parent=0 // loop_pre_header
    _
  $region3: #{caries_segunet_forward.1} parent=0 // loop_header
    %s15 = sphi 0, %s19
    %p16 = scmp.ge.s32.totalorder %s15, 4
    %s25 = sphi 0, %s27
    %s28 = sphi 0, %s25
    %s29 = sphi 0, %s28
    %s45 = sphi 0, %s29
    %s49 = sphi 0, %s49
    %s51 = sphi 0, %s49
    %s52 = sphi 0, %s51
    %s66 = sphi 0, %s52
    %s70 = sphi 0, %s70
    %s72 = sphi 0, %s70
    %s73 = sphi 0, %s72
    %s87 = sphi 0, %s73
    %s91 = sphi 0, %s91
    %s93 = sphi 0, %s91
    %s94 = sphi 0, %s93
    %s108 = sphi 0, %s94
    %s112 = sphi 0, %s112
    %s114 = sphi 0, %s112
    %s115 = sphi 0, %s114
    %s129 = sphi 0, %s115
    %s133 = sphi 0, %s133
    %s135 = sphi 0, %s133
    %s136 = sphi 0, %s135
    %s150 = sphi 0, %s136
    %s154 = sphi 0, %s154
    %s156 = sphi 0, %s154
    %s157 = sphi 0, %s156
    %s171 = sphi 0, %s157
    %s175 = sphi 0, %s175
    %s177 = sphi 0, %s175
    %s178 = sphi 0, %s177
    %s192 = sphi 0, %s178
    %s196 = sphi 0, %s196
    %s198 = sphi 0, %s196
    %s199 = sphi 0, %s198
    %s213 = sphi 0, %s199
    %s219 = sphi 0, %s221
    %s222 = sphi 0, %s219
    %s223 = sphi 0, %s222
    %s239 = sphi 0, %s223
  $region4: #{caries_segunet_forward.1} parent=0 // loop_header_branch
    %18 = sbr.rel (%p16) target = $region8
  $region5: #{caries_segunet_forward.1} parent=0 // loop_body
    %s20 = ssub.s32 %s15, 1
    %s21 = ssub.s32 %s15, 2
    %s22 = sadd.s32 %s15, 1
    %s23 = ssub.s32 %s15, %s22
    %p24 = scmp.eq.s32.totalorder %s23, 0
    %s26 = sadd.s32 %s25, 1
    %s27 = scalar_select %p24, %s25, %s26
    %p30 = pneg %p24
    %p31 = scmp.eq.s32.totalorder %s15, 1
    %p32 = por %p30, %p31
    %p33 = scmp.ne.s32.totalorder %s25, %s28
    %p34 = scmp.eq.s32.totalorder %s15, 0
    %p35 = por %p33, %p34
    %p36 = scmp.ne.s32.totalorder %s25, %s28
    %p37 = scmp.eq.s32.totalorder %s20, 1
    %p38 = por %p36, %p37
    %p39 = scmp.ne.s32.totalorder %s28, %s29
    %p40 = scmp.eq.s32.totalorder %s20, 0
    %p41 = por %p39, %p40
    %p42 = scmp.ne.s32.totalorder %s28, %s29
    %p43 = scmp.eq.s32.totalorder %s21, 1
    %p44 = por %p42, %p43
    %p46 = scmp.ne.s32.totalorder %s29, %s45
    %p47 = scmp.eq.s32.totalorder %s21, 0
    %p48 = por %p46, %p47
    %s50 = sadd.s32 %s49, 1
    %p53 = scmp.eq.s32.totalorder %s15, 1
    %p54 = scmp.ne.s32.totalorder %s49, %s51
    %p55 = scmp.eq.s32.totalorder %s15, 0
    %p56 = por %p54, %p55
    %p57 = scmp.ne.s32.totalorder %s49, %s51
    %p58 = scmp.eq.s32.totalorder %s20, 1
    %p59 = por %p57, %p58
    %p60 = scmp.ne.s32.totalorder %s51, %s52
    %p61 = scmp.eq.s32.totalorder %s20, 0
    %p62 = por %p60, %p61
    %p63 = scmp.ne.s32.totalorder %s51, %s52
    %p64 = scmp.eq.s32.totalorder %s21, 1
    %p65 = por %p63, %p64
    %p67 = scmp.ne.s32.totalorder %s52, %s66
    %p68 = scmp.eq.s32.totalorder %s21, 0
    %p69 = por %p67, %p68
    %s71 = sadd.s32 %s70, 1
    %p74 = scmp.eq.s32.totalorder %s15, 1
    %p75 = scmp.ne.s32.totalorder %s70, %s72
    %p76 = scmp.eq.s32.totalorder %s15, 0
    %p77 = por %p75, %p76
    %p78 = scmp.ne.s32.totalorder %s70, %s72
    %p79 = scmp.eq.s32.totalorder %s20, 1
    %p80 = por %p78, %p79
    %p81 = scmp.ne.s32.totalorder %s72, %s73
    %p82 = scmp.eq.s32.totalorder %s20, 0
    %p83 = por %p81, %p82
    %p84 = scmp.ne.s32.totalorder %s72, %s73
    %p85 = scmp.eq.s32.totalorder %s21, 1
    %p86 = por %p84, %p85
    %p88 = scmp.ne.s32.totalorder %s73, %s87
    %p89 = scmp.eq.s32.totalorder %s21, 0
    %p90 = por %p88, %p89
    %s92 = sadd.s32 %s91, 1
    %p95 = scmp.eq.s32.totalorder %s15, 1
    %p96 = scmp.ne.s32.totalorder %s91, %s93
    %p97 = scmp.eq.s32.totalorder %s15, 0
    %p98 = por %p96, %p97
    %p99 = scmp.ne.s32.totalorder %s91, %s93
    %p100 = scmp.eq.s32.totalorder %s20, 1
    %p101 = por %p99, %p100
    %p102 = scmp.ne.s32.totalorder %s93, %s94
    %p103 = scmp.eq.s32.totalorder %s20, 0
    %p104 = por %p102, %p103
    %p105 = scmp.ne.s32.totalorder %s93, %s94
    %p106 = scmp.eq.s32.totalorder %s21, 1
    %p107 = por %p105, %p106
    %p109 = scmp.ne.s32.totalorder %s94, %s108
    %p110 = scmp.eq.s32.totalorder %s21, 0
    %p111 = por %p109, %p110
    %s113 = sadd.s32 %s112, 1
    %p116 = scmp.eq.s32.totalorder %s15, 1
    %p117 = scmp.ne.s32.totalorder %s112, %s114
    %p118 = scmp.eq.s32.totalorder %s15, 0
    %p119 = por %p117, %p118
    %p120 = scmp.ne.s32.totalorder %s112, %s114
    %p121 = scmp.eq.s32.totalorder %s20, 1
    %p122 = por %p120, %p121
    %p123 = scmp.ne.s32.totalorder %s114, %s115
    %p124 = scmp.eq.s32.totalorder %s20, 0
    %p125 = por %p123, %p124
    %p126 = scmp.ne.s32.totalorder %s114, %s115
    %p127 = scmp.eq.s32.totalorder %s21, 1
    %p128 = por %p126, %p127
    %p130 = scmp.ne.s32.totalorder %s115, %s129
    %p131 = scmp.eq.s32.totalorder %s21, 0
    %p132 = por %p130, %p131
    %s134 = sadd.s32 %s133, 1
    %p137 = scmp.eq.s32.totalorder %s15, 1
    %p138 = scmp.ne.s32.totalorder %s133, %s135
    %p139 = scmp.eq.s32.totalorder %s15, 0
    %p140 = por %p138, %p139
    %p141 = scmp.ne.s32.totalorder %s133, %s135
    %p142 = scmp.eq.s32.totalorder %s20, 1
    %p143 = por %p141, %p142
    %p144 = scmp.ne.s32.totalorder %s135, %s136
    %p145 = scmp.eq.s32.totalorder %s20, 0
    %p146 = por %p144, %p145
    %p147 = scmp.ne.s32.totalorder %s135, %s136
    %p148 = scmp.eq.s32.totalorder %s21, 1
    %p149 = por %p147, %p148
    %p151 = scmp.ne.s32.totalorder %s136, %s150
    %p152 = scmp.eq.s32.totalorder %s21, 0
    %p153 = por %p151, %p152
    %s155 = sadd.s32 %s154, 1
    %p158 = scmp.eq.s32.totalorder %s15, 1
    %p159 = scmp.ne.s32.totalorder %s154, %s156
    %p160 = scmp.eq.s32.totalorder %s15, 0
    %p161 = por %p159, %p160
    %p162 = scmp.ne.s32.totalorder %s154, %s156
    %p163 = scmp.eq.s32.totalorder %s20, 1
    %p164 = por %p162, %p163
    %p165 = scmp.ne.s32.totalorder %s156, %s157
    %p166 = scmp.eq.s32.totalorder %s20, 0
    %p167 = por %p165, %p166
    %p168 = scmp.ne.s32.totalorder %s156, %s157
    %p169 = scmp.eq.s32.totalorder %s21, 1
    %p170 = por %p168, %p169
    %p172 = scmp.ne.s32.totalorder %s157, %s171
    %p173 = scmp.eq.s32.totalorder %s21, 0
    %p174 = por %p172, %p173
    %s176 = sadd.s32 %s175, 1
    %p179 = scmp.eq.s32.totalorder %s15, 1
    %p180 = scmp.ne.s32.totalorder %s175, %s177
    %p181 = scmp.eq.s32.totalorder %s15, 0
    %p182 = por %p180, %p181
    %p183 = scmp.ne.s32.totalorder %s175, %s177
    %p184 = scmp.eq.s32.totalorder %s20, 1
    %p185 = por %p183, %p184
    %p186 = scmp.ne.s32.totalorder %s177, %s178
    %p187 = scmp.eq.s32.totalorder %s20, 0
    %p188 = por %p186, %p187
    %p189 = scmp.ne.s32.totalorder %s177, %s178
    %p190 = scmp.eq.s32.totalorder %s21, 1
    %p191 = por %p189, %p190
    %p193 = scmp.ne.s32.totalorder %s178, %s192
    %p194 = scmp.eq.s32.totalorder %s21, 0
    %p195 = por %p193, %p194
    %s197 = sadd.s32 %s196, 1
    %p200 = scmp.eq.s32.totalorder %s15, 1
    %p201 = scmp.ne.s32.totalorder %s196, %s198
    %p202 = scmp.eq.s32.totalorder %s15, 0
    %p203 = por %p201, %p202
    %p204 = scmp.ne.s32.totalorder %s196, %s198
    %p205 = scmp.eq.s32.totalorder %s20, 1
    %p206 = por %p204, %p205
    %p207 = scmp.ne.s32.totalorder %s198, %s199
    %p208 = scmp.eq.s32.totalorder %s20, 0
    %p209 = por %p207, %p208
    %p210 = scmp.ne.s32.totalorder %s198, %s199
    %p211 = scmp.eq.s32.totalorder %s21, 1
    %p212 = por %p210, %p211
    %p214 = scmp.ne.s32.totalorder %s199, %s213
    %p215 = scmp.eq.s32.totalorder %s21, 0
    %p216 = por %p214, %p215
    %s217 = ssub.s32 %s15, %s22
    %p218 = scmp.eq.s32.totalorder %s217, 0
    %s220 = sadd.s32 %s219, 1
    %s221 = scalar_select %p218, %s219, %s220
    %p224 = pneg %p218
    %p225 = scmp.eq.s32.totalorder %s15, 1
    %p226 = por %p224, %p225
    %p227 = scmp.ne.s32.totalorder %s219, %s222
    %p228 = scmp.eq.s32.totalorder %s15, 0
    %p229 = por %p227, %p228
    %p230 = scmp.ne.s32.totalorder %s219, %s222
    %p231 = scmp.eq.s32.totalorder %s20, 1
    %p232 = por %p230, %p231
    %p233 = scmp.ne.s32.totalorder %s222, %s223
    %p234 = scmp.eq.s32.totalorder %s20, 0
    %p235 = por %p233, %p234
    %p236 = scmp.ne.s32.totalorder %s222, %s223
    %p237 = scmp.eq.s32.totalorder %s21, 1
    %p238 = por %p236, %p237
    %p240 = scmp.ne.s32.totalorder %s223, %s239
    %p241 = scmp.eq.s32.totalorder %s21, 0
    %p242 = por %p240, %p241
    %p243 = scmp.le.s32.totalorder 1, %s15
    %p244 = scmp.lt.s32.totalorder %s15, 3
    %p245 = pnand %p243, %p244
    %p246 = pneg %p245
    // Predicated region
    $region9: #{caries_segunet_forward.1} parent=5 // pred_check
      _
    $region10: #{caries_segunet_forward.1} parent=5 // pred_check_branch
      %248 = sbr.rel (%p245) target = $region12
    $region11: #{caries_segunet_forward.1} parent=5 // pred_region
      %s249 = ssub.s32 %s15, 1
      // Predicated region
      $region13: #{caries_segunet_forward.1} parent=11 // pred_check
        %p250 = pneg %p62
      $region14: #{caries_segunet_forward.1} parent=11 // pred_check_branch
        %252 = sbr.rel (%p250) target = $region16
      $region15: #{caries_segunet_forward.1} parent=11 // pred_region
        _
      $region16: #{caries_segunet_forward.1} parent=11 // pred_fallthru
        _
      // Predicated region
      $region17: #{caries_segunet_forward.1} parent=11 // pred_check
        %p253 = pneg %p83
      $region18: #{caries_segunet_forward.1} parent=11 // pred_check_branch
        %255 = sbr.rel (%p253) target = $region20
      $region19: #{caries_segunet_forward.1} parent=11 // pred_region
        _
      $region20: #{caries_segunet_forward.1} parent=11 // pred_fallthru
        _
      // Predicated region
      $region21: #{caries_segunet_forward.1} parent=11 // pred_check
        %p256 = pneg %p104
      $region22: #{caries_segunet_forward.1} parent=11 // pred_check_branch
        %258 = sbr.rel (%p256) target = $region24
      $region23: #{caries_segunet_forward.1} parent=11 // pred_region
        _
      $region24: #{caries_segunet_forward.1} parent=11 // pred_fallthru
        _
      // Predicated region
      $region25: #{caries_segunet_forward.1} parent=11 // pred_check
        %p259 = pneg %p125
      $region26: #{caries_segunet_forward.1} parent=11 // pred_check_branch
        %261 = sbr.rel (%p259) target = $region28
      $region27: #{caries_segunet_forward.1} parent=11 // pred_region
        _
      $region28: #{caries_segunet_forward.1} parent=11 // pred_fallthru
        _
      // Predicated region
      $region29: #{caries_segunet_forward.1} parent=11 // pred_check
        %p262 = pneg %p146
      $region30: #{caries_segunet_forward.1} parent=11 // pred_check_branch
        %264 = sbr.rel (%p262) target = $region32
      $region31: #{caries_segunet_forward.1} parent=11 // pred_region
        _
      $region32: #{caries_segunet_forward.1} parent=11 // pred_fallthru
        _
      // Predicated region
      $region33: #{caries_segunet_forward.1} parent=11 // pred_check
        %p265 = pneg %p167
      $region34: #{caries_segunet_forward.1} parent=11 // pred_check_branch
        %267 = sbr.rel (%p265) target = $region36
      $region35: #{caries_segunet_forward.1} parent=11 // pred_region
        _
      $region36: #{caries_segunet_forward.1} parent=11 // pred_fallthru
        _
      // Predicated region
      $region37: #{caries_segunet_forward.1} parent=11 // pred_check
        %p268 = pneg %p188
      $region38: #{caries_segunet_forward.1} parent=11 // pred_check_branch
        %270 = sbr.rel (%p268) target = $region40
      $region39: #{caries_segunet_forward.1} parent=11 // pred_region
        _
      $region40: #{caries_segunet_forward.1} parent=11 // pred_fallthru
        _
      // Predicated region
      $region41: #{caries_segunet_forward.1} parent=11 // pred_check
        %p271 = pneg %p209
      $region42: #{caries_segunet_forward.1} parent=11 // pred_check_branch
        %273 = sbr.rel (%p271) target = $region44
      $region43: #{caries_segunet_forward.1} parent=11 // pred_region
        _
      $region44: #{caries_segunet_forward.1} parent=11 // pred_fallthru
        _
    $region12: #{caries_segunet_forward.1} parent=5 // pred_fallthru
      _
    %p274 = scmp.lt.s32.totalorder %s15, 2
    // Predicated region
    $region45: #{caries_segunet_forward.1} parent=5 // pred_check
      %p275 = pneg %p274
    $region46: #{caries_segunet_forward.1} parent=5 // pred_check_branch
      %277 = sbr.rel (%p275) target = $region48
    $region47: #{caries_segunet_forward.1} parent=5 // pred_region
      // Predicated region
      $region49: #{caries_segunet_forward.1} parent=47 // pred_check
        %p278 = pneg %p35
      $region50: #{caries_segunet_forward.1} parent=47 // pred_check_branch
        %280 = sbr.rel (%p278) target = $region52
      $region51: #{caries_segunet_forward.1} parent=47 // pred_region
        %p281 = scmp.lt.s32.totalorder %s15, 1
        %s282 = scalar_select %p281, %s15, 1
        %s283 = smul.addr %s282, 54
        %s284 = smul.addr %s283, 8
        %s285 = scalar_lea.vmem %s0, %s284
      $region52: #{caries_segunet_forward.1} parent=47 // pred_fallthru
        _
    $region48: #{caries_segunet_forward.1} parent=5 // pred_fallthru
      _
    %p286 = scmp.le.s32.totalorder 1, %s15
    %p287 = scmp.lt.s32.totalorder %s15, 3
    %p288 = pnand %p286, %p287
    %p289 = pneg %p288
    // Predicated region
    $region53: #{caries_segunet_forward.1} parent=5 // pred_check
      _
    $region54: #{caries_segunet_forward.1} parent=5 // pred_check_branch
      %291 = sbr.rel (%p288) target = $region56
    $region55: #{caries_segunet_forward.1} parent=5 // pred_region
      %s292 = ssub.s32 %s15, 1
      %p293 = scmp.lt.s32.totalorder %s20, 1
      %s294 = scalar_select %p293, %s20, 1
      %s295 = smul.addr %s294, 54
      %s296 = smul.addr %s295, 8
      %s297 = scalar_lea.vmem %s0, %s296
      %p298 = pneg %p41
      %p299 = pneg %p38
      %p300 = pneg %p62
      %p301 = pneg %p59
      %p302 = pneg %p83
      %p303 = pneg %p80
      %p304 = pneg %p104
      %p305 = pneg %p101
      %p306 = pneg %p125
      %p307 = pneg %p122
      %p308 = pneg %p146
      %p309 = pneg %p143
      %p310 = pneg %p167
      %p311 = pneg %p164
      %p312 = pneg %p188
      %p313 = pneg %p185
      %p314 = pneg %p209
      %p315 = pneg %p206
      %p316 = pneg %p235
      %p317 = pneg %p232
      %p318 = scmp.lt.s32.totalorder %s20, 1
      %s319 = scalar_select %p318, %s20, 1
      %s320 = smul.addr %s319, 8
      %s321 = smul.addr %s320, 8
      %s322 = scalar_lea.vmem %s9, %s321
      %p323 = scmp.lt.s32.totalorder %s20, 1
      %s324 = scalar_select %p323, %s20, 1
      %s325 = smul.addr %s324, 54
      %s326 = smul.addr %s325, 8
      %s327 = scalar_lea.vmem %s0, %s326
      %p328 = scmp.lt.s32.totalorder %s20, 1
      %s329 = scalar_select %p328, %s20, 1
      %s330 = smul.addr %s329, 8
      %s331 = smul.addr %s330, 8
      %s332 = scalar_lea.vmem %s9, %s331
      %vm333 = vcmask 523264
      %334 = vst.msk [vmem:[#allocation2] sm:$0xff] %vm333, 0.0
      %335 = vst.msk [vmem:[#allocation2 + $0x8] sm:$0xff] %vm333, 0.0
      %vm336 = vcmask 517120
      %337 = vst.msk [vmem:[#allocation2 + $0x10] sm:$0x3] %vm336, 0.0
      %338 = vst.msk [vmem:[#allocation2 + $0x18] sm:$0xff] %vm333, 0.0
      %339 = vst.msk [vmem:[#allocation2 + $0x20] sm:$0xff] %vm333, 0.0
      %340 = vst.msk [vmem:[#allocation2 + $0x28] sm:$0x3] %vm336, 0.0
      %341 = vst.msk [vmem:[#allocation2 + $0x30] sm:$0xff] %vm333, 0.0
      %342 = vst.msk [vmem:[#allocation2 + $0x38] sm:$0xff] %vm333, 0.0
      %343 = vst.msk [vmem:[#allocation2 + $0x40] sm:$0x3] %vm336, 0.0
      %344 = vst.msk [vmem:[#allocation2 + $0x48] sm:$0xff] %vm333, 0.0
      %345 = vst.msk [vmem:[#allocation2 + $0x50] sm:$0xff] %vm333, 0.0
      %346 = vst.msk [vmem:[#allocation2 + $0x58] sm:$0x3] %vm336, 0.0
      %347 = vst.msk [vmem:[#allocation2 + $0x60] sm:$0xff] %vm333, 0.0
      %348 = vst.msk [vmem:[#allocation2 + $0x68] sm:$0xff] %vm333, 0.0
      %349 = vst.msk [vmem:[#allocation2 + $0x70] sm:$0x3] %vm336, 0.0
      %350 = vst.msk [vmem:[#allocation2 + $0x78] sm:$0xff] %vm333, 0.0
      %351 = vst.msk [vmem:[#allocation2 + $0x80] sm:$0xff] %vm333, 0.0
      %352 = vst.msk [vmem:[#allocation2 + $0x88] sm:$0x3] %vm336, 0.0
      %353 = vst.msk [vmem:[#allocation2 + $0x90] sm:$0xff] %vm333, 0.0
      %354 = vst.msk [vmem:[#allocation2 + $0x98] sm:$0xff] %vm333, 0.0
      %355 = vst.msk [vmem:[#allocation2 + $0xa0] sm:$0x3] %vm336, 0.0
      %356 = vst.msk [vmem:[#allocation2 + $0xa8] sm:$0xff] %vm333, 0.0
      %357 = vst.msk [vmem:[#allocation2 + $0xb0] sm:$0xff] %vm333, 0.0
      %358 = vst.msk [vmem:[#allocation2 + $0xb8] sm:$0x3] %vm336, 0.0
      %359 = vst.msk [vmem:[#allocation2 + $0xc0] sm:$0xff] %vm333, 0.0
      %360 = vst.msk [vmem:[#allocation2 + $0xc8] sm:$0xff] %vm333, 0.0
      %361 = vst.msk [vmem:[#allocation2 + $0xd0] sm:$0x3] %vm336, 0.0
      %362 = vst.msk [vmem:[#allocation2 + $0xd8] sm:$0xff] %vm333, 0.0
      %363 = vst.msk [vmem:[#allocation2 + $0xe0] sm:$0xff] %vm333, 0.0
      %364 = vst.msk [vmem:[#allocation2 + $0xe8] sm:$0x3] %vm336, 0.0
      %365 = vst.msk [vmem:[#allocation2 + $0xf0] sm:$0xff] %vm333, 0.0
      %366 = vst.msk [vmem:[#allocation2 + $0xf8] sm:$0xff] %vm333, 0.0
      %367 = vst.msk [vmem:[#allocation2 + $0x100] sm:$0x3] %vm336, 0.0
      %368 = vst.msk [vmem:[#allocation2 + $0x108] sm:$0xff] %vm333, 0.0
      %369 = vst.msk [vmem:[#allocation2 + $0x110] sm:$0xff] %vm333, 0.0
      %370 = vst.msk [vmem:[#allocation2 + $0x118] sm:$0x3] %vm336, 0.0
      %371 = vst.msk [vmem:[#allocation2 + $0x120] sm:$0xff] %vm333, 0.0
      %372 = vst.msk [vmem:[#allocation2 + $0x128] sm:$0xff] %vm333, 0.0
      %373 = vst.msk [vmem:[#allocation2 + $0x130] sm:$0x3] %vm336, 0.0
      %374 = vst.msk [vmem:[#allocation2 + $0x138] sm:$0xff] %vm333, 0.0
      %375 = vst.msk [vmem:[#allocation2 + $0x140] sm:$0xff] %vm333, 0.0
      %376 = vst.msk [vmem:[#allocation2 + $0x148] sm:$0x3] %vm336, 0.0
      %377 = vst.msk [vmem:[#allocation2 + $0x150] sm:$0xff] %vm333, 0.0
      %378 = vst.msk [vmem:[#allocation2 + $0x158] sm:$0xff] %vm333, 0.0
      %379 = vst.msk [vmem:[#allocation2 + $0x160] sm:$0x3] %vm336, 0.0
      %380 = vst.msk [vmem:[#allocation2 + $0x168] sm:$0xff] %vm333, 0.0
      %381 = vst.msk [vmem:[#allocation2 + $0x170] sm:$0xff] %vm333, 0.0
      %382 = vst.msk [vmem:[#allocation2 + $0x178] sm:$0x3] %vm336, 0.0
      %383 = vst.msk [vmem:[#allocation2 + $0x180] sm:$0xff] %vm333, 0.0
      %384 = vst.msk [vmem:[#allocation2 + $0x188] sm:$0xff] %vm333, 0.0
      %385 = vst.msk [vmem:[#allocation2 + $0x190] sm:$0x3] %vm336, 0.0
      %386 = vst.msk [vmem:[#allocation2 + $0x198] sm:$0xff] %vm333, 0.0
      %387 = vst.msk [vmem:[#allocation2 + $0x1a0] sm:$0xff] %vm333, 0.0
      %388 = vst.msk [vmem:[#allocation2 + $0x1a8] sm:$0x3] %vm336, 0.0
      %389 = vst.msk [vmem:[#allocation3] sm:$0xff] %vm333, 0.0
      %390 = vst.msk [vmem:[#allocation3 + $0x8] sm:$0x3] %vm336, 0.0
      %391 = vst.msk [vmem:[#allocation3 + $0x10] sm:$0xff] %vm333, 0.0
      %392 = vst.msk [vmem:[#allocation3 + $0x18] sm:$0x3] %vm336, 0.0
      %393 = vst.msk [vmem:[#allocation3 + $0x20] sm:$0xff] %vm333, 0.0
      %394 = vst.msk [vmem:[#allocation3 + $0x28] sm:$0x3] %vm336, 0.0
      %395 = vst.msk [vmem:[#allocation3 + $0x30] sm:$0xff] %vm333, 0.0
      %396 = vst.msk [vmem:[#allocation3 + $0x38] sm:$0x3] %vm336, 0.0
      %397 = vst.msk [vmem:[#allocation3 + $0x40] sm:$0xff] %vm333, 0.0
      %398 = vst.msk [vmem:[#allocation3 + $0x48] sm:$0x3] %vm336, 0.0
      %399 = vst.msk [vmem:[#allocation3 + $0x50] sm:$0xff] %vm333, 0.0
      %400 = vst.msk [vmem:[#allocation3 + $0x58] sm:$0x3] %vm336, 0.0
      %401 = vst.msk [vmem:[#allocation3 + $0x60] sm:$0xff] %vm333, 0.0
      %402 = vst.msk [vmem:[#allocation3 + $0x68] sm:$0x3] %vm336, 0.0
      %403 = vst.msk [vmem:[#allocation3 + $0x70] sm:$0xff] %vm333, 0.0
      %404 = vst.msk [vmem:[#allocation3 + $0x78] sm:$0x3] %vm336, 0.0
      %405 = vst.msk [vmem:[#allocation3 + $0x80] sm:$0xff] %vm333, 0.0
      %406 = vst.msk [vmem:[#allocation3 + $0x88] sm:$0x3] %vm336, 0.0
      %407 = vst.msk [vmem:[#allocation3 + $0x90] sm:$0xff] %vm333, 0.0
      %408 = vst.msk [vmem:[#allocation3 + $0x98] sm:$0x3] %vm336, 0.0
      %409 = vst.msk [vmem:[#allocation4] sm:$0xff] %vm333, 0.0
      %410 = vst.msk [vmem:[#allocation4 + $0x8] sm:$0x3] %vm336, 0.0
      %411 = vst.msk [vmem:[#allocation4 + $0x10] sm:$0xff] %vm333, 0.0
      %412 = vst.msk [vmem:[#allocation4 + $0x18] sm:$0x3] %vm336, 0.0
      %413 = vst.msk [vmem:[#allocation4 + $0x20] sm:$0xff] %vm333, 0.0
      %414 = vst.msk [vmem:[#allocation4 + $0x28] sm:$0x3] %vm336, 0.0
      %415 = vst.msk [vmem:[#allocation4 + $0x30] sm:$0xff] %vm333, 0.0
      %416 = vst.msk [vmem:[#allocation4 + $0x38] sm:$0x3] %vm336, 0.0
      %417 = vst.msk [vmem:[#allocation4 + $0x40] sm:$0xff] %vm333, 0.0
      %418 = vst.msk [vmem:[#allocation4 + $0x48] sm:$0x3] %vm336, 0.0
      %419 = vst.msk [vmem:[#allocation4 + $0x50] sm:$0xff] %vm333, 0.0
      %420 = vst.msk [vmem:[#allocation4 + $0x58] sm:$0x3] %vm336, 0.0
      %421 = vst.msk [vmem:[#allocation4 + $0x60] sm:$0xff] %vm333, 0.0
      %422 = vst.msk [vmem:[#allocation4 + $0x68] sm:$0x3] %vm336, 0.0
      %423 = vst.msk [vmem:[#allocation4 + $0x70] sm:$0xff] %vm333, 0.0
      %424 = vst.msk [vmem:[#allocation4 + $0x78] sm:$0x3] %vm336, 0.0
      %425 = vst.msk [vmem:[#allocation4 + $0x80] sm:$0xff] %vm333, 0.0
      %426 = vst.msk [vmem:[#allocation4 + $0x88] sm:$0x3] %vm336, 0.0
      %427 = vst.msk [vmem:[#allocation4 + $0x90] sm:$0xff] %vm333, 0.0
      %428 = vst.msk [vmem:[#allocation4 + $0x98] sm:$0x3] %vm336, 0.0
      %v429 = vld [vmem:[%s327] sm:$0xff]
      %v430 = vld [vmem:[%s327 + $0x8] sm:$0xff]
      %v431 = vld [vmem:[%s327 + $0x18] sm:$0xff]
      %v432 = vld [vmem:[%s327 + $0x20] sm:$0xff]
      %v433 = vld [vmem:[%s327 + $0x30] sm:$0xff]
      %v434 = vld [vmem:[%s327 + $0x38] sm:$0xff]
      %v435 = vld [vmem:[%s327 + $0x48] sm:$0xff]
      %v436 = vld [vmem:[%s327 + $0x50] sm:$0xff]
      %v437 = vld [vmem:[%s327 + $0x60] sm:$0xff]
      %v438 = vld [vmem:[%s327 + $0x68] sm:$0xff]
      %v439 = vld [vmem:[%s327 + $0x78] sm:$0xff]
      %v440 = vld [vmem:[%s327 + $0x80] sm:$0xff]
      %v441 = vld [vmem:[%s327 + $0x90] sm:$0xff]
      %v442 = vld [vmem:[%s327 + $0x98] sm:$0xff]
      %v443 = vld [vmem:[%s327 + $0xa8] sm:$0xff]
      %v444 = vld [vmem:[%s327 + $0xb0] sm:$0xff]
      %v445 = vld [vmem:[%s327 + $0xc0] sm:$0xff]
      %v446 = vld [vmem:[%s327 + $0xc8] sm:$0xff]
      %v447 = vld [vmem:[%s327 + $0xd8] sm:$0xff]
      %v448 = vld [vmem:[%s327 + $0xe0] sm:$0xff]
      %v449 = vld [vmem:[%s327 + $0xf0] sm:$0xff]
      %v450 = vld [vmem:[%s327 + $0xf8] sm:$0xff]
      %v451 = vld [vmem:[%s327 + $0x108] sm:$0xff]
      %v452 = vld [vmem:[%s327 + $0x110] sm:$0xff]
      %v453 = vld [vmem:[%s327 + $0x120] sm:$0xff]
      %v454 = vld [vmem:[%s327 + $0x128] sm:$0xff]
      %v455 = vld [vmem:[%s327 + $0x138] sm:$0xff]
      %v456 = vld [vmem:[%s327 + $0x140] sm:$0xff]
      %v457 = vld [vmem:[%s327 + $0x150] sm:$0xff]
      %v458 = vld [vmem:[%s327 + $0x158] sm:$0xff]
      %v459 = vld [vmem:[%s327 + $0x168] sm:$0xff]
      %v460 = vld [vmem:[%s327 + $0x170] sm:$0xff]
      %vm461 = vcmask 31744
      %462 = vst.msk [vmem:[#allocation5] sm:$0xff] %vm461, %v429
      %463 = vst.msk [vmem:[#allocation5 + $0x8] sm:$0xff] %vm461, %v430
      %464 = vst.msk [vmem:[#allocation5 + $0x10] sm:$0xff] %vm461, %v431
      %465 = vst.msk [vmem:[#allocation5 + $0x18] sm:$0xff] %vm461, %v432
      %466 = vst.msk [vmem:[#allocation5 + $0x20] sm:$0xff] %vm461, %v433
      %467 = vst.msk [vmem:[#allocation5 + $0x28] sm:$0xff] %vm461, %v434
      %468 = vst.msk [vmem:[#allocation5 + $0x30] sm:$0xff] %vm461, %v435
      %469 = vst.msk [vmem:[#allocation5 + $0x38] sm:$0xff] %vm461, %v436
      %470 = vst.msk [vmem:[#allocation5 + $0x40] sm:$0xff] %vm461, %v437
      %471 = vst.msk [vmem:[#allocation5 + $0x48] sm:$0xff] %vm461, %v438
      %472 = vst.msk [vmem:[#allocation5 + $0x50] sm:$0xff] %vm461, %v439
      %473 = vst.msk [vmem:[#allocation5 + $0x58] sm:$0xff] %vm461, %v440
      %474 = vst.msk [vmem:[#allocation5 + $0x60] sm:$0xff] %vm461, %v441
      %475 = vst.msk [vmem:[#allocation5 + $0x68] sm:$0xff] %vm461, %v442
      %476 = vst.msk [vmem:[#allocation5 + $0x70] sm:$0xff] %vm461, %v443
      %477 = vst.msk [vmem:[#allocation5 + $0x78] sm:$0xff] %vm461, %v444
      %478 = vst.msk [vmem:[#allocation5 + $0x80] sm:$0xff] %vm461, %v445
      %479 = vst.msk [vmem:[#allocation5 + $0x88] sm:$0xff] %vm461, %v446
      %480 = vst.msk [vmem:[#allocation5 + $0x90] sm:$0xff] %vm461, %v447
      %481 = vst.msk [vmem:[#allocation5 + $0x98] sm:$0xff] %vm461, %v448
      %482 = vst.msk [vmem:[#allocation5 + $0xa0] sm:$0xff] %vm461, %v449
      %483 = vst.msk [vmem:[#allocation5 + $0xa8] sm:$0xff] %vm461, %v450
      %484 = vst.msk [vmem:[#allocation5 + $0xb0] sm:$0xff] %vm461, %v451
      %485 = vst.msk [vmem:[#allocation5 + $0xb8] sm:$0xff] %vm461, %v452
      %486 = vst.msk [vmem:[#allocation5 + $0xc0] sm:$0xff] %vm461, %v453
      %487 = vst.msk [vmem:[#allocation5 + $0xc8] sm:$0xff] %vm461, %v454
      %488 = vst.msk [vmem:[#allocation5 + $0xd0] sm:$0xff] %vm461, %v455
      %489 = vst.msk [vmem:[#allocation5 + $0xd8] sm:$0xff] %vm461, %v456
      %490 = vst.msk [vmem:[#allocation5 + $0xe0] sm:$0xff] %vm461, %v457
      %491 = vst.msk [vmem:[#allocation5 + $0xe8] sm:$0xff] %vm461, %v458
      %492 = vst.msk [vmem:[#allocation5 + $0xf0] sm:$0xff] %vm461, %v459
      %493 = vst.msk [vmem:[#allocation5 + $0xf8] sm:$0xff] %vm461, %v460
      %v494 = vld [vmem:[%s327 + $0x1] sm:$0xff]
      %v495 = vld [vmem:[%s327 + $0x9] sm:$0xff]
      %v496 = vld [vmem:[%s327 + $0x19] sm:$0xff]
      %v497 = vld [vmem:[%s327 + $0x21] sm:$0xff]
      %v498 = vld [vmem:[%s327 + $0x31] sm:$0xff]
      %v499 = vld [vmem:[%s327 + $0x39] sm:$0xff]
      %v500 = vld [vmem:[%s327 + $0x49] sm:$0xff]
      %v501 = vld [vmem:[%s327 + $0x51] sm:$0xff]
      %v502 = vld [vmem:[%s327 + $0x61] sm:$0xff]
      %v503 = vld [vmem:[%s327 + $0x69] sm:$0xff]
      %v504 = vld [vmem:[%s327 + $0x79] sm:$0xff]
      %v505 = vld [vmem:[%s327 + $0x81] sm:$0xff]
      %v506 = vld [vmem:[%s327 + $0x91] sm:$0xff]
      %v507 = vld [vmem:[%s327 + $0x99] sm:$0xff]
      %v508 = vld [vmem:[%s327 + $0xa9] sm:$0xff]
      %v509 = vld [vmem:[%s327 + $0xb1] sm:$0xff]
      %v510 = vld [vmem:[%s327 + $0xc1] sm:$0xff]
      %v511 = vld [vmem:[%s327 + $0xc9] sm:$0xff]
      %v512 = vld [vmem:[%s327 + $0xd9] sm:$0xff]
      %v513 = vld [vmem:[%s327 + $0xe1] sm:$0xff]
      %v514 = vld [vmem:[%s327 + $0xf1] sm:$0xff]
      %v515 = vld [vmem:[%s327 + $0xf9] sm:$0xff]
      %v516 = vld [vmem:[%s327 + $0x109] sm:$0xff]
      %v517 = vld [vmem:[%s327 + $0x111] sm:$0xff]
      %v518 = vld [vmem:[%s327 + $0x121] sm:$0xff]
      %v519 = vld [vmem:[%s327 + $0x129] sm:$0xff]
      %v520 = vld [vmem:[%s327 + $0x139] sm:$0xff]
      %v521 = vld [vmem:[%s327 + $0x141] sm:$0xff]
      %v522 = vld [vmem:[%s327 + $0x151] sm:$0xff]
      %v523 = vld [vmem:[%s327 + $0x159] sm:$0xff]
      %v524 = vld [vmem:[%s327 + $0x169] sm:$0xff]
      %v525 = vld [vmem:[%s327 + $0x171] sm:$0xff]
      %558 = vrot.lane.b32.xlu0 %v494, 4
      %v559 = vpop.permute.xlu0 %558
      %560 = vrot.lane.b32.xlu0 %v495, 4
      %v561 = vpop.permute.xlu0 %560
      %562 = vrot.lane.b32.xlu0 %v496, 4
      %v563 = vpop.permute.xlu0 %562
      %564 = vrot.lane.b32.xlu0 %v497, 4
      %v565 = vpop.permute.xlu0 %564
      %566 = vrot.lane.b32.xlu0 %v498, 4
      %v567 = vpop.permute.xlu0 %566
      %568 = vrot.lane.b32.xlu0 %v499, 4
      %v569 = vpop.permute.xlu0 %568
      %570 = vrot.lane.b32.xlu0 %v500, 4
      %v571 = vpop.permute.xlu0 %570
      %572 = vrot.lane.b32.xlu0 %v501, 4
      %v573 = vpop.permute.xlu0 %572
      %574 = vrot.lane.b32.xlu0 %v502, 4
      %v575 = vpop.permute.xlu0 %574
      %576 = vrot.lane.b32.xlu0 %v503, 4
      %v577 = vpop.permute.xlu0 %576
      %578 = vrot.lane.b32.xlu0 %v504, 4
      %v579 = vpop.permute.xlu0 %578
      %580 = vrot.lane.b32.xlu0 %v505, 4
      %v581 = vpop.permute.xlu0 %580
      %582 = vrot.lane.b32.xlu0 %v506, 4
      %v583 = vpop.permute.xlu0 %582
      %584 = vrot.lane.b32.xlu0 %v507, 4
      %v585 = vpop.permute.xlu0 %584
      %586 = vrot.lane.b32.xlu0 %v508, 4
      %v587 = vpop.permute.xlu0 %586
      %588 = vrot.lane.b32.xlu0 %v509, 4
      %v589 = vpop.permute.xlu0 %588
      %590 = vrot.lane.b32.xlu0 %v510, 4
      %v591 = vpop.permute.xlu0 %590
      %592 = vrot.lane.b32.xlu0 %v511, 4
      %v593 = vpop.permute.xlu0 %592
      %594 = vrot.lane.b32.xlu0 %v512, 4
      %v595 = vpop.permute.xlu0 %594
      %596 = vrot.lane.b32.xlu0 %v513, 4
      %v597 = vpop.permute.xlu0 %596
      %598 = vrot.lane.b32.xlu0 %v514, 4
      %v599 = vpop.permute.xlu0 %598
      %600 = vrot.lane.b32.xlu0 %v515, 4
      %v601 = vpop.permute.xlu0 %600
      %602 = vrot.lane.b32.xlu0 %v516, 4
      %v603 = vpop.permute.xlu0 %602
      %604 = vrot.lane.b32.xlu0 %v517, 4
      %v605 = vpop.permute.xlu0 %604
      %606 = vrot.lane.b32.xlu0 %v518, 4
      %v607 = vpop.permute.xlu0 %606
      %608 = vrot.lane.b32.xlu0 %v519, 4
      %v609 = vpop.permute.xlu0 %608
      %610 = vrot.lane.b32.xlu0 %v520, 4
      %v611 = vpop.permute.xlu0 %610
      %612 = vrot.lane.b32.xlu0 %v521, 4
      %v613 = vpop.permute.xlu0 %612
      %614 = vrot.lane.b32.xlu0 %v522, 4
      %v615 = vpop.permute.xlu0 %614
      %616 = vrot.lane.b32.xlu0 %v523, 4
      %v617 = vpop.permute.xlu0 %616
      %618 = vrot.lane.b32.xlu0 %v524, 4
      %v619 = vpop.permute.xlu0 %618
      %620 = vrot.lane.b32.xlu0 %v525, 4
      %v621 = vpop.permute.xlu0 %620
      %vm654 = vcmask 64544
      %655 = vst.msk [vmem:[#allocation5] sm:$0xff] %vm654, %v559
      %656 = vst.msk [vmem:[#allocation5 + $0x8] sm:$0xff] %vm654, %v561
      %657 = vst.msk [vmem:[#allocation5 + $0x10] sm:$0xff] %vm654, %v563
      %658 = vst.msk [vmem:[#allocation5 + $0x18] sm:$0xff] %vm654, %v565
      %659 = vst.msk [vmem:[#allocation5 + $0x20] sm:$0xff] %vm654, %v567
      %660 = vst.msk [vmem:[#allocation5 + $0x28] sm:$0xff] %vm654, %v569
      %661 = vst.msk [vmem:[#allocation5 + $0x30] sm:$0xff] %vm654, %v571
      %662 = vst.msk [vmem:[#allocation5 + $0x38] sm:$0xff] %vm654, %v573
      %663 = vst.msk [vmem:[#allocation5 + $0x40] sm:$0xff] %vm654, %v575
      %664 = vst.msk [vmem:[#allocation5 + $0x48] sm:$0xff] %vm654, %v577
      %665 = vst.msk [vmem:[#allocation5 + $0x50] sm:$0xff] %vm654, %v579
      %666 = vst.msk [vmem:[#allocation5 + $0x58] sm:$0xff] %vm654, %v581
      %667 = vst.msk [vmem:[#allocation5 + $0x60] sm:$0xff] %vm654, %v583
      %668 = vst.msk [vmem:[#allocation5 + $0x68] sm:$0xff] %vm654, %v585
      %669 = vst.msk [vmem:[#allocation5 + $0x70] sm:$0xff] %vm654, %v587
      %670 = vst.msk [vmem:[#allocation5 + $0x78] sm:$0xff] %vm654, %v589
      %671 = vst.msk [vmem:[#allocation5 + $0x80] sm:$0xff] %vm654, %v591
      %672 = vst.msk [vmem:[#allocation5 + $0x88] sm:$0xff] %vm654, %v593
      %673 = vst.msk [vmem:[#allocation5 + $0x90] sm:$0xff] %vm654, %v595
      %674 = vst.msk [vmem:[#allocation5 + $0x98] sm:$0xff] %vm654, %v597
      %675 = vst.msk [vmem:[#allocation5 + $0xa0] sm:$0xff] %vm654, %v599
      %676 = vst.msk [vmem:[#allocation5 + $0xa8] sm:$0xff] %vm654, %v601
      %677 = vst.msk [vmem:[#allocation5 + $0xb0] sm:$0xff] %vm654, %v603
      %678 = vst.msk [vmem:[#allocation5 + $0xb8] sm:$0xff] %vm654, %v605
      %679 = vst.msk [vmem:[#allocation5 + $0xc0] sm:$0xff] %vm654, %v607
      %680 = vst.msk [vmem:[#allocation5 + $0xc8] sm:$0xff] %vm654, %v609
      %681 = vst.msk [vmem:[#allocation5 + $0xd0] sm:$0xff] %vm654, %v611
      %682 = vst.msk [vmem:[#allocation5 + $0xd8] sm:$0xff] %vm654, %v613
      %683 = vst.msk [vmem:[#allocation5 + $0xe0] sm:$0xff] %vm654, %v615
      %684 = vst.msk [vmem:[#allocation5 + $0xe8] sm:$0xff] %vm654, %v617
      %685 = vst.msk [vmem:[#allocation5 + $0xf0] sm:$0xff] %vm654, %v619
      %686 = vst.msk [vmem:[#allocation5 + $0xf8] sm:$0xff] %vm654, %v621
      %v687 = vld [vmem:[%s327 + $0x2] sm:$0xff]
      %v688 = vld [vmem:[%s327 + $0xa] sm:$0xff]
      %v689 = vld [vmem:[%s327 + $0x1a] sm:$0xff]
      %v690 = vld [vmem:[%s327 + $0x22] sm:$0xff]
      %v691 = vld [vmem:[%s327 + $0x32] sm:$0xff]
      %v692 = vld [vmem:[%s327 + $0x3a] sm:$0xff]
      %v693 = vld [vmem:[%s327 + $0x4a] sm:$0xff]
      %v694 = vld [vmem:[%s327 + $0x52] sm:$0xff]
      %v695 = vld [vmem:[%s327 + $0x62] sm:$0xff]
      %v696 = vld [vmem:[%s327 + $0x6a] sm:$0xff]
      %v697 = vld [vmem:[%s327 + $0x7a] sm:$0xff]
      %v698 = vld [vmem:[%s327 + $0x82] sm:$0xff]
      %v699 = vld [vmem:[%s327 + $0x92] sm:$0xff]
      %v700 = vld [vmem:[%s327 + $0x9a] sm:$0xff]
      %v701 = vld [vmem:[%s327 + $0xaa] sm:$0xff]
      %v702 = vld [vmem:[%s327 + $0xb2] sm:$0xff]
      %v703 = vld [vmem:[%s327 + $0xc2] sm:$0xff]
      %v704 = vld [vmem:[%s327 + $0xca] sm:$0xff]
      %v705 = vld [vmem:[%s327 + $0xda] sm:$0xff]
      %v706 = vld [vmem:[%s327 + $0xe2] sm:$0xff]
      %v707 = vld [vmem:[%s327 + $0xf2] sm:$0xff]
      %v708 = vld [vmem:[%s327 + $0xfa] sm:$0xff]
      %v709 = vld [vmem:[%s327 + $0x10a] sm:$0xff]
      %v710 = vld [vmem:[%s327 + $0x112] sm:$0xff]
      %v711 = vld [vmem:[%s327 + $0x122] sm:$0xff]
      %v712 = vld [vmem:[%s327 + $0x12a] sm:$0xff]
      %v713 = vld [vmem:[%s327 + $0x13a] sm:$0xff]
      %v714 = vld [vmem:[%s327 + $0x142] sm:$0xff]
      %v715 = vld [vmem:[%s327 + $0x152] sm:$0xff]
      %v716 = vld [vmem:[%s327 + $0x15a] sm:$0xff]
      %v717 = vld [vmem:[%s327 + $0x16a] sm:$0xff]
      %v718 = vld [vmem:[%s327 + $0x172] sm:$0xff]
      %751 = vrot.lane.b32.xlu0 %v687, 8
      %v752 = vpop.permute.xlu0 %751
      %753 = vrot.lane.b32.xlu0 %v688, 8
      %v754 = vpop.permute.xlu0 %753
      %755 = vrot.lane.b32.xlu0 %v689, 8
      %v756 = vpop.permute.xlu0 %755
      %757 = vrot.lane.b32.xlu0 %v690, 8
      %v758 = vpop.permute.xlu0 %757
      %759 = vrot.lane.b32.xlu0 %v691, 8
      %v760 = vpop.permute.xlu0 %759
      %761 = vrot.lane.b32.xlu0 %v692, 8
      %v762 = vpop.permute.xlu0 %761
      %763 = vrot.lane.b32.xlu0 %v693, 8
      %v764 = vpop.permute.xlu0 %763
      %765 = vrot.lane.b32.xlu0 %v694, 8
      %v766 = vpop.permute.xlu0 %765
      %767 = vrot.lane.b32.xlu0 %v695, 8
      %v768 = vpop.permute.xlu0 %767
      %769 = vrot.lane.b32.xlu0 %v696, 8
      %v770 = vpop.permute.xlu0 %769
      %771 = vrot.lane.b32.xlu0 %v697, 8
      %v772 = vpop.permute.xlu0 %771
      %773 = vrot.lane.b32.xlu0 %v698, 8
      %v774 = vpop.permute.xlu0 %773
      %775 = vrot.lane.b32.xlu0 %v699, 8
      %v776 = vpop.permute.xlu0 %775
      %777 = vrot.lane.b32.xlu0 %v700, 8
      %v778 = vpop.permute.xlu0 %777
      %779 = vrot.lane.b32.xlu0 %v701, 8
      %v780 = vpop.permute.xlu0 %779
      %781 = vrot.lane.b32.xlu0 %v702, 8
      %v782 = vpop.permute.xlu0 %781
      %783 = vrot.lane.b32.xlu0 %v703, 8
      %v784 = vpop.permute.xlu0 %783
      %785 = vrot.lane.b32.xlu0 %v704, 8
      %v786 = vpop.permute.xlu0 %785
      %787 = vrot.lane.b32.xlu0 %v705, 8
      %v788 = vpop.permute.xlu0 %787
      %789 = vrot.lane.b32.xlu0 %v706, 8
      %v790 = vpop.permute.xlu0 %789
      %791 = vrot.lane.b32.xlu0 %v707, 8
      %v792 = vpop.permute.xlu0 %791
      %793 = vrot.lane.b32.xlu0 %v708, 8
      %v794 = vpop.permute.xlu0 %793
      %795 = vrot.lane.b32.xlu0 %v709, 8
      %v796 = vpop.permute.xlu0 %795
      %797 = vrot.lane.b32.xlu0 %v710, 8
      %v798 = vpop.permute.xlu0 %797
      %799 = vrot.lane.b32.xlu0 %v711, 8
      %v800 = vpop.permute.xlu0 %799
      %801 = vrot.lane.b32.xlu0 %v712, 8
      %v802 = vpop.permute.xlu0 %801
      %803 = vrot.lane.b32.xlu0 %v713, 8
      %v804 = vpop.permute.xlu0 %803
      %805 = vrot.lane.b32.xlu0 %v714, 8
      %v806 = vpop.permute.xlu0 %805
      %807 = vrot.lane.b32.xlu0 %v715, 8
      %v808 = vpop.permute.xlu0 %807
      %809 = vrot.lane.b32.xlu0 %v716, 8
      %v810 = vpop.permute.xlu0 %809
      %811 = vrot.lane.b32.xlu0 %v717, 8
      %v812 = vpop.permute.xlu0 %811
      %813 = vrot.lane.b32.xlu0 %v718, 8
      %v814 = vpop.permute.xlu0 %813
      %vm847 = vcmask 97344
      %848 = vst.msk [vmem:[#allocation5] sm:$0xff] %vm847, %v752
      %849 = vst.msk [vmem:[#allocation5 + $0x8] sm:$0xff] %vm847, %v754
      %850 = vst.msk [vmem:[#allocation5 + $0x10] sm:$0xff] %vm847, %v756
      %851 = vst.msk [vmem:[#allocation5 + $0x18] sm:$0xff] %vm847, %v758
      %852 = vst.msk [vmem:[#allocation5 + $0x20] sm:$0xff] %vm847, %v760
      %853 = vst.msk [vmem:[#allocation5 + $0x28] sm:$0xff] %vm847, %v762
      %854 = vst.msk [vmem:[#allocation5 + $0x30] sm:$0xff] %vm847, %v764
      %855 = vst.msk [vmem:[#allocation5 + $0x38] sm:$0xff] %vm847, %v766
      %856 = vst.msk [vmem:[#allocation5 + $0x40] sm:$0xff] %vm847, %v768
      %857 = vst.msk [vmem:[#allocation5 + $0x48] sm:$0xff] %vm847, %v770
      %858 = vst.msk [vmem:[#allocation5 + $0x50] sm:$0xff] %vm847, %v772
      %859 = vst.msk [vmem:[#allocation5 + $0x58] sm:$0xff] %vm847, %v774
      %860 = vst.msk [vmem:[#allocation5 + $0x60] sm:$0xff] %vm847, %v776
      %861 = vst.msk [vmem:[#allocation5 + $0x68] sm:$0xff] %vm847, %v778
      %862 = vst.msk [vmem:[#allocation5 + $0x70] sm:$0xff] %vm847, %v780
      %863 = vst.msk [vmem:[#allocation5 + $0x78] sm:$0xff] %vm847, %v782
      %864 = vst.msk [vmem:[#allocation5 + $0x80] sm:$0xff] %vm847, %v784
      %865 = vst.msk [vmem:[#allocation5 + $0x88] sm:$0xff] %vm847, %v786
      %866 = vst.msk [vmem:[#allocation5 + $0x90] sm:$0xff] %vm847, %v788
      %867 = vst.msk [vmem:[#allocation5 + $0x98] sm:$0xff] %vm847, %v790
      %868 = vst.msk [vmem:[#allocation5 + $0xa0] sm:$0xff] %vm847, %v792
      %869 = vst.msk [vmem:[#allocation5 + $0xa8] sm:$0xff] %vm847, %v794
      %870 = vst.msk [vmem:[#allocation5 + $0xb0] sm:$0xff] %vm847, %v796
      %871 = vst.msk [vmem:[#allocation5 + $0xb8] sm:$0xff] %vm847, %v798
      %872 = vst.msk [vmem:[#allocation5 + $0xc0] sm:$0xff] %vm847, %v800
      %873 = vst.msk [vmem:[#allocation5 + $0xc8] sm:$0xff] %vm847, %v802
      %874 = vst.msk [vmem:[#allocation5 + $0xd0] sm:$0xff] %vm847, %v804
      %875 = vst.msk [vmem:[#allocation5 + $0xd8] sm:$0xff] %vm847, %v806
      %876 = vst.msk [vmem:[#allocation5 + $0xe0] sm:$0xff] %vm847, %v808
      %877 = vst.msk [vmem:[#allocation5 + $0xe8] sm:$0xff] %vm847, %v810
      %878 = vst.msk [vmem:[#allocation5 + $0xf0] sm:$0xff] %vm847, %v812
      %879 = vst.msk [vmem:[#allocation5 + $0xf8] sm:$0xff] %vm847, %v814
      %s880 = scalar_lea.vmem %s327, 24
      %v881 = vld [vmem:[%s880] sm:$0xff]
      %v882 = vld [vmem:[%s880 + $0x8] sm:$0xff]
      %v883 = vld [vmem:[%s880 + $0x18] sm:$0xff]
      %v884 = vld [vmem:[%s880 + $0x20] sm:$0xff]
      %v885 = vld [vmem:[%s880 + $0x30] sm:$0xff]
      %v886 = vld [vmem:[%s880 + $0x38] sm:$0xff]
      %v887 = vld [vmem:[%s880 + $0x48] sm:$0xff]
      %v888 = vld [vmem:[%s880 + $0x50] sm:$0xff]
      %v889 = vld [vmem:[%s880 + $0x60] sm:$0xff]
      %v890 = vld [vmem:[%s880 + $0x68] sm:$0xff]
      %v891 = vld [vmem:[%s880 + $0x78] sm:$0xff]
      %v892 = vld [vmem:[%s880 + $0x80] sm:$0xff]
      %v893 = vld [vmem:[%s880 + $0x90] sm:$0xff]
      %v894 = vld [vmem:[%s880 + $0x98] sm:$0xff]
      %v895 = vld [vmem:[%s880 + $0xa8] sm:$0xff]
      %v896 = vld [vmem:[%s880 + $0xb0] sm:$0xff]
      %v897 = vld [vmem:[%s880 + $0xc0] sm:$0xff]
      %v898 = vld [vmem:[%s880 + $0xc8] sm:$0xff]
      %v899 = vld [vmem:[%s880 + $0xd8] sm:$0xff]
      %v900 = vld [vmem:[%s880 + $0xe0] sm:$0xff]
      %v901 = vld [vmem:[%s880 + $0xf0] sm:$0xff]
      %v902 = vld [vmem:[%s880 + $0xf8] sm:$0xff]
      %v903 = vld [vmem:[%s880 + $0x108] sm:$0xff]
      %v904 = vld [vmem:[%s880 + $0x110] sm:$0xff]
      %v905 = vld [vmem:[%s880 + $0x120] sm:$0xff]
      %v906 = vld [vmem:[%s880 + $0x128] sm:$0xff]
      %v907 = vld [vmem:[%s880 + $0x138] sm:$0xff]
      %v908 = vld [vmem:[%s880 + $0x140] sm:$0xff]
      %v909 = vld [vmem:[%s880 + $0x150] sm:$0xff]
      %v910 = vld [vmem:[%s880 + $0x158] sm:$0xff]
      %v911 = vld [vmem:[%s880 + $0x168] sm:$0xff]
      %v912 = vld [vmem:[%s880 + $0x170] sm:$0xff]
      %945 = vrot.lane.b32.xlu0 %v881, 12
      %v946 = vpop.permute.xlu0 %945
      %947 = vrot.lane.b32.xlu0 %v882, 12
      %v948 = vpop.permute.xlu0 %947
      %949 = vrot.lane.b32.xlu0 %v883, 12
      %v950 = vpop.permute.xlu0 %949
      %951 = vrot.lane.b32.xlu0 %v884, 12
      %v952 = vpop.permute.xlu0 %951
      %953 = vrot.lane.b32.xlu0 %v885, 12
      %v954 = vpop.permute.xlu0 %953
      %955 = vrot.lane.b32.xlu0 %v886, 12
      %v956 = vpop.permute.xlu0 %955
      %957 = vrot.lane.b32.xlu0 %v887, 12
      %v958 = vpop.permute.xlu0 %957
      %959 = vrot.lane.b32.xlu0 %v888, 12
      %v960 = vpop.permute.xlu0 %959
      %961 = vrot.lane.b32.xlu0 %v889, 12
      %v962 = vpop.permute.xlu0 %961
      %963 = vrot.lane.b32.xlu0 %v890, 12
      %v964 = vpop.permute.xlu0 %963
      %965 = vrot.lane.b32.xlu0 %v891, 12
      %v966 = vpop.permute.xlu0 %965
      %967 = vrot.lane.b32.xlu0 %v892, 12
      %v968 = vpop.permute.xlu0 %967
      %969 = vrot.lane.b32.xlu0 %v893, 12
      %v970 = vpop.permute.xlu0 %969
      %971 = vrot.lane.b32.xlu0 %v894, 12
      %v972 = vpop.permute.xlu0 %971
      %973 = vrot.lane.b32.xlu0 %v895, 12
      %v974 = vpop.permute.xlu0 %973
      %975 = vrot.lane.b32.xlu0 %v896, 12
      %v976 = vpop.permute.xlu0 %975
      %977 = vrot.lane.b32.xlu0 %v897, 12
      %v978 = vpop.permute.xlu0 %977
      %979 = vrot.lane.b32.xlu0 %v898, 12
      %v980 = vpop.permute.xlu0 %979
      %981 = vrot.lane.b32.xlu0 %v899, 12
      %v982 = vpop.permute.xlu0 %981
      %983 = vrot.lane.b32.xlu0 %v900, 12
      %v984 = vpop.permute.xlu0 %983
      %985 = vrot.lane.b32.xlu0 %v901, 12
      %v986 = vpop.permute.xlu0 %985
      %987 = vrot.lane.b32.xlu0 %v902, 12
      %v988 = vpop.permute.xlu0 %987
      %989 = vrot.lane.b32.xlu0 %v903, 12
      %v990 = vpop.permute.xlu0 %989
      %991 = vrot.lane.b32.xlu0 %v904, 12
      %v992 = vpop.permute.xlu0 %991
      %993 = vrot.lane.b32.xlu0 %v905, 12
      %v994 = vpop.permute.xlu0 %993
      %995 = vrot.lane.b32.xlu0 %v906, 12
      %v996 = vpop.permute.xlu0 %995
      %997 = vrot.lane.b32.xlu0 %v907, 12
      %v998 = vpop.permute.xlu0 %997
      %999 = vrot.lane.b32.xlu0 %v908, 12
      %v1000 = vpop.permute.xlu0 %999
      %1001 = vrot.lane.b32.xlu0 %v909, 12
      %v1002 = vpop.permute.xlu0 %1001
      %1003 = vrot.lane.b32.xlu0 %v910, 12
      %v1004 = vpop.permute.xlu0 %1003
      %1005 = vrot.lane.b32.xlu0 %v911, 12
      %v1006 = vpop.permute.xlu0 %1005
      %1007 = vrot.lane.b32.xlu0 %v912, 12
      %v1008 = vpop.permute.xlu0 %1007
      %vm1041 = vcmask 130144
      %1042 = vst.msk [vmem:[#allocation5] sm:$0xff] %vm1041, %v946
      %1043 = vst.msk [vmem:[#allocation5 + $0x8] sm:$0xff] %vm1041, %v948
      %1044 = vst.msk [vmem:[#allocation5 + $0x10] sm:$0xff] %vm1041, %v950
      %1045 = vst.msk [vmem:[#allocation5 + $0x18] sm:$0xff] %vm1041, %v952
      %1046 = vst.msk [vmem:[#allocation5 + $0x20] sm:$0xff] %vm1041, %v954
      %1047 = vst.msk [vmem:[#allocation5 + $0x28] sm:$0xff] %vm1041, %v956
      %1048 = vst.msk [vmem:[#allocation5 + $0x30] sm:$0xff] %vm1041, %v958
      %1049 = vst.msk [vmem:[#allocation5 + $0x38] sm:$0xff] %vm1041, %v960
      %1050 = vst.msk [vmem:[#allocation5 + $0x40] sm:$0xff] %vm1041, %v962
      %1051 = vst.msk [vmem:[#allocation5 + $0x48] sm:$0xff] %vm1041, %v964
      %1052 = vst.msk [vmem:[#allocation5 + $0x50] sm:$0xff] %vm1041, %v966
      %1053 = vst.msk [vmem:[#allocation5 + $0x58] sm:$0xff] %vm1041, %v968
      %1054 = vst.msk [vmem:[#allocation5 + $0x60] sm:$0xff] %vm1041, %v970
      %1055 = vst.msk [vmem:[#allocation5 + $0x68] sm:$0xff] %vm1041, %v972
      %1056 = vst.msk [vmem:[#allocation5 + $0x70] sm:$0xff] %vm1041, %v974
      %1057 = vst.msk [vmem:[#allocation5 + $0x78] sm:$0xff] %vm1041, %v976
      %1058 = vst.msk [vmem:[#allocation5 + $0x80] sm:$0xff] %vm1041, %v978
      %1059 = vst.msk [vmem:[#allocation5 + $0x88] sm:$0xff] %vm1041, %v980
      %1060 = vst.msk [vmem:[#allocation5 + $0x90] sm:$0xff] %vm1041, %v982
      %1061 = vst.msk [vmem:[#allocation5 + $0x98] sm:$0xff] %vm1041, %v984
      %1062 = vst.msk [vmem:[#allocation5 + $0xa0] sm:$0xff] %vm1041, %v986
      %1063 = vst.msk [vmem:[#allocation5 + $0xa8] sm:$0xff] %vm1041, %v988
      %1064 = vst.msk [vmem:[#allocation5 + $0xb0] sm:$0xff] %vm1041, %v990
      %1065 = vst.msk [vmem:[#allocation5 + $0xb8] sm:$0xff] %vm1041, %v992
      %1066 = vst.msk [vmem:[#allocation5 + $0xc0] sm:$0xff] %vm1041, %v994
      %1067 = vst.msk [vmem:[#allocation5 + $0xc8] sm:$0xff] %vm1041, %v996
      %1068 = vst.msk [vmem:[#allocation5 + $0xd0] sm:$0xff] %vm1041, %v998
      %1069 = vst.msk [vmem:[#allocation5 + $0xd8] sm:$0xff] %vm1041, %v1000
      %1070 = vst.msk [vmem:[#allocation5 + $0xe0] sm:$0xff] %vm1041, %v1002
      %1071 = vst.msk [vmem:[#allocation5 + $0xe8] sm:$0xff] %vm1041, %v1004
      %1072 = vst.msk [vmem:[#allocation5 + $0xf0] sm:$0xff] %vm1041, %v1006
      %1073 = vst.msk [vmem:[#allocation5 + $0xf8] sm:$0xff] %vm1041, %v1008
      %v1074 = vld [vmem:[%s880 + $0x1] sm:$0xff]
      %v1075 = vld [vmem:[%s880 + $0x9] sm:$0xff]
      %v1076 = vld [vmem:[%s880 + $0x19] sm:$0xff]
      %v1077 = vld [vmem:[%s880 + $0x21] sm:$0xff]
      %v1078 = vld [vmem:[%s880 + $0x31] sm:$0xff]
      %v1079 = vld [vmem:[%s880 + $0x39] sm:$0xff]
      %v1080 = vld [vmem:[%s880 + $0x49] sm:$0xff]
      %v1081 = vld [vmem:[%s880 + $0x51] sm:$0xff]
      %v1082 = vld [vmem:[%s880 + $0x61] sm:$0xff]
      %v1083 = vld [vmem:[%s880 + $0x69] sm:$0xff]
      %v1084 = vld [vmem:[%s880 + $0x79] sm:$0xff]
      %v1085 = vld [vmem:[%s880 + $0x81] sm:$0xff]
      %v1086 = vld [vmem:[%s880 + $0x91] sm:$0xff]
      %v1087 = vld [vmem:[%s880 + $0x99] sm:$0xff]
      %v1088 = vld [vmem:[%s880 + $0xa9] sm:$0xff]
      %v1089 = vld [vmem:[%s880 + $0xb1] sm:$0xff]
      %v1090 = vld [vmem:[%s880 + $0xc1] sm:$0xff]
      %v1091 = vld [vmem:[%s880 + $0xc9] sm:$0xff]
      %v1092 = vld [vmem:[%s880 + $0xd9] sm:$0xff]
      %v1093 = vld [vmem:[%s880 + $0xe1] sm:$0xff]
      %v1094 = vld [vmem:[%s880 + $0xf1] sm:$0xff]
      %v1095 = vld [vmem:[%s880 + $0xf9] sm:$0xff]
      %v1096 = vld [vmem:[%s880 + $0x109] sm:$0xff]
      %v1097 = vld [vmem:[%s880 + $0x111] sm:$0xff]
      %v1098 = vld [vmem:[%s880 + $0x121] sm:$0xff]
      %v1099 = vld [vmem:[%s880 + $0x129] sm:$0xff]
      %v1100 = vld [vmem:[%s880 + $0x139] sm:$0xff]
      %v1101 = vld [vmem:[%s880 + $0x141] sm:$0xff]
      %v1102 = vld [vmem:[%s880 + $0x151] sm:$0xff]
      %v1103 = vld [vmem:[%s880 + $0x159] sm:$0xff]
      %v1104 = vld [vmem:[%s880 + $0x169] sm:$0xff]
      %v1105 = vld [vmem:[%s880 + $0x171] sm:$0xff]
      %1138 = vrot.lane.b32.xlu0 %v1074, 16
      %v1139 = vpop.permute.xlu0 %1138
      %1140 = vrot.lane.b32.xlu0 %v1075, 16
      %v1141 = vpop.permute.xlu0 %1140
      %1142 = vrot.lane.b32.xlu0 %v1076, 16
      %v1143 = vpop.permute.xlu0 %1142
      %1144 = vrot.lane.b32.xlu0 %v1077, 16
      %v1145 = vpop.permute.xlu0 %1144
      %1146 = vrot.lane.b32.xlu0 %v1078, 16
      %v1147 = vpop.permute.xlu0 %1146
      %1148 = vrot.lane.b32.xlu0 %v1079, 16
      %v1149 = vpop.permute.xlu0 %1148
      %1150 = vrot.lane.b32.xlu0 %v1080, 16
      %v1151 = vpop.permute.xlu0 %1150
      %1152 = vrot.lane.b32.xlu0 %v1081, 16
      %v1153 = vpop.permute.xlu0 %1152
      %1154 = vrot.lane.b32.xlu0 %v1082, 16
      %v1155 = vpop.permute.xlu0 %1154
      %1156 = vrot.lane.b32.xlu0 %v1083, 16
      %v1157 = vpop.permute.xlu0 %1156
      %1158 = vrot.lane.b32.xlu0 %v1084, 16
      %v1159 = vpop.permute.xlu0 %1158
      %1160 = vrot.lane.b32.xlu0 %v1085, 16
      %v1161 = vpop.permute.xlu0 %1160
      %1162 = vrot.lane.b32.xlu0 %v1086, 16
      %v1163 = vpop.permute.xlu0 %1162
      %1164 = vrot.lane.b32.xlu0 %v1087, 16
      %v1165 = vpop.permute.xlu0 %1164
      %1166 = vrot.lane.b32.xlu0 %v1088, 16
      %v1167 = vpop.permute.xlu0 %1166
      %1168 = vrot.lane.b32.xlu0 %v1089, 16
      %v1169 = vpop.permute.xlu0 %1168
      %1170 = vrot.lane.b32.xlu0 %v1090, 16
      %v1171 = vpop.permute.xlu0 %1170
      %1172 = vrot.lane.b32.xlu0 %v1091, 16
      %v1173 = vpop.permute.xlu0 %1172
      %1174 = vrot.lane.b32.xlu0 %v1092, 16
      %v1175 = vpop.permute.xlu0 %1174
      %1176 = vrot.lane.b32.xlu0 %v1093, 16
      %v1177 = vpop.permute.xlu0 %1176
      %1178 = vrot.lane.b32.xlu0 %v1094, 16
      %v1179 = vpop.permute.xlu0 %1178
      %1180 = vrot.lane.b32.xlu0 %v1095, 16
      %v1181 = vpop.permute.xlu0 %1180
      %1182 = vrot.lane.b32.xlu0 %v1096, 16
      %v1183 = vpop.permute.xlu0 %1182
      %1184 = vrot.lane.b32.xlu0 %v1097, 16
      %v1185 = vpop.permute.xlu0 %1184
      %1186 = vrot.lane.b32.xlu0 %v1098, 16
      %v1187 = vpop.permute.xlu0 %1186
      %1188 = vrot.lane.b32.xlu0 %v1099, 16
      %v1189 = vpop.permute.xlu0 %1188
      %1190 = vrot.lane.b32.xlu0 %v1100, 16
      %v1191 = vpop.permute.xlu0 %1190
      %1192 = vrot.lane.b32.xlu0 %v1101, 16
      %v1193 = vpop.permute.xlu0 %1192
      %1194 = vrot.lane.b32.xlu0 %v1102, 16
      %v1195 = vpop.permute.xlu0 %1194
      %1196 = vrot.lane.b32.xlu0 %v1103, 16
      %v1197 = vpop.permute.xlu0 %1196
      %1198 = vrot.lane.b32.xlu0 %v1104, 16
      %v1199 = vpop.permute.xlu0 %1198
      %1200 = vrot.lane.b32.xlu0 %v1105, 16
      %v1201 = vpop.permute.xlu0 %1200
      %vm1234 = vcmask 162944
      %1235 = vst.msk [vmem:[#allocation5] sm:$0xff] %vm1234, %v1139
      %1236 = vst.msk [vmem:[#allocation5 + $0x8] sm:$0xff] %vm1234, %v1141
      %1237 = vst.msk [vmem:[#allocation5 + $0x10] sm:$0xff] %vm1234, %v1143
      %1238 = vst.msk [vmem:[#allocation5 + $0x18] sm:$0xff] %vm1234, %v1145
      %1239 = vst.msk [vmem:[#allocation5 + $0x20] sm:$0xff] %vm1234, %v1147
      %1240 = vst.msk [vmem:[#allocation5 + $0x28] sm:$0xff] %vm1234, %v1149
      %1241 = vst.msk [vmem:[#allocation5 + $0x30] sm:$0xff] %vm1234, %v1151
      %1242 = vst.msk [vmem:[#allocation5 + $0x38] sm:$0xff] %vm1234, %v1153
      %1243 = vst.msk [vmem:[#allocation5 + $0x40] sm:$0xff] %vm1234, %v1155
      %1244 = vst.msk [vmem:[#allocation5 + $0x48] sm:$0xff] %vm1234, %v1157
      %1245 = vst.msk [vmem:[#allocation5 + $0x50] sm:$0xff] %vm1234, %v1159
      %1246 = vst.msk [vmem:[#allocation5 + $0x58] sm:$0xff] %vm1234, %v1161
      %1247 = vst.msk [vmem:[#allocation5 + $0x60] sm:$0xff] %vm1234, %v1163
      %1248 = vst.msk [vmem:[#allocation5 + $0x68] sm:$0xff] %vm1234, %v1165
      %1249 = vst.msk [vmem:[#allocation5 + $0x70] sm:$0xff] %vm1234, %v1167
      %1250 = vst.msk [vmem:[#allocation5 + $0x78] sm:$0xff] %vm1234, %v1169
      %1251 = vst.msk [vmem:[#allocation5 + $0x80] sm:$0xff] %vm1234, %v1171
      %1252 = vst.msk [vmem:[#allocation5 + $0x88] sm:$0xff] %vm1234, %v1173
      %1253 = vst.msk [vmem:[#allocation5 + $0x90] sm:$0xff] %vm1234, %v1175
      %1254 = vst.msk [vmem:[#allocation5 + $0x98] sm:$0xff] %vm1234, %v1177
      %1255 = vst.msk [vmem:[#allocation5 + $0xa0] sm:$0xff] %vm1234, %v1179
      %1256 = vst.msk [vmem:[#allocation5 + $0xa8] sm:$0xff] %vm1234, %v1181
      %1257 = vst.msk [vmem:[#allocation5 + $0xb0] sm:$0xff] %vm1234, %v1183
      %1258 = vst.msk [vmem:[#allocation5 + $0xb8] sm:$0xff] %vm1234, %v1185
      %1259 = vst.msk [vmem:[#allocation5 + $0xc0] sm:$0xff] %vm1234, %v1187
      %1260 = vst.msk [vmem:[#allocation5 + $0xc8] sm:$0xff] %vm1234, %v1189
      %1261 = vst.msk [vmem:[#allocation5 + $0xd0] sm:$0xff] %vm1234, %v1191
      %1262 = vst.msk [vmem:[#allocation5 + $0xd8] sm:$0xff] %vm1234, %v1193
      %1263 = vst.msk [vmem:[#allocation5 + $0xe0] sm:$0xff] %vm1234, %v1195
      %1264 = vst.msk [vmem:[#allocation5 + $0xe8] sm:$0xff] %vm1234, %v1197
      %1265 = vst.msk [vmem:[#allocation5 + $0xf0] sm:$0xff] %vm1234, %v1199
      %1266 = vst.msk [vmem:[#allocation5 + $0xf8] sm:$0xff] %vm1234, %v1201
      %v1267 = vld [vmem:[%s880 + $0x2] sm:$0xff]
      %v1268 = vld [vmem:[%s880 + $0xa] sm:$0xff]
      %v1269 = vld [vmem:[%s880 + $0x1a] sm:$0xff]
      %v1270 = vld [vmem:[%s880 + $0x22] sm:$0xff]
      %v1271 = vld [vmem:[%s880 + $0x32] sm:$0xff]
      %v1272 = vld [vmem:[%s880 + $0x3a] sm:$0xff]
      %v1273 = vld [vmem:[%s880 + $0x4a] sm:$0xff]
      %v1274 = vld [vmem:[%s880 + $0x52] sm:$0xff]
      %v1275 = vld [vmem:[%s880 + $0x62] sm:$0xff]
      %v1276 = vld [vmem:[%s880 + $0x6a] sm:$0xff]
      %v1277 = vld [vmem:[%s880 + $0x7a] sm:$0xff]
      %v1278 = vld [vmem:[%s880 + $0x82] sm:$0xff]
      %v1279 = vld [vmem:[%s880 + $0x92] sm:$0xff]
      %v1280 = vld [vmem:[%s880 + $0x9a] sm:$0xff]
      %v1281 = vld [vmem:[%s880 + $0xaa] sm:$0xff]
      %v1282 = vld [vmem:[%s880 + $0xb2] sm:$0xff]
      %v1283 = vld [vmem:[%s880 + $0xc2] sm:$0xff]
      %v1284 = vld [vmem:[%s880 + $0xca] sm:$0xff]
      %v1285 = vld [vmem:[%s880 + $0xda] sm:$0xff]
      %v1286 = vld [vmem:[%s880 + $0xe2] sm:$0xff]
      %v1287 = vld [vmem:[%s880 + $0xf2] sm:$0xff]
      %v1288 = vld [vmem:[%s880 + $0xfa] sm:$0xff]
      %v1289 = vld [vmem:[%s880 + $0x10a] sm:$0xff]
      %v1290 = vld [vmem:[%s880 + $0x112] sm:$0xff]
      %v1291 = vld [vmem:[%s880 + $0x122] sm:$0xff]
      %v1292 = vld [vmem:[%s880 + $0x12a] sm:$0xff]
      %v1293 = vld [vmem:[%s880 + $0x13a] sm:$0xff]
      %v1294 = vld [vmem:[%s880 + $0x142] sm:$0xff]
      %v1295 = vld [vmem:[%s880 + $0x152] sm:$0xff]
      %v1296 = vld [vmem:[%s880 + $0x15a] sm:$0xff]
      %v1297 = vld [vmem:[%s880 + $0x16a] sm:$0xff]
      %v1298 = vld [vmem:[%s880 + $0x172] sm:$0xff]
      %1331 = vrot.lane.b32.xlu0 %v1267, 20
      %v1332 = vpop.permute.xlu0 %1331
      %1333 = vrot.lane.b32.xlu0 %v1268, 20
      %v1334 = vpop.permute.xlu0 %1333
      %1335 = vrot.lane.b32.xlu0 %v1269, 20
      %v1336 = vpop.permute.xlu0 %1335
      %1337 = vrot.lane.b32.xlu0 %v1270, 20
      %v1338 = vpop.permute.xlu0 %1337
      %1339 = vrot.lane.b32.xlu0 %v1271, 20
      %v1340 = vpop.permute.xlu0 %1339
      %1341 = vrot.lane.b32.xlu0 %v1272, 20
      %v1342 = vpop.permute.xlu0 %1341
      %1343 = vrot.lane.b32.xlu0 %v1273, 20
      %v1344 = vpop.permute.xlu0 %1343
      %1345 = vrot.lane.b32.xlu0 %v1274, 20
      %v1346 = vpop.permute.xlu0 %1345
      %1347 = vrot.lane.b32.xlu0 %v1275, 20
      %v1348 = vpop.permute.xlu0 %1347
      %1349 = vrot.lane.b32.xlu0 %v1276, 20
      %v1350 = vpop.permute.xlu0 %1349
      %1351 = vrot.lane.b32.xlu0 %v1277, 20
      %v1352 = vpop.permute.xlu0 %1351
      %1353 = vrot.lane.b32.xlu0 %v1278, 20
      %v1354 = vpop.permute.xlu0 %1353
      %1355 = vrot.lane.b32.xlu0 %v1279, 20
      %v1356 = vpop.permute.xlu0 %1355
      %1357 = vrot.lane.b32.xlu0 %v1280, 20
      %v1358 = vpop.permute.xlu0 %1357
      %1359 = vrot.lane.b32.xlu0 %v1281, 20
      %v1360 = vpop.permute.xlu0 %1359
      %1361 = vrot.lane.b32.xlu0 %v1282, 20
      %v1362 = vpop.permute.xlu0 %1361
      %1363 = vrot.lane.b32.xlu0 %v1283, 20
      %v1364 = vpop.permute.xlu0 %1363
      %1365 = vrot.lane.b32.xlu0 %v1284, 20
      %v1366 = vpop.permute.xlu0 %1365
      %1367 = vrot.lane.b32.xlu0 %v1285, 20
      %v1368 = vpop.permute.xlu0 %1367
      %1369 = vrot.lane.b32.xlu0 %v1286, 20
      %v1370 = vpop.permute.xlu0 %1369
      %1371 = vrot.lane.b32.xlu0 %v1287, 20
      %v1372 = vpop.permute.xlu0 %1371
      %1373 = vrot.lane.b32.xlu0 %v1288, 20
      %v1374 = vpop.permute.xlu0 %1373
      %1375 = vrot.lane.b32.xlu0 %v1289, 20
      %v1376 = vpop.permute.xlu0 %1375
      %1377 = vrot.lane.b32.xlu0 %v1290, 20
      %v1378 = vpop.permute.xlu0 %1377
      %1379 = vrot.lane.b32.xlu0 %v1291, 20
      %v1380 = vpop.permute.xlu0 %1379
      %1381 = vrot.lane.b32.xlu0 %v1292, 20
      %v1382 = vpop.permute.xlu0 %1381
      %1383 = vrot.lane.b32.xlu0 %v1293, 20
      %v1384 = vpop.permute.xlu0 %1383
      %1385 = vrot.lane.b32.xlu0 %v1294, 20
      %v1386 = vpop.permute.xlu0 %1385
      %1387 = vrot.lane.b32.xlu0 %v1295, 20
      %v1388 = vpop.permute.xlu0 %1387
      %1389 = vrot.lane.b32.xlu0 %v1296, 20
      %v1390 = vpop.permute.xlu0 %1389
      %1391 = vrot.lane.b32.xlu0 %v1297, 20
      %v1392 = vpop.permute.xlu0 %1391
      %1393 = vrot.lane.b32.xlu0 %v1298, 20
      %v1394 = vpop.permute.xlu0 %1393
      %vm1427 = vcmask 195744
      %1428 = vst.msk [vmem:[#allocation5] sm:$0xff] %vm1427, %v1332
      %1429 = vst.msk [vmem:[#allocation5 + $0x8] sm:$0xff] %vm1427, %v1334
      %1430 = vst.msk [vmem:[#allocation5 + $0x10] sm:$0xff] %vm1427, %v1336
      %1431 = vst.msk [vmem:[#allocation5 + $0x18] sm:$0xff] %vm1427, %v1338
      %1432 = vst.msk [vmem:[#allocation5 + $0x20] sm:$0xff] %vm1427, %v1340
      %1433 = vst.msk [vmem:[#allocation5 + $0x28] sm:$0xff] %vm1427, %v1342
      %1434 = vst.msk [vmem:[#allocation5 + $0x30] sm:$0xff] %vm1427, %v1344
      %1435 = vst.msk [vmem:[#allocation5 + $0x38] sm:$0xff] %vm1427, %v1346
      %1436 = vst.msk [vmem:[#allocation5 + $0x40] sm:$0xff] %vm1427, %v1348
      %1437 = vst.msk [vmem:[#allocation5 + $0x48] sm:$0xff] %vm1427, %v1350
      %1438 = vst.msk [vmem:[#allocation5 + $0x50] sm:$0xff] %vm1427, %v1352
      %1439 = vst.msk [vmem:[#allocation5 + $0x58] sm:$0xff] %vm1427, %v1354
      %1440 = vst.msk [vmem:[#allocation5 + $0x60] sm:$0xff] %vm1427, %v1356
      %1441 = vst.msk [vmem:[#allocation5 + $0x68] sm:$0xff] %vm1427, %v1358
      %1442 = vst.msk [vmem:[#allocation5 + $0x70] sm:$0xff] %vm1427, %v1360
      %1443 = vst.msk [vmem:[#allocation5 + $0x78] sm:$0xff] %vm1427, %v1362
      %1444 = vst.msk [vmem:[#allocation5 + $0x80] sm:$0xff] %vm1427, %v1364
      %1445 = vst.msk [vmem:[#allocation5 + $0x88] sm:$0xff] %vm1427, %v1366
      %1446 = vst.msk [vmem:[#allocation5 + $0x90] sm:$0xff] %vm1427, %v1368
      %1447 = vst.msk [vmem:[#allocation5 + $0x98] sm:$0xff] %vm1427, %v1370
      %1448 = vst.msk [vmem:[#allocation5 + $0xa0] sm:$0xff] %vm1427, %v1372
      %1449 = vst.msk [vmem:[#allocation5 + $0xa8] sm:$0xff] %vm1427, %v1374
      %1450 = vst.msk [vmem:[#allocation5 + $0xb0] sm:$0xff] %vm1427, %v1376
      %1451 = vst.msk [vmem:[#allocation5 + $0xb8] sm:$0xff] %vm1427, %v1378
      %1452 = vst.msk [vmem:[#allocation5 + $0xc0] sm:$0xff] %vm1427, %v1380
      %1453 = vst.msk [vmem:[#allocation5 + $0xc8] sm:$0xff] %vm1427, %v1382
      %1454 = vst.msk [vmem:[#allocation5 + $0xd0] sm:$0xff] %vm1427, %v1384
      %1455 = vst.msk [vmem:[#allocation5 + $0xd8] sm:$0xff] %vm1427, %v1386
      %1456 = vst.msk [vmem:[#allocation5 + $0xe0] sm:$0xff] %vm1427, %v1388
      %1457 = vst.msk [vmem:[#allocation5 + $0xe8] sm:$0xff] %vm1427, %v1390
      %1458 = vst.msk [vmem:[#allocation5 + $0xf0] sm:$0xff] %vm1427, %v1392
      %1459 = vst.msk [vmem:[#allocation5 + $0xf8] sm:$0xff] %vm1427, %v1394
      %s1460 = scalar_lea.vmem %s327, 48
      %v1461 = vld [vmem:[%s1460] sm:$0xff]
      %v1462 = vld [vmem:[%s1460 + $0x8] sm:$0xff]
      %v1463 = vld [vmem:[%s1460 + $0x18] sm:$0xff]
      %v1464 = vld [vmem:[%s1460 + $0x20] sm:$0xff]
      %v1465 = vld [vmem:[%s1460 + $0x30] sm:$0xff]
      %v1466 = vld [vmem:[%s1460 + $0x38] sm:$0xff]
      %v1467 = vld [vmem:[%s1460 + $0x48] sm:$0xff]
      %v1468 = vld [vmem:[%s1460 + $0x50] sm:$0xff]
      %v1469 = vld [vmem:[%s1460 + $0x60] sm:$0xff]
      %v1470 = vld [vmem:[%s1460 + $0x68] sm:$0xff]
      %v1471 = vld [vmem:[%s1460 + $0x78] sm:$0xff]
      %v1472 = vld [vmem:[%s1460 + $0x80] sm:$0xff]
      %v1473 = vld [vmem:[%s1460 + $0x90] sm:$0xff]
      %v1474 = vld [vmem:[%s1460 + $0x98] sm:$0xff]
      %v1475 = vld [vmem:[%s1460 + $0xa8] sm:$0xff]
      %v1476 = vld [vmem:[%s1460 + $0xb0] sm:$0xff]
      %v1477 = vld [vmem:[%s1460 + $0xc0] sm:$0xff]
      %v1478 = vld [vmem:[%s1460 + $0xc8] sm:$0xff]
      %v1479 = vld [vmem:[%s1460 + $0xd8] sm:$0xff]
      %v1480 = vld [vmem:[%s1460 + $0xe0] sm:$0xff]
      %v1481 = vld [vmem:[%s1460 + $0xf0] sm:$0xff]
      %v1482 = vld [vmem:[%s1460 + $0xf8] sm:$0xff]
      %v1483 = vld [vmem:[%s1460 + $0x108] sm:$0xff]
      %v1484 = vld [vmem:[%s1460 + $0x110] sm:$0xff]
      %v1485 = vld [vmem:[%s1460 + $0x120] sm:$0xff]
      %v1486 = vld [vmem:[%s1460 + $0x128] sm:$0xff]
      %v1487 = vld [vmem:[%s1460 + $0x138] sm:$0xff]
      %v1488 = vld [vmem:[%s1460 + $0x140] sm:$0xff]
      %v1489 = vld [vmem:[%s1460 + $0x150] sm:$0xff]
      %v1490 = vld [vmem:[%s1460 + $0x158] sm:$0xff]
      %v1491 = vld [vmem:[%s1460 + $0x168] sm:$0xff]
      %v1492 = vld [vmem:[%s1460 + $0x170] sm:$0xff]
      %1525 = vrot.lane.b32.xlu0 %v1461, 24
      %v1526 = vpop.permute.xlu0 %1525
      %1527 = vrot.lane.b32.xlu0 %v1462, 24
      %v1528 = vpop.permute.xlu0 %1527
      %1529 = vrot.lane.b32.xlu0 %v1463, 24
      %v1530 = vpop.permute.xlu0 %1529
      %1531 = vrot.lane.b32.xlu0 %v1464, 24
      %v1532 = vpop.permute.xlu0 %1531
      %1533 = vrot.lane.b32.xlu0 %v1465, 24
      %v1534 = vpop.permute.xlu0 %1533
      %1535 = vrot.lane.b32.xlu0 %v1466, 24
      %v1536 = vpop.permute.xlu0 %1535
      %1537 = vrot.lane.b32.xlu0 %v1467, 24
      %v1538 = vpop.permute.xlu0 %1537
      %1539 = vrot.lane.b32.xlu0 %v1468, 24
      %v1540 = vpop.permute.xlu0 %1539
      %1541 = vrot.lane.b32.xlu0 %v1469, 24
      %v1542 = vpop.permute.xlu0 %1541
      %1543 = vrot.lane.b32.xlu0 %v1470, 24
      %v1544 = vpop.permute.xlu0 %1543
      %1545 = vrot.lane.b32.xlu0 %v1471, 24
      %v1546 = vpop.permute.xlu0 %1545
      %1547 = vrot.lane.b32.xlu0 %v1472, 24
      %v1548 = vpop.permute.xlu0 %1547
      %1549 = vrot.lane.b32.xlu0 %v1473, 24
      %v1550 = vpop.permute.xlu0 %1549
      %1551 = vrot.lane.b32.xlu0 %v1474, 24
      %v1552 = vpop.permute.xlu0 %1551
      %1553 = vrot.lane.b32.xlu0 %v1475, 24
      %v1554 = vpop.permute.xlu0 %1553
      %1555 = vrot.lane.b32.xlu0 %v1476, 24
      %v1556 = vpop.permute.xlu0 %1555
      %1557 = vrot.lane.b32.xlu0 %v1477, 24
      %v1558 = vpop.permute.xlu0 %1557
      %1559 = vrot.lane.b32.xlu0 %v1478, 24
      %v1560 = vpop.permute.xlu0 %1559
      %1561 = vrot.lane.b32.xlu0 %v1479, 24
      %v1562 = vpop.permute.xlu0 %1561
      %1563 = vrot.lane.b32.xlu0 %v1480, 24
      %v1564 = vpop.permute.xlu0 %1563
      %1565 = vrot.lane.b32.xlu0 %v1481, 24
      %v1566 = vpop.permute.xlu0 %1565
      %1567 = vrot.lane.b32.xlu0 %v1482, 24
      %v1568 = vpop.permute.xlu0 %1567
      %1569 = vrot.lane.b32.xlu0 %v1483, 24
      %v1570 = vpop.permute.xlu0 %1569
      %1571 = vrot.lane.b32.xlu0 %v1484, 24
      %v1572 = vpop.permute.xlu0 %1571
      %1573 = vrot.lane.b32.xlu0 %v1485, 24
      %v1574 = vpop.permute.xlu0 %1573
      %1575 = vrot.lane.b32.xlu0 %v1486, 24
      %v1576 = vpop.permute.xlu0 %1575
      %1577 = vrot.lane.b32.xlu0 %v1487, 24
      %v1578 = vpop.permute.xlu0 %1577
      %1579 = vrot.lane.b32.xlu0 %v1488, 24
      %v1580 = vpop.permute.xlu0 %1579
      %1581 = vrot.lane.b32.xlu0 %v1489, 24
      %v1582 = vpop.permute.xlu0 %1581
      %1583 = vrot.lane.b32.xlu0 %v1490, 24
      %v1584 = vpop.permute.xlu0 %1583
      %1585 = vrot.lane.b32.xlu0 %v1491, 24
      %v1586 = vpop.permute.xlu0 %1585
      %1587 = vrot.lane.b32.xlu0 %v1492, 24
      %v1588 = vpop.permute.xlu0 %1587
      %vm1621 = vcmask 228544
      %1622 = vst.msk [vmem:[#allocation5] sm:$0xff] %vm1621, %v1526
      %1623 = vst.msk [vmem:[#allocation5 + $0x8] sm:$0xff] %vm1621, %v1528
      %1624 = vst.msk [vmem:[#allocation5 + $0x10] sm:$0xff] %vm1621, %v1530
      %1625 = vst.msk [vmem:[#allocation5 + $0x18] sm:$0xff] %vm1621, %v1532
      %1626 = vst.msk [vmem:[#allocation5 + $0x20] sm:$0xff] %vm1621, %v1534
      %1627 = vst.msk [vmem:[#allocation5 + $0x28] sm:$0xff] %vm1621, %v1536
      %1628 = vst.msk [vmem:[#allocation5 + $0x30] sm:$0xff] %vm1621, %v1538
      %1629 = vst.msk [vmem:[#allocation5 + $0x38] sm:$0xff] %vm1621, %v1540
      %1630 = vst.msk [vmem:[#allocation5 + $0x40] sm:$0xff] %vm1621, %v1542
      %1631 = vst.msk [vmem:[#allocation5 + $0x48] sm:$0xff] %vm1621, %v1544
      %1632 = vst.msk [vmem:[#allocation5 + $0x50] sm:$0xff] %vm1621, %v1546
      %1633 = vst.msk [vmem:[#allocation5 + $0x58] sm:$0xff] %vm1621, %v1548
      %1634 = vst.msk [vmem:[#allocation5 + $0x60] sm:$0xff] %vm1621, %v1550
      %1635 = vst.msk [vmem:[#allocation5 + $0x68] sm:$0xff] %vm1621, %v1552
      %1636 = vst.msk [vmem:[#allocation5 + $0x70] sm:$0xff] %vm1621, %v1554
      %1637 = vst.msk [vmem:[#allocation5 + $0x78] sm:$0xff] %vm1621, %v1556
      %1638 = vst.msk [vmem:[#allocation5 + $0x80] sm:$0xff] %vm1621, %v1558
      %1639 = vst.msk [vmem:[#allocation5 + $0x88] sm:$0xff] %vm1621, %v1560
      %1640 = vst.msk [vmem:[#allocation5 + $0x90] sm:$0xff] %vm1621, %v1562
      %1641 = vst.msk [vmem:[#allocation5 + $0x98] sm:$0xff] %vm1621, %v1564
      %1642 = vst.msk [vmem:[#allocation5 + $0xa0] sm:$0xff] %vm1621, %v1566
      %1643 = vst.msk [vmem:[#allocation5 + $0xa8] sm:$0xff] %vm1621, %v1568
      %1644 = vst.msk [vmem:[#allocation5 + $0xb0] sm:$0xff] %vm1621, %v1570
      %1645 = vst.msk [vmem:[#allocation5 + $0xb8] sm:$0xff] %vm1621, %v1572
      %1646 = vst.msk [vmem:[#allocation5 + $0xc0] sm:$0xff] %vm1621, %v1574
      %1647 = vst.msk [vmem:[#allocation5 + $0xc8] sm:$0xff] %vm1621, %v1576
      %1648 = vst.msk [vmem:[#allocation5 + $0xd0] sm:$0xff] %vm1621, %v1578
      %1649 = vst.msk [vmem:[#allocation5 + $0xd8] sm:$0xff] %vm1621, %v1580
      %1650 = vst.msk [vmem:[#allocation5 + $0xe0] sm:$0xff] %vm1621, %v1582
      %1651 = vst.msk [vmem:[#allocation5 + $0xe8] sm:$0xff] %vm1621, %v1584
      %1652 = vst.msk [vmem:[#allocation5 + $0xf0] sm:$0xff] %vm1621, %v1586
      %1653 = vst.msk [vmem:[#allocation5 + $0xf8] sm:$0xff] %vm1621, %v1588
      %v1654 = vld [vmem:[%s1460 + $0x1] sm:$0xff]
      %v1655 = vld [vmem:[%s1460 + $0x9] sm:$0xff]
      %v1656 = vld [vmem:[%s1460 + $0x19] sm:$0xff]
      %v1657 = vld [vmem:[%s1460 + $0x21] sm:$0xff]
      %v1658 = vld [vmem:[%s1460 + $0x31] sm:$0xff]
      %v1659 = vld [vmem:[%s1460 + $0x39] sm:$0xff]
      %v1660 = vld [vmem:[%s1460 + $0x49] sm:$0xff]
      %v1661 = vld [vmem:[%s1460 + $0x51] sm:$0xff]
      %v1662 = vld [vmem:[%s1460 + $0x61] sm:$0xff]
      %v1663 = vld [vmem:[%s1460 + $0x69] sm:$0xff]
      %v1664 = vld [vmem:[%s1460 + $0x79] sm:$0xff]
      %v1665 = vld [vmem:[%s1460 + $0x81] sm:$0xff]
      %v1666 = vld [vmem:[%s1460 + $0x91] sm:$0xff]
      %v1667 = vld [vmem:[%s1460 + $0x99] sm:$0xff]
      %v1668 = vld [vmem:[%s1460 + $0xa9] sm:$0xff]
      %v1669 = vld [vmem:[%s1460 + $0xb1] sm:$0xff]
      %v1670 = vld [vmem:[%s1460 + $0xc1] sm:$0xff]
      %v1671 = vld [vmem:[%s1460 + $0xc9] sm:$0xff]
      %v1672 = vld [vmem:[%s1460 + $0xd9] sm:$0xff]
      %v1673 = vld [vmem:[%s1460 + $0xe1] sm:$0xff]
      %v1674 = vld [vmem:[%s1460 + $0xf1] sm:$0xff]
      %v1675 = vld [vmem:[%s1460 + $0xf9] sm:$0xff]
      %v1676 = vld [vmem:[%s1460 + $0x109] sm:$0xff]
      %v1677 = vld [vmem:[%s1460 + $0x111] sm:$0xff]
      %v1678 = vld [vmem:[%s1460 + $0x121] sm:$0xff]
      %v1679 = vld [vmem:[%s1460 + $0x129] sm:$0xff]
      %v1680 = vld [vmem:[%s1460 + $0x139] sm:$0xff]
      %v1681 = vld [vmem:[%s1460 + $0x141] sm:$0xff]
      %v1682 = vld [vmem:[%s1460 + $0x151] sm:$0xff]
      %v1683 = vld [vmem:[%s1460 + $0x159] sm:$0xff]
      %v1684 = vld [vmem:[%s1460 + $0x169] sm:$0xff]
      %v1685 = vld [vmem:[%s1460 + $0x171] sm:$0xff]
      %1718 = vrot.lane.b32.xlu0 %v1654, 28
      %v1719 = vpop.permute.xlu0 %1718
      %1720 = vrot.lane.b32.xlu0 %v1655, 28
      %v1721 = vpop.permute.xlu0 %1720
      %1722 = vrot.lane.b32.xlu0 %v1656, 28
      %v1723 = vpop.permute.xlu0 %1722
      %1724 = vrot.lane.b32.xlu0 %v1657, 28
      %v1725 = vpop.permute.xlu0 %1724
      %1726 = vrot.lane.b32.xlu0 %v1658, 28
      %v1727 = vpop.permute.xlu0 %1726
      %1728 = vrot.lane.b32.xlu0 %v1659, 28
      %v1729 = vpop.permute.xlu0 %1728
      %1730 = vrot.lane.b32.xlu0 %v1660, 28
      %v1731 = vpop.permute.xlu0 %1730
      %1732 = vrot.lane.b32.xlu0 %v1661, 28
      %v1733 = vpop.permute.xlu0 %1732
      %1734 = vrot.lane.b32.xlu0 %v1662, 28
      %v1735 = vpop.permute.xlu0 %1734
      %1736 = vrot.lane.b32.xlu0 %v1663, 28
      %v1737 = vpop.permute.xlu0 %1736
      %1738 = vrot.lane.b32.xlu0 %v1664, 28
      %v1739 = vpop.permute.xlu0 %1738
      %1740 = vrot.lane.b32.xlu0 %v1665, 28
      %v1741 = vpop.permute.xlu0 %1740
      %1742 = vrot.lane.b32.xlu0 %v1666, 28
      %v1743 = vpop.permute.xlu0 %1742
      %1744 = vrot.lane.b32.xlu0 %v1667, 28
      %v1745 = vpop.permute.xlu0 %1744
      %1746 = vrot.lane.b32.xlu0 %v1668, 28
      %v1747 = vpop.permute.xlu0 %1746
      %1748 = vrot.lane.b32.xlu0 %v1669, 28
      %v1749 = vpop.permute.xlu0 %1748
      %1750 = vrot.lane.b32.xlu0 %v1670, 28
      %v1751 = vpop.permute.xlu0 %1750
      %1752 = vrot.lane.b32.xlu0 %v1671, 28
      %v1753 = vpop.permute.xlu0 %1752
      %1754 = vrot.lane.b32.xlu0 %v1672, 28
      %v1755 = vpop.permute.xlu0 %1754
      %1756 = vrot.lane.b32.xlu0 %v1673, 28
      %v1757 = vpop.permute.xlu0 %1756
      %1758 = vrot.lane.b32.xlu0 %v1674, 28
      %v1759 = vpop.permute.xlu0 %1758
      %1760 = vrot.lane.b32.xlu0 %v1675, 28
      %v1761 = vpop.permute.xlu0 %1760
      %1762 = vrot.lane.b32.xlu0 %v1676, 28
      %v1763 = vpop.permute.xlu0 %1762
      %1764 = vrot.lane.b32.xlu0 %v1677, 28
      %v1765 = vpop.permute.xlu0 %1764
      %1766 = vrot.lane.b32.xlu0 %v1678, 28
      %v1767 = vpop.permute.xlu0 %1766
      %1768 = vrot.lane.b32.xlu0 %v1679, 28
      %v1769 = vpop.permute.xlu0 %1768
      %1770 = vrot.lane.b32.xlu0 %v1680, 28
      %v1771 = vpop.permute.xlu0 %1770
      %1772 = vrot.lane.b32.xlu0 %v1681, 28
      %v1773 = vpop.permute.xlu0 %1772
      %1774 = vrot.lane.b32.xlu0 %v1682, 28
      %v1775 = vpop.permute.xlu0 %1774
      %1776 = vrot.lane.b32.xlu0 %v1683, 28
      %v1777 = vpop.permute.xlu0 %1776
      %1778 = vrot.lane.b32.xlu0 %v1684, 28
      %v1779 = vpop.permute.xlu0 %1778
      %1780 = vrot.lane.b32.xlu0 %v1685, 28
      %v1781 = vpop.permute.xlu0 %1780
      %vm1814 = vcmask 261344
      %1815 = vst.msk [vmem:[#allocation5] sm:$0xff] %vm1814, %v1719
      %1816 = vst.msk [vmem:[#allocation5 + $0x8] sm:$0xff] %vm1814, %v1721
      %1817 = vst.msk [vmem:[#allocation5 + $0x10] sm:$0xff] %vm1814, %v1723
      %1818 = vst.msk [vmem:[#allocation5 + $0x18] sm:$0xff] %vm1814, %v1725
      %1819 = vst.msk [vmem:[#allocation5 + $0x20] sm:$0xff] %vm1814, %v1727
      %1820 = vst.msk [vmem:[#allocation5 + $0x28] sm:$0xff] %vm1814, %v1729
      %1821 = vst.msk [vmem:[#allocation5 + $0x30] sm:$0xff] %vm1814, %v1731
      %1822 = vst.msk [vmem:[#allocation5 + $0x38] sm:$0xff] %vm1814, %v1733
      %1823 = vst.msk [vmem:[#allocation5 + $0x40] sm:$0xff] %vm1814, %v1735
      %1824 = vst.msk [vmem:[#allocation5 + $0x48] sm:$0xff] %vm1814, %v1737
      %1825 = vst.msk [vmem:[#allocation5 + $0x50] sm:$0xff] %vm1814, %v1739
      %1826 = vst.msk [vmem:[#allocation5 + $0x58] sm:$0xff] %vm1814, %v1741
      %1827 = vst.msk [vmem:[#allocation5 + $0x60] sm:$0xff] %vm1814, %v1743
      %1828 = vst.msk [vmem:[#allocation5 + $0x68] sm:$0xff] %vm1814, %v1745
      %1829 = vst.msk [vmem:[#allocation5 + $0x70] sm:$0xff] %vm1814, %v1747
      %1830 = vst.msk [vmem:[#allocation5 + $0x78] sm:$0xff] %vm1814, %v1749
      %1831 = vst.msk [vmem:[#allocation5 + $0x80] sm:$0xff] %vm1814, %v1751
      %1832 = vst.msk [vmem:[#allocation5 + $0x88] sm:$0xff] %vm1814, %v1753
      %1833 = vst.msk [vmem:[#allocation5 + $0x90] sm:$0xff] %vm1814, %v1755
      %1834 = vst.msk [vmem:[#allocation5 + $0x98] sm:$0xff] %vm1814, %v1757
      %1835 = vst.msk [vmem:[#allocation5 + $0xa0] sm:$0xff] %vm1814, %v1759
      %1836 = vst.msk [vmem:[#allocation5 + $0xa8] sm:$0xff] %vm1814, %v1761
      %1837 = vst.msk [vmem:[#allocation5 + $0xb0] sm:$0xff] %vm1814, %v1763
      %1838 = vst.msk [vmem:[#allocation5 + $0xb8] sm:$0xff] %vm1814, %v1765
      %1839 = vst.msk [vmem:[#allocation5 + $0xc0] sm:$0xff] %vm1814, %v1767
      %1840 = vst.msk [vmem:[#allocation5 + $0xc8] sm:$0xff] %vm1814, %v1769
      %1841 = vst.msk [vmem:[#allocation5 + $0xd0] sm:$0xff] %vm1814, %v1771
      %1842 = vst.msk [vmem:[#allocation5 + $0xd8] sm:$0xff] %vm1814, %v1773
      %1843 = vst.msk [vmem:[#allocation5 + $0xe0] sm:$0xff] %vm1814, %v1775
      %1844 = vst.msk [vmem:[#allocation5 + $0xe8] sm:$0xff] %vm1814, %v1777
      %1845 = vst.msk [vmem:[#allocation5 + $0xf0] sm:$0xff] %vm1814, %v1779
      %1846 = vst.msk [vmem:[#allocation5 + $0xf8] sm:$0xff] %vm1814, %v1781
      %v1847 = vld [vmem:[%s1460 + $0x2] sm:$0xff]
      %v1848 = vld [vmem:[%s1460 + $0xa] sm:$0xff]
      %v1849 = vld [vmem:[%s1460 + $0x1a] sm:$0xff]
      %v1850 = vld [vmem:[%s1460 + $0x22] sm:$0xff]
      %v1851 = vld [vmem:[%s1460 + $0x32] sm:$0xff]
      %v1852 = vld [vmem:[%s1460 + $0x3a] sm:$0xff]
      %v1853 = vld [vmem:[%s1460 + $0x4a] sm:$0xff]
      %v1854 = vld [vmem:[%s1460 + $0x52] sm:$0xff]
      %v1855 = vld [vmem:[%s1460 + $0x62] sm:$0xff]
      %v1856 = vld [vmem:[%s1460 + $0x6a] sm:$0xff]
      %v1857 = vld [vmem:[%s1460 + $0x7a] sm:$0xff]
      %v1858 = vld [vmem:[%s1460 + $0x82] sm:$0xff]
      %v1859 = vld [vmem:[%s1460 + $0x92] sm:$0xff]
      %v1860 = vld [vmem:[%s1460 + $0x9a] sm:$0xff]
      %v1861 = vld [vmem:[%s1460 + $0xaa] sm:$0xff]
      %v1862 = vld [vmem:[%s1460 + $0xb2] sm:$0xff]
      %v1863 = vld [vmem:[%s1460 + $0xc2] sm:$0xff]
      %v1864 = vld [vmem:[%s1460 + $0xca] sm:$0xff]
      %v1865 = vld [vmem:[%s1460 + $0xda] sm:$0xff]
      %v1866 = vld [vmem:[%s1460 + $0xe2] sm:$0xff]
      %v1867 = vld [vmem:[%s1460 + $0xf2] sm:$0xff]
      %v1868 = vld [vmem:[%s1460 + $0xfa] sm:$0xff]
      %v1869 = vld [vmem:[%s1460 + $0x10a] sm:$0xff]
      %v1870 = vld [vmem:[%s1460 + $0x112] sm:$0xff]
      %v1871 = vld [vmem:[%s1460 + $0x122] sm:$0xff]
      %v1872 = vld [vmem:[%s1460 + $0x12a] sm:$0xff]
      %v1873 = vld [vmem:[%s1460 + $0x13a] sm:$0xff]
      %v1874 = vld [vmem:[%s1460 + $0x142] sm:$0xff]
      %v1875 = vld [vmem:[%s1460 + $0x152] sm:$0xff]
      %v1876 = vld [vmem:[%s1460 + $0x15a] sm:$0xff]
      %v1877 = vld [vmem:[%s1460 + $0x16a] sm:$0xff]
      %v1878 = vld [vmem:[%s1460 + $0x172] sm:$0xff]
      %1911 = vrot.lane.b32.xlu0 %v1847, 32
      %v1912 = vpop.permute.xlu0 %1911
      %1913 = vrot.lane.b32.xlu0 %v1848, 32
      %v1914 = vpop.permute.xlu0 %1913
      %1915 = vrot.lane.b32.xlu0 %v1849, 32
      %v1916 = vpop.permute.xlu0 %1915
      %1917 = vrot.lane.b32.xlu0 %v1850, 32
      %v1918 = vpop.permute.xlu0 %1917
      %1919 = vrot.lane.b32.xlu0 %v1851, 32
      %v1920 = vpop.permute.xlu0 %1919
      %1921 = vrot.lane.b32.xlu0 %v1852, 32
      %v1922 = vpop.permute.xlu0 %1921
      %1923 = vrot.lane.b32.xlu0 %v1853, 32
      %v1924 = vpop.permute.xlu0 %1923
      %1925 = vrot.lane.b32.xlu0 %v1854, 32
      %v1926 = vpop.permute.xlu0 %1925
      %1927 = vrot.lane.b32.xlu0 %v1855, 32
      %v1928 = vpop.permute.xlu0 %1927
      %1929 = vrot.lane.b32.xlu0 %v1856, 32
      %v1930 = vpop.permute.xlu0 %1929
      %1931 = vrot.lane.b32.xlu0 %v1857, 32
      %v1932 = vpop.permute.xlu0 %1931
      %1933 = vrot.lane.b32.xlu0 %v1858, 32
      %v1934 = vpop.permute.xlu0 %1933
      %1935 = vrot.lane.b32.xlu0 %v1859, 32
      %v1936 = vpop.permute.xlu0 %1935
      %1937 = vrot.lane.b32.xlu0 %v1860, 32
      %v1938 = vpop.permute.xlu0 %1937
      %1939 = vrot.lane.b32.xlu0 %v1861, 32
      %v1940 = vpop.permute.xlu0 %1939
      %1941 = vrot.lane.b32.xlu0 %v1862, 32
      %v1942 = vpop.permute.xlu0 %1941
      %1943 = vrot.lane.b32.xlu0 %v1863, 32
      %v1944 = vpop.permute.xlu0 %1943
      %1945 = vrot.lane.b32.xlu0 %v1864, 32
      %v1946 = vpop.permute.xlu0 %1945
      %1947 = vrot.lane.b32.xlu0 %v1865, 32
      %v1948 = vpop.permute.xlu0 %1947
      %1949 = vrot.lane.b32.xlu0 %v1866, 32
      %v1950 = vpop.permute.xlu0 %1949
      %1951 = vrot.lane.b32.xlu0 %v1867, 32
      %v1952 = vpop.permute.xlu0 %1951
      %1953 = vrot.lane.b32.xlu0 %v1868, 32
      %v1954 = vpop.permute.xlu0 %1953
      %1955 = vrot.lane.b32.xlu0 %v1869, 32
      %v1956 = vpop.permute.xlu0 %1955
      %1957 = vrot.lane.b32.xlu0 %v1870, 32
      %v1958 = vpop.permute.xlu0 %1957
      %1959 = vrot.lane.b32.xlu0 %v1871, 32
      %v1960 = vpop.permute.xlu0 %1959
      %1961 = vrot.lane.b32.xlu0 %v1872, 32
      %v1962 = vpop.permute.xlu0 %1961
      %1963 = vrot.lane.b32.xlu0 %v1873, 32
      %v1964 = vpop.permute.xlu0 %1963
      %1965 = vrot.lane.b32.xlu0 %v1874, 32
      %v1966 = vpop.permute.xlu0 %1965
      %1967 = vrot.lane.b32.xlu0 %v1875, 32
      %v1968 = vpop.permute.xlu0 %1967
      %1969 = vrot.lane.b32.xlu0 %v1876, 32
      %v1970 = vpop.permute.xlu0 %1969
      %1971 = vrot.lane.b32.xlu0 %v1877, 32
      %v1972 = vpop.permute.xlu0 %1971
      %1973 = vrot.lane.b32.xlu0 %v1878, 32
      %v1974 = vpop.permute.xlu0 %1973
      %vm2007 = vcmask 294144
      %2008 = vst.msk [vmem:[#allocation5] sm:$0xff] %vm2007, %v1912
      %2009 = vst.msk [vmem:[#allocation5 + $0x8] sm:$0xff] %vm2007, %v1914
      %2010 = vst.msk [vmem:[#allocation5 + $0x10] sm:$0xff] %vm2007, %v1916
      %2011 = vst.msk [vmem:[#allocation5 + $0x18] sm:$0xff] %vm2007, %v1918
      %2012 = vst.msk [vmem:[#allocation5 + $0x20] sm:$0xff] %vm2007, %v1920
      %2013 = vst.msk [vmem:[#allocation5 + $0x28] sm:$0xff] %vm2007, %v1922
      %2014 = vst.msk [vmem:[#allocation5 + $0x30] sm:$0xff] %vm2007, %v1924
      %2015 = vst.msk [vmem:[#allocation5 + $0x38] sm:$0xff] %vm2007, %v1926
      %2016 = vst.msk [vmem:[#allocation5 + $0x40] sm:$0xff] %vm2007, %v1928
      %2017 = vst.msk [vmem:[#allocation5 + $0x48] sm:$0xff] %vm2007, %v1930
      %2018 = vst.msk [vmem:[#allocation5 + $0x50] sm:$0xff] %vm2007, %v1932
      %2019 = vst.msk [vmem:[#allocation5 + $0x58] sm:$0xff] %vm2007, %v1934
      %2020 = vst.msk [vmem:[#allocation5 + $0x60] sm:$0xff] %vm2007, %v1936
      %2021 = vst.msk [vmem:[#allocation5 + $0x68] sm:$0xff] %vm2007, %v1938
      %2022 = vst.msk [vmem:[#allocation5 + $0x70] sm:$0xff] %vm2007, %v1940
      %2023 = vst.msk [vmem:[#allocation5 + $0x78] sm:$0xff] %vm2007, %v1942
      %2024 = vst.msk [vmem:[#allocation5 + $0x80] sm:$0xff] %vm2007, %v1944
      %2025 = vst.msk [vmem:[#allocation5 + $0x88] sm:$0xff] %vm2007, %v1946
      %2026 = vst.msk [vmem:[#allocation5 + $0x90] sm:$0xff] %vm2007, %v1948
      %2027 = vst.msk [vmem:[#allocation5 + $0x98] sm:$0xff] %vm2007, %v1950
      %2028 = vst.msk [vmem:[#allocation5 + $0xa0] sm:$0xff] %vm2007, %v1952
      %2029 = vst.msk [vmem:[#allocation5 + $0xa8] sm:$0xff] %vm2007, %v1954
      %2030 = vst.msk [vmem:[#allocation5 + $0xb0] sm:$0xff] %vm2007, %v1956
      %2031 = vst.msk [vmem:[#allocation5 + $0xb8] sm:$0xff] %vm2007, %v1958
      %2032 = vst.msk [vmem:[#allocation5 + $0xc0] sm:$0xff] %vm2007, %v1960
      %2033 = vst.msk [vmem:[#allocation5 + $0xc8] sm:$0xff] %vm2007, %v1962
      %2034 = vst.msk [vmem:[#allocation5 + $0xd0] sm:$0xff] %vm2007, %v1964
      %2035 = vst.msk [vmem:[#allocation5 + $0xd8] sm:$0xff] %vm2007, %v1966
      %2036 = vst.msk [vmem:[#allocation5 + $0xe0] sm:$0xff] %vm2007, %v1968
      %2037 = vst.msk [vmem:[#allocation5 + $0xe8] sm:$0xff] %vm2007, %v1970
      %2038 = vst.msk [vmem:[#allocation5 + $0xf0] sm:$0xff] %vm2007, %v1972
      %2039 = vst.msk [vmem:[#allocation5 + $0xf8] sm:$0xff] %vm2007, %v1974
      %v2040 = vld [vmem:[#allocation5] sm:$0xff]
      %v2041 = vld [vmem:[#allocation5 + $0x8] sm:$0xff]
      %v2042 = vld [vmem:[#allocation5 + $0x10] sm:$0xff]
      %v2043 = vld [vmem:[#allocation5 + $0x18] sm:$0xff]
      %v2044 = vld [vmem:[#allocation5 + $0x20] sm:$0xff]
      %v2045 = vld [vmem:[#allocation5 + $0x28] sm:$0xff]
      %v2046 = vld [vmem:[#allocation5 + $0x30] sm:$0xff]
      %v2047 = vld [vmem:[#allocation5 + $0x38] sm:$0xff]
      %v2048 = vld [vmem:[#allocation5 + $0x40] sm:$0xff]
      %v2049 = vld [vmem:[#allocation5 + $0x48] sm:$0xff]
      %v2050 = vld [vmem:[#allocation5 + $0x50] sm:$0xff]
      %v2051 = vld [vmem:[#allocation5 + $0x58] sm:$0xff]
      %v2052 = vld [vmem:[#allocation5 + $0x60] sm:$0xff]
      %v2053 = vld [vmem:[#allocation5 + $0x68] sm:$0xff]
      %v2054 = vld [vmem:[#allocation5 + $0x70] sm:$0xff]
      %v2055 = vld [vmem:[#allocation5 + $0x78] sm:$0xff]
      %v2056 = vld [vmem:[#allocation5 + $0x80] sm:$0xff]
      %v2057 = vld [vmem:[#allocation5 + $0x88] sm:$0xff]
      %v2058 = vld [vmem:[#allocation5 + $0x90] sm:$0xff]
      %v2059 = vld [vmem:[#allocation5 + $0x98] sm:$0xff]
      %v2060 = vld [vmem:[#allocation5 + $0xa0] sm:$0xff]
      %v2061 = vld [vmem:[#allocation5 + $0xa8] sm:$0xff]
      %v2062 = vld [vmem:[#allocation5 + $0xb0] sm:$0xff]
      %v2063 = vld [vmem:[#allocation5 + $0xb8] sm:$0xff]
      %v2064 = vld [vmem:[#allocation5 + $0xc0] sm:$0xff]
      %v2065 = vld [vmem:[#allocation5 + $0xc8] sm:$0xff]
      %v2066 = vld [vmem:[#allocation5 + $0xd0] sm:$0xff]
      %v2067 = vld [vmem:[#allocation5 + $0xd8] sm:$0xff]
      %v2068 = vld [vmem:[#allocation5 + $0xe0] sm:$0xff]
      %v2069 = vld [vmem:[#allocation5 + $0xe8] sm:$0xff]
      %v2070 = vld [vmem:[#allocation5 + $0xf0] sm:$0xff]
      %v2071 = vld [vmem:[#allocation5 + $0xf8] sm:$0xff]
      %v2072 = vld [vmem:[%s1] sm:$0xff]
      %v2073 = vld [vmem:[%s1 + $0x8] sm:$0xff]
      %v2074 = vld [vmem:[%s1 + $0x10] sm:$0xff]
      %v2075 = vld [vmem:[%s1 + $0x18] sm:$0xff]
      %v2076 = vld [vmem:[%s1 + $0x20] sm:$0xf]
      %v2077 = vld [vmem:[%s2] sm:$0x1]
      %v2079 = vlaneseq
      %v2080 = vshrl.u32 %v2079, 7
      %v2081 = vsub.s32 0, %v2080
      %v2082 = vrot.slane %v2077, %v2081
      %vm2084 = vcmask 293888
      %v2086 = vsel %vm2084, %v2040, 0
      %v2089 = vsel %vm2084, %v2041, 0
      %v2092 = vsel %vm2084, %v2042, 0
      %v2095 = vsel %vm2084, %v2043, 0
      %v2098 = vsel %vm2084, %v2044, 0
      %v2101 = vsel %vm2084, %v2045, 0
      %v2104 = vsel %vm2084, %v2046, 0
      %v2107 = vsel %vm2084, %v2047, 0
      %v2110 = vsel %vm2084, %v2048, 0
      %v2113 = vsel %vm2084, %v2049, 0
      %v2116 = vsel %vm2084, %v2050, 0
      %v2119 = vsel %vm2084, %v2051, 0
      %v2122 = vsel %vm2084, %v2052, 0
      %v2125 = vsel %vm2084, %v2053, 0
      %v2128 = vsel %vm2084, %v2054, 0
      %v2131 = vsel %vm2084, %v2055, 0
      %v2134 = vsel %vm2084, %v2056, 0
      %v2137 = vsel %vm2084, %v2057, 0
      %v2140 = vsel %vm2084, %v2058, 0
      %v2143 = vsel %vm2084, %v2059, 0
      %v2146 = vsel %vm2084, %v2060, 0
      %v2149 = vsel %vm2084, %v2061, 0
      %v2152 = vsel %vm2084, %v2062, 0
      %v2155 = vsel %vm2084, %v2063, 0
      %v2158 = vsel %vm2084, %v2064, 0
      %v2161 = vsel %vm2084, %v2065, 0
      %v2164 = vsel %vm2084, %v2066, 0
      %v2167 = vsel %vm2084, %v2067, 0
      %v2170 = vsel %vm2084, %v2068, 0
      %v2173 = vsel %vm2084, %v2069, 0
      %v2176 = vsel %vm2084, %v2070, 0
      %v2179 = vsel %vm2084, %v2071, 0
      %vm2181 = vcmask 1043456
      %v2183 = vsel %vm2181, %v2076, 0
      %2185 = vmatprep.subr.mxu0 0.0
      %2186 = vmatpush1.msra.mxu0 %v2072
      %2187 = vmatprep.subr.mxu0 0.0
      %2188 = vmatpush1.msra.mxu0 %v2073
      %2189 = vmatprep.subr.mxu0 0.0
      %2190 = vmatpush1.msra.mxu0 %v2074
      %2191 = vmatprep.subr.mxu0 0.0
      %2192 = vmatpush1.msra.mxu0 %v2075
      %2193 = vmatprep.subr.mxu0 0.0
      %2194 = vmatpush1.msra.mxu0 %v2183
      %2195 = vmatprep.subr.mxu0 0.0
      %2196 = vmatpush1.msra.mxu0 0.0
      %2197 = vmatprep.subr.mxu0 0.0
      %2198 = vmatpush1.msra.mxu0 0.0
      %2199 = vmatprep.subr.mxu0 0.0
      %2200 = vmatpush1.msra.mxu0 0.0
      %2201 = vmatprep.subr.mxu0 0.0
      %2202 = vmatpush1.msra.mxu0 0.0
      %2203 = vmatprep.subr.mxu0 0.0
      %2204 = vmatpush1.msra.mxu0 0.0
      %2205 = vmatprep.subr.mxu0 0.0
      %2206 = vmatpush1.msra.mxu0 0.0
      %2207 = vmatprep.subr.mxu0 0.0
      %2208 = vmatpush1.msra.mxu0 0.0
      %2209 = vmatprep.subr.mxu0 0.0
      %2210 = vmatpush1.msra.mxu0 0.0
      %2211 = vmatprep.subr.mxu0 0.0
      %2212 = vmatpush1.msra.mxu0 0.0
      %2213 = vmatprep.subr.mxu0 0.0
      %2214 = vmatpush1.msra.mxu0 0.0
      %2215 = vmatprep.subr.mxu0 0.0
      %2216 = vmatpush1.msra.mxu0 0.0
      %2217 = vmatprep.subr.mxu0 0.0
      %2218 = vmatpush1.msra.mxu0 0.0
      %2219 = vmatprep.subr.mxu0 0.0
      %2220 = vmatpush1.msra.mxu0 0.0
      %2221 = vmatprep.subr.mxu0 0.0
      %2222 = vmatpush1.msra.mxu0 0.0
      %2223 = vmatprep.subr.mxu0 0.0
      %2224 = vmatpush1.msra.mxu0 0.0
      %2225 = vmatprep.subr.mxu0 0.0
      %2226 = vmatpush1.msra.mxu0 0.0
      %2227 = vmatprep.subr.mxu0 0.0
      %2228 = vmatpush1.msra.mxu0 0.0
      %2229 = vmatprep.subr.mxu0 0.0
      %2230 = vmatpush1.msra.mxu0 0.0
      %2231 = vmatprep.subr.mxu0 0.0
      %2232 = vmatpush1.msra.mxu0 0.0
      %2233 = vmatprep.subr.mxu0 0.0
      %2234 = vmatpush1.msra.mxu0 0.0
      %2235 = vmatprep.subr.mxu0 0.0
      %2236 = vmatpush1.msra.mxu0 0.0
      %2237 = vmatprep.subr.mxu0 0.0
      %2238 = vmatpush1.msra.mxu0 0.0
      %2239 = vmatprep.subr.mxu0 0.0
      %2240 = vmatpush1.msra.mxu0 0.0
      %2241 = vmatprep.subr.mxu0 0.0
      %2242 = vmatpush1.msra.mxu0 0.0
      %2243 = vmatprep.subr.mxu0 0.0
      %2244 = vmatpush1.msra.mxu0 0.0
      %2245 = vmatprep.subr.mxu0 0.0
      %2246 = vmatpush1.msra.mxu0 0.0
      %2247 = vmatprep.subr.mxu0 0.0
      %2248 = vmatpush1.msra.mxu0 0.0
      %2249 = vmatprep.mubr.f32.mxu0 0.0
      %2250 = vmatmul.mubr.f32.gmra.mrb[0].mxu0 %v2086
      %v2251 = vpop.f32.mrb[0].mxu0
      %v2252 = vadd.f32 %v2082, %v2251
      %v2253 = vpop.f32.mrb[0].mxu0
      %2254 = vmatprep.mubr.f32.mxu0 0.0
      %2255 = vmatmul.mubr.f32.gmra.mrb[0].mxu0 %v2089
      %v2256 = vpop.f32.mrb[0].mxu0
      %v2257 = vadd.f32 %v2082, %v2256
      %v2258 = vpop.f32.mrb[0].mxu0
      %2259 = vmatprep.mubr.f32.mxu0 0.0
      %2260 = vmatmul.mubr.f32.gmra.mrb[0].mxu0 %v2092
      %v2261 = vpop.f32.mrb[0].mxu0
      %v2262 = vadd.f32 %v2082, %v2261
      %v2263 = vpop.f32.mrb[0].mxu0
      %2264 = vmatprep.mubr.f32.mxu0 0.0
      %2265 = vmatmul.mubr.f32.gmra.mrb[0].mxu0 %v2095
      %v2266 = vpop.f32.mrb[0].mxu0
      %v2267 = vadd.f32 %v2082, %v2266
      %v2268 = vpop.f32.mrb[0].mxu0
      %2269 = vmatprep.mubr.f32.mxu0 0.0
      %2270 = vmatmul.mubr.f32.gmra.mrb[0].mxu0 %v2098
      %v2271 = vpop.f32.mrb[0].mxu0
      %v2272 = vadd.f32 %v2082, %v2271
      %v2273 = vpop.f32.mrb[0].mxu0
      %2274 = vmatprep.mubr.f32.mxu0 0.0
      %2275 = vmatmul.mubr.f32.gmra.mrb[0].mxu0 %v2101
      %v2276 = vpop.f32.mrb[0].mxu0
      %v2277 = vadd.f32 %v2082, %v2276
      %v2278 = vpop.f32.mrb[0].mxu0
      %2279 = vmatprep.mubr.f32.mxu0 0.0
      %2280 = vmatmul.mubr.f32.gmra.mrb[0].mxu0 %v2104
      %v2281 = vpop.f32.mrb[0].mxu0
      %v2282 = vadd.f32 %v2082, %v2281
      %v2283 = vpop.f32.mrb[0].mxu0
      %2284 = vmatprep.mubr.f32.mxu0 0.0
      %2285 = vmatmul.mubr.f32.gmra.mrb[0].mxu0 %v2107
      %v2286 = vpop.f32.mrb[0].mxu0
      %v2287 = vadd.f32 %v2082, %v2286
      %v2288 = vpop.f32.mrb[0].mxu0
      %2289 = vmatprep.mubr.f32.mxu0 0.0
      %2290 = vmatmul.mubr.f32.gmra.mrb[0].mxu0 %v2110
      %v2291 = vpop.f32.mrb[0].mxu0
      %v2292 = vadd.f32 %v2082, %v2291
      %v2293 = vpop.f32.mrb[0].mxu0
      %2294 = vmatprep.mubr.f32.mxu0 0.0
      %2295 = vmatmul.mubr.f32.gmra.mrb[0].mxu0 %v2113
      %v2296 = vpop.f32.mrb[0].mxu0
      %v2297 = vadd.f32 %v2082, %v2296
      %v2298 = vpop.f32.mrb[0].mxu0
      %2299 = vmatprep.mubr.f32.mxu0 0.0
      %2300 = vmatmul.mubr.f32.gmra.mrb[0].mxu0 %v2116
      %v2301 = vpop.f32.mrb[0].mxu0
      %v2302 = vadd.f32 %v2082, %v2301
      %v2303 = vpop.f32.mrb[0].mxu0
      %2304 = vmatprep.mubr.f32.mxu0 0.0
      %2305 = vmatmul.mubr.f32.gmra.mrb[0].mxu0 %v2119
      %v2306 = vpop.f32.mrb[0].mxu0
      %v2307 = vadd.f32 %v2082, %v2306
      %v2308 = vpop.f32.mrb[0].mxu0
      %2309 = vmatprep.mubr.f32.mxu0 0.0
      %2310 = vmatmul.mubr.f32.gmra.mrb[0].mxu0 %v2122
      %v2311 = vpop.f32.mrb[0].mxu0
      %v2312 = vadd.f32 %v2082, %v2311
      %v2313 = vpop.f32.mrb[0].mxu0
      %2314 = vmatprep.mubr.f32.mxu0 0.0
      %2315 = vmatmul.mubr.f32.gmra.mrb[0].mxu0 %v2125
      %v2316 = vpop.f32.mrb[0].mxu0
      %v2317 = vadd.f32 %v2082, %v2316
      %v2318 = vpop.f32.mrb[0].mxu0
      %2319 = vmatprep.mubr.f32.mxu0 0.0
      %2320 = vmatmul.mubr.f32.gmra.mrb[0].mxu0 %v2128
      %v2321 = vpop.f32.mrb[0].mxu0
      %v2322 = vadd.f32 %v2082, %v2321
      %v2323 = vpop.f32.mrb[0].mxu0
      %2324 = vmatprep.mubr.f32.mxu0 0.0
      %2325 = vmatmul.mubr.f32.gmra.mrb[0].mxu0 %v2131
      %v2326 = vpop.f32.mrb[0].mxu0
      %v2327 = vadd.f32 %v2082, %v2326
      %v2328 = vpop.f32.mrb[0].mxu0
      %2329 = vmatprep.mubr.f32.mxu0 0.0
      %2330 = vmatmul.mubr.f32.gmra.mrb[0].mxu0 %v2134
      %v2331 = vpop.f32.mrb[0].mxu0
      %v2332 = vadd.f32 %v2082, %v2331
      %v2333 = vpop.f32.mrb[0].mxu0
      %2334 = vmatprep.mubr.f32.mxu0 0.0
      %2335 = vmatmul.mubr.f32.gmra.mrb[0].mxu0 %v2137
      %v2336 = vpop.f32.mrb[0].mxu0
      %v2337 = vadd.f32 %v2082, %v2336
      %v2338 = vpop.f32.mrb[0].mxu0
      %2339 = vmatprep.mubr.f32.mxu0 0.0
      %2340 = vmatmul.mubr.f32.gmra.mrb[0].mxu0 %v2140
      %v2341 = vpop.f32.mrb[0].mxu0
      %v2342 = vadd.f32 %v2082, %v2341
      %v2343 = vpop.f32.mrb[0].mxu0
      %2344 = vmatprep.mubr.f32.mxu0 0.0
      %2345 = vmatmul.mubr.f32.gmra.mrb[0].mxu0 %v2143
      %v2346 = vpop.f32.mrb[0].mxu0
      %v2347 = vadd.f32 %v2082, %v2346
      %v2348 = vpop.f32.mrb[0].mxu0
      %2349 = vmatprep.mubr.f32.mxu0 0.0
      %2350 = vmatmul.mubr.f32.gmra.mrb[0].mxu0 %v2146
      %v2351 = vpop.f32.mrb[0].mxu0
      %v2352 = vadd.f32 %v2082, %v2351
      %v2353 = vpop.f32.mrb[0].mxu0
      %2354 = vmatprep.mubr.f32.mxu0 0.0
      %2355 = vmatmul.mubr.f32.gmra.mrb[0].mxu0 %v2149
      %v2356 = vpop.f32.mrb[0].mxu0
      %v2357 = vadd.f32 %v2082, %v2356
      %v2358 = vpop.f32.mrb[0].mxu0
      %2359 = vmatprep.mubr.f32.mxu0 0.0
      %2360 = vmatmul.mubr.f32.gmra.mrb[0].mxu0 %v2152
      %v2361 = vpop.f32.mrb[0].mxu0
      %v2362 = vadd.f32 %v2082, %v2361
      %v2363 = vpop.f32.mrb[0].mxu0
      %2364 = vmatprep.mubr.f32.mxu0 0.0
      %2365 = vmatmul.mubr.f32.gmra.mrb[0].mxu0 %v2155
      %v2366 = vpop.f32.mrb[0].mxu0
      %v2367 = vadd.f32 %v2082, %v2366
      %v2368 = vpop.f32.mrb[0].mxu0
      %2369 = vmatprep.mubr.f32.mxu0 0.0
      %2370 = vmatmul.mubr.f32.gmra.mrb[0].mxu0 %v2158
      %v2371 = vpop.f32.mrb[0].mxu0
      %v2372 = vadd.f32 %v2082, %v2371
      %v2373 = vpop.f32.mrb[0].mxu0
      %2374 = vmatprep.mubr.f32.mxu0 0.0
      %2375 = vmatmul.mubr.f32.gmra.mrb[0].mxu0 %v2161
      %v2376 = vpop.f32.mrb[0].mxu0
      %v2377 = vadd.f32 %v2082, %v2376
      %v2378 = vpop.f32.mrb[0].mxu0
      %2379 = vmatprep.mubr.f32.mxu0 0.0
      %2380 = vmatmul.mubr.f32.gmra.mrb[0].mxu0 %v2164
      %v2381 = vpop.f32.mrb[0].mxu0
      %v2382 = vadd.f32 %v2082, %v2381
      %v2383 = vpop.f32.mrb[0].mxu0
      %2384 = vmatprep.mubr.f32.mxu0 0.0
      %2385 = vmatmul.mubr.f32.gmra.mrb[0].mxu0 %v2167
      %v2386 = vpop.f32.mrb[0].mxu0
      %v2387 = vadd.f32 %v2082, %v2386
      %v2388 = vpop.f32.mrb[0].mxu0
      %2389 = vmatprep.mubr.f32.mxu0 0.0
      %2390 = vmatmul.mubr.f32.gmra.mrb[0].mxu0 %v2170
      %v2391 = vpop.f32.mrb[0].mxu0
      %v2392 = vadd.f32 %v2082, %v2391
      %v2393 = vpop.f32.mrb[0].mxu0
      %2394 = vmatprep.mubr.f32.mxu0 0.0
      %2395 = vmatmul.mubr.f32.gmra.mrb[0].mxu0 %v2173
      %v2396 = vpop.f32.mrb[0].mxu0
      %v2397 = vadd.f32 %v2082, %v2396
      %v2398 = vpop.f32.mrb[0].mxu0
      %2399 = vmatprep.mubr.f32.mxu0 0.0
      %2400 = vmatmul.mubr.f32.gmra.mrb[0].mxu0 %v2176
      %v2401 = vpop.f32.mrb[0].mxu0
      %v2402 = vadd.f32 %v2082, %v2401
      %v2403 = vpop.f32.mrb[0].mxu0
      %2404 = vmatprep.mubr.f32.mxu0 0.0
      %2405 = vmatmul.mubr.f32.gmra.mrb[0].mxu0 %v2179
      %v2406 = vpop.f32.mrb[0].mxu0
      %v2407 = vadd.f32 %v2082, %v2406
      %v2408 = vpop.f32.mrb[0].mxu0
      %2409 = vdwg.mxu0
      %v2410 = vmax.f32 %v2252, 0.0
      %v2411 = vmax.f32 %v2257, 0.0
      %v2412 = vmax.f32 %v2262, 0.0
      %v2413 = vmax.f32 %v2267, 0.0
      %v2414 = vmax.f32 %v2272, 0.0
      %v2415 = vmax.f32 %v2277, 0.0
      %v2416 = vmax.f32 %v2282, 0.0
      %v2417 = vmax.f32 %v2287, 0.0
      %v2418 = vmax.f32 %v2292, 0.0
      %v2419 = vmax.f32 %v2297, 0.0
      %v2420 = vmax.f32 %v2302, 0.0
      %v2421 = vmax.f32 %v2307, 0.0
      %v2422 = vmax.f32 %v2312, 0.0
      %v2423 = vmax.f32 %v2317, 0.0
      %v2424 = vmax.f32 %v2322, 0.0
      %v2425 = vmax.f32 %v2327, 0.0
      %v2426 = vmax.f32 %v2332, 0.0
      %v2427 = vmax.f32 %v2337, 0.0
      %v2428 = vmax.f32 %v2342, 0.0
      %v2429 = vmax.f32 %v2347, 0.0
      %v2430 = vmax.f32 %v2352, 0.0
      %v2431 = vmax.f32 %v2357, 0.0
      %v2432 = vmax.f32 %v2362, 0.0
      %v2433 = vmax.f32 %v2367, 0.0
      %v2434 = vmax.f32 %v2372, 0.0
      %v2435 = vmax.f32 %v2377, 0.0
      %v2436 = vmax.f32 %v2382, 0.0
      %v2437 = vmax.f32 %v2387, 0.0
      %v2438 = vmax.f32 %v2392, 0.0
      %v2439 = vmax.f32 %v2397, 0.0
      %v2440 = vmax.f32 %v2402, 0.0
      %v2441 = vmax.f32 %v2407, 0.0
      %s2442 = scalar_lea.vmem [#allocation2], 24
      %2443 = vst.msk [vmem:[%s2442 + $0x1] sm:$0xff] %vm333, %v2410
      %2444 = vst.msk [vmem:[%s2442 + $0x9] sm:$0xff] %vm333, %v2411
      %2445 = vst.msk [vmem:[%s2442 + $0x19] sm:$0xff] %vm333, %v2412
      %2446 = vst.msk [vmem:[%s2442 + $0x21] sm:$0xff] %vm333, %v2413
      %2447 = vst.msk [vmem:[%s2442 + $0x31] sm:$0xff] %vm333, %v2414
      %2448 = vst.msk [vmem:[%s2442 + $0x39] sm:$0xff] %vm333, %v2415
      %2449 = vst.msk [vmem:[%s2442 + $0x49] sm:$0xff] %vm333, %v2416
      %2450 = vst.msk [vmem:[%s2442 + $0x51] sm:$0xff] %vm333, %v2417
      %2451 = vst.msk [vmem:[%s2442 + $0x61] sm:$0xff] %vm333, %v2418
      %2452 = vst.msk [vmem:[%s2442 + $0x69] sm:$0xff] %vm333, %v2419
      %2453 = vst.msk [vmem:[%s2442 + $0x79] sm:$0xff] %vm333, %v2420
      %2454 = vst.msk [vmem:[%s2442 + $0x81] sm:$0xff] %vm333, %v2421
      %2455 = vst.msk [vmem:[%s2442 + $0x91] sm:$0xff] %vm333, %v2422
      %2456 = vst.msk [vmem:[%s2442 + $0x99] sm:$0xff] %vm333, %v2423
      %2457 = vst.msk [vmem:[%s2442 + $0xa9] sm:$0xff] %vm333, %v2424
      %2458 = vst.msk [vmem:[%s2442 + $0xb1] sm:$0xff] %vm333, %v2425
      %2459 = vst.msk [vmem:[%s2442 + $0xc1] sm:$0xff] %vm333, %v2426
      %2460 = vst.msk [vmem:[%s2442 + $0xc9] sm:$0xff] %vm333, %v2427
      %2461 = vst.msk [vmem:[%s2442 + $0xd9] sm:$0xff] %vm333, %v2428
      %2462 = vst.msk [vmem:[%s2442 + $0xe1] sm:$0xff] %vm333, %v2429
      %2463 = vst.msk [vmem:[%s2442 + $0xf1] sm:$0xff] %vm333, %v2430
      %2464 = vst.msk [vmem:[%s2442 + $0xf9] sm:$0xff] %vm333, %v2431
      %2465 = vst.msk [vmem:[%s2442 + $0x109] sm:$0xff] %vm333, %v2432
      %2466 = vst.msk [vmem:[%s2442 + $0x111] sm:$0xff] %vm333, %v2433
      %2467 = vst.msk [vmem:[%s2442 + $0x121] sm:$0xff] %vm333, %v2434
      %2468 = vst.msk [vmem:[%s2442 + $0x129] sm:$0xff] %vm333, %v2435
      %2469 = vst.msk [vmem:[%s2442 + $0x139] sm:$0xff] %vm333, %v2436
      %2470 = vst.msk [vmem:[%s2442 + $0x141] sm:$0xff] %vm333, %v2437
      %2471 = vst.msk [vmem:[%s2442 + $0x151] sm:$0xff] %vm333, %v2438
      %2472 = vst.msk [vmem:[%s2442 + $0x159] sm:$0xff] %vm333, %v2439
      %2473 = vst.msk [vmem:[%s2442 + $0x169] sm:$0xff] %vm333, %v2440
      %2474 = vst.msk [vmem:[%s2442 + $0x171] sm:$0xff] %vm333, %v2441
      %v2475 = vld [vmem:[#allocation2] sm:$0xff]
      %v2476 = vld [vmem:[#allocation2 + $0x8] sm:$0xff]
      %v2477 = vld [vmem:[#allocation2 + $0x18] sm:$0xff]
      %v2478 = vld [vmem:[#allocation2 + $0x20] sm:$0xff]
      %v2479 = vld [vmem:[#allocation2 + $0x30] sm:$0xff]
      %v2480 = vld [vmem:[#allocation2 + $0x38] sm:$0xff]
      %v2481 = vld [vmem:[#allocation2 + $0x48] sm:$0xff]
      %v2482 = vld [vmem:[#allocation2 + $0x50] sm:$0xff]
      %v2483 = vld [vmem:[#allocation2 + $0x60] sm:$0xff]
      %v2484 = vld [vmem:[#allocation2 + $0x68] sm:$0xff]
      %v2485 = vld [vmem:[#allocation2 + $0x78] sm:$0xff]
      %v2486 = vld [vmem:[#allocation2 + $0x80] sm:$0xff]
      %v2487 = vld [vmem:[#allocation2 + $0x90] sm:$0xff]
      %v2488 = vld [vmem:[#allocation2 + $0x98] sm:$0xff]
      %v2489 = vld [vmem:[#allocation2 + $0xa8] sm:$0xff]
      %v2490 = vld [vmem:[#allocation2 + $0xb0] sm:$0xff]
      %v2491 = vld [vmem:[#allocation2 + $0xc0] sm:$0xff]
      %v2492 = vld [vmem:[#allocation2 + $0xc8] sm:$0xff]
      %v2493 = vld [vmem:[#allocation2 + $0xd8] sm:$0xff]
      %v2494 = vld [vmem:[#allocation2 + $0xe0] sm:$0xff]
      %v2495 = vld [vmem:[#allocation2 + $0xf0] sm:$0xff]
      %v2496 = vld [vmem:[#allocation2 + $0xf8] sm:$0xff]
      %v2497 = vld [vmem:[#allocation2 + $0x108] sm:$0xff]
      %v2498 = vld [vmem:[#allocation2 + $0x110] sm:$0xff]
      %v2499 = vld [vmem:[#allocation2 + $0x120] sm:$0xff]
      %v2500 = vld [vmem:[#allocation2 + $0x128] sm:$0xff]
      %v2501 = vld [vmem:[#allocation2 + $0x138] sm:$0xff]
      %v2502 = vld [vmem:[#allocation2 + $0x140] sm:$0xff]
      %v2503 = vld [vmem:[#allocation2 + $0x150] sm:$0xff]
      %v2504 = vld [vmem:[#allocation2 + $0x158] sm:$0xff]
      %v2505 = vld [vmem:[#allocation2 + $0x168] sm:$0xff]
      %v2506 = vld [vmem:[#allocation2 + $0x170] sm:$0xff]
      %2507 = vst.msk [vmem:[#allocation6] sm:$0xff] %vm333, %v2475
      %2508 = vst.msk [vmem:[#allocation6 + $0x28] sm:$0xff] %vm333, %v2476
      %2509 = vst.msk [vmem:[#allocation6 + $0x50] sm:$0xff] %vm333, %v2477
      %2510 = vst.msk [vmem:[#allocation6 + $0x78] sm:$0xff] %vm333, %v2478
      %2511 = vst.msk [vmem:[#allocation6 + $0xa0] sm:$0xff] %vm333, %v2479
      %2512 = vst.msk [vmem:[#allocation6 + $0xc8] sm:$0xff] %vm333, %v2480
      %2513 = vst.msk [vmem:[#allocation6 + $0xf0] sm:$0xff] %vm333, %v2481
      %2514 = vst.msk [vmem:[#allocation6 + $0x118] sm:$0xff] %vm333, %v2482
      %2515 = vst.msk [vmem:[#allocation6 + $0x140] sm:$0xff] %vm333, %v2483
      %2516 = vst.msk [vmem:[#allocation6 + $0x168] sm:$0xff] %vm333, %v2484
      %2517 = vst.msk [vmem:[#allocation6 + $0x190] sm:$0xff] %vm333, %v2485
      %2518 = vst.msk [vmem:[#allocation6 + $0x1b8] sm:$0xff] %vm333, %v2486
      %2519 = vst.msk [vmem:[#allocation6 + $0x1e0] sm:$0xff] %vm333, %v2487
      %2520 = vst.msk [vmem:[#allocation6 + $0x208] sm:$0xff] %vm333, %v2488
      %2521 = vst.msk [vmem:[#allocation6 + $0x230] sm:$0xff] %vm333, %v2489
      %2522 = vst.msk [vmem:[#allocation6 + $0x258] sm:$0xff] %vm333, %v2490
      %2523 = vst.msk [vmem:[#allocation6 + $0x280] sm:$0xff] %vm333, %v2491
      %2524 = vst.msk [vmem:[#allocation6 + $0x2a8] sm:$0xff] %vm333, %v2492
      %2525 = vst.msk [vmem:[#allocation6 + $0x2d0] sm:$0xff] %vm333, %v2493
      %2526 = vst.msk [vmem:[#allocation6 + $0x2f8] sm:$0xff] %vm333, %v2494
      %2527 = vst.msk [vmem:[#allocation6 + $0x320] sm:$0xff] %vm333, %v2495
      %2528 = vst.msk [vmem:[#allocation6 + $0x348] sm:$0xff] %vm333, %v2496
      %2529 = vst.msk [vmem:[#allocation6 + $0x370] sm:$0xff] %vm333, %v2497
      %2530 = vst.msk [vmem:[#allocation6 + $0x398] sm:$0xff] %vm333, %v2498
      %2531 = vst.msk [vmem:[#allocation6 + $0x3c0] sm:$0xff] %vm333, %v2499
      %2532 = vst.msk [vmem:[#allocation6 + $0x3e8] sm:$0xff] %vm333, %v2500
      %2533 = vst.msk [vmem:[#allocation6 + $0x410] sm:$0xff] %vm333, %v2501
      %2534 = vst.msk [vmem:[#allocation6 + $0x438] sm:$0xff] %vm333, %v2502
      %2535 = vst.msk [vmem:[#allocation6 + $0x460] sm:$0xff] %vm333, %v2503
      %2536 = vst.msk [vmem:[#allocation6 + $0x488] sm:$0xff] %vm333, %v2504
      %2537 = vst.msk [vmem:[#allocation6 + $0x4b0] sm:$0xff] %vm333, %v2505
      %2538 = vst.msk [vmem:[#allocation6 + $0x4d8] sm:$0xff] %vm333, %v2506
      %v2539 = vld [vmem:[#allocation2 + $0x1] sm:$0xff]
      %v2540 = vld [vmem:[#allocation2 + $0x9] sm:$0xff]
      %v2541 = vld [vmem:[#allocation2 + $0x19] sm:$0xff]
      %v2542 = vld [vmem:[#allocation2 + $0x21] sm:$0xff]
      %v2543 = vld [vmem:[#allocation2 + $0x31] sm:$0xff]
      %v2544 = vld [vmem:[#allocation2 + $0x39] sm:$0xff]
      %v2545 = vld [vmem:[#allocation2 + $0x49] sm:$0xff]
      %v2546 = vld [vmem:[#allocation2 + $0x51] sm:$0xff]
      %v2547 = vld [vmem:[#allocation2 + $0x61] sm:$0xff]
      %v2548 = vld [vmem:[#allocation2 + $0x69] sm:$0xff]
      %v2549 = vld [vmem:[#allocation2 + $0x79] sm:$0xff]
      %v2550 = vld [vmem:[#allocation2 + $0x81] sm:$0xff]
      %v2551 = vld [vmem:[#allocation2 + $0x91] sm:$0xff]
      %v2552 = vld [vmem:[#allocation2 + $0x99] sm:$0xff]
      %v2553 = vld [vmem:[#allocation2 + $0xa9] sm:$0xff]
      %v2554 = vld [vmem:[#allocation2 + $0xb1] sm:$0xff]
      %v2555 = vld [vmem:[#allocation2 + $0xc1] sm:$0xff]
      %v2556 = vld [vmem:[#allocation2 + $0xc9] sm:$0xff]
      %v2557 = vld [vmem:[#allocation2 + $0xd9] sm:$0xff]
      %v2558 = vld [vmem:[#allocation2 + $0xe1] sm:$0xff]
      %v2559 = vld [vmem:[#allocation2 + $0xf1] sm:$0xff]
      %v2560 = vld [vmem:[#allocation2 + $0xf9] sm:$0xff]
      %v2561 = vld [vmem:[#allocation2 + $0x109] sm:$0xff]
      %v2562 = vld [vmem:[#allocation2 + $0x111] sm:$0xff]
      %v2563 = vld [vmem:[#allocation2 + $0x121] sm:$0xff]
      %v2564 = vld [vmem:[#allocation2 + $0x129] sm:$0xff]
      %v2565 = vld [vmem:[#allocation2 + $0x139] sm:$0xff]
      %v2566 = vld [vmem:[#allocation2 + $0x141] sm:$0xff]
      %v2567 = vld [vmem:[#allocation2 + $0x151] sm:$0xff]
      %v2568 = vld [vmem:[#allocation2 + $0x159] sm:$0xff]
      %v2569 = vld [vmem:[#allocation2 + $0x169] sm:$0xff]
      %v2570 = vld [vmem:[#allocation2 + $0x171] sm:$0xff]
      %2603 = vrot.lane.b32.xlu0 %v2539, 64
      %v2604 = vpop.permute.xlu0 %2603
      %2605 = vrot.lane.b32.xlu0 %v2540, 64
      %v2606 = vpop.permute.xlu0 %2605
      %2607 = vrot.lane.b32.xlu0 %v2541, 64
      %v2608 = vpop.permute.xlu0 %2607
      %2609 = vrot.lane.b32.xlu0 %v2542, 64
      %v2610 = vpop.permute.xlu0 %2609
      %2611 = vrot.lane.b32.xlu0 %v2543, 64
      %v2612 = vpop.permute.xlu0 %2611
      %2613 = vrot.lane.b32.xlu0 %v2544, 64
      %v2614 = vpop.permute.xlu0 %2613
      %2615 = vrot.lane.b32.xlu0 %v2545, 64
      %v2616 = vpop.permute.xlu0 %2615
      %2617 = vrot.lane.b32.xlu0 %v2546, 64
      %v2618 = vpop.permute.xlu0 %2617
      %2619 = vrot.lane.b32.xlu0 %v2547, 64
      %v2620 = vpop.permute.xlu0 %2619
      %2621 = vrot.lane.b32.xlu0 %v2548, 64
      %v2622 = vpop.permute.xlu0 %2621
      %2623 = vrot.lane.b32.xlu0 %v2549, 64
      %v2624 = vpop.permute.xlu0 %2623
      %2625 = vrot.lane.b32.xlu0 %v2550, 64
      %v2626 = vpop.permute.xlu0 %2625
      %2627 = vrot.lane.b32.xlu0 %v2551, 64
      %v2628 = vpop.permute.xlu0 %2627
      %2629 = vrot.lane.b32.xlu0 %v2552, 64
      %v2630 = vpop.permute.xlu0 %2629
      %2631 = vrot.lane.b32.xlu0 %v2553, 64
      %v2632 = vpop.permute.xlu0 %2631
      %2633 = vrot.lane.b32.xlu0 %v2554, 64
      %v2634 = vpop.permute.xlu0 %2633
      %2635 = vrot.lane.b32.xlu0 %v2555, 64
      %v2636 = vpop.permute.xlu0 %2635
      %2637 = vrot.lane.b32.xlu0 %v2556, 64
      %v2638 = vpop.permute.xlu0 %2637
      %2639 = vrot.lane.b32.xlu0 %v2557, 64
      %v2640 = vpop.permute.xlu0 %2639
      %2641 = vrot.lane.b32.xlu0 %v2558, 64
      %v2642 = vpop.permute.xlu0 %2641
      %2643 = vrot.lane.b32.xlu0 %v2559, 64
      %v2644 = vpop.permute.xlu0 %2643
      %2645 = vrot.lane.b32.xlu0 %v2560, 64
      %v2646 = vpop.permute.xlu0 %2645
      %2647 = vrot.lane.b32.xlu0 %v2561, 64
      %v2648 = vpop.permute.xlu0 %2647
      %2649 = vrot.lane.b32.xlu0 %v2562, 64
      %v2650 = vpop.permute.xlu0 %2649
      %2651 = vrot.lane.b32.xlu0 %v2563, 64
      %v2652 = vpop.permute.xlu0 %2651
      %2653 = vrot.lane.b32.xlu0 %v2564, 64
      %v2654 = vpop.permute.xlu0 %2653
      %2655 = vrot.lane.b32.xlu0 %v2565, 64
      %v2656 = vpop.permute.xlu0 %2655
      %2657 = vrot.lane.b32.xlu0 %v2566, 64
      %v2658 = vpop.permute.xlu0 %2657
      %2659 = vrot.lane.b32.xlu0 %v2567, 64
      %v2660 = vpop.permute.xlu0 %2659
      %2661 = vrot.lane.b32.xlu0 %v2568, 64
      %v2662 = vpop.permute.xlu0 %2661
      %2663 = vrot.lane.b32.xlu0 %v2569, 64
      %v2664 = vpop.permute.xlu0 %2663
      %2665 = vrot.lane.b32.xlu0 %v2570, 64
      %v2666 = vpop.permute.xlu0 %2665
      %vm2699 = vcmask 1048064
      %2700 = vst.msk [vmem:[#allocation6] sm:$0xff] %vm2699, %v2604
      %2701 = vst.msk [vmem:[#allocation6 + $0x28] sm:$0xff] %vm2699, %v2606
      %2702 = vst.msk [vmem:[#allocation6 + $0x50] sm:$0xff] %vm2699, %v2608
      %2703 = vst.msk [vmem:[#allocation6 + $0x78] sm:$0xff] %vm2699, %v2610
      %2704 = vst.msk [vmem:[#allocation6 + $0xa0] sm:$0xff] %vm2699, %v2612
      %2705 = vst.msk [vmem:[#allocation6 + $0xc8] sm:$0xff] %vm2699, %v2614
      %2706 = vst.msk [vmem:[#allocation6 + $0xf0] sm:$0xff] %vm2699, %v2616
      %2707 = vst.msk [vmem:[#allocation6 + $0x118] sm:$0xff] %vm2699, %v2618
      %2708 = vst.msk [vmem:[#allocation6 + $0x140] sm:$0xff] %vm2699, %v2620
      %2709 = vst.msk [vmem:[#allocation6 + $0x168] sm:$0xff] %vm2699, %v2622
      %2710 = vst.msk [vmem:[#allocation6 + $0x190] sm:$0xff] %vm2699, %v2624
      %2711 = vst.msk [vmem:[#allocation6 + $0x1b8] sm:$0xff] %vm2699, %v2626
      %2712 = vst.msk [vmem:[#allocation6 + $0x1e0] sm:$0xff] %vm2699, %v2628
      %2713 = vst.msk [vmem:[#allocation6 + $0x208] sm:$0xff] %vm2699, %v2630
      %2714 = vst.msk [vmem:[#allocation6 + $0x230] sm:$0xff] %vm2699, %v2632
      %2715 = vst.msk [vmem:[#allocation6 + $0x258] sm:$0xff] %vm2699, %v2634
      %2716 = vst.msk [vmem:[#allocation6 + $0x280] sm:$0xff] %vm2699, %v2636
      %2717 = vst.msk [vmem:[#allocation6 + $0x2a8] sm:$0xff] %vm2699, %v2638
      %2718 = vst.msk [vmem:[#allocation6 + $0x2d0] sm:$0xff] %vm2699, %v2640
      %2719 = vst.msk [vmem:[#allocation6 + $0x2f8] sm:$0xff] %vm2699, %v2642
      %2720 = vst.msk [vmem:[#allocation6 + $0x320] sm:$0xff] %vm2699, %v2644
      %2721 = vst.msk [vmem:[#allocation6 + $0x348] sm:$0xff] %vm2699, %v2646
      %2722 = vst.msk [vmem:[#allocation6 + $0x370] sm:$0xff] %vm2699, %v2648
      %2723 = vst.msk [vmem:[#allocation6 + $0x398] sm:$0xff] %vm2699, %v2650
      %2724 = vst.msk [vmem:[#allocation6 + $0x3c0] sm:$0xff] %vm2699, %v2652
      %2725 = vst.msk [vmem:[#allocation6 + $0x3e8] sm:$0xff] %vm2699, %v2654
      %2726 = vst.msk [vmem:[#allocation6 + $0x410] sm:$0xff] %vm2699, %v2656
      %2727 = vst.msk [vmem:[#allocation6 + $0x438] sm:$0xff] %vm2699, %v2658
      %2728 = vst.msk [vmem:[#allocation6 + $0x460] sm:$0xff] %vm2699, %v2660
      %2729 = vst.msk [vmem:[#allocation6 + $0x488] sm:$0xff] %vm2699, %v2662
      %2730 = vst.msk [vmem:[#allocation6 + $0x4b0] sm:$0xff] %vm2699, %v2664
      %2731 = vst.msk [vmem:[#allocation6 + $0x4d8] sm:$0xff] %vm2699, %v2666
      %v2732 = vld [vmem:[#allocation2 + $0x2] sm:$0xff]
      %v2733 = vld [vmem:[#allocation2 + $0xa] sm:$0xff]
      %v2734 = vld [vmem:[#allocation2 + $0x1a] sm:$0xff]
      %v2735 = vld [vmem:[#allocation2 + $0x22] sm:$0xff]
      %v2736 = vld [vmem:[#allocation2 + $0x32] sm:$0xff]
      %v2737 = vld [vmem:[#allocation2 + $0x3a] sm:$0xff]
      %v2738 = vld [vmem:[#allocation2 + $0x4a] sm:$0xff]
      %v2739 = vld [vmem:[#allocation2 + $0x52] sm:$0xff]
      %v2740 = vld [vmem:[#allocation2 + $0x62] sm:$0xff]
      %v2741 = vld [vmem:[#allocation2 + $0x6a] sm:$0xff]
      %v2742 = vld [vmem:[#allocation2 + $0x7a] sm:$0xff]
      %v2743 = vld [vmem:[#allocation2 + $0x82] sm:$0xff]
      %v2744 = vld [vmem:[#allocation2 + $0x92] sm:$0xff]
      %v2745 = vld [vmem:[#allocation2 + $0x9a] sm:$0xff]
      %v2746 = vld [vmem:[#allocation2 + $0xaa] sm:$0xff]
      %v2747 = vld [vmem:[#allocation2 + $0xb2] sm:$0xff]
      %v2748 = vld [vmem:[#allocation2 + $0xc2] sm:$0xff]
      %v2749 = vld [vmem:[#allocation2 + $0xca] sm:$0xff]
      %v2750 = vld [vmem:[#allocation2 + $0xda] sm:$0xff]
      %v2751 = vld [vmem:[#allocation2 + $0xe2] sm:$0xff]
      %v2752 = vld [vmem:[#allocation2 + $0xf2] sm:$0xff]
      %v2753 = vld [vmem:[#allocation2 + $0xfa] sm:$0xff]
      %v2754 = vld [vmem:[#allocation2 + $0x10a] sm:$0xff]
      %v2755 = vld [vmem:[#allocation2 + $0x112] sm:$0xff]
      %v2756 = vld [vmem:[#allocation2 + $0x122] sm:$0xff]
      %v2757 = vld [vmem:[#allocation2 + $0x12a] sm:$0xff]
      %v2758 = vld [vmem:[#allocation2 + $0x13a] sm:$0xff]
      %v2759 = vld [vmem:[#allocation2 + $0x142] sm:$0xff]
      %v2760 = vld [vmem:[#allocation2 + $0x152] sm:$0xff]
      %v2761 = vld [vmem:[#allocation2 + $0x15a] sm:$0xff]
      %v2762 = vld [vmem:[#allocation2 + $0x16a] sm:$0xff]
      %v2763 = vld [vmem:[#allocation2 + $0x172] sm:$0xff]
      %2764 = vst.msk [vmem:[#allocation6 + $0x8] sm:$0xff] %vm333, %v2732
      %2765 = vst.msk [vmem:[#allocation6 + $0x30] sm:$0xff] %vm333, %v2733
      %2766 = vst.msk [vmem:[#allocation6 + $0x58] sm:$0xff] %vm333, %v2734
      %2767 = vst.msk [vmem:[#allocation6 + $0x80] sm:$0xff] %vm333, %v2735
      %2768 = vst.msk [vmem:[#allocation6 + $0xa8] sm:$0xff] %vm333, %v2736
      %2769 = vst.msk [vmem:[#allocation6 + $0xd0] sm:$0xff] %vm333, %v2737
      %2770 = vst.msk [vmem:[#allocation6 + $0xf8] sm:$0xff] %vm333, %v2738
      %2771 = vst.msk [vmem:[#allocation6 + $0x120] sm:$0xff] %vm333, %v2739
      %2772 = vst.msk [vmem:[#allocation6 + $0x148] sm:$0xff] %vm333, %v2740
      %2773 = vst.msk [vmem:[#allocation6 + $0x170] sm:$0xff] %vm333, %v2741
      %2774 = vst.msk [vmem:[#allocation6 + $0x198] sm:$0xff] %vm333, %v2742
      %2775 = vst.msk [vmem:[#allocation6 + $0x1c0] sm:$0xff] %vm333, %v2743
      %2776 = vst.msk [vmem:[#allocation6 + $0x1e8] sm:$0xff] %vm333, %v2744
      %2777 = vst.msk [vmem:[#allocation6 + $0x210] sm:$0xff] %vm333, %v2745
      %2778 = vst.msk [vmem:[#allocation6 + $0x238] sm:$0xff] %vm333, %v2746
      %2779 = vst.msk [vmem:[#allocation6 + $0x260] sm:$0xff] %vm333, %v2747
      %2780 = vst.msk [vmem:[#allocation6 + $0x288] sm:$0xff] %vm333, %v2748
      %2781 = vst.msk [vmem:[#allocation6 + $0x2b0] sm:$0xff] %vm333, %v2749
      %2782 = vst.msk [vmem:[#allocation6 + $0x2d8] sm:$0xff] %vm333, %v2750
      %2783 = vst.msk [vmem:[#allocation6 + $0x300] sm:$0xff] %vm333, %v2751
      %2784 = vst.msk [vmem:[#allocation6 + $0x328] sm:$0xff] %vm333, %v2752
      %2785 = vst.msk [vmem:[#allocation6 + $0x350] sm:$0xff] %vm333, %v2753
      %2786 = vst.msk [vmem:[#allocation6 + $0x378] sm:$0xff] %vm333, %v2754
      %2787 = vst.msk [vmem:[#allocation6 + $0x3a0] sm:$0xff] %vm333, %v2755
      %2788 = vst.msk [vmem:[#allocation6 + $0x3c8] sm:$0xff] %vm333, %v2756
      %2789 = vst.msk [vmem:[#allocation6 + $0x3f0] sm:$0xff] %vm333, %v2757
      %2790 = vst.msk [vmem:[#allocation6 + $0x418] sm:$0xff] %vm333, %v2758
      %2791 = vst.msk [vmem:[#allocation6 + $0x440] sm:$0xff] %vm333, %v2759
      %2792 = vst.msk [vmem:[#allocation6 + $0x468] sm:$0xff] %vm333, %v2760
      %2793 = vst.msk [vmem:[#allocation6 + $0x490] sm:$0xff] %vm333, %v2761
      %2794 = vst.msk [vmem:[#allocation6 + $0x4b8] sm:$0xff] %vm333, %v2762
      %2795 = vst.msk [vmem:[#allocation6 + $0x4e0] sm:$0xff] %vm333, %v2763
      %v2796 = vld [vmem:[%s2442] sm:$0xff]
      %v2797 = vld [vmem:[%s2442 + $0x8] sm:$0xff]
      %v2798 = vld [vmem:[%s2442 + $0x18] sm:$0xff]
      %v2799 = vld [vmem:[%s2442 + $0x20] sm:$0xff]
      %v2800 = vld [vmem:[%s2442 + $0x30] sm:$0xff]
      %v2801 = vld [vmem:[%s2442 + $0x38] sm:$0xff]
      %v2802 = vld [vmem:[%s2442 + $0x48] sm:$0xff]
      %v2803 = vld [vmem:[%s2442 + $0x50] sm:$0xff]
      %v2804 = vld [vmem:[%s2442 + $0x60] sm:$0xff]
      %v2805 = vld [vmem:[%s2442 + $0x68] sm:$0xff]
      %v2806 = vld [vmem:[%s2442 + $0x78] sm:$0xff]
      %v2807 = vld [vmem:[%s2442 + $0x80] sm:$0xff]
      %v2808 = vld [vmem:[%s2442 + $0x90] sm:$0xff]
      %v2809 = vld [vmem:[%s2442 + $0x98] sm:$0xff]
      %v2810 = vld [vmem:[%s2442 + $0xa8] sm:$0xff]
      %v2811 = vld [vmem:[%s2442 + $0xb0] sm:$0xff]
      %v2812 = vld [vmem:[%s2442 + $0xc0] sm:$0xff]
      %v2813 = vld [vmem:[%s2442 + $0xc8] sm:$0xff]
      %v2814 = vld [vmem:[%s2442 + $0xd8] sm:$0xff]
      %v2815 = vld [vmem:[%s2442 + $0xe0] sm:$0xff]
      %v2816 = vld [vmem:[%s2442 + $0xf0] sm:$0xff]
      %v2817 = vld [vmem:[%s2442 + $0xf8] sm:$0xff]
      %v2818 = vld [vmem:[%s2442 + $0x108] sm:$0xff]
      %v2819 = vld [vmem:[%s2442 + $0x110] sm:$0xff]
      %v2820 = vld [vmem:[%s2442 + $0x120] sm:$0xff]
      %v2821 = vld [vmem:[%s2442 + $0x128] sm:$0xff]
      %v2822 = vld [vmem:[%s2442 + $0x138] sm:$0xff]
      %v2823 = vld [vmem:[%s2442 + $0x140] sm:$0xff]
      %v2824 = vld [vmem:[%s2442 + $0x150] sm:$0xff]
      %v2825 = vld [vmem:[%s2442 + $0x158] sm:$0xff]
      %v2826 = vld [vmem:[%s2442 + $0x168] sm:$0xff]
      %v2827 = vld [vmem:[%s2442 + $0x170] sm:$0xff]
      %2860 = vrot.lane.b32.xlu0 %v2796, 64
      %v2861 = vpop.permute.xlu0 %2860
      %2862 = vrot.lane.b32.xlu0 %v2797, 64
      %v2863 = vpop.permute.xlu0 %2862
      %2864 = vrot.lane.b32.xlu0 %v2798, 64
      %v2865 = vpop.permute.xlu0 %2864
      %2866 = vrot.lane.b32.xlu0 %v2799, 64
      %v2867 = vpop.permute.xlu0 %2866
      %2868 = vrot.lane.b32.xlu0 %v2800, 64
      %v2869 = vpop.permute.xlu0 %2868
      %2870 = vrot.lane.b32.xlu0 %v2801, 64
      %v2871 = vpop.permute.xlu0 %2870
      %2872 = vrot.lane.b32.xlu0 %v2802, 64
      %v2873 = vpop.permute.xlu0 %2872
      %2874 = vrot.lane.b32.xlu0 %v2803, 64
      %v2875 = vpop.permute.xlu0 %2874
      %2876 = vrot.lane.b32.xlu0 %v2804, 64
      %v2877 = vpop.permute.xlu0 %2876
      %2878 = vrot.lane.b32.xlu0 %v2805, 64
      %v2879 = vpop.permute.xlu0 %2878
      %2880 = vrot.lane.b32.xlu0 %v2806, 64
      %v2881 = vpop.permute.xlu0 %2880
      %2882 = vrot.lane.b32.xlu0 %v2807, 64
      %v2883 = vpop.permute.xlu0 %2882
      %2884 = vrot.lane.b32.xlu0 %v2808, 64
      %v2885 = vpop.permute.xlu0 %2884
      %2886 = vrot.lane.b32.xlu0 %v2809, 64
      %v2887 = vpop.permute.xlu0 %2886
      %2888 = vrot.lane.b32.xlu0 %v2810, 64
      %v2889 = vpop.permute.xlu0 %2888
      %2890 = vrot.lane.b32.xlu0 %v2811, 64
      %v2891 = vpop.permute.xlu0 %2890
      %2892 = vrot.lane.b32.xlu0 %v2812, 64
      %v2893 = vpop.permute.xlu0 %2892
      %2894 = vrot.lane.b32.xlu0 %v2813, 64
      %v2895 = vpop.permute.xlu0 %2894
      %2896 = vrot.lane.b32.xlu0 %v2814, 64
      %v2897 = vpop.permute.xlu0 %2896
      %2898 = vrot.lane.b32.xlu0 %v2815, 64
      %v2899 = vpop.permute.xlu0 %2898
      %2900 = vrot.lane.b32.xlu0 %v2816, 64
      %v2901 = vpop.permute.xlu0 %2900
      %2902 = vrot.lane.b32.xlu0 %v2817, 64
      %v2903 = vpop.permute.xlu0 %2902
      %2904 = vrot.lane.b32.xlu0 %v2818, 64
      %v2905 = vpop.permute.xlu0 %2904
      %2906 = vrot.lane.b32.xlu0 %v2819, 64
      %v2907 = vpop.permute.xlu0 %2906
      %2908 = vrot.lane.b32.xlu0 %v2820, 64
      %v2909 = vpop.permute.xlu0 %2908
      %2910 = vrot.lane.b32.xlu0 %v2821, 64
      %v2911 = vpop.permute.xlu0 %2910
      %2912 = vrot.lane.b32.xlu0 %v2822, 64
      %v2913 = vpop.permute.xlu0 %2912
      %2914 = vrot.lane.b32.xlu0 %v2823, 64
      %v2915 = vpop.permute.xlu0 %2914
      %2916 = vrot.lane.b32.xlu0 %v2824, 64
      %v2917 = vpop.permute.xlu0 %2916
      %2918 = vrot.lane.b32.xlu0 %v2825, 64
      %v2919 = vpop.permute.xlu0 %2918
      %2920 = vrot.lane.b32.xlu0 %v2826, 64
      %v2921 = vpop.permute.xlu0 %2920
      %2922 = vrot.lane.b32.xlu0 %v2827, 64
      %v2923 = vpop.permute.xlu0 %2922
      %2956 = vst.msk [vmem:[#allocation6 + $0x8] sm:$0xff] %vm2699, %v2861
      %2957 = vst.msk [vmem:[#allocation6 + $0x30] sm:$0xff] %vm2699, %v2863
      %2958 = vst.msk [vmem:[#allocation6 + $0x58] sm:$0xff] %vm2699, %v2865
      %2959 = vst.msk [vmem:[#allocation6 + $0x80] sm:$0xff] %vm2699, %v2867
      %2960 = vst.msk [vmem:[#allocation6 + $0xa8] sm:$0xff] %vm2699, %v2869
      %2961 = vst.msk [vmem:[#allocation6 + $0xd0] sm:$0xff] %vm2699, %v2871
      %2962 = vst.msk [vmem:[#allocation6 + $0xf8] sm:$0xff] %vm2699, %v2873
      %2963 = vst.msk [vmem:[#allocation6 + $0x120] sm:$0xff] %vm2699, %v2875
      %2964 = vst.msk [vmem:[#allocation6 + $0x148] sm:$0xff] %vm2699, %v2877
      %2965 = vst.msk [vmem:[#allocation6 + $0x170] sm:$0xff] %vm2699, %v2879
      %2966 = vst.msk [vmem:[#allocation6 + $0x198] sm:$0xff] %vm2699, %v2881
      %2967 = vst.msk [vmem:[#allocation6 + $0x1c0] sm:$0xff] %vm2699, %v2883
      %2968 = vst.msk [vmem:[#allocation6 + $0x1e8] sm:$0xff] %vm2699, %v2885
      %2969 = vst.msk [vmem:[#allocation6 + $0x210] sm:$0xff] %vm2699, %v2887
      %2970 = vst.msk [vmem:[#allocation6 + $0x238] sm:$0xff] %vm2699, %v2889
      %2971 = vst.msk [vmem:[#allocation6 + $0x260] sm:$0xff] %vm2699, %v2891
      %2972 = vst.msk [vmem:[#allocation6 + $0x288] sm:$0xff] %vm2699, %v2893
      %2973 = vst.msk [vmem:[#allocation6 + $0x2b0] sm:$0xff] %vm2699, %v2895
      %2974 = vst.msk [vmem:[#allocation6 + $0x2d8] sm:$0xff] %vm2699, %v2897
      %2975 = vst.msk [vmem:[#allocation6 + $0x300] sm:$0xff] %vm2699, %v2899
      %2976 = vst.msk [vmem:[#allocation6 + $0x328] sm:$0xff] %vm2699, %v2901
      %2977 = vst.msk [vmem:[#allocation6 + $0x350] sm:$0xff] %vm2699, %v2903
      %2978 = vst.msk [vmem:[#allocation6 + $0x378] sm:$0xff] %vm2699, %v2905
      %2979 = vst.msk [vmem:[#allocation6 + $0x3a0] sm:$0xff] %vm2699, %v2907
      %2980 = vst.msk [vmem:[#allocation6 + $0x3c8] sm:$0xff] %vm2699, %v2909
      %2981 = vst.msk [vmem:[#allocation6 + $0x3f0] sm:$0xff] %vm2699, %v2911
      %2982 = vst.msk [vmem:[#allocation6 + $0x418] sm:$0xff] %vm2699, %v2913
      %2983 = vst.msk [vmem:[#allocation6 + $0x440] sm:$0xff] %vm2699, %v2915
      %2984 = vst.msk [vmem:[#allocation6 + $0x468] sm:$0xff] %vm2699, %v2917
      %2985 = vst.msk [vmem:[#allocation6 + $0x490] sm:$0xff] %vm2699, %v2919
      %2986 = vst.msk [vmem:[#allocation6 + $0x4b8] sm:$0xff] %vm2699, %v2921
      %2987 = vst.msk [vmem:[#allocation6 + $0x4e0] sm:$0xff] %vm2699, %v2923
      %v2988 = vld [vmem:[%s2442 + $0x1] sm:$0xff]
      %v2989 = vld [vmem:[%s2442 + $0x9] sm:$0xff]
      %v2990 = vld [vmem:[%s2442 + $0x19] sm:$0xff]
      %v2991 = vld [vmem:[%s2442 + $0x21] sm:$0xff]
      %v2992 = vld [vmem:[%s2442 + $0x31] sm:$0xff]
      %v2993 = vld [vmem:[%s2442 + $0x39] sm:$0xff]
      %v2994 = vld [vmem:[%s2442 + $0x49] sm:$0xff]
      %v2995 = vld [vmem:[%s2442 + $0x51] sm:$0xff]
      %v2996 = vld [vmem:[%s2442 + $0x61] sm:$0xff]
      %v2997 = vld [vmem:[%s2442 + $0x69] sm:$0xff]
      %v2998 = vld [vmem:[%s2442 + $0x79] sm:$0xff]
      %v2999 = vld [vmem:[%s2442 + $0x81] sm:$0xff]
      %v3000 = vld [vmem:[%s2442 + $0x91] sm:$0xff]
      %v3001 = vld [vmem:[%s2442 + $0x99] sm:$0xff]
      %v3002 = vld [vmem:[%s2442 + $0xa9] sm:$0xff]
      %v3003 = vld [vmem:[%s2442 + $0xb1] sm:$0xff]
      %v3004 = vld [vmem:[%s2442 + $0xc1] sm:$0xff]
      %v3005 = vld [vmem:[%s2442 + $0xc9] sm:$0xff]
      %v3006 = vld [vmem:[%s2442 + $0xd9] sm:$0xff]
      %v3007 = vld [vmem:[%s2442 + $0xe1] sm:$0xff]
      %v3008 = vld [vmem:[%s2442 + $0xf1] sm:$0xff]
      %v3009 = vld [vmem:[%s2442 + $0xf9] sm:$0xff]
      %v3010 = vld [vmem:[%s2442 + $0x109] sm:$0xff]
      %v3011 = vld [vmem:[%s2442 + $0x111] sm:$0xff]
      %v3012 = vld [vmem:[%s2442 + $0x121] sm:$0xff]
      %v3013 = vld [vmem:[%s2442 + $0x129] sm:$0xff]
      %v3014 = vld [vmem:[%s2442 + $0x139] sm:$0xff]
      %v3015 = vld [vmem:[%s2442 + $0x141] sm:$0xff]
      %v3016 = vld [vmem:[%s2442 + $0x151] sm:$0xff]
      %v3017 = vld [vmem:[%s2442 + $0x159] sm:$0xff]
      %v3018 = vld [vmem:[%s2442 + $0x169] sm:$0xff]
      %v3019 = vld [vmem:[%s2442 + $0x171] sm:$0xff]
      %3020 = vst.msk [vmem:[#allocation6 + $0x10] sm:$0xff] %vm333, %v2988
      %3021 = vst.msk [vmem:[#allocation6 + $0x38] sm:$0xff] %vm333, %v2989
      %3022 = vst.msk [vmem:[#allocation6 + $0x60] sm:$0xff] %vm333, %v2990
      %3023 = vst.msk [vmem:[#allocation6 + $0x88] sm:$0xff] %vm333, %v2991
      %3024 = vst.msk [vmem:[#allocation6 + $0xb0] sm:$0xff] %vm333, %v2992
      %3025 = vst.msk [vmem:[#allocation6 + $0xd8] sm:$0xff] %vm333, %v2993
      %3026 = vst.msk [vmem:[#allocation6 + $0x100] sm:$0xff] %vm333, %v2994
      %3027 = vst.msk [vmem:[#allocation6 + $0x128] sm:$0xff] %vm333, %v2995
      %3028 = vst.msk [vmem:[#allocation6 + $0x150] sm:$0xff] %vm333, %v2996
      %3029 = vst.msk [vmem:[#allocation6 + $0x178] sm:$0xff] %vm333, %v2997
      %3030 = vst.msk [vmem:[#allocation6 + $0x1a0] sm:$0xff] %vm333, %v2998
      %3031 = vst.msk [vmem:[#allocation6 + $0x1c8] sm:$0xff] %vm333, %v2999
      %3032 = vst.msk [vmem:[#allocation6 + $0x1f0] sm:$0xff] %vm333, %v3000
      %3033 = vst.msk [vmem:[#allocation6 + $0x218] sm:$0xff] %vm333, %v3001
      %3034 = vst.msk [vmem:[#allocation6 + $0x240] sm:$0xff] %vm333, %v3002
      %3035 = vst.msk [vmem:[#allocation6 + $0x268] sm:$0xff] %vm333, %v3003
      %3036 = vst.msk [vmem:[#allocation6 + $0x290] sm:$0xff] %vm333, %v3004
      %3037 = vst.msk [vmem:[#allocation6 + $0x2b8] sm:$0xff] %vm333, %v3005
      %3038 = vst.msk [vmem:[#allocation6 + $0x2e0] sm:$0xff] %vm333, %v3006
      %3039 = vst.msk [vmem:[#allocation6 + $0x308] sm:$0xff] %vm333, %v3007
      %3040 = vst.msk [vmem:[#allocation6 + $0x330] sm:$0xff] %vm333, %v3008
      %3041 = vst.msk [vmem:[#allocation6 + $0x358] sm:$0xff] %vm333, %v3009
      %3042 = vst.msk [vmem:[#allocation6 + $0x380] sm:$0xff] %vm333, %v3010
      %3043 = vst.msk [vmem:[#allocation6 + $0x3a8] sm:$0xff] %vm333, %v3011
      %3044 = vst.msk [vmem:[#allocation6 + $0x3d0] sm:$0xff] %vm333, %v3012
      %3045 = vst.msk [vmem:[#allocation6 + $0x3f8] sm:$0xff] %vm333, %v3013
      %3046 = vst.msk [vmem:[#allocation6 + $0x420] sm:$0xff] %vm333, %v3014
      %3047 = vst.msk [vmem:[#allocation6 + $0x448] sm:$0xff] %vm333, %v3015
      %3048 = vst.msk [vmem:[#allocation6 + $0x470] sm:$0xff] %vm333, %v3016
      %3049 = vst.msk [vmem:[#allocation6 + $0x498] sm:$0xff] %vm333, %v3017
      %3050 = vst.msk [vmem:[#allocation6 + $0x4c0] sm:$0xff] %vm333, %v3018
      %3051 = vst.msk [vmem:[#allocation6 + $0x4e8] sm:$0xff] %vm333, %v3019
      %v3052 = vld [vmem:[%s2442 + $0x2] sm:$0xff]
      %v3053 = vld [vmem:[%s2442 + $0xa] sm:$0xff]
      %v3054 = vld [vmem:[%s2442 + $0x1a] sm:$0xff]
      %v3055 = vld [vmem:[%s2442 + $0x22] sm:$0xff]
      %v3056 = vld [vmem:[%s2442 + $0x32] sm:$0xff]
      %v3057 = vld [vmem:[%s2442 + $0x3a] sm:$0xff]
      %v3058 = vld [vmem:[%s2442 + $0x4a] sm:$0xff]
      %v3059 = vld [vmem:[%s2442 + $0x52] sm:$0xff]
      %v3060 = vld [vmem:[%s2442 + $0x62] sm:$0xff]
      %v3061 = vld [vmem:[%s2442 + $0x6a] sm:$0xff]
      %v3062 = vld [vmem:[%s2442 + $0x7a] sm:$0xff]
      %v3063 = vld [vmem:[%s2442 + $0x82] sm:$0xff]
      %v3064 = vld [vmem:[%s2442 + $0x92] sm:$0xff]
      %v3065 = vld [vmem:[%s2442 + $0x9a] sm:$0xff]
      %v3066 = vld [vmem:[%s2442 + $0xaa] sm:$0xff]
      %v3067 = vld [vmem:[%s2442 + $0xb2] sm:$0xff]
      %v3068 = vld [vmem:[%s2442 + $0xc2] sm:$0xff]
      %v3069 = vld [vmem:[%s2442 + $0xca] sm:$0xff]
      %v3070 = vld [vmem:[%s2442 + $0xda] sm:$0xff]
      %v3071 = vld [vmem:[%s2442 + $0xe2] sm:$0xff]
      %v3072 = vld [vmem:[%s2442 + $0xf2] sm:$0xff]
      %v3073 = vld [vmem:[%s2442 + $0xfa] sm:$0xff]
      %v3074 = vld [vmem:[%s2442 + $0x10a] sm:$0xff]
      %v3075 = vld [vmem:[%s2442 + $0x112] sm:$0xff]
      %v3076 = vld [vmem:[%s2442 + $0x122] sm:$0xff]
      %v3077 = vld [vmem:[%s2442 + $0x12a] sm:$0xff]
      %v3078 = vld [vmem:[%s2442 + $0x13a] sm:$0xff]
      %v3079 = vld [vmem:[%s2442 + $0x142] sm:$0xff]
      %v3080 = vld [vmem:[%s2442 + $0x152] sm:$0xff]
      %v3081 = vld [vmem:[%s2442 + $0x15a] sm:$0xff]
      %v3082 = vld [vmem:[%s2442 + $0x16a] sm:$0xff]
      %v3083 = vld [vmem:[%s2442 + $0x172] sm:$0xff]
      %3116 = vrot.lane.b32.xlu0 %v3052, 64
      %v3117 = vpop.permute.xlu0 %3116
      %3118 = vrot.lane.b32.xlu0 %v3053, 64
      %v3119 = vpop.permute.xlu0 %3118
      %3120 = vrot.lane.b32.xlu0 %v3054, 64
      %v3121 = vpop.permute.xlu0 %3120
      %3122 = vrot.lane.b32.xlu0 %v3055, 64
      %v3123 = vpop.permute.xlu0 %3122
      %3124 = vrot.lane.b32.xlu0 %v3056, 64
      %v3125 = vpop.permute.xlu0 %3124
      %3126 = vrot.lane.b32.xlu0 %v3057, 64
      %v3127 = vpop.permute.xlu0 %3126
      %3128 = vrot.lane.b32.xlu0 %v3058, 64
      %v3129 = vpop.permute.xlu0 %3128
      %3130 = vrot.lane.b32.xlu0 %v3059, 64
      %v3131 = vpop.permute.xlu0 %3130
      %3132 = vrot.lane.b32.xlu0 %v3060, 64
      %v3133 = vpop.permute.xlu0 %3132
      %3134 = vrot.lane.b32.xlu0 %v3061, 64
      %v3135 = vpop.permute.xlu0 %3134
      %3136 = vrot.lane.b32.xlu0 %v3062, 64
      %v3137 = vpop.permute.xlu0 %3136
      %3138 = vrot.lane.b32.xlu0 %v3063, 64
      %v3139 = vpop.permute.xlu0 %3138
      %3140 = vrot.lane.b32.xlu0 %v3064, 64
      %v3141 = vpop.permute.xlu0 %3140
      %3142 = vrot.lane.b32.xlu0 %v3065, 64
      %v3143 = vpop.permute.xlu0 %3142
      %3144 = vrot.lane.b32.xlu0 %v3066, 64
      %v3145 = vpop.permute.xlu0 %3144
      %3146 = vrot.lane.b32.xlu0 %v3067, 64
      %v3147 = vpop.permute.xlu0 %3146
      %3148 = vrot.lane.b32.xlu0 %v3068, 64
      %v3149 = vpop.permute.xlu0 %3148
      %3150 = vrot.lane.b32.xlu0 %v3069, 64
      %v3151 = vpop.permute.xlu0 %3150
      %3152 = vrot.lane.b32.xlu0 %v3070, 64
      %v3153 = vpop.permute.xlu0 %3152
      %3154 = vrot.lane.b32.xlu0 %v3071, 64
      %v3155 = vpop.permute.xlu0 %3154
      %3156 = vrot.lane.b32.xlu0 %v3072, 64
      %v3157 = vpop.permute.xlu0 %3156
      %3158 = vrot.lane.b32.xlu0 %v3073, 64
      %v3159 = vpop.permute.xlu0 %3158
      %3160 = vrot.lane.b32.xlu0 %v3074, 64
      %v3161 = vpop.permute.xlu0 %3160
      %3162 = vrot.lane.b32.xlu0 %v3075, 64
      %v3163 = vpop.permute.xlu0 %3162
      %3164 = vrot.lane.b32.xlu0 %v3076, 64
      %v3165 = vpop.permute.xlu0 %3164
      %3166 = vrot.lane.b32.xlu0 %v3077, 64
      %v3167 = vpop.permute.xlu0 %3166
      %3168 = vrot.lane.b32.xlu0 %v3078, 64
      %v3169 = vpop.permute.xlu0 %3168
      %3170 = vrot.lane.b32.xlu0 %v3079, 64
      %v3171 = vpop.permute.xlu0 %3170
      %3172 = vrot.lane.b32.xlu0 %v3080, 64
      %v3173 = vpop.permute.xlu0 %3172
      %3174 = vrot.lane.b32.xlu0 %v3081, 64
      %v3175 = vpop.permute.xlu0 %3174
      %3176 = vrot.lane.b32.xlu0 %v3082, 64
      %v3177 = vpop.permute.xlu0 %3176
      %3178 = vrot.lane.b32.xlu0 %v3083, 64
      %v3179 = vpop.permute.xlu0 %3178
      %3212 = vst.msk [vmem:[#allocation6 + $0x10] sm:$0xff] %vm2699, %v3117
      %3213 = vst.msk [vmem:[#allocation6 + $0x38] sm:$0xff] %vm2699, %v3119
      %3214 = vst.msk [vmem:[#allocation6 + $0x60] sm:$0xff] %vm2699, %v3121
      %3215 = vst.msk [vmem:[#allocation6 + $0x88] sm:$0xff] %vm2699, %v3123
      %3216 = vst.msk [vmem:[#allocation6 + $0xb0] sm:$0xff] %vm2699, %v3125
      %3217 = vst.msk [vmem:[#allocation6 + $0xd8] sm:$0xff] %vm2699, %v3127
      %3218 = vst.msk [vmem:[#allocation6 + $0x100] sm:$0xff] %vm2699, %v3129
      %3219 = vst.msk [vmem:[#allocation6 + $0x128] sm:$0xff] %vm2699, %v3131
      %3220 = vst.msk [vmem:[#allocation6 + $0x150] sm:$0xff] %vm2699, %v3133
      %3221 = vst.msk [vmem:[#allocation6 + $0x178] sm:$0xff] %vm2699, %v3135
      %3222 = vst.msk [vmem:[#allocation6 + $0x1a0] sm:$0xff] %vm2699, %v3137
      %3223 = vst.msk [vmem:[#allocation6 + $0x1c8] sm:$0xff] %vm2699, %v3139
      %3224 = vst.msk [vmem:[#allocation6 + $0x1f0] sm:$0xff] %vm2699, %v3141
      %3225 = vst.msk [vmem:[#allocation6 + $0x218] sm:$0xff] %vm2699, %v3143
      %3226 = vst.msk [vmem:[#allocation6 + $0x240] sm:$0xff] %vm2699, %v3145
      %3227 = vst.msk [vmem:[#allocation6 + $0x268] sm:$0xff] %vm2699, %v3147
      %3228 = vst.msk [vmem:[#allocation6 + $0x290] sm:$0xff] %vm2699, %v3149
      %3229 = vst.msk [vmem:[#allocation6 + $0x2b8] sm:$0xff] %vm2699, %v3151
      %3230 = vst.msk [vmem:[#allocation6 + $0x2e0] sm:$0xff] %vm2699, %v3153
      %3231 = vst.msk [vmem:[#allocation6 + $0x308] sm:$0xff] %vm2699, %v3155
      %3232 = vst.msk [vmem:[#allocation6 + $0x330] sm:$0xff] %vm2699, %v3157
      %3233 = vst.msk [vmem:[#allocation6 + $0x358] sm:$0xff] %vm2699, %v3159
      %3234 = vst.msk [vmem:[#allocation6 + $0x380] sm:$0xff] %vm2699, %v3161
      %3235 = vst.msk [vmem:[#allocation6 + $0x3a8] sm:$0xff] %vm2699, %v3163
      %3236 = vst.msk [vmem:[#allocation6 + $0x3d0] sm:$0xff] %vm2699, %v3165
      %3237 = vst.msk [vmem:[#allocation6 + $0x3f8] sm:$0xff] %vm2699, %v3167
      %3238 = vst.msk [vmem:[#allocation6 + $0x420] sm:$0xff] %vm2699, %v3169
      %3239 = vst.msk [vmem:[#allocation6 + $0x448] sm:$0xff] %vm2699, %v3171
      %3240 = vst.msk [vmem:[#allocation6 + $0x470] sm:$0xff] %vm2699, %v3173
      %3241 = vst.msk [vmem:[#allocation6 + $0x498] sm:$0xff] %vm2699, %v3175
      %3242 = vst.msk [vmem:[#allocation6 + $0x4c0] sm:$0xff] %vm2699, %v3177
      %3243 = vst.msk [vmem:[#allocation6 + $0x4e8] sm:$0xff] %vm2699, %v3179
      %s3244 = scalar_lea.vmem [#allocation2], 48
      %v3245 = vld [vmem:[%s3244] sm:$0xff]
      %v3246 = vld [vmem:[%s3244 + $0x8] sm:$0xff]
      %v3247 = vld [vmem:[%s3244 + $0x18] sm:$0xff]
      %v3248 = vld [vmem:[%s3244 + $0x20] sm:$0xff]
      %v3249 = vld [vmem:[%s3244 + $0x30] sm:$0xff]
      %v3250 = vld [vmem:[%s3244 + $0x38] sm:$0xff]
      %v3251 = vld [vmem:[%s3244 + $0x48] sm:$0xff]
      %v3252 = vld [vmem:[%s3244 + $0x50] sm:$0xff]
      %v3253 = vld [vmem:[%s3244 + $0x60] sm:$0xff]
      %v3254 = vld [vmem:[%s3244 + $0x68] sm:$0xff]
      %v3255 = vld [vmem:[%s3244 + $0x78] sm:$0xff]
      %v3256 = vld [vmem:[%s3244 + $0x80] sm:$0xff]
      %v3257 = vld [vmem:[%s3244 + $0x90] sm:$0xff]
      %v3258 = vld [vmem:[%s3244 + $0x98] sm:$0xff]
      %v3259 = vld [vmem:[%s3244 + $0xa8] sm:$0xff]
      %v3260 = vld [vmem:[%s3244 + $0xb0] sm:$0xff]
      %v3261 = vld [vmem:[%s3244 + $0xc0] sm:$0xff]
      %v3262 = vld [vmem:[%s3244 + $0xc8] sm:$0xff]
      %v3263 = vld [vmem:[%s3244 + $0xd8] sm:$0xff]
      %v3264 = vld [vmem:[%s3244 + $0xe0] sm:$0xff]
      %v3265 = vld [vmem:[%s3244 + $0xf0] sm:$0xff]
      %v3266 = vld [vmem:[%s3244 + $0xf8] sm:$0xff]
      %v3267 = vld [vmem:[%s3244 + $0x108] sm:$0xff]
      %v3268 = vld [vmem:[%s3244 + $0x110] sm:$0xff]
      %v3269 = vld [vmem:[%s3244 + $0x120] sm:$0xff]
      %v3270 = vld [vmem:[%s3244 + $0x128] sm:$0xff]
      %v3271 = vld [vmem:[%s3244 + $0x138] sm:$0xff]
      %v3272 = vld [vmem:[%s3244 + $0x140] sm:$0xff]
      %v3273 = vld [vmem:[%s3244 + $0x150] sm:$0xff]
      %v3274 = vld [vmem:[%s3244 + $0x158] sm:$0xff]
      %v3275 = vld [vmem:[%s3244 + $0x168] sm:$0xff]
      %v3276 = vld [vmem:[%s3244 + $0x170] sm:$0xff]
      %3277 = vst.msk [vmem:[#allocation6 + $0x18] sm:$0xff] %vm333, %v3245
      %3278 = vst.msk [vmem:[#allocation6 + $0x40] sm:$0xff] %vm333, %v3246
      %3279 = vst.msk [vmem:[#allocation6 + $0x68] sm:$0xff] %vm333, %v3247
      %3280 = vst.msk [vmem:[#allocation6 + $0x90] sm:$0xff] %vm333, %v3248
      %3281 = vst.msk [vmem:[#allocation6 + $0xb8] sm:$0xff] %vm333, %v3249
      %3282 = vst.msk [vmem:[#allocation6 + $0xe0] sm:$0xff] %vm333, %v3250
      %3283 = vst.msk [vmem:[#allocation6 + $0x108] sm:$0xff] %vm333, %v3251
      %3284 = vst.msk [vmem:[#allocation6 + $0x130] sm:$0xff] %vm333, %v3252
      %3285 = vst.msk [vmem:[#allocation6 + $0x158] sm:$0xff] %vm333, %v3253
      %3286 = vst.msk [vmem:[#allocation6 + $0x180] sm:$0xff] %vm333, %v3254
      %3287 = vst.msk [vmem:[#allocation6 + $0x1a8] sm:$0xff] %vm333, %v3255
      %3288 = vst.msk [vmem:[#allocation6 + $0x1d0] sm:$0xff] %vm333, %v3256
      %3289 = vst.msk [vmem:[#allocation6 + $0x1f8] sm:$0xff] %vm333, %v3257
      %3290 = vst.msk [vmem:[#allocation6 + $0x220] sm:$0xff] %vm333, %v3258
      %3291 = vst.msk [vmem:[#allocation6 + $0x248] sm:$0xff] %vm333, %v3259
      %3292 = vst.msk [vmem:[#allocation6 + $0x270] sm:$0xff] %vm333, %v3260
      %3293 = vst.msk [vmem:[#allocation6 + $0x298] sm:$0xff] %vm333, %v3261
      %3294 = vst.msk [vmem:[#allocation6 + $0x2c0] sm:$0xff] %vm333, %v3262
      %3295 = vst.msk [vmem:[#allocation6 + $0x2e8] sm:$0xff] %vm333, %v3263
      %3296 = vst.msk [vmem:[#allocation6 + $0x310] sm:$0xff] %vm333, %v3264
      %3297 = vst.msk [vmem:[#allocation6 + $0x338] sm:$0xff] %vm333, %v3265
      %3298 = vst.msk [vmem:[#allocation6 + $0x360] sm:$0xff] %vm333, %v3266
      %3299 = vst.msk [vmem:[#allocation6 + $0x388] sm:$0xff] %vm333, %v3267
      %3300 = vst.msk [vmem:[#allocation6 + $0x3b0] sm:$0xff] %vm333, %v3268
      %3301 = vst.msk [vmem:[#allocation6 + $0x3d8] sm:$0xff] %vm333, %v3269
      %3302 = vst.msk [vmem:[#allocation6 + $0x400] sm:$0xff] %vm333, %v3270
      %3303 = vst.msk [vmem:[#allocation6 + $0x428] sm:$0xff] %vm333, %v3271
      %3304 = vst.msk [vmem:[#allocation6 + $0x450] sm:$0xff] %vm333, %v3272
      %3305 = vst.msk [vmem:[#allocation6 + $0x478] sm:$0xff] %vm333, %v3273
      %3306 = vst.msk [vmem:[#allocation6 + $0x4a0] sm:$0xff] %vm333, %v3274
      %3307 = vst.msk [vmem:[#allocation6 + $0x4c8] sm:$0xff] %vm333, %v3275
      %3308 = vst.msk [vmem:[#allocation6 + $0x4f0] sm:$0xff] %vm333, %v3276
      %v3309 = vld [vmem:[%s3244 + $0x1] sm:$0xff]
      %v3310 = vld [vmem:[%s3244 + $0x9] sm:$0xff]
      %v3311 = vld [vmem:[%s3244 + $0x19] sm:$0xff]
      %v3312 = vld [vmem:[%s3244 + $0x21] sm:$0xff]
      %v3313 = vld [vmem:[%s3244 + $0x31] sm:$0xff]
      %v3314 = vld [vmem:[%s3244 + $0x39] sm:$0xff]
      %v3315 = vld [vmem:[%s3244 + $0x49] sm:$0xff]
      %v3316 = vld [vmem:[%s3244 + $0x51] sm:$0xff]
      %v3317 = vld [vmem:[%s3244 + $0x61] sm:$0xff]
      %v3318 = vld [vmem:[%s3244 + $0x69] sm:$0xff]
      %v3319 = vld [vmem:[%s3244 + $0x79] sm:$0xff]
      %v3320 = vld [vmem:[%s3244 + $0x81] sm:$0xff]
      %v3321 = vld [vmem:[%s3244 + $0x91] sm:$0xff]
      %v3322 = vld [vmem:[%s3244 + $0x99] sm:$0xff]
      %v3323 = vld [vmem:[%s3244 + $0xa9] sm:$0xff]
      %v3324 = vld [vmem:[%s3244 + $0xb1] sm:$0xff]
      %v3325 = vld [vmem:[%s3244 + $0xc1] sm:$0xff]
      %v3326 = vld [vmem:[%s3244 + $0xc9] sm:$0xff]
      %v3327 = vld [vmem:[%s3244 + $0xd9] sm:$0xff]
      %v3328 = vld [vmem:[%s3244 + $0xe1] sm:$0xff]
      %v3329 = vld [vmem:[%s3244 + $0xf1] sm:$0xff]
      %v3330 = vld [vmem:[%s3244 + $0xf9] sm:$0xff]
      %v3331 = vld [vmem:[%s3244 + $0x109] sm:$0xff]
      %v3332 = vld [vmem:[%s3244 + $0x111] sm:$0xff]
      %v3333 = vld [vmem:[%s3244 + $0x121] sm:$0xff]
      %v3334 = vld [vmem:[%s3244 + $0x129] sm:$0xff]
      %v3335 = vld [vmem:[%s3244 + $0x139] sm:$0xff]
      %v3336 = vld [vmem:[%s3244 + $0x141] sm:$0xff]
      %v3337 = vld [vmem:[%s3244 + $0x151] sm:$0xff]
      %v3338 = vld [vmem:[%s3244 + $0x159] sm:$0xff]
      %v3339 = vld [vmem:[%s3244 + $0x169] sm:$0xff]
      %v3340 = vld [vmem:[%s3244 + $0x171] sm:$0xff]
      %3373 = vrot.lane.b32.xlu0 %v3309, 64
      %v3374 = vpop.permute.xlu0 %3373
      %3375 = vrot.lane.b32.xlu0 %v3310, 64
      %v3376 = vpop.permute.xlu0 %3375
      %3377 = vrot.lane.b32.xlu0 %v3311, 64
      %v3378 = vpop.permute.xlu0 %3377
      %3379 = vrot.lane.b32.xlu0 %v3312, 64
      %v3380 = vpop.permute.xlu0 %3379
      %3381 = vrot.lane.b32.xlu0 %v3313, 64
      %v3382 = vpop.permute.xlu0 %3381
      %3383 = vrot.lane.b32.xlu0 %v3314, 64
      %v3384 = vpop.permute.xlu0 %3383
      %3385 = vrot.lane.b32.xlu0 %v3315, 64
      %v3386 = vpop.permute.xlu0 %3385
      %3387 = vrot.lane.b32.xlu0 %v3316, 64
      %v3388 = vpop.permute.xlu0 %3387
      %3389 = vrot.lane.b32.xlu0 %v3317, 64
      %v3390 = vpop.permute.xlu0 %3389
      %3391 = vrot.lane.b32.xlu0 %v3318, 64
      %v3392 = vpop.permute.xlu0 %3391
      %3393 = vrot.lane.b32.xlu0 %v3319, 64
      %v3394 = vpop.permute.xlu0 %3393
      %3395 = vrot.lane.b32.xlu0 %v3320, 64
      %v3396 = vpop.permute.xlu0 %3395
      %3397 = vrot.lane.b32.xlu0 %v3321, 64
      %v3398 = vpop.permute.xlu0 %3397
      %3399 = vrot.lane.b32.xlu0 %v3322, 64
      %v3400 = vpop.permute.xlu0 %3399
      %3401 = vrot.lane.b32.xlu0 %v3323, 64
      %v3402 = vpop.permute.xlu0 %3401
      %3403 = vrot.lane.b32.xlu0 %v3324, 64
      %v3404 = vpop.permute.xlu0 %3403
      %3405 = vrot.lane.b32.xlu0 %v3325, 64
      %v3406 = vpop.permute.xlu0 %3405
      %3407 = vrot.lane.b32.xlu0 %v3326, 64
      %v3408 = vpop.permute.xlu0 %3407
      %3409 = vrot.lane.b32.xlu0 %v3327, 64
      %v3410 = vpop.permute.xlu0 %3409
      %3411 = vrot.lane.b32.xlu0 %v3328, 64
      %v3412 = vpop.permute.xlu0 %3411
      %3413 = vrot.lane.b32.xlu0 %v3329, 64
      %v3414 = vpop.permute.xlu0 %3413
      %3415 = vrot.lane.b32.xlu0 %v3330, 64
      %v3416 = vpop.permute.xlu0 %3415
      %3417 = vrot.lane.b32.xlu0 %v3331, 64
      %v3418 = vpop.permute.xlu0 %3417
      %3419 = vrot.lane.b32.xlu0 %v3332, 64
      %v3420 = vpop.permute.xlu0 %3419
      %3421 = vrot.lane.b32.xlu0 %v3333, 64
      %v3422 = vpop.permute.xlu0 %3421
      %3423 = vrot.lane.b32.xlu0 %v3334, 64
      %v3424 = vpop.permute.xlu0 %3423
      %3425 = vrot.lane.b32.xlu0 %v3335, 64
      %v3426 = vpop.permute.xlu0 %3425
      %3427 = vrot.lane.b32.xlu0 %v3336, 64
      %v3428 = vpop.permute.xlu0 %3427
      %3429 = vrot.lane.b32.xlu0 %v3337, 64
      %v3430 = vpop.permute.xlu0 %3429
      %3431 = vrot.lane.b32.xlu0 %v3338, 64
      %v3432 = vpop.permute.xlu0 %3431
      %3433 = vrot.lane.b32.xlu0 %v3339, 64
      %v3434 = vpop.permute.xlu0 %3433
      %3435 = vrot.lane.b32.xlu0 %v3340, 64
      %v3436 = vpop.permute.xlu0 %3435
      %3469 = vst.msk [vmem:[#allocation6 + $0x18] sm:$0xff] %vm2699, %v3374
      %3470 = vst.msk [vmem:[#allocation6 + $0x40] sm:$0xff] %vm2699, %v3376
      %3471 = vst.msk [vmem:[#allocation6 + $0x68] sm:$0xff] %vm2699, %v3378
      %3472 = vst.msk [vmem:[#allocation6 + $0x90] sm:$0xff] %vm2699, %v3380
      %3473 = vst.msk [vmem:[#allocation6 + $0xb8] sm:$0xff] %vm2699, %v3382
      %3474 = vst.msk [vmem:[#allocation6 + $0xe0] sm:$0xff] %vm2699, %v3384
      %3475 = vst.msk [vmem:[#allocation6 + $0x108] sm:$0xff] %vm2699, %v3386
      %3476 = vst.msk [vmem:[#allocation6 + $0x130] sm:$0xff] %vm2699, %v3388
      %3477 = vst.msk [vmem:[#allocation6 + $0x158] sm:$0xff] %vm2699, %v3390
      %3478 = vst.msk [vmem:[#allocation6 + $0x180] sm:$0xff] %vm2699, %v3392
      %3479 = vst.msk [vmem:[#allocation6 + $0x1a8] sm:$0xff] %vm2699, %v3394
      %3480 = vst.msk [vmem:[#allocation6 + $0x1d0] sm:$0xff] %vm2699, %v3396
      %3481 = vst.msk [vmem:[#allocation6 + $0x1f8] sm:$0xff] %vm2699, %v3398
      %3482 = vst.msk [vmem:[#allocation6 + $0x220] sm:$0xff] %vm2699, %v3400
      %3483 = vst.msk [vmem:[#allocation6 + $0x248] sm:$0xff] %vm2699, %v3402
      %3484 = vst.msk [vmem:[#allocation6 + $0x270] sm:$0xff] %vm2699, %v3404
      %3485 = vst.msk [vmem:[#allocation6 + $0x298] sm:$0xff] %vm2699, %v3406
      %3486 = vst.msk [vmem:[#allocation6 + $0x2c0] sm:$0xff] %vm2699, %v3408
      %3487 = vst.msk [vmem:[#allocation6 + $0x2e8] sm:$0xff] %vm2699, %v3410
      %3488 = vst.msk [vmem:[#allocation6 + $0x310] sm:$0xff] %vm2699, %v3412
      %3489 = vst.msk [vmem:[#allocation6 + $0x338] sm:$0xff] %vm2699, %v3414
      %3490 = vst.msk [vmem:[#allocation6 + $0x360] sm:$0xff] %vm2699, %v3416
      %3491 = vst.msk [vmem:[#allocation6 + $0x388] sm:$0xff] %vm2699, %v3418
      %3492 = vst.msk [vmem:[#allocation6 + $0x3b0] sm:$0xff] %vm2699, %v3420
      %3493 = vst.msk [vmem:[#allocation6 + $0x3d8] sm:$0xff] %vm2699, %v3422
      %3494 = vst.msk [vmem:[#allocation6 + $0x400] sm:$0xff] %vm2699, %v3424
      %3495 = vst.msk [vmem:[#allocation6 + $0x428] sm:$0xff] %vm2699, %v3426
      %3496 = vst.msk [vmem:[#allocation6 + $0x450] sm:$0xff] %vm2699, %v3428
      %3497 = vst.msk [vmem:[#allocation6 + $0x478] sm:$0xff] %vm2699, %v3430
      %3498 = vst.msk [vmem:[#allocation6 + $0x4a0] sm:$0xff] %vm2699, %v3432
      %3499 = vst.msk [vmem:[#allocation6 + $0x4c8] sm:$0xff] %vm2699, %v3434
      %3500 = vst.msk [vmem:[#allocation6 + $0x4f0] sm:$0xff] %vm2699, %v3436
      %v3501 = vld [vmem:[%s3244 + $0x2] sm:$0xff]
      %v3502 = vld [vmem:[%s3244 + $0xa] sm:$0xff]
      %v3503 = vld [vmem:[%s3244 + $0x1a] sm:$0xff]
      %v3504 = vld [vmem:[%s3244 + $0x22] sm:$0xff]
      %v3505 = vld [vmem:[%s3244 + $0x32] sm:$0xff]
      %v3506 = vld [vmem:[%s3244 + $0x3a] sm:$0xff]
      %v3507 = vld [vmem:[%s3244 + $0x4a] sm:$0xff]
      %v3508 = vld [vmem:[%s3244 + $0x52] sm:$0xff]
      %v3509 = vld [vmem:[%s3244 + $0x62] sm:$0xff]
      %v3510 = vld [vmem:[%s3244 + $0x6a] sm:$0xff]
      %v3511 = vld [vmem:[%s3244 + $0x7a] sm:$0xff]
      %v3512 = vld [vmem:[%s3244 + $0x82] sm:$0xff]
      %v3513 = vld [vmem:[%s3244 + $0x92] sm:$0xff]
      %v3514 = vld [vmem:[%s3244 + $0x9a] sm:$0xff]
      %v3515 = vld [vmem:[%s3244 + $0xaa] sm:$0xff]
      %v3516 = vld [vmem:[%s3244 + $0xb2] sm:$0xff]
      %v3517 = vld [vmem:[%s3244 + $0xc2] sm:$0xff]
      %v3518 = vld [vmem:[%s3244 + $0xca] sm:$0xff]
      %v3519 = vld [vmem:[%s3244 + $0xda] sm:$0xff]
      %v3520 = vld [vmem:[%s3244 + $0xe2] sm:$0xff]
      %v3521 = vld [vmem:[%s3244 + $0xf2] sm:$0xff]
      %v3522 = vld [vmem:[%s3244 + $0xfa] sm:$0xff]
      %v3523 = vld [vmem:[%s3244 + $0x10a] sm:$0xff]
      %v3524 = vld [vmem:[%s3244 + $0x112] sm:$0xff]
      %v3525 = vld [vmem:[%s3244 + $0x122] sm:$0xff]
      %v3526 = vld [vmem:[%s3244 + $0x12a] sm:$0xff]
      %v3527 = vld [vmem:[%s3244 + $0x13a] sm:$0xff]
      %v3528 = vld [vmem:[%s3244 + $0x142] sm:$0xff]
      %v3529 = vld [vmem:[%s3244 + $0x152] sm:$0xff]
      %v3530 = vld [vmem:[%s3244 + $0x15a] sm:$0xff]
      %v3531 = vld [vmem:[%s3244 + $0x16a] sm:$0xff]
      %v3532 = vld [vmem:[%s3244 + $0x172] sm:$0xff]
      %3533 = vst.msk [vmem:[#allocation6 + $0x20] sm:$0xff] %vm333, %v3501
      %3534 = vst.msk [vmem:[#allocation6 + $0x48] sm:$0xff] %vm333, %v3502
      %3535 = vst.msk [vmem:[#allocation6 + $0x70] sm:$0xff] %vm333, %v3503
      %3536 = vst.msk [vmem:[#allocation6 + $0x98] sm:$0xff] %vm333, %v3504
      %3537 = vst.msk [vmem:[#allocation6 + $0xc0] sm:$0xff] %vm333, %v3505
      %3538 = vst.msk [vmem:[#allocation6 + $0xe8] sm:$0xff] %vm333, %v3506
      %3539 = vst.msk [vmem:[#allocation6 + $0x110] sm:$0xff] %vm333, %v3507
      %3540 = vst.msk [vmem:[#allocation6 + $0x138] sm:$0xff] %vm333, %v3508
      %3541 = vst.msk [vmem:[#allocation6 + $0x160] sm:$0xff] %vm333, %v3509
      %3542 = vst.msk [vmem:[#allocation6 + $0x188] sm:$0xff] %vm333, %v3510
      %3543 = vst.msk [vmem:[#allocation6 + $0x1b0] sm:$0xff] %vm333, %v3511
      %3544 = vst.msk [vmem:[#allocation6 + $0x1d8] sm:$0xff] %vm333, %v3512
      %3545 = vst.msk [vmem:[#allocation6 + $0x200] sm:$0xff] %vm333, %v3513
      %3546 = vst.msk [vmem:[#allocation6 + $0x228] sm:$0xff] %vm333, %v3514
      %3547 = vst.msk [vmem:[#allocation6 + $0x250] sm:$0xff] %vm333, %v3515
      %3548 = vst.msk [vmem:[#allocation6 + $0x278] sm:$0xff] %vm333, %v3516
      %3549 = vst.msk [vmem:[#allocation6 + $0x2a0] sm:$0xff] %vm333, %v3517
      %3550 = vst.msk [vmem:[#allocation6 + $0x2c8] sm:$0xff] %vm333, %v3518
      %3551 = vst.msk [vmem:[#allocation6 + $0x2f0] sm:$0xff] %vm333, %v3519
      %3552 = vst.msk [vmem:[#allocation6 + $0x318] sm:$0xff] %vm333, %v3520
      %3553 = vst.msk [vmem:[#allocation6 + $0x340] sm:$0xff] %vm333, %v3521
      %3554 = vst.msk [vmem:[#allocation6 + $0x368] sm:$0xff] %vm333, %v3522
      %3555 = vst.msk [vmem:[#allocation6 + $0x390] sm:$0xff] %vm333, %v3523
      %3556 = vst.msk [vmem:[#allocation6 + $0x3b8] sm:$0xff] %vm333, %v3524
      %3557 = vst.msk [vmem:[#allocation6 + $0x3e0] sm:$0xff] %vm333, %v3525
      %3558 = vst.msk [vmem:[#allocation6 + $0x408] sm:$0xff] %vm333, %v3526
      %3559 = vst.msk [vmem:[#allocation6 + $0x430] sm:$0xff] %vm333, %v3527
      %3560 = vst.msk [vmem:[#allocation6 + $0x458] sm:$0xff] %vm333, %v3528
      %3561 = vst.msk [vmem:[#allocation6 + $0x480] sm:$0xff] %vm333, %v3529
      %3562 = vst.msk [vmem:[#allocation6 + $0x4a8] sm:$0xff] %vm333, %v3530
      %3563 = vst.msk [vmem:[#allocation6 + $0x4d0] sm:$0xff] %vm333, %v3531
      %3564 = vst.msk [vmem:[#allocation6 + $0x4f8] sm:$0xff] %vm333, %v3532
      %v3565 = vld [vmem:[#allocation6] sm:$0xff]
      %v3566 = vld [vmem:[#allocation6 + $0x8] sm:$0xff]
      %v3567 = vld [vmem:[#allocation6 + $0x10] sm:$0xff]
      %v3568 = vld [vmem:[#allocation6 + $0x18] sm:$0xff]
      %v3569 = vld [vmem:[#allocation6 + $0x20] sm:$0xff]
      %v3570 = vld [vmem:[#allocation6 + $0x28] sm:$0xff]
      %v3571 = vld [vmem:[#allocation6 + $0x30] sm:$0xff]
      %v3572 = vld [vmem:[#allocation6 + $0x38] sm:$0xff]
      %v3573 = vld [vmem:[#allocation6 + $0x40] sm:$0xff]
      %v3574 = vld [vmem:[#allocation6 + $0x48] sm:$0xff]
      %v3575 = vld [vmem:[#allocation6 + $0x50] sm:$0xff]
      %v3576 = vld [vmem:[#allocation6 + $0x58] sm:$0xff]
      %v3577 = vld [vmem:[#allocation6 + $0x60] sm:$0xff]
      %v3578 = vld [vmem:[#allocation6 + $0x68] sm:$0xff]
      %v3579 = vld [vmem:[#allocation6 + $0x70] sm:$0xff]
      %v3580 = vld [vmem:[#allocation6 + $0x78] sm:$0xff]
      %v3581 = vld [vmem:[#allocation6 + $0x80] sm:$0xff]
      %v3582 = vld [vmem:[#allocation6 + $0x88] sm:$0xff]
      %v3583 = vld [vmem:[#allocation6 + $0x90] sm:$0xff]
      %v3584 = vld [vmem:[#allocation6 + $0x98] sm:$0xff]
      %v3585 = vld [vmem:[#allocation6 + $0xa0] sm:$0xff]
      %v3586 = vld [vmem:[#allocation6 + $0xa8] sm:$0xff]
      %v3587 = vld [vmem:[#allocation6 + $0xb0] sm:$0xff]
      %v3588 = vld [vmem:[#allocation6 + $0xb8] sm:$0xff]
      %v3589 = vld [vmem:[#allocation6 + $0xc0] sm:$0xff]
      %v3590 = vld [vmem:[#allocation6 + $0xc8] sm:$0xff]
      %v3591 = vld [vmem:[#allocation6 + $0xd0] sm:$0xff]
      %v3592 = vld [vmem:[#allocation6 + $0xd8] sm:$0xff]
      %v3593 = vld [vmem:[#allocation6 + $0xe0] sm:$0xff]
      %v3594 = vld [vmem:[#allocation6 + $0xe8] sm:$0xff]
      %v3595 = vld [vmem:[#allocation6 + $0xf0] sm:$0xff]
      %v3596 = vld [vmem:[#allocation6 + $0xf8] sm:$0xff]
      %v3597 = vld [vmem:[#allocation6 + $0x100] sm:$0xff]
      %v3598 = vld [vmem:[#allocation6 + $0x108] sm:$0xff]
      %v3599 = vld [vmem:[#allocation6 + $0x110] sm:$0xff]
      %v3600 = vld [vmem:[#allocation6 + $0x118] sm:$0xff]
      %v3601 = vld [vmem:[#allocation6 + $0x120] sm:$0xff]
      %v3602 = vld [vmem:[#allocation6 + $0x128] sm:$0xff]
      %v3603 = vld [vmem:[#allocation6 + $0x130] sm:$0xff]
      %v3604 = vld [vmem:[#allocation6 + $0x138] sm:$0xff]
      %v3605 = vld [vmem:[#allocation6 + $0x140] sm:$0xff]
      %v3606 = vld [vmem:[#allocation6 + $0x148] sm:$0xff]
      %v3607 = vld [vmem:[#allocation6 + $0x150] sm:$0xff]
      %v3608 = vld [vmem:[#allocation6 + $0x158] sm:$0xff]
      %v3609 = vld [vmem:[#allocation6 + $0x160] sm:$0xff]
      %v3610 = vld [vmem:[#allocation6 + $0x168] sm:$0xff]
      %v3611 = vld [vmem:[#allocation6 + $0x170] sm:$0xff]
      %v3612 = vld [vmem:[#allocation6 + $0x178] sm:$0xff]
      %v3613 = vld [vmem:[#allocation6 + $0x180] sm:$0xff]
      %v3614 = vld [vmem:[#allocation6 + $0x188] sm:$0xff]
      %v3615 = vld [vmem:[#allocation6 + $0x190] sm:$0xff]
      %v3616 = vld [vmem:[#allocation6 + $0x198] sm:$0xff]
      %v3617 = vld [vmem:[#allocation6 + $0x1a0] sm:$0xff]
      %v3618 = vld [vmem:[#allocation6 + $0x1a8] sm:$0xff]
      %v3619 = vld [vmem:[#allocation6 + $0x1b0] sm:$0xff]
      %v3620 = vld [vmem:[#allocation6 + $0x1b8] sm:$0xff]
      %v3621 = vld [vmem:[#allocation6 + $0x1c0] sm:$0xff]
      %v3622 = vld [vmem:[#allocation6 + $0x1c8] sm:$0xff]
      %v3623 = vld [vmem:[#allocation6 + $0x1d0] sm:$0xff]
      %v3624 = vld [vmem:[#allocation6 + $0x1d8] sm:$0xff]
      %v3625 = vld [vmem:[#allocation6 + $0x1e0] sm:$0xff]
      %v3626 = vld [vmem:[#allocation6 + $0x1e8] sm:$0xff]
      %v3627 = vld [vmem:[#allocation6 + $0x1f0] sm:$0xff]
      %v3628 = vld [vmem:[#allocation6 + $0x1f8] sm:$0xff]
      %v3629 = vld [vmem:[#allocation6 + $0x200] sm:$0xff]
      %v3630 = vld [vmem:[#allocation6 + $0x208] sm:$0xff]
      %v3631 = vld [vmem:[#allocation6 + $0x210] sm:$0xff]
      %v3632 = vld [vmem:[#allocation6 + $0x218] sm:$0xff]
      %v3633 = vld [vmem:[#allocation6 + $0x220] sm:$0xff]
      %v3634 = vld [vmem:[#allocation6 + $0x228] sm:$0xff]
      %v3635 = vld [vmem:[#allocation6 + $0x230] sm:$0xff]
      %v3636 = vld [vmem:[#allocation6 + $0x238] sm:$0xff]
      %v3637 = vld [vmem:[#allocation6 + $0x240] sm:$0xff]
      %v3638 = vld [vmem:[#allocation6 + $0x248] sm:$0xff]
      %v3639 = vld [vmem:[#allocation6 + $0x250] sm:$0xff]
      %v3640 = vld [vmem:[#allocation6 + $0x258] sm:$0xff]
      %v3641 = vld [vmem:[#allocation6 + $0x260] sm:$0xff]
      %v3642 = vld [vmem:[#allocation6 + $0x268] sm:$0xff]
      %v3643 = vld [vmem:[#allocation6 + $0x270] sm:$0xff]
      %v3644 = vld [vmem:[#allocation6 + $0x278] sm:$0xff]
      %v3645 = vld [vmem:[#allocation6 + $0x280] sm:$0xff]
      %v3646 = vld [vmem:[#allocation6 + $0x288] sm:$0xff]
      %v3647 = vld [vmem:[#allocation6 + $0x290] sm:$0xff]
      %v3648 = vld [vmem:[#allocation6 + $0x298] sm:$0xff]
      %v3649 = vld [vmem:[#allocation6 + $0x2a0] sm:$0xff]
      %v3650 = vld [vmem:[#allocation6 + $0x2a8] sm:$0xff]
      %v3651 = vld [vmem:[#allocation6 + $0x2b0] sm:$0xff]
      %v3652 = vld [vmem:[#allocation6 + $0x2b8] sm:$0xff]
      %v3653 = vld [vmem:[#allocation6 + $0x2c0] sm:$0xff]
      %v3654 = vld [vmem:[#allocation6 + $0x2c8] sm:$0xff]
      %v3655 = vld [vmem:[#allocation6 + $0x2d0] sm:$0xff]
      %v3656 = vld [vmem:[#allocation6 + $0x2d8] sm:$0xff]
      %v3657 = vld [vmem:[#allocation6 + $0x2e0] sm:$0xff]
      %v3658 = vld [vmem:[#allocation6 + $0x2e8] sm:$0xff]
      %v3659 = vld [vmem:[#allocation6 + $0x2f0] sm:$0xff]
      %v3660 = vld [vmem:[#allocation6 + $0x2f8] sm:$0xff]
      %v3661 = vld [vmem:[#allocation6 + $0x300] sm:$0xff]
      %v3662 = vld [vmem:[#allocation6 + $0x308] sm:$0xff]
      %v3663 = vld [vmem:[#allocation6 + $0x310] sm:$0xff]
      %v3664 = vld [vmem:[#allocation6 + $0x318] sm:$0xff]
      %v3665 = vld [vmem:[#allocation6 + $0x320] sm:$0xff]
      %v3666 = vld [vmem:[#allocation6 + $0x328] sm:$0xff]
      %v3667 = vld [vmem:[#allocation6 + $0x330] sm:$0xff]
      %v3668 = vld [vmem:[#allocation6 + $0x338] sm:$0xff]
      %v3669 = vld [vmem:[#allocation6 + $0x340] sm:$0xff]
      %v3670 = vld [vmem:[#allocation6 + $0x348] sm:$0xff]
      %v3671 = vld [vmem:[#allocation6 + $0x350] sm:$0xff]
      %v3672 = vld [vmem:[#allocation6 + $0x358] sm:$0xff]
      %v3673 = vld [vmem:[#allocation6 + $0x360] sm:$0xff]
      %v3674 = vld [vmem:[#allocation6 + $0x368] sm:$0xff]
      %v3675 = vld [vmem:[#allocation6 + $0x370] sm:$0xff]
      %v3676 = vld [vmem:[#allocation6 + $0x378] sm:$0xff]
      %v3677 = vld [vmem:[#allocation6 + $0x380] sm:$0xff]
      %v3678 = vld [vmem:[#allocation6 + $0x388] sm:$0xff]
      %v3679 = vld [vmem:[#allocation6 + $0x390] sm:$0xff]
      %v3680 = vld [vmem:[#allocation6 + $0x398] sm:$0xff]
      %v3681 = vld [vmem:[#allocation6 + $0x3a0] sm:$0xff]
      %v3682 = vld [vmem:[#allocation6 + $0x3a8] sm:$0xff]
      %v3683 = vld [vmem:[#allocation6 + $0x3b0] sm:$0xff]
      %v3684 = vld [vmem:[#allocation6 + $0x3b8] sm:$0xff]
      %v3685 = vld [vmem:[#allocation6 + $0x3c0] sm:$0xff]
      %v3686 = vld [vmem:[#allocation6 + $0x3c8] sm:$0xff]
      %v3687 = vld [vmem:[#allocation6 + $0x3d0] sm:$0xff]
      %v3688 = vld [vmem:[#allocation6 + $0x3d8] sm:$0xff]
      %v3689 = vld [vmem:[#allocation6 + $0x3e0] sm:$0xff]
      %v3690 = vld [vmem:[#allocation6 + $0x3e8] sm:$0xff]
      %v3691 = vld [vmem:[#allocation6 + $0x3f0] sm:$0xff]
      %v3692 = vld [vmem:[#allocation6 + $0x3f8] sm:$0xff]
      %v3693 = vld [vmem:[#allocation6 + $0x400] sm:$0xff]
      %v3694 = vld [vmem:[#allocation6 + $0x408] sm:$0xff]
      %v3695 = vld [vmem:[#allocation6 + $0x410] sm:$0xff]
      %v3696 = vld [vmem:[#allocation6 + $0x418] sm:$0xff]
      %v3697 = vld [vmem:[#allocation6 + $0x420] sm:$0xff]
      %v3698 = vld [vmem:[#allocation6 + $0x428] sm:$0xff]
      %v3699 = vld [vmem:[#allocation6 + $0x430] sm:$0xff]
      %v3700 = vld [vmem:[#allocation6 + $0x438] sm:$0xff]
      %v3701 = vld [vmem:[#allocation6 + $0x440] sm:$0xff]
      %v3702 = vld [vmem:[#allocation6 + $0x448] sm:$0xff]
      %v3703 = vld [vmem:[#allocation6 + $0x450] sm:$0xff]
      %v3704 = vld [vmem:[#allocation6 + $0x458] sm:$0xff]
      %v3705 = vld [vmem:[#allocation6 + $0x460] sm:$0xff]
      %v3706 = vld [vmem:[#allocation6 + $0x468] sm:$0xff]
      %v3707 = vld [vmem:[#allocation6 + $0x470] sm:$0xff]
      %v3708 = vld [vmem:[#allocation6 + $0x478] sm:$0xff]
      %v3709 = vld [vmem:[#allocation6 + $0x480] sm:$0xff]
      %v3710 = vld [vmem:[#allocation6 + $0x488] sm:$0xff]
      %v3711 = vld [vmem:[#allocation6 + $0x490] sm:$0xff]
      %v3712 = vld [vmem:[#allocation6 + $0x498] sm:$0xff]
      %v3713 = vld [vmem:[#allocation6 + $0x4a0] sm:$0xff]
      %v3714 = vld [vmem:[#allocation6 + $0x4a8] sm:$0xff]
      %v3715 = vld [vmem:[#allocation6 + $0x4b0] sm:$0xff]
      %v3716 = vld [vmem:[#allocation6 + $0x4b8] sm:$0xff]
      %v3717 = vld [vmem:[#allocation6 + $0x4c0] sm:$0xff]
      %v3718 = vld [vmem:[#allocation6 + $0x4c8] sm:$0xff]
      %v3719 = vld [vmem:[#allocation6 + $0x4d0] sm:$0xff]
      %v3720 = vld [vmem:[#allocation6 + $0x4d8] sm:$0xff]
      %v3721 = vld [vmem:[#allocation6 + $0x4e0] sm:$0xff]
      %v3722 = vld [vmem:[#allocation6 + $0x4e8] sm:$0xff]
      %v3723 = vld [vmem:[#allocation6 + $0x4f0] sm:$0xff]
      %v3724 = vld [vmem:[#allocation6 + $0x4f8] sm:$0xff]
      %v3725 = vld [vmem:[%s3] sm:$0xff]
      %v3726 = vld [vmem:[%s3 + $0x8] sm:$0xff]
      %v3727 = vld [vmem:[%s3 + $0x10] sm:$0xff]
      %v3728 = vld [vmem:[%s3 + $0x18] sm:$0xff]
      %v3729 = vld [vmem:[%s3 + $0x20] sm:$0xff]
      %v3730 = vld [vmem:[%s3 + $0x28] sm:$0xff]
      %v3731 = vld [vmem:[%s3 + $0x30] sm:$0xff]
      %v3732 = vld [vmem:[%s3 + $0x38] sm:$0xff]
      %v3733 = vld [vmem:[%s3 + $0x40] sm:$0xff]
      %v3734 = vld [vmem:[%s3 + $0x48] sm:$0xff]
      %v3735 = vld [vmem:[%s3 + $0x50] sm:$0xff]
      %v3736 = vld [vmem:[%s3 + $0x58] sm:$0xff]
      %v3737 = vld [vmem:[%s3 + $0x60] sm:$0xff]
      %v3738 = vld [vmem:[%s3 + $0x68] sm:$0xff]
      %v3739 = vld [vmem:[%s3 + $0x70] sm:$0xff]
      %v3740 = vld [vmem:[%s3 + $0x78] sm:$0xff]
      %v3741 = vld [vmem:[%s3 + $0x80] sm:$0xff]
      %v3742 = vld [vmem:[%s3 + $0x88] sm:$0xff]
      %v3743 = vld [vmem:[%s3 + $0x90] sm:$0xff]
      %v3744 = vld [vmem:[%s3 + $0x98] sm:$0xff]
      %v3745 = vld [vmem:[%s3 + $0xa0] sm:$0xff]
      %v3746 = vld [vmem:[%s3 + $0xa8] sm:$0xff]
      %v3747 = vld [vmem:[%s3 + $0xb0] sm:$0xff]
      %v3748 = vld [vmem:[%s3 + $0xb8] sm:$0xff]
      %v3749 = vld [vmem:[%s3 + $0xc0] sm:$0xff]
      %v3750 = vld [vmem:[%s3 + $0xc8] sm:$0xff]
      %v3751 = vld [vmem:[%s3 + $0xd0] sm:$0xff]
      %v3752 = vld [vmem:[%s3 + $0xd8] sm:$0xff]
      %v3753 = vld [vmem:[%s3 + $0xe0] sm:$0xff]
      %v3754 = vld [vmem:[%s3 + $0xe8] sm:$0xff]
      %v3755 = vld [vmem:[%s3 + $0xf0] sm:$0xff]
      %v3756 = vld [vmem:[%s3 + $0xf8] sm:$0xff]
      %v3757 = vld [vmem:[%s3 + $0x100] sm:$0xff]
      %v3758 = vld [vmem:[%s3 + $0x108] sm:$0xff]
      %v3759 = vld [vmem:[%s3 + $0x110] sm:$0xff]
      %v3760 = vld [vmem:[%s3 + $0x118] sm:$0xff]
      %v3761 = vld [vmem:[%s3 + $0x120] sm:$0xff]
      %v3762 = vld [vmem:[%s3 + $0x128] sm:$0xff]
      %v3763 = vld [vmem:[%s3 + $0x130] sm:$0xff]
      %v3764 = vld [vmem:[%s3 + $0x138] sm:$0xff]
      %v3765 = vld [vmem:[%s3 + $0x140] sm:$0xff]
      %v3766 = vld [vmem:[%s3 + $0x148] sm:$0xff]
      %v3767 = vld [vmem:[%s3 + $0x150] sm:$0xff]
      %v3768 = vld [vmem:[%s3 + $0x158] sm:$0xff]
      %v3769 = vld [vmem:[%s3 + $0x160] sm:$0xff]
      %v3770 = vld [vmem:[%s3 + $0x168] sm:$0xff]
      %v3771 = vld [vmem:[%s3 + $0x170] sm:$0xff]
      %v3772 = vld [vmem:[%s3 + $0x178] sm:$0xff]
      %v3773 = vld [vmem:[%s3 + $0x180] sm:$0xff]
      %v3774 = vld [vmem:[%s3 + $0x188] sm:$0xff]
      %v3775 = vld [vmem:[%s3 + $0x190] sm:$0xff]
      %v3776 = vld [vmem:[%s3 + $0x198] sm:$0xff]
      %v3777 = vld [vmem:[%s3 + $0x1a0] sm:$0xff]
      %v3778 = vld [vmem:[%s3 + $0x1a8] sm:$0xff]
      %v3779 = vld [vmem:[%s3 + $0x1b0] sm:$0xff]
      %v3780 = vld [vmem:[%s3 + $0x1b8] sm:$0xff]
      %v3781 = vld [vmem:[%s3 + $0x1c0] sm:$0xff]
      %v3782 = vld [vmem:[%s3 + $0x1c8] sm:$0xff]
      %v3783 = vld [vmem:[%s3 + $0x1d0] sm:$0xff]
      %v3784 = vld [vmem:[%s3 + $0x1d8] sm:$0xff]
      %v3785 = vld [vmem:[%s3 + $0x1e0] sm:$0xff]
      %v3786 = vld [vmem:[%s3 + $0x1e8] sm:$0xff]
      %v3787 = vld [vmem:[%s3 + $0x1f0] sm:$0xff]
      %v3788 = vld [vmem:[%s3 + $0x1f8] sm:$0xff]
      %v3789 = vld [vmem:[%s3 + $0x200] sm:$0xff]
      %v3790 = vld [vmem:[%s3 + $0x208] sm:$0xff]
      %v3791 = vld [vmem:[%s3 + $0x210] sm:$0xff]
      %v3792 = vld [vmem:[%s3 + $0x218] sm:$0xff]
      %v3793 = vld [vmem:[%s3 + $0x220] sm:$0xff]
      %v3794 = vld [vmem:[%s3 + $0x228] sm:$0xff]
      %v3795 = vld [vmem:[%s3 + $0x230] sm:$0xff]
      %v3796 = vld [vmem:[%s3 + $0x238] sm:$0xff]
      %v3797 = vld [vmem:[%s4] sm:$0x1]
      %v3799 = vlaneseq
      %v3800 = vshrl.u32 %v3799, 7
      %v3801 = vsub.s32 0, %v3800
      %v3802 = vrot.slane %v3797, %v3801
      %v3805 = vsel %vm333, %v3569, 0
      %v3808 = vsel %vm333, %v3574, 0
      %v3811 = vsel %vm333, %v3579, 0
      %v3814 = vsel %vm333, %v3584, 0
      %v3817 = vsel %vm333, %v3589, 0
      %v3820 = vsel %vm333, %v3594, 0
      %v3823 = vsel %vm333, %v3599, 0
      %v3826 = vsel %vm333, %v3604, 0
      %v3829 = vsel %vm333, %v3609, 0
      %v3832 = vsel %vm333, %v3614, 0
      %v3835 = vsel %vm333, %v3619, 0
      %v3838 = vsel %vm333, %v3624, 0
      %v3841 = vsel %vm333, %v3629, 0
      %v3844 = vsel %vm333, %v3634, 0
      %v3847 = vsel %vm333, %v3639, 0
      %v3850 = vsel %vm333, %v3644, 0
      %v3853 = vsel %vm333, %v3649, 0
      %v3856 = vsel %vm333, %v3654, 0
      %v3859 = vsel %vm333, %v3659, 0
      %v3862 = vsel %vm333, %v3664, 0
      %v3865 = vsel %vm333, %v3669, 0
      %v3868 = vsel %vm333, %v3674, 0
      %v3871 = vsel %vm333, %v3679, 0
      %v3874 = vsel %vm333, %v3684, 0
      %v3877 = vsel %vm333, %v3689, 0
      %v3880 = vsel %vm333, %v3694, 0
      %v3883 = vsel %vm333, %v3699, 0
      %v3886 = vsel %vm333, %v3704, 0
      %v3889 = vsel %vm333, %v3709, 0
      %v3892 = vsel %vm333, %v3714, 0
      %v3895 = vsel %vm333, %v3719, 0
      %v3898 = vsel %vm333, %v3724, 0
      %3900 = vmatprep.subr.mxu0 0.0
      %3901 = vmatpush1.msra.mxu0 %v3725
      %3902 = vmatprep.subr.mxu0 0.0
      %3903 = vmatpush1.msra.mxu0 %v3726
      %3904 = vmatprep.subr.mxu0 0.0
      %3905 = vmatpush1.msra.mxu0 %v3727
      %3906 = vmatprep.subr.mxu0 0.0
      %3907 = vmatpush1.msra.mxu0 %v3728
      %3908 = vmatprep.subr.mxu0 0.0
      %3909 = vmatpush1.msra.mxu0 %v3729
      %3910 = vmatprep.subr.mxu0 0.0
      %3911 = vmatpush1.msra.mxu0 %v3730
      %3912 = vmatprep.subr.mxu0 0.0
      %3913 = vmatpush1.msra.mxu0 %v3731
      %3914 = vmatprep.subr.mxu0 0.0
      %3915 = vmatpush1.msra.mxu0 %v3732
      %3916 = vmatprep.subr.mxu0 0.0
      %3917 = vmatpush1.msra.mxu0 %v3733
      %3918 = vmatprep.subr.mxu0 0.0
      %3919 = vmatpush1.msra.mxu0 %v3734
      %3920 = vmatprep.subr.mxu0 0.0
      %3921 = vmatpush1.msra.mxu0 %v3735
      %3922 = vmatprep.subr.mxu0 0.0
      %3923 = vmatpush1.msra.mxu0 %v3736
      %3924 = vmatprep.subr.mxu0 0.0
      %3925 = vmatpush1.msra.mxu0 %v3737
      %3926 = vmatprep.subr.mxu0 0.0
      %3927 = vmatpush1.msra.mxu0 %v3738
      %3928 = vmatprep.subr.mxu0 0.0
      %3929 = vmatpush1.msra.mxu0 %v3739
      %3930 = vmatprep.subr.mxu0 0.0
      %3931 = vmatpush1.msra.mxu0 %v3740
      %3932 = vmatprep.subr.mxu0 0.0
      %3933 = vmatpush1.msra.mxu0 %v3741
      %3934 = vmatprep.subr.mxu0 0.0
      %3935 = vmatpush1.msra.mxu0 %v3742
      %3936 = vmatprep.subr.mxu0 0.0
      %3937 = vmatpush1.msra.mxu0 %v3743
      %3938 = vmatprep.subr.mxu0 0.0
      %3939 = vmatpush1.msra.mxu0 %v3744
      %3940 = vmatprep.subr.mxu0 0.0
      %3941 = vmatpush1.msra.mxu0 %v3745
      %3942 = vmatprep.subr.mxu0 0.0
      %3943 = vmatpush1.msra.mxu0 %v3746
      %3944 = vmatprep.subr.mxu0 0.0
      %3945 = vmatpush1.msra.mxu0 %v3747
      %3946 = vmatprep.subr.mxu0 0.0
      %3947 = vmatpush1.msra.mxu0 %v3748
      %3948 = vmatprep.subr.mxu0 0.0
      %3949 = vmatpush1.msra.mxu0 %v3749
      %3950 = vmatprep.subr.mxu0 0.0
      %3951 = vmatpush1.msra.mxu0 %v3750
      %3952 = vmatprep.subr.mxu0 0.0
      %3953 = vmatpush1.msra.mxu0 %v3751
      %3954 = vmatprep.subr.mxu0 0.0
      %3955 = vmatpush1.msra.mxu0 %v3752
      %3956 = vmatprep.subr.mxu0 0.0
      %3957 = vmatpush1.msra.mxu0 %v3753
      %3958 = vmatprep.subr.mxu0 0.0
      %3959 = vmatpush1.msra.mxu0 %v3754
      %3960 = vmatprep.subr.mxu0 0.0
      %3961 = vmatpush1.msra.mxu0 %v3755
      %3962 = vmatprep.subr.mxu0 0.0
      %3963 = vmatpush1.msra.mxu0 %v3756
      %3964 = vmatprep.mubr.f32.mxu0 %v3566
      %3965 = vmatmul.mubr.f32.gmra.mrb[0].mxu0 %v3565
      %v3966 = vpop.f32.mrb[0].mxu0
      %v3967 = vadd.f32 %v3802, %v3966
      %v3968 = vpop.f32.mrb[0].mxu0
      %3969 = vmatprep.mubr.f32.mxu0 %v3571
      %3970 = vmatmul.mubr.f32.gmra.mrb[0].mxu0 %v3570
      %v3971 = vpop.f32.mrb[0].mxu0
      %v3972 = vadd.f32 %v3802, %v3971
      %v3973 = vpop.f32.mrb[0].mxu0
      %3974 = vmatprep.mubr.f32.mxu0 %v3576
      %3975 = vmatmul.mubr.f32.gmra.mrb[0].mxu0 %v3575
      %v3976 = vpop.f32.mrb[0].mxu0
      %v3977 = vadd.f32 %v3802, %v3976
      %v3978 = vpop.f32.mrb[0].mxu0
      %3979 = vmatprep.mubr.f32.mxu0 %v3581
      %3980 = vmatmul.mubr.f32.gmra.mrb[0].mxu0 %v3580
      %v3981 = vpop.f32.mrb[0].mxu0
      %v3982 = vadd.f32 %v3802, %v3981
      %v3983 = vpop.f32.mrb[0].mxu0
      %3984 = vmatprep.mubr.f32.mxu0 %v3586
      %3985 = vmatmul.mubr.f32.gmra.mrb[0].mxu0 %v3585
      %v3986 = vpop.f32.mrb[0].mxu0
      %v3987 = vadd.f32 %v3802, %v3986
      %v3988 = vpop.f32.mrb[0].mxu0
      %3989 = vmatprep.mubr.f32.mxu0 %v3591
      %3990 = vmatmul.mubr.f32.gmra.mrb[0].mxu0 %v3590
      %v3991 = vpop.f32.mrb[0].mxu0
      %v3992 = vadd.f32 %v3802, %v3991
      %v3993 = vpop.f32.mrb[0].mxu0
      %3994 = vmatprep.mubr.f32.mxu0 %v3596
      %3995 = vmatmul.mubr.f32.gmra.mrb[0].mxu0 %v3595
      %v3996 = vpop.f32.mrb[0].mxu0
      %v3997 = vadd.f32 %v3802, %v3996
      %v3998 = vpop.f32.mrb[0].mxu0
      %3999 = vmatprep.mubr.f32.mxu0 %v3601
      %4000 = vmatmul.mubr.f32.gmra.mrb[0].mxu0 %v3600
      %v4001 = vpop.f32.mrb[0].mxu0
      %v4002 = vadd.f32 %v3802, %v4001
      %v4003 = vpop.f32.mrb[0].mxu0
      %4004 = vmatprep.mubr.f32.mxu0 %v3606
      %4005 = vmatmul.mubr.f32.gmra.mrb[0].mxu0 %v3605
      %v4006 = vpop.f32.mrb[0].mxu0
      %v4007 = vadd.f32 %v3802, %v4006
      %v4008 = vpop.f32.mrb[0].mxu0
      %4009 = vmatprep.mubr.f32.mxu0 %v3611
      %4010 = vmatmul.mubr.f32.gmra.mrb[0].mxu0 %v3610
      %v4011 = vpop.f32.mrb[0].mxu0
      %v4012 = vadd.f32 %v3802, %v4011
      %v4013 = vpop.f32.mrb[0].mxu0
      %4014 = vmatprep.mubr.f32.mxu0 %v3616
      %4015 = vmatmul.mubr.f32.gmra.mrb[0].mxu0 %v3615
      %v4016 = vpop.f32.mrb[0].mxu0
      %v4017 = vadd.f32 %v3802, %v4016
      %v4018 = vpop.f32.mrb[0].mxu0
      %4019 = vmatprep.mubr.f32.mxu0 %v3621
      %4020 = vmatmul.mubr.f32.gmra.mrb[0].mxu0 %v3620
      %v4021 = vpop.f32.mrb[0].mxu0
      %v4022 = vadd.f32 %v3802, %v4021
      %v4023 = vpop.f32.mrb[0].mxu0
      %4024 = vmatprep.mubr.f32.mxu0 %v3626
      %4025 = vmatmul.mubr.f32.gmra.mrb[0].mxu0 %v3625
      %v4026 = vpop.f32.mrb[0].mxu0
      %v4027 = vadd.f32 %v3802, %v4026
      %v4028 = vpop.f32.mrb[0].mxu0
      %4029 = vmatprep.mubr.f32.mxu0 %v3631
      %4030 = vmatmul.mubr.f32.gmra.mrb[0].mxu0 %v3630
      %v4031 = vpop.f32.mrb[0].mxu0
      %v4032 = vadd.f32 %v3802, %v4031
      %v4033 = vpop.f32.mrb[0].mxu0
      %4034 = vmatprep.mubr.f32.mxu0 %v3636
      %4035 = vmatmul.mubr.f32.gmra.mrb[0].mxu0 %v3635
      %v4036 = vpop.f32.mrb[0].mxu0
      %v4037 = vadd.f32 %v3802, %v4036
      %v4038 = vpop.f32.mrb[0].mxu0
      %4039 = vmatprep.mubr.f32.mxu0 %v3641
      %4040 = vmatmul.mubr.f32.gmra.mrb[0].mxu0 %v3640
      %v4041 = vpop.f32.mrb[0].mxu0
      %v4042 = vadd.f32 %v3802, %v4041
      %v4043 = vpop.f32.mrb[0].mxu0
      %4044 = vmatprep.mubr.f32.mxu0 %v3646
      %4045 = vmatmul.mubr.f32.gmra.mrb[0].mxu0 %v3645
      %v4046 = vpop.f32.mrb[0].mxu0
      %v4047 = vadd.f32 %v3802, %v4046
      %v4048 = vpop.f32.mrb[0].mxu0
      %4049 = vmatprep.mubr.f32.mxu0 %v3651
      %4050 = vmatmul.mubr.f32.gmra.mrb[0].mxu0 %v3650
      %v4051 = vpop.f32.mrb[0].mxu0
      %v4052 = vadd.f32 %v3802, %v4051
      %v4053 = vpop.f32.mrb[0].mxu0
      %4054 = vmatprep.mubr.f32.mxu0 %v3656
      %4055 = vmatmul.mubr.f32.gmra.mrb[0].mxu0 %v3655
      %v4056 = vpop.f32.mrb[0].mxu0
      %v4057 = vadd.f32 %v3802, %v4056
      %v4058 = vpop.f32.mrb[0].mxu0
      %4059 = vmatprep.mubr.f32.mxu0 %v3661
      %4060 = vmatmul.mubr.f32.gmra.mrb[0].mxu0 %v3660
      %v4061 = vpop.f32.mrb[0].mxu0
      %v4062 = vadd.f32 %v3802, %v4061
      %v4063 = vpop.f32.mrb[0].mxu0
      %4064 = vmatprep.mubr.f32.mxu0 %v3666
      %4065 = vmatmul.mubr.f32.gmra.mrb[0].mxu0 %v3665
      %v4066 = vpop.f32.mrb[0].mxu0
      %v4067 = vadd.f32 %v3802, %v4066
      %v4068 = vpop.f32.mrb[0].mxu0
      %4069 = vmatprep.mubr.f32.mxu0 %v3671
      %4070 = vmatmul.mubr.f32.gmra.mrb[0].mxu0 %v3670
      %v4071 = vpop.f32.mrb[0].mxu0
      %v4072 = vadd.f32 %v3802, %v4071
      %v4073 = vpop.f32.mrb[0].mxu0
      %4074 = vmatprep.mubr.f32.mxu0 %v3676
      %4075 = vmatmul.mubr.f32.gmra.mrb[0].mxu0 %v3675
      %v4076 = vpop.f32.mrb[0].mxu0
      %v4077 = vadd.f32 %v3802, %v4076
      %v4078 = vpop.f32.mrb[0].mxu0
      %4079 = vmatprep.mubr.f32.mxu0 %v3681
      %4080 = vmatmul.mubr.f32.gmra.mrb[0].mxu0 %v3680
      %v4081 = vpop.f32.mrb[0].mxu0
      %v4082 = vadd.f32 %v3802, %v4081
      %v4083 = vpop.f32.mrb[0].mxu0
      %4084 = vmatprep.mubr.f32.mxu0 %v3686
      %4085 = vmatmul.mubr.f32.gmra.mrb[0].mxu0 %v3685
      %v4086 = vpop.f32.mrb[0].mxu0
      %v4087 = vadd.f32 %v3802, %v4086
      %v4088 = vpop.f32.mrb[0].mxu0
      %4089 = vmatprep.mubr.f32.mxu0 %v3691
      %4090 = vmatmul.mubr.f32.gmra.mrb[0].mxu0 %v3690
      %v4091 = vpop.f32.mrb[0].mxu0
      %v4092 = vadd.f32 %v3802, %v4091
      %v4093 = vpop.f32.mrb[0].mxu0
      %4094 = vmatprep.mubr.f32.mxu0 %v3696
      %4095 = vmatmul.mubr.f32.gmra.mrb[0].mxu0 %v3695
      %v4096 = vpop.f32.mrb[0].mxu0
      %v4097 = vadd.f32 %v3802, %v4096
      %v4098 = vpop.f32.mrb[0].mxu0
      %4099 = vmatprep.mubr.f32.mxu0 %v3701
      %4100 = vmatmul.mubr.f32.gmra.mrb[0].mxu0 %v3700
      %v4101 = vpop.f32.mrb[0].mxu0
      %v4102 = vadd.f32 %v3802, %v4101
      %v4103 = vpop.f32.mrb[0].mxu0
      %4104 = vmatprep.mubr.f32.mxu0 %v3706
      %4105 = vmatmul.mubr.f32.gmra.mrb[0].mxu0 %v3705
      %v4106 = vpop.f32.mrb[0].mxu0
      %v4107 = vadd.f32 %v3802, %v4106
      %v4108 = vpop.f32.mrb[0].mxu0
      %4109 = vmatprep.mubr.f32.mxu0 %v3711
      %4110 = vmatmul.mubr.f32.gmra.mrb[0].mxu0 %v3710
      %v4111 = vpop.f32.mrb[0].mxu0
      %v4112 = vadd.f32 %v3802, %v4111
      %v4113 = vpop.f32.mrb[0].mxu0
      %4114 = vmatprep.mubr.f32.mxu0 %v3716
      %4115 = vmatmul.mubr.f32.gmra.mrb[0].mxu0 %v3715
      %v4116 = vpop.f32.mrb[0].mxu0
      %v4117 = vadd.f32 %v3802, %v4116
      %v4118 = vpop.f32.mrb[0].mxu0
      %4119 = vmatprep.mubr.f32.mxu0 %v3721
      %4120 = vmatmul.mubr.f32.gmra.mrb[0].mxu0 %v3720
      %v4121 = vpop.f32.mrb[0].mxu0
      %v4122 = vadd.f32 %v3802, %v4121
      %v4123 = vpop.f32.mrb[0].mxu0
      %4124 = vdwg.mxu0
      %4125 = vmatprep.subr.mxu0 0.0
      %4126 = vmatpush1.msra.mxu0 %v3757
      %4127 = vmatprep.subr.mxu0 0.0
      %4128 = vmatpush1.msra.mxu0 %v3758
      %4129 = vmatprep.subr.mxu0 0.0
      %4130 = vmatpush1.msra.mxu0 %v3759
      %4131 = vmatprep.subr.mxu0 0.0
      %4132 = vmatpush1.msra.mxu0 %v3760
      %4133 = vmatprep.subr.mxu0 0.0
      %4134 = vmatpush1.msra.mxu0 %v3761
      %4135 = vmatprep.subr.mxu0 0.0
      %4136 = vmatpush1.msra.mxu0 %v3762
      %4137 = vmatprep.subr.mxu0 0.0
      %4138 = vmatpush1.msra.mxu0 %v3763
      %4139 = vmatprep.subr.mxu0 0.0
      %4140 = vmatpush1.msra.mxu0 %v3764
      %4141 = vmatprep.subr.mxu0 0.0
      %4142 = vmatpush1.msra.mxu0 %v3765
      %4143 = vmatprep.subr.mxu0 0.0
      %4144 = vmatpush1.msra.mxu0 %v3766
      %4145 = vmatprep.subr.mxu0 0.0
      %4146 = vmatpush1.msra.mxu0 %v3767
      %4147 = vmatprep.subr.mxu0 0.0
      %4148 = vmatpush1.msra.mxu0 %v3768
      %4149 = vmatprep.subr.mxu0 0.0
      %4150 = vmatpush1.msra.mxu0 %v3769
      %4151 = vmatprep.subr.mxu0 0.0
      %4152 = vmatpush1.msra.mxu0 %v3770
      %4153 = vmatprep.subr.mxu0 0.0
      %4154 = vmatpush1.msra.mxu0 %v3771
      %4155 = vmatprep.subr.mxu0 0.0
      %4156 = vmatpush1.msra.mxu0 %v3772
      %4157 = vmatprep.subr.mxu0 0.0
      %4158 = vmatpush1.msra.mxu0 %v3773
      %4159 = vmatprep.subr.mxu0 0.0
      %4160 = vmatpush1.msra.mxu0 %v3774
      %4161 = vmatprep.subr.mxu0 0.0
      %4162 = vmatpush1.msra.mxu0 %v3775
      %4163 = vmatprep.subr.mxu0 0.0
      %4164 = vmatpush1.msra.mxu0 %v3776
      %4165 = vmatprep.subr.mxu0 0.0
      %4166 = vmatpush1.msra.mxu0 %v3777
      %4167 = vmatprep.subr.mxu0 0.0
      %4168 = vmatpush1.msra.mxu0 %v3778
      %4169 = vmatprep.subr.mxu0 0.0
      %4170 = vmatpush1.msra.mxu0 %v3779
      %4171 = vmatprep.subr.mxu0 0.0
      %4172 = vmatpush1.msra.mxu0 %v3780
      %4173 = vmatprep.subr.mxu0 0.0
      %4174 = vmatpush1.msra.mxu0 %v3781
      %4175 = vmatprep.subr.mxu0 0.0
      %4176 = vmatpush1.msra.mxu0 %v3782
      %4177 = vmatprep.subr.mxu0 0.0
      %4178 = vmatpush1.msra.mxu0 %v3783
      %4179 = vmatprep.subr.mxu0 0.0
      %4180 = vmatpush1.msra.mxu0 %v3784
      %4181 = vmatprep.subr.mxu0 0.0
      %4182 = vmatpush1.msra.mxu0 %v3785
      %4183 = vmatprep.subr.mxu0 0.0
      %4184 = vmatpush1.msra.mxu0 %v3786
      %4185 = vmatprep.subr.mxu0 0.0
      %4186 = vmatpush1.msra.mxu0 %v3787
      %4187 = vmatprep.subr.mxu0 0.0
      %4188 = vmatpush1.msra.mxu0 %v3788
      %4189 = vmatprep.mubr.f32.mxu0 %v3568
      %4190 = vmatmul.mubr.f32.gmra.mrb[0].mxu0 %v3567
      %v4191 = vpop.f32.mrb[0].mxu0
      %v4192 = vadd.f32 %v3967, %v4191
      %v4193 = vpop.f32.mrb[0].mxu0
      %4194 = vmatprep.mubr.f32.mxu0 %v3573
      %4195 = vmatmul.mubr.f32.gmra.mrb[0].mxu0 %v3572
      %v4196 = vpop.f32.mrb[0].mxu0
      %v4197 = vadd.f32 %v3972, %v4196
      %v4198 = vpop.f32.mrb[0].mxu0
      %4199 = vmatprep.mubr.f32.mxu0 %v3578
      %4200 = vmatmul.mubr.f32.gmra.mrb[0].mxu0 %v3577
      %v4201 = vpop.f32.mrb[0].mxu0
      %v4202 = vadd.f32 %v3977, %v4201
      %v4203 = vpop.f32.mrb[0].mxu0
      %4204 = vmatprep.mubr.f32.mxu0 %v3583
      %4205 = vmatmul.mubr.f32.gmra.mrb[0].mxu0 %v3582
      %v4206 = vpop.f32.mrb[0].mxu0
      %v4207 = vadd.f32 %v3982, %v4206
      %v4208 = vpop.f32.mrb[0].mxu0
      %4209 = vmatprep.mubr.f32.mxu0 %v3588
      %4210 = vmatmul.mubr.f32.gmra.mrb[0].mxu0 %v3587
      %v4211 = vpop.f32.mrb[0].mxu0
      %v4212 = vadd.f32 %v3987, %v4211
      %v4213 = vpop.f32.mrb[0].mxu0
      %4214 = vmatprep.mubr.f32.mxu0 %v3593
      %4215 = vmatmul.mubr.f32.gmra.mrb[0].mxu0 %v3592
      %v4216 = vpop.f32.mrb[0].mxu0
      %v4217 = vadd.f32 %v3992, %v4216
      %v4218 = vpop.f32.mrb[0].mxu0
      %4219 = vmatprep.mubr.f32.mxu0 %v3598
      %4220 = vmatmul.mubr.f32.gmra.mrb[0].mxu0 %v3597
      %v4221 = vpop.f32.mrb[0].mxu0
      %v4222 = vadd.f32 %v3997, %v4221
      %v4223 = vpop.f32.mrb[0].mxu0
      %4224 = vmatprep.mubr.f32.mxu0 %v3603
      %4225 = vmatmul.mubr.f32.gmra.mrb[0].mxu0 %v3602
      %v4226 = vpop.f32.mrb[0].mxu0
      %v4227 = vadd.f32 %v4002, %v4226
      %v4228 = vpop.f32.mrb[0].mxu0
      %4229 = vmatprep.mubr.f32.mxu0 %v3608
      %4230 = vmatmul.mubr.f32.gmra.mrb[0].mxu0 %v3607
      %v4231 = vpop.f32.mrb[0].mxu0
      %v4232 = vadd.f32 %v4007, %v4231
      %v4233 = vpop.f32.mrb[0].mxu0
      %4234 = vmatprep.mubr.f32.mxu0 %v3613
      %4235 = vmatmul.mubr.f32.gmra.mrb[0].mxu0 %v3612
      %v4236 = vpop.f32.mrb[0].mxu0
      %v4237 = vadd.f32 %v4012, %v4236
      %v4238 = vpop.f32.mrb[0].mxu0
      %4239 = vmatprep.mubr.f32.mxu0 %v3618
      %4240 = vmatmul.mubr.f32.gmra.mrb[0].mxu0 %v3617
      %v4241 = vpop.f32.mrb[0].mxu0
      %v4242 = vadd.f32 %v4017, %v4241
      %v4243 = vpop.f32.mrb[0].mxu0
      %4244 = vmatprep.mubr.f32.mxu0 %v3623
      %4245 = vmatmul.mubr.f32.gmra.mrb[0].mxu0 %v3622
      %v4246 = vpop.f32.mrb[0].mxu0
      %v4247 = vadd.f32 %v4022, %v4246
      %v4248 = vpop.f32.mrb[0].mxu0
      %4249 = vmatprep.mubr.f32.mxu0 %v3628
      %4250 = vmatmul.mubr.f32.gmra.mrb[0].mxu0 %v3627
      %v4251 = vpop.f32.mrb[0].mxu0
      %v4252 = vadd.f32 %v4027, %v4251
      %v4253 = vpop.f32.mrb[0].mxu0
      %4254 = vmatprep.mubr.f32.mxu0 %v3633
      %4255 = vmatmul.mubr.f32.gmra.mrb[0].mxu0 %v3632
      %v4256 = vpop.f32.mrb[0].mxu0
      %v4257 = vadd.f32 %v4032, %v4256
      %v4258 = vpop.f32.mrb[0].mxu0
      %4259 = vmatprep.mubr.f32.mxu0 %v3638
      %4260 = vmatmul.mubr.f32.gmra.mrb[0].mxu0 %v3637
      %v4261 = vpop.f32.mrb[0].mxu0
      %v4262 = vadd.f32 %v4037, %v4261
      %v4263 = vpop.f32.mrb[0].mxu0
      %4264 = vmatprep.mubr.f32.mxu0 %v3643
      %4265 = vmatmul.mubr.f32.gmra.mrb[0].mxu0 %v3642
      %v4266 = vpop.f32.mrb[0].mxu0
      %v4267 = vadd.f32 %v4042, %v4266
      %v4268 = vpop.f32.mrb[0].mxu0
      %4269 = vmatprep.mubr.f32.mxu0 %v3648
      %4270 = vmatmul.mubr.f32.gmra.mrb[0].mxu0 %v3647
      %v4271 = vpop.f32.mrb[0].mxu0
      %v4272 = vadd.f32 %v4047, %v4271
      %v4273 = vpop.f32.mrb[0].mxu0
      %4274 = vmatprep.mubr.f32.mxu0 %v3653
      %4275 = vmatmul.mubr.f32.gmra.mrb[0].mxu0 %v3652
      %v4276 = vpop.f32.mrb[0].mxu0
      %v4277 = vadd.f32 %v4052, %v4276
      %v4278 = vpop.f32.mrb[0].mxu0
      %4279 = vmatprep.mubr.f32.mxu0 %v3658
      %4280 = vmatmul.mubr.f32.gmra.mrb[0].mxu0 %v3657
      %v4281 = vpop.f32.mrb[0].mxu0
      %v4282 = vadd.f32 %v4057, %v4281
      %v4283 = vpop.f32.mrb[0].mxu0
      %4284 = vmatprep.mubr.f32.mxu0 %v3663
      %4285 = vmatmul.mubr.f32.gmra.mrb[0].mxu0 %v3662
      %v4286 = vpop.f32.mrb[0].mxu0
      %v4287 = vadd.f32 %v4062, %v4286
      %v4288 = vpop.f32.mrb[0].mxu0
      %4289 = vmatprep.mubr.f32.mxu0 %v3668
      %4290 = vmatmul.mubr.f32.gmra.mrb[0].mxu0 %v3667
      %v4291 = vpop.f32.mrb[0].mxu0
      %v4292 = vadd.f32 %v4067, %v4291
      %v4293 = vpop.f32.mrb[0].mxu0
      %4294 = vmatprep.mubr.f32.mxu0 %v3673
      %4295 = vmatmul.mubr.f32.gmra.mrb[0].mxu0 %v3672
      %v4296 = vpop.f32.mrb[0].mxu0
      %v4297 = vadd.f32 %v4072, %v4296
      %v4298 = vpop.f32.mrb[0].mxu0
      %4299 = vmatprep.mubr.f32.mxu0 %v3678
      %4300 = vmatmul.mubr.f32.gmra.mrb[0].mxu0 %v3677
      %v4301 = vpop.f32.mrb[0].mxu0
      %v4302 = vadd.f32 %v4077, %v4301
      %v4303 = vpop.f32.mrb[0].mxu0
      %4304 = vmatprep.mubr.f32.mxu0 %v3683
      %4305 = vmatmul.mubr.f32.gmra.mrb[0].mxu0 %v3682
      %v4306 = vpop.f32.mrb[0].mxu0
      %v4307 = vadd.f32 %v4082, %v4306
      %v4308 = vpop.f32.mrb[0].mxu0
      %4309 = vmatprep.mubr.f32.mxu0 %v3688
      %4310 = vmatmul.mubr.f32.gmra.mrb[0].mxu0 %v3687
      %v4311 = vpop.f32.mrb[0].mxu0
      %v4312 = vadd.f32 %v4087, %v4311
      %v4313 = vpop.f32.mrb[0].mxu0
      %4314 = vmatprep.mubr.f32.mxu0 %v3693
      %4315 = vmatmul.mubr.f32.gmra.mrb[0].mxu0 %v3692
      %v4316 = vpop.f32.mrb[0].mxu0
      %v4317 = vadd.f32 %v4092, %v4316
      %v4318 = vpop.f32.mrb[0].mxu0
      %4319 = vmatprep.mubr.f32.mxu0 %v3698
      %4320 = vmatmul.mubr.f32.gmra.mrb[0].mxu0 %v3697
      %v4321 = vpop.f32.mrb[0].mxu0
      %v4322 = vadd.f32 %v4097, %v4321
      %v4323 = vpop.f32.mrb[0].mxu0
      %4324 = vmatprep.mubr.f32.mxu0 %v3703
      %4325 = vmatmul.mubr.f32.gmra.mrb[0].mxu0 %v3702
      %v4326 = vpop.f32.mrb[0].mxu0
      %v4327 = vadd.f32 %v4102, %v4326
      %v4328 = vpop.f32.mrb[0].mxu0
      %4329 = vmatprep.mubr.f32.mxu0 %v3708
      %4330 = vmatmul.mubr.f32.gmra.mrb[0].mxu0 %v3707
      %v4331 = vpop.f32.mrb[0].mxu0
      %v4332 = vadd.f32 %v4107, %v4331
      %v4333 = vpop.f32.mrb[0].mxu0
      %4334 = vmatprep.mubr.f32.mxu0 %v3713
      %4335 = vmatmul.mubr.f32.gmra.mrb[0].mxu0 %v3712
      %v4336 = vpop.f32.mrb[0].mxu0
      %v4337 = vadd.f32 %v4112, %v4336
      %v4338 = vpop.f32.mrb[0].mxu0
      %4339 = vmatprep.mubr.f32.mxu0 %v3718
      %4340 = vmatmul.mubr.f32.gmra.mrb[0].mxu0 %v3717
      %v4341 = vpop.f32.mrb[0].mxu0
      %v4342 = vadd.f32 %v4117, %v4341
      %v4343 = vpop.f32.mrb[0].mxu0
      %4344 = vmatprep.mubr.f32.mxu0 %v3723
      %4345 = vmatmul.mubr.f32.gmra.mrb[0].mxu0 %v3722
      %v4346 = vpop.f32.mrb[0].mxu0
      %v4347 = vadd.f32 %v4122, %v4346
      %v4348 = vpop.f32.mrb[0].mxu0
      %4349 = vdwg.mxu0
      %4350 = vmatprep.subr.mxu0 0.0
      %4351 = vmatpush1.msra.mxu0 %v3789
      %4352 = vmatprep.subr.mxu0 0.0
      %4353 = vmatpush1.msra.mxu0 %v3790
      %4354 = vmatprep.subr.mxu0 0.0
      %4355 = vmatpush1.msra.mxu0 %v3791
      %4356 = vmatprep.subr.mxu0 0.0
      %4357 = vmatpush1.msra.mxu0 %v3792
      %4358 = vmatprep.subr.mxu0 0.0
      %4359 = vmatpush1.msra.mxu0 %v3793
      %4360 = vmatprep.subr.mxu0 0.0
      %4361 = vmatpush1.msra.mxu0 %v3794
      %4362 = vmatprep.subr.mxu0 0.0
      %4363 = vmatpush1.msra.mxu0 %v3795
      %4364 = vmatprep.subr.mxu0 0.0
      %4365 = vmatpush1.msra.mxu0 %v3796
      %4366 = vmatprep.subr.mxu0 0.0
      %4367 = vmatpush1.msra.mxu0 0.0
      %4368 = vmatprep.subr.mxu0 0.0
      %4369 = vmatpush1.msra.mxu0 0.0
      %4370 = vmatprep.subr.mxu0 0.0
      %4371 = vmatpush1.msra.mxu0 0.0
      %4372 = vmatprep.subr.mxu0 0.0
      %4373 = vmatpush1.msra.mxu0 0.0
      %4374 = vmatprep.subr.mxu0 0.0
      %4375 = vmatpush1.msra.mxu0 0.0
      %4376 = vmatprep.subr.mxu0 0.0
      %4377 = vmatpush1.msra.mxu0 0.0
      %4378 = vmatprep.subr.mxu0 0.0
      %4379 = vmatpush1.msra.mxu0 0.0
      %4380 = vmatprep.subr.mxu0 0.0
      %4381 = vmatpush1.msra.mxu0 0.0
      %4382 = vmatprep.subr.mxu0 0.0
      %4383 = vmatpush1.msra.mxu0 0.0
      %4384 = vmatprep.subr.mxu0 0.0
      %4385 = vmatpush1.msra.mxu0 0.0
      %4386 = vmatprep.subr.mxu0 0.0
      %4387 = vmatpush1.msra.mxu0 0.0
      %4388 = vmatprep.subr.mxu0 0.0
      %4389 = vmatpush1.msra.mxu0 0.0
      %4390 = vmatprep.subr.mxu0 0.0
      %4391 = vmatpush1.msra.mxu0 0.0
      %4392 = vmatprep.subr.mxu0 0.0
      %4393 = vmatpush1.msra.mxu0 0.0
      %4394 = vmatprep.subr.mxu0 0.0
      %4395 = vmatpush1.msra.mxu0 0.0
      %4396 = vmatprep.subr.mxu0 0.0
      %4397 = vmatpush1.msra.mxu0 0.0
      %4398 = vmatprep.subr.mxu0 0.0
      %4399 = vmatpush1.msra.mxu0 0.0
      %4400 = vmatprep.subr.mxu0 0.0
      %4401 = vmatpush1.msra.mxu0 0.0
      %4402 = vmatprep.subr.mxu0 0.0
      %4403 = vmatpush1.msra.mxu0 0.0
      %4404 = vmatprep.subr.mxu0 0.0
      %4405 = vmatpush1.msra.mxu0 0.0
      %4406 = vmatprep.subr.mxu0 0.0
      %4407 = vmatpush1.msra.mxu0 0.0
      %4408 = vmatprep.subr.mxu0 0.0
      %4409 = vmatpush1.msra.mxu0 0.0
      %4410 = vmatprep.subr.mxu0 0.0
      %4411 = vmatpush1.msra.mxu0 0.0
      %4412 = vmatprep.subr.mxu0 0.0
      %4413 = vmatpush1.msra.mxu0 0.0
      %4414 = vmatprep.mubr.f32.mxu0 0.0
      %4415 = vmatmul.mubr.f32.gmra.mrb[0].mxu0 %v3805
      %v4416 = vpop.f32.mrb[0].mxu0
      %v4417 = vadd.f32 %v4192, %v4416
      %v4418 = vpop.f32.mrb[0].mxu0
      %4419 = vmatprep.mubr.f32.mxu0 0.0
      %4420 = vmatmul.mubr.f32.gmra.mrb[0].mxu0 %v3808
      %v4421 = vpop.f32.mrb[0].mxu0
      %v4422 = vadd.f32 %v4197, %v4421
      %v4423 = vpop.f32.mrb[0].mxu0
      %4424 = vmatprep.mubr.f32.mxu0 0.0
      %4425 = vmatmul.mubr.f32.gmra.mrb[0].mxu0 %v3811
      %v4426 = vpop.f32.mrb[0].mxu0
      %v4427 = vadd.f32 %v4202, %v4426
      %v4428 = vpop.f32.mrb[0].mxu0
      %4429 = vmatprep.mubr.f32.mxu0 0.0
      %4430 = vmatmul.mubr.f32.gmra.mrb[0].mxu0 %v3814
      %v4431 = vpop.f32.mrb[0].mxu0
      %v4432 = vadd.f32 %v4207, %v4431
      %v4433 = vpop.f32.mrb[0].mxu0
      %4434 = vmatprep.mubr.f32.mxu0 0.0
      %4435 = vmatmul.mubr.f32.gmra.mrb[0].mxu0 %v3817
      %v4436 = vpop.f32.mrb[0].mxu0
      %v4437 = vadd.f32 %v4212, %v4436
      %v4438 = vpop.f32.mrb[0].mxu0
      %4439 = vmatprep.mubr.f32.mxu0 0.0
      %4440 = vmatmul.mubr.f32.gmra.mrb[0].mxu0 %v3820
      %v4441 = vpop.f32.mrb[0].mxu0
      %v4442 = vadd.f32 %v4217, %v4441
      %v4443 = vpop.f32.mrb[0].mxu0
      %4444 = vmatprep.mubr.f32.mxu0 0.0
      %4445 = vmatmul.mubr.f32.gmra.mrb[0].mxu0 %v3823
      %v4446 = vpop.f32.mrb[0].mxu0
      %v4447 = vadd.f32 %v4222, %v4446
      %v4448 = vpop.f32.mrb[0].mxu0
      %4449 = vmatprep.mubr.f32.mxu0 0.0
      %4450 = vmatmul.mubr.f32.gmra.mrb[0].mxu0 %v3826
      %v4451 = vpop.f32.mrb[0].mxu0
      %v4452 = vadd.f32 %v4227, %v4451
      %v4453 = vpop.f32.mrb[0].mxu0
      %4454 = vmatprep.mubr.f32.mxu0 0.0
      %4455 = vmatmul.mubr.f32.gmra.mrb[0].mxu0 %v3829
      %v4456 = vpop.f32.mrb[0].mxu0
      %v4457 = vadd.f32 %v4232, %v4456
      %v4458 = vpop.f32.mrb[0].mxu0
      %4459 = vmatprep.mubr.f32.mxu0 0.0
      %4460 = vmatmul.mubr.f32.gmra.mrb[0].mxu0 %v3832
      %v4461 = vpop.f32.mrb[0].mxu0
      %v4462 = vadd.f32 %v4237, %v4461
      %v4463 = vpop.f32.mrb[0].mxu0
      %4464 = vmatprep.mubr.f32.mxu0 0.0
      %4465 = vmatmul.mubr.f32.gmra.mrb[0].mxu0 %v3835
      %v4466 = vpop.f32.mrb[0].mxu0
      %v4467 = vadd.f32 %v4242, %v4466
      %v4468 = vpop.f32.mrb[0].mxu0
      %4469 = vmatprep.mubr.f32.mxu0 0.0
      %4470 = vmatmul.mubr.f32.gmra.mrb[0].mxu0 %v3838
      %v4471 = vpop.f32.mrb[0].mxu0
      %v4472 = vadd.f32 %v4247, %v4471
      %v4473 = vpop.f32.mrb[0].mxu0
      %4474 = vmatprep.mubr.f32.mxu0 0.0
      %4475 = vmatmul.mubr.f32.gmra.mrb[0].mxu0 %v3841
      %v4476 = vpop.f32.mrb[0].mxu0
      %v4477 = vadd.f32 %v4252, %v4476
      %v4478 = vpop.f32.mrb[0].mxu0
      %4479 = vmatprep.mubr.f32.mxu0 0.0
      %4480 = vmatmul.mubr.f32.gmra.mrb[0].mxu0 %v3844
      %v4481 = vpop.f32.mrb[0].mxu0
      %v4482 = vadd.f32 %v4257, %v4481
      %v4483 = vpop.f32.mrb[0].mxu0
      %4484 = vmatprep.mubr.f32.mxu0 0.0
      %4485 = vmatmul.mubr.f32.gmra.mrb[0].mxu0 %v3847
      %v4486 = vpop.f32.mrb[0].mxu0
      %v4487 = vadd.f32 %v4262, %v4486
      %v4488 = vpop.f32.mrb[0].mxu0
      %4489 = vmatprep.mubr.f32.mxu0 0.0
      %4490 = vmatmul.mubr.f32.gmra.mrb[0].mxu0 %v3850
      %v4491 = vpop.f32.mrb[0].mxu0
      %v4492 = vadd.f32 %v4267, %v4491
      %v4493 = vpop.f32.mrb[0].mxu0
      %4494 = vmatprep.mubr.f32.mxu0 0.0
      %4495 = vmatmul.mubr.f32.gmra.mrb[0].mxu0 %v3853
      %v4496 = vpop.f32.mrb[0].mxu0
      %v4497 = vadd.f32 %v4272, %v4496
      %v4498 = vpop.f32.mrb[0].mxu0
      %4499 = vmatprep.mubr.f32.mxu0 0.0
      %4500 = vmatmul.mubr.f32.gmra.mrb[0].mxu0 %v3856
      %v4501 = vpop.f32.mrb[0].mxu0
      %v4502 = vadd.f32 %v4277, %v4501
      %v4503 = vpop.f32.mrb[0].mxu0
      %4504 = vmatprep.mubr.f32.mxu0 0.0
      %4505 = vmatmul.mubr.f32.gmra.mrb[0].mxu0 %v3859
      %v4506 = vpop.f32.mrb[0].mxu0
      %v4507 = vadd.f32 %v4282, %v4506
      %v4508 = vpop.f32.mrb[0].mxu0
      %4509 = vmatprep.mubr.f32.mxu0 0.0
      %4510 = vmatmul.mubr.f32.gmra.mrb[0].mxu0 %v3862
      %v4511 = vpop.f32.mrb[0].mxu0
      %v4512 = vadd.f32 %v4287, %v4511
      %v4513 = vpop.f32.mrb[0].mxu0
      %4514 = vmatprep.mubr.f32.mxu0 0.0
      %4515 = vmatmul.mubr.f32.gmra.mrb[0].mxu0 %v3865
      %v4516 = vpop.f32.mrb[0].mxu0
      %v4517 = vadd.f32 %v4292, %v4516
      %v4518 = vpop.f32.mrb[0].mxu0
      %4519 = vmatprep.mubr.f32.mxu0 0.0
      %4520 = vmatmul.mubr.f32.gmra.mrb[0].mxu0 %v3868
      %v4521 = vpop.f32.mrb[0].mxu0
      %v4522 = vadd.f32 %v4297, %v4521
      %v4523 = vpop.f32.mrb[0].mxu0
      %4524 = vmatprep.mubr.f32.mxu0 0.0
      %4525 = vmatmul.mubr.f32.gmra.mrb[0].mxu0 %v3871
      %v4526 = vpop.f32.mrb[0].mxu0
      %v4527 = vadd.f32 %v4302, %v4526
      %v4528 = vpop.f32.mrb[0].mxu0
      %4529 = vmatprep.mubr.f32.mxu0 0.0
      %4530 = vmatmul.mubr.f32.gmra.mrb[0].mxu0 %v3874
      %v4531 = vpop.f32.mrb[0].mxu0
      %v4532 = vadd.f32 %v4307, %v4531
      %v4533 = vpop.f32.mrb[0].mxu0
      %4534 = vmatprep.mubr.f32.mxu0 0.0
      %4535 = vmatmul.mubr.f32.gmra.mrb[0].mxu0 %v3877
      %v4536 = vpop.f32.mrb[0].mxu0
      %v4537 = vadd.f32 %v4312, %v4536
      %v4538 = vpop.f32.mrb[0].mxu0
      %4539 = vmatprep.mubr.f32.mxu0 0.0
      %4540 = vmatmul.mubr.f32.gmra.mrb[0].mxu0 %v3880
      %v4541 = vpop.f32.mrb[0].mxu0
      %v4542 = vadd.f32 %v4317, %v4541
      %v4543 = vpop.f32.mrb[0].mxu0
      %4544 = vmatprep.mubr.f32.mxu0 0.0
      %4545 = vmatmul.mubr.f32.gmra.mrb[0].mxu0 %v3883
      %v4546 = vpop.f32.mrb[0].mxu0
      %v4547 = vadd.f32 %v4322, %v4546
      %v4548 = vpop.f32.mrb[0].mxu0
      %4549 = vmatprep.mubr.f32.mxu0 0.0
      %4550 = vmatmul.mubr.f32.gmra.mrb[0].mxu0 %v3886
      %v4551 = vpop.f32.mrb[0].mxu0
      %v4552 = vadd.f32 %v4327, %v4551
      %v4553 = vpop.f32.mrb[0].mxu0
      %4554 = vmatprep.mubr.f32.mxu0 0.0
      %4555 = vmatmul.mubr.f32.gmra.mrb[0].mxu0 %v3889
      %v4556 = vpop.f32.mrb[0].mxu0
      %v4557 = vadd.f32 %v4332, %v4556
      %v4558 = vpop.f32.mrb[0].mxu0
      %4559 = vmatprep.mubr.f32.mxu0 0.0
      %4560 = vmatmul.mubr.f32.gmra.mrb[0].mxu0 %v3892
      %v4561 = vpop.f32.mrb[0].mxu0
      %v4562 = vadd.f32 %v4337, %v4561
      %v4563 = vpop.f32.mrb[0].mxu0
      %4564 = vmatprep.mubr.f32.mxu0 0.0
      %4565 = vmatmul.mubr.f32.gmra.mrb[0].mxu0 %v3895
      %v4566 = vpop.f32.mrb[0].mxu0
      %v4567 = vadd.f32 %v4342, %v4566
      %v4568 = vpop.f32.mrb[0].mxu0
      %4569 = vmatprep.mubr.f32.mxu0 0.0
      %4570 = vmatmul.mubr.f32.gmra.mrb[0].mxu0 %v3898
      %v4571 = vpop.f32.mrb[0].mxu0
      %v4572 = vadd.f32 %v4347, %v4571
      %v4573 = vpop.f32.mrb[0].mxu0
      %4574 = vdwg.mxu0
      %v4575 = vmax.f32 %v4417, 0.0
      %v4576 = vmax.f32 %v4422, 0.0
      %v4577 = vmax.f32 %v4427, 0.0
      %v4578 = vmax.f32 %v4432, 0.0
      %v4579 = vmax.f32 %v4437, 0.0
      %v4580 = vmax.f32 %v4442, 0.0
      %v4581 = vmax.f32 %v4447, 0.0
      %v4582 = vmax.f32 %v4452, 0.0
      %v4583 = vmax.f32 %v4457, 0.0
      %v4584 = vmax.f32 %v4462, 0.0
      %v4585 = vmax.f32 %v4467, 0.0
      %v4586 = vmax.f32 %v4472, 0.0
      %v4587 = vmax.f32 %v4477, 0.0
      %v4588 = vmax.f32 %v4482, 0.0
      %v4589 = vmax.f32 %v4487, 0.0
      %v4590 = vmax.f32 %v4492, 0.0
      %v4591 = vmax.f32 %v4497, 0.0
      %v4592 = vmax.f32 %v4502, 0.0
      %v4593 = vmax.f32 %v4507, 0.0
      %v4594 = vmax.f32 %v4512, 0.0
      %v4595 = vmax.f32 %v4517, 0.0
      %v4596 = vmax.f32 %v4522, 0.0
      %v4597 = vmax.f32 %v4527, 0.0
      %v4598 = vmax.f32 %v4532, 0.0
      %v4599 = vmax.f32 %v4537, 0.0
      %v4600 = vmax.f32 %v4542, 0.0
      %v4601 = vmax.f32 %v4547, 0.0
      %v4602 = vmax.f32 %v4552, 0.0
      %v4603 = vmax.f32 %v4557, 0.0
      %v4604 = vmax.f32 %v4562, 0.0
      %v4605 = vmax.f32 %v4567, 0.0
      %v4606 = vmax.f32 %v4572, 0.0
      %v4607 = vmax.f32 %v4575, %v4577
      %v4608 = vmax.f32 %v4576, %v4578
      %v4609 = vmax.f32 %v4579, %v4581
      %v4610 = vmax.f32 %v4580, %v4582
      %v4611 = vmax.f32 %v4583, %v4585
      %v4612 = vmax.f32 %v4584, %v4586
      %v4613 = vmax.f32 %v4587, %v4589
      %v4614 = vmax.f32 %v4588, %v4590
      %v4615 = vmax.f32 %v4591, %v4593
      %v4616 = vmax.f32 %v4592, %v4594
      %v4617 = vmax.f32 %v4595, %v4597
      %v4618 = vmax.f32 %v4596, %v4598
      %v4619 = vmax.f32 %v4599, %v4601
      %v4620 = vmax.f32 %v4600, %v4602
      %v4621 = vmax.f32 %v4603, %v4605
      %v4622 = vmax.f32 %v4604, %v4606
      %v4631 = vrot.slane %v4607, 1
      %v4632 = vrot.slane %v4609, 1
      %v4633 = vrot.slane %v4611, 1
      %v4634 = vrot.slane %v4613, 1
      %v4635 = vrot.slane %v4615, 1
      %v4636 = vrot.slane %v4617, 1
      %v4637 = vrot.slane %v4619, 1
      %v4638 = vrot.slane %v4621, 1
      %v4647 = vmax.f32 %v4607, %v4631
      %v4648 = vmax.f32 %v4609, %v4632
      %v4649 = vmax.f32 %v4611, %v4633
      %v4650 = vmax.f32 %v4613, %v4634
      %v4651 = vmax.f32 %v4615, %v4635
      %v4652 = vmax.f32 %v4617, %v4636
      %v4653 = vmax.f32 %v4619, %v4637
      %v4654 = vmax.f32 %v4621, %v4638
      %s4655 = scalar_lea.vmem [#allocation3], 16
      %vm4656 = vcmask 516096
      %4657 = vst.msk [vmem:[%s4655 + $0x1] sm:$0x1] %vm4656, %v4647
      %4658 = vst.msk [vmem:[%s4655 + $0x11] sm:$0x1] %vm4656, %v4648
      %4659 = vst.msk [vmem:[%s4655 + $0x21] sm:$0x1] %vm4656, %v4649
      %4660 = vst.msk [vmem:[%s4655 + $0x31] sm:$0x1] %vm4656, %v4650
      %4661 = vst.msk [vmem:[%s4655 + $0x41] sm:$0x1] %vm4656, %v4651
      %4662 = vst.msk [vmem:[%s4655 + $0x51] sm:$0x1] %vm4656, %v4652
      %4663 = vst.msk [vmem:[%s4655 + $0x61] sm:$0x1] %vm4656, %v4653
      %4664 = vst.msk [vmem:[%s4655 + $0x71] sm:$0x1] %vm4656, %v4654
      %vm4665 = vcmask 518146
      %4666 = vst.msk [vmem:[%s4655] sm:$0x4] %vm4665, %v4647
      %4667 = vst.msk [vmem:[%s4655 + $0x10] sm:$0x4] %vm4665, %v4648
      %4668 = vst.msk [vmem:[%s4655 + $0x20] sm:$0x4] %vm4665, %v4649
      %4669 = vst.msk [vmem:[%s4655 + $0x30] sm:$0x4] %vm4665, %v4650
      %4670 = vst.msk [vmem:[%s4655 + $0x40] sm:$0x4] %vm4665, %v4651
      %4671 = vst.msk [vmem:[%s4655 + $0x50] sm:$0x4] %vm4665, %v4652
      %4672 = vst.msk [vmem:[%s4655 + $0x60] sm:$0x4] %vm4665, %v4653
      %4673 = vst.msk [vmem:[%s4655 + $0x70] sm:$0x4] %vm4665, %v4654
      %vm4674 = vcmask 520196
      %4675 = vst.msk [vmem:[%s4655 - $0x1] sm:$0x10] %vm4674, %v4647
      %4676 = vst.msk [vmem:[%s4655 + $0xf] sm:$0x10] %vm4674, %v4648
      %4677 = vst.msk [vmem:[%s4655 + $0x1f] sm:$0x10] %vm4674, %v4649
      %4678 = vst.msk [vmem:[%s4655 + $0x2f] sm:$0x10] %vm4674, %v4650
      %4679 = vst.msk [vmem:[%s4655 + $0x3f] sm:$0x10] %vm4674, %v4651
      %4680 = vst.msk [vmem:[%s4655 + $0x4f] sm:$0x10] %vm4674, %v4652
      %4681 = vst.msk [vmem:[%s4655 + $0x5f] sm:$0x10] %vm4674, %v4653
      %4682 = vst.msk [vmem:[%s4655 + $0x6f] sm:$0x10] %vm4674, %v4654
      %vm4683 = vcmask 522246
      %4684 = vst.msk [vmem:[%s4655 - $0x2] sm:$0x40] %vm4683, %v4647
      %4685 = vst.msk [vmem:[%s4655 + $0xe] sm:$0x40] %vm4683, %v4648
      %4686 = vst.msk [vmem:[%s4655 + $0x1e] sm:$0x40] %vm4683, %v4649
      %4687 = vst.msk [vmem:[%s4655 + $0x2e] sm:$0x40] %vm4683, %v4650
      %4688 = vst.msk [vmem:[%s4655 + $0x3e] sm:$0x40] %vm4683, %v4651
      %4689 = vst.msk [vmem:[%s4655 + $0x4e] sm:$0x40] %vm4683, %v4652
      %4690 = vst.msk [vmem:[%s4655 + $0x5e] sm:$0x40] %vm4683, %v4653
      %4691 = vst.msk [vmem:[%s4655 + $0x6e] sm:$0x40] %vm4683, %v4654
      %v4700 = vrot.slane %v4608, 1
      %v4701 = vrot.slane %v4610, 1
      %v4702 = vrot.slane %v4612, 1
      %v4703 = vrot.slane %v4614, 1
      %v4704 = vrot.slane %v4616, 1
      %v4705 = vrot.slane %v4618, 1
      %v4706 = vrot.slane %v4620, 1
      %v4707 = vrot.slane %v4622, 1
      %v4716 = vmax.f32 %v4608, %v4700
      %v4717 = vmax.f32 %v4610, %v4701
      %v4718 = vmax.f32 %v4612, %v4702
      %v4719 = vmax.f32 %v4614, %v4703
      %v4720 = vmax.f32 %v4616, %v4704
      %v4721 = vmax.f32 %v4618, %v4705
      %v4722 = vmax.f32 %v4620, %v4706
      %v4723 = vmax.f32 %v4622, %v4707
      %4724 = vst.msk [vmem:[%s4655 + $0x5] sm:$0x1] %vm4656, %v4716
      %4725 = vst.msk [vmem:[%s4655 + $0x15] sm:$0x1] %vm4656, %v4717
      %4726 = vst.msk [vmem:[%s4655 + $0x25] sm:$0x1] %vm4656, %v4718
      %4727 = vst.msk [vmem:[%s4655 + $0x35] sm:$0x1] %vm4656, %v4719
      %4728 = vst.msk [vmem:[%s4655 + $0x45] sm:$0x1] %vm4656, %v4720
      %4729 = vst.msk [vmem:[%s4655 + $0x55] sm:$0x1] %vm4656, %v4721
      %4730 = vst.msk [vmem:[%s4655 + $0x65] sm:$0x1] %vm4656, %v4722
      %4731 = vst.msk [vmem:[%s4655 + $0x75] sm:$0x1] %vm4656, %v4723
      %4732 = vst.msk [vmem:[%s4655 + $0x4] sm:$0x4] %vm4665, %v4716
      %4733 = vst.msk [vmem:[%s4655 + $0x14] sm:$0x4] %vm4665, %v4717
      %4734 = vst.msk [vmem:[%s4655 + $0x24] sm:$0x4] %vm4665, %v4718
      %4735 = vst.msk [vmem:[%s4655 + $0x34] sm:$0x4] %vm4665, %v4719
      %4736 = vst.msk [vmem:[%s4655 + $0x44] sm:$0x4] %vm4665, %v4720
      %4737 = vst.msk [vmem:[%s4655 + $0x54] sm:$0x4] %vm4665, %v4721
      %4738 = vst.msk [vmem:[%s4655 + $0x64] sm:$0x4] %vm4665, %v4722
      %4739 = vst.msk [vmem:[%s4655 + $0x74] sm:$0x4] %vm4665, %v4723
      %4740 = vst.msk [vmem:[%s4655 + $0x3] sm:$0x10] %vm4674, %v4716
      %4741 = vst.msk [vmem:[%s4655 + $0x13] sm:$0x10] %vm4674, %v4717
      %4742 = vst.msk [vmem:[%s4655 + $0x23] sm:$0x10] %vm4674, %v4718
      %4743 = vst.msk [vmem:[%s4655 + $0x33] sm:$0x10] %vm4674, %v4719
      %4744 = vst.msk [vmem:[%s4655 + $0x43] sm:$0x10] %vm4674, %v4720
      %4745 = vst.msk [vmem:[%s4655 + $0x53] sm:$0x10] %vm4674, %v4721
      %4746 = vst.msk [vmem:[%s4655 + $0x63] sm:$0x10] %vm4674, %v4722
      %4747 = vst.msk [vmem:[%s4655 + $0x73] sm:$0x10] %vm4674, %v4723
      %4748 = vst.msk [vmem:[%s4655 + $0x2] sm:$0x40] %vm4683, %v4716
      %4749 = vst.msk [vmem:[%s4655 + $0x12] sm:$0x40] %vm4683, %v4717
      %4750 = vst.msk [vmem:[%s4655 + $0x22] sm:$0x40] %vm4683, %v4718
      %4751 = vst.msk [vmem:[%s4655 + $0x32] sm:$0x40] %vm4683, %v4719
      %4752 = vst.msk [vmem:[%s4655 + $0x42] sm:$0x40] %vm4683, %v4720
      %4753 = vst.msk [vmem:[%s4655 + $0x52] sm:$0x40] %vm4683, %v4721
      %4754 = vst.msk [vmem:[%s4655 + $0x62] sm:$0x40] %vm4683, %v4722
      %4755 = vst.msk [vmem:[%s4655 + $0x72] sm:$0x40] %vm4683, %v4723
      %v4756 = vld [vmem:[#allocation3] sm:$0xff]
      %v4757 = vld [vmem:[#allocation3 + $0x10] sm:$0xff]
      %v4758 = vld [vmem:[#allocation3 + $0x20] sm:$0xff]
      %v4759 = vld [vmem:[#allocation3 + $0x30] sm:$0xff]
      %v4760 = vld [vmem:[#allocation3 + $0x40] sm:$0xff]
      %v4761 = vld [vmem:[#allocation3 + $0x50] sm:$0xff]
      %v4762 = vld [vmem:[#allocation3 + $0x60] sm:$0xff]
      %v4763 = vld [vmem:[#allocation3 + $0x70] sm:$0xff]
      %4764 = vst.msk [vmem:[#allocation7] sm:$0xff] %vm333, %v4756
      %4765 = vst.msk [vmem:[#allocation7 + $0x28] sm:$0xff] %vm333, %v4757
      %4766 = vst.msk [vmem:[#allocation7 + $0x50] sm:$0xff] %vm333, %v4758
      %4767 = vst.msk [vmem:[#allocation7 + $0x78] sm:$0xff] %vm333, %v4759
      %4768 = vst.msk [vmem:[#allocation7 + $0xa0] sm:$0xff] %vm333, %v4760
      %4769 = vst.msk [vmem:[#allocation7 + $0xc8] sm:$0xff] %vm333, %v4761
      %4770 = vst.msk [vmem:[#allocation7 + $0xf0] sm:$0xff] %vm333, %v4762
      %4771 = vst.msk [vmem:[#allocation7 + $0x118] sm:$0xff] %vm333, %v4763
      %v4772 = vld [vmem:[#allocation3 + $0x1] sm:$0xff]
      %v4773 = vld [vmem:[#allocation3 + $0x11] sm:$0xff]
      %v4774 = vld [vmem:[#allocation3 + $0x21] sm:$0xff]
      %v4775 = vld [vmem:[#allocation3 + $0x31] sm:$0xff]
      %v4776 = vld [vmem:[#allocation3 + $0x41] sm:$0xff]
      %v4777 = vld [vmem:[#allocation3 + $0x51] sm:$0xff]
      %v4778 = vld [vmem:[#allocation3 + $0x61] sm:$0xff]
      %v4779 = vld [vmem:[#allocation3 + $0x71] sm:$0xff]
      %4788 = vrot.lane.b32.xlu0 %v4772, 64
      %v4789 = vpop.permute.xlu0 %4788
      %4790 = vrot.lane.b32.xlu0 %v4773, 64
      %v4791 = vpop.permute.xlu0 %4790
      %4792 = vrot.lane.b32.xlu0 %v4774, 64
      %v4793 = vpop.permute.xlu0 %4792
      %4794 = vrot.lane.b32.xlu0 %v4775, 64
      %v4795 = vpop.permute.xlu0 %4794
      %4796 = vrot.lane.b32.xlu0 %v4776, 64
      %v4797 = vpop.permute.xlu0 %4796
      %4798 = vrot.lane.b32.xlu0 %v4777, 64
      %v4799 = vpop.permute.xlu0 %4798
      %4800 = vrot.lane.b32.xlu0 %v4778, 64
      %v4801 = vpop.permute.xlu0 %4800
      %4802 = vrot.lane.b32.xlu0 %v4779, 64
      %v4803 = vpop.permute.xlu0 %4802
      %4812 = vst.msk [vmem:[#allocation7] sm:$0xff] %vm2699, %v4789
      %4813 = vst.msk [vmem:[#allocation7 + $0x28] sm:$0xff] %vm2699, %v4791
      %4814 = vst.msk [vmem:[#allocation7 + $0x50] sm:$0xff] %vm2699, %v4793
      %4815 = vst.msk [vmem:[#allocation7 + $0x78] sm:$0xff] %vm2699, %v4795
      %4816 = vst.msk [vmem:[#allocation7 + $0xa0] sm:$0xff] %vm2699, %v4797
      %4817 = vst.msk [vmem:[#allocation7 + $0xc8] sm:$0xff] %vm2699, %v4799
      %4818 = vst.msk [vmem:[#allocation7 + $0xf0] sm:$0xff] %vm2699, %v4801
      %4819 = vst.msk [vmem:[#allocation7 + $0x118] sm:$0xff] %vm2699, %v4803
      %v4820 = vld [vmem:[#allocation3 + $0x2] sm:$0xff]
      %v4821 = vld [vmem:[#allocation3 + $0x12] sm:$0xff]
      %v4822 = vld [vmem:[#allocation3 + $0x22] sm:$0xff]
      %v4823 = vld [vmem:[#allocation3 + $0x32] sm:$0xff]
      %v4824 = vld [vmem:[#allocation3 + $0x42] sm:$0xff]
      %v4825 = vld [vmem:[#allocation3 + $0x52] sm:$0xff]
      %v4826 = vld [vmem:[#allocation3 + $0x62] sm:$0xff]
      %v4827 = vld [vmem:[#allocation3 + $0x72] sm:$0xff]
      %4828 = vst.msk [vmem:[#allocation7 + $0x8] sm:$0xff] %vm333, %v4820
      %4829 = vst.msk [vmem:[#allocation7 + $0x30] sm:$0xff] %vm333, %v4821
      %4830 = vst.msk [vmem:[#allocation7 + $0x58] sm:$0xff] %vm333, %v4822
      %4831 = vst.msk [vmem:[#allocation7 + $0x80] sm:$0xff] %vm333, %v4823
      %4832 = vst.msk [vmem:[#allocation7 + $0xa8] sm:$0xff] %vm333, %v4824
      %4833 = vst.msk [vmem:[#allocation7 + $0xd0] sm:$0xff] %vm333, %v4825
      %4834 = vst.msk [vmem:[#allocation7 + $0xf8] sm:$0xff] %vm333, %v4826
      %4835 = vst.msk [vmem:[#allocation7 + $0x120] sm:$0xff] %vm333, %v4827
      %v4836 = vld [vmem:[%s4655] sm:$0xff]
      %v4837 = vld [vmem:[%s4655 + $0x10] sm:$0xff]
      %v4838 = vld [vmem:[%s4655 + $0x20] sm:$0xff]
      %v4839 = vld [vmem:[%s4655 + $0x30] sm:$0xff]
      %v4840 = vld [vmem:[%s4655 + $0x40] sm:$0xff]
      %v4841 = vld [vmem:[%s4655 + $0x50] sm:$0xff]
      %v4842 = vld [vmem:[%s4655 + $0x60] sm:$0xff]
      %v4843 = vld [vmem:[%s4655 + $0x70] sm:$0xff]
      %4852 = vrot.lane.b32.xlu0 %v4836, 64
      %v4853 = vpop.permute.xlu0 %4852
      %4854 = vrot.lane.b32.xlu0 %v4837, 64
      %v4855 = vpop.permute.xlu0 %4854
      %4856 = vrot.lane.b32.xlu0 %v4838, 64
      %v4857 = vpop.permute.xlu0 %4856
      %4858 = vrot.lane.b32.xlu0 %v4839, 64
      %v4859 = vpop.permute.xlu0 %4858
      %4860 = vrot.lane.b32.xlu0 %v4840, 64
      %v4861 = vpop.permute.xlu0 %4860
      %4862 = vrot.lane.b32.xlu0 %v4841, 64
      %v4863 = vpop.permute.xlu0 %4862
      %4864 = vrot.lane.b32.xlu0 %v4842, 64
      %v4865 = vpop.permute.xlu0 %4864
      %4866 = vrot.lane.b32.xlu0 %v4843, 64
      %v4867 = vpop.permute.xlu0 %4866
      %4876 = vst.msk [vmem:[#allocation7 + $0x8] sm:$0xff] %vm2699, %v4853
      %4877 = vst.msk [vmem:[#allocation7 + $0x30] sm:$0xff] %vm2699, %v4855
      %4878 = vst.msk [vmem:[#allocation7 + $0x58] sm:$0xff] %vm2699, %v4857
      %4879 = vst.msk [vmem:[#allocation7 + $0x80] sm:$0xff] %vm2699, %v4859
      %4880 = vst.msk [vmem:[#allocation7 + $0xa8] sm:$0xff] %vm2699, %v4861
      %4881 = vst.msk [vmem:[#allocation7 + $0xd0] sm:$0xff] %vm2699, %v4863
      %4882 = vst.msk [vmem:[#allocation7 + $0xf8] sm:$0xff] %vm2699, %v4865
      %4883 = vst.msk [vmem:[#allocation7 + $0x120] sm:$0xff] %vm2699, %v4867
      %v4884 = vld [vmem:[%s4655 + $0x1] sm:$0xff]
      %v4885 = vld [vmem:[%s4655 + $0x11] sm:$0xff]
      %v4886 = vld [vmem:[%s4655 + $0x21] sm:$0xff]
      %v4887 = vld [vmem:[%s4655 + $0x31] sm:$0xff]
      %v4888 = vld [vmem:[%s4655 + $0x41] sm:$0xff]
      %v4889 = vld [vmem:[%s4655 + $0x51] sm:$0xff]
      %v4890 = vld [vmem:[%s4655 + $0x61] sm:$0xff]
      %v4891 = vld [vmem:[%s4655 + $0x71] sm:$0xff]
      %4892 = vst.msk [vmem:[#allocation7 + $0x10] sm:$0xff] %vm333, %v4884
      %4893 = vst.msk [vmem:[#allocation7 + $0x38] sm:$0xff] %vm333, %v4885
      %4894 = vst.msk [vmem:[#allocation7 + $0x60] sm:$0xff] %vm333, %v4886
      %4895 = vst.msk [vmem:[#allocation7 + $0x88] sm:$0xff] %vm333, %v4887
      %4896 = vst.msk [vmem:[#allocation7 + $0xb0] sm:$0xff] %vm333, %v4888
      %4897 = vst.msk [vmem:[#allocation7 + $0xd8] sm:$0xff] %vm333, %v4889
      %4898 = vst.msk [vmem:[#allocation7 + $0x100] sm:$0xff] %vm333, %v4890
      %4899 = vst.msk [vmem:[#allocation7 + $0x128] sm:$0xff] %vm333, %v4891
      %v4900 = vld [vmem:[%s4655 + $0x2] sm:$0xff]
      %v4901 = vld [vmem:[%s4655 + $0x12] sm:$0xff]
      %v4902 = vld [vmem:[%s4655 + $0x22] sm:$0xff]
      %v4903 = vld [vmem:[%s4655 + $0x32] sm:$0xff]
      %v4904 = vld [vmem:[%s4655 + $0x42] sm:$0xff]
      %v4905 = vld [vmem:[%s4655 + $0x52] sm:$0xff]
      %v4906 = vld [vmem:[%s4655 + $0x62] sm:$0xff]
      %v4907 = vld [vmem:[%s4655 + $0x72] sm:$0xff]
      %4916 = vrot.lane.b32.xlu0 %v4900, 64
      %v4917 = vpop.permute.xlu0 %4916
      %4918 = vrot.lane.b32.xlu0 %v4901, 64
      %v4919 = vpop.permute.xlu0 %4918
      %4920 = vrot.lane.b32.xlu0 %v4902, 64
      %v4921 = vpop.permute.xlu0 %4920
      %4922 = vrot.lane.b32.xlu0 %v4903, 64
      %v4923 = vpop.permute.xlu0 %4922
      %4924 = vrot.lane.b32.xlu0 %v4904, 64
      %v4925 = vpop.permute.xlu0 %4924
      %4926 = vrot.lane.b32.xlu0 %v4905, 64
      %v4927 = vpop.permute.xlu0 %4926
      %4928 = vrot.lane.b32.xlu0 %v4906, 64
      %v4929 = vpop.permute.xlu0 %4928
      %4930 = vrot.lane.b32.xlu0 %v4907, 64
      %v4931 = vpop.permute.xlu0 %4930
      %4940 = vst.msk [vmem:[#allocation7 + $0x10] sm:$0xff] %vm2699, %v4917
      %4941 = vst.msk [vmem:[#allocation7 + $0x38] sm:$0xff] %vm2699, %v4919
      %4942 = vst.msk [vmem:[#allocation7 + $0x60] sm:$0xff] %vm2699, %v4921
      %4943 = vst.msk [vmem:[#allocation7 + $0x88] sm:$0xff] %vm2699, %v4923
      %4944 = vst.msk [vmem:[#allocation7 + $0xb0] sm:$0xff] %vm2699, %v4925
      %4945 = vst.msk [vmem:[#allocation7 + $0xd8] sm:$0xff] %vm2699, %v4927
      %4946 = vst.msk [vmem:[#allocation7 + $0x100] sm:$0xff] %vm2699, %v4929
      %4947 = vst.msk [vmem:[#allocation7 + $0x128] sm:$0xff] %vm2699, %v4931
      %s4948 = scalar_lea.vmem [#allocation3], 32
      %v4949 = vld [vmem:[%s4948] sm:$0xff]
      %v4950 = vld [vmem:[%s4948 + $0x10] sm:$0xff]
      %v4951 = vld [vmem:[%s4948 + $0x20] sm:$0xff]
      %v4952 = vld [vmem:[%s4948 + $0x30] sm:$0xff]
      %v4953 = vld [vmem:[%s4948 + $0x40] sm:$0xff]
      %v4954 = vld [vmem:[%s4948 + $0x50] sm:$0xff]
      %v4955 = vld [vmem:[%s4948 + $0x60] sm:$0xff]
      %v4956 = vld [vmem:[%s4948 + $0x70] sm:$0xff]
      %4957 = vst.msk [vmem:[#allocation7 + $0x18] sm:$0xff] %vm333, %v4949
      %4958 = vst.msk [vmem:[#allocation7 + $0x40] sm:$0xff] %vm333, %v4950
      %4959 = vst.msk [vmem:[#allocation7 + $0x68] sm:$0xff] %vm333, %v4951
      %4960 = vst.msk [vmem:[#allocation7 + $0x90] sm:$0xff] %vm333, %v4952
      %4961 = vst.msk [vmem:[#allocation7 + $0xb8] sm:$0xff] %vm333, %v4953
      %4962 = vst.msk [vmem:[#allocation7 + $0xe0] sm:$0xff] %vm333, %v4954
      %4963 = vst.msk [vmem:[#allocation7 + $0x108] sm:$0xff] %vm333, %v4955
      %4964 = vst.msk [vmem:[#allocation7 + $0x130] sm:$0xff] %vm333, %v4956
      %v4965 = vld [vmem:[%s4948 + $0x1] sm:$0xff]
      %v4966 = vld [vmem:[%s4948 + $0x11] sm:$0xff]
      %v4967 = vld [vmem:[%s4948 + $0x21] sm:$0xff]
      %v4968 = vld [vmem:[%s4948 + $0x31] sm:$0xff]
      %v4969 = vld [vmem:[%s4948 + $0x41] sm:$0xff]
      %v4970 = vld [vmem:[%s4948 + $0x51] sm:$0xff]
      %v4971 = vld [vmem:[%s4948 + $0x61] sm:$0xff]
      %v4972 = vld [vmem:[%s4948 + $0x71] sm:$0xff]
      %4981 = vrot.lane.b32.xlu0 %v4965, 64
      %v4982 = vpop.permute.xlu0 %4981
      %4983 = vrot.lane.b32.xlu0 %v4966, 64
      %v4984 = vpop.permute.xlu0 %4983
      %4985 = vrot.lane.b32.xlu0 %v4967, 64
      %v4986 = vpop.permute.xlu0 %4985
      %4987 = vrot.lane.b32.xlu0 %v4968, 64
      %v4988 = vpop.permute.xlu0 %4987
      %4989 = vrot.lane.b32.xlu0 %v4969, 64
      %v4990 = vpop.permute.xlu0 %4989
      %4991 = vrot.lane.b32.xlu0 %v4970, 64
      %v4992 = vpop.permute.xlu0 %4991
      %4993 = vrot.lane.b32.xlu0 %v4971, 64
      %v4994 = vpop.permute.xlu0 %4993
      %4995 = vrot.lane.b32.xlu0 %v4972, 64
      %v4996 = vpop.permute.xlu0 %4995
      %5005 = vst.msk [vmem:[#allocation7 + $0x18] sm:$0xff] %vm2699, %v4982
      %5006 = vst.msk [vmem:[#allocation7 + $0x40] sm:$0xff] %vm2699, %v4984
      %5007 = vst.msk [vmem:[#allocation7 + $0x68] sm:$0xff] %vm2699, %v4986
      %5008 = vst.msk [vmem:[#allocation7 + $0x90] sm:$0xff] %vm2699, %v4988
      %5009 = vst.msk [vmem:[#allocation7 + $0xb8] sm:$0xff] %vm2699, %v4990
      %5010 = vst.msk [vmem:[#allocation7 + $0xe0] sm:$0xff] %vm2699, %v4992
      %5011 = vst.msk [vmem:[#allocation7 + $0x108] sm:$0xff] %vm2699, %v4994
      %5012 = vst.msk [vmem:[#allocation7 + $0x130] sm:$0xff] %vm2699, %v4996
      %v5013 = vld [vmem:[%s4948 + $0x2] sm:$0xff]
      %v5014 = vld [vmem:[%s4948 + $0x12] sm:$0xff]
      %v5015 = vld [vmem:[%s4948 + $0x22] sm:$0xff]
      %v5016 = vld [vmem:[%s4948 + $0x32] sm:$0xff]
      %v5017 = vld [vmem:[%s4948 + $0x42] sm:$0xff]
      %v5018 = vld [vmem:[%s4948 + $0x52] sm:$0xff]
      %v5019 = vld [vmem:[%s4948 + $0x62] sm:$0xff]
      %v5020 = vld [vmem:[%s4948 + $0x72] sm:$0xff]
      %5021 = vst.msk [vmem:[#allocation7 + $0x20] sm:$0xff] %vm333, %v5013
      %5022 = vst.msk [vmem:[#allocation7 + $0x48] sm:$0xff] %vm333, %v5014
      %5023 = vst.msk [vmem:[#allocation7 + $0x70] sm:$0xff] %vm333, %v5015
      %5024 = vst.msk [vmem:[#allocation7 + $0x98] sm:$0xff] %vm333, %v5016
      %5025 = vst.msk [vmem:[#allocation7 + $0xc0] sm:$0xff] %vm333, %v5017
      %5026 = vst.msk [vmem:[#allocation7 + $0xe8] sm:$0xff] %vm333, %v5018
      %5027 = vst.msk [vmem:[#allocation7 + $0x110] sm:$0xff] %vm333, %v5019
      %5028 = vst.msk [vmem:[#allocation7 + $0x138] sm:$0xff] %vm333, %v5020
      %v5029 = vld [vmem:[#allocation7] sm:$0xff]
      %v5030 = vld [vmem:[#allocation7 + $0x8] sm:$0xff]
      %v5031 = vld [vmem:[#allocation7 + $0x10] sm:$0xff]
      %v5032 = vld [vmem:[#allocation7 + $0x18] sm:$0xff]
      %v5033 = vld [vmem:[#allocation7 + $0x20] sm:$0xff]
      %v5034 = vld [vmem:[#allocation7 + $0x28] sm:$0xff]
      %v5035 = vld [vmem:[#allocation7 + $0x30] sm:$0xff]
      %v5036 = vld [vmem:[#allocation7 + $0x38] sm:$0xff]
      %v5037 = vld [vmem:[#allocation7 + $0x40] sm:$0xff]
      %v5038 = vld [vmem:[#allocation7 + $0x48] sm:$0xff]
      %v5039 = vld [vmem:[#allocation7 + $0x50] sm:$0xff]
      %v5040 = vld [vmem:[#allocation7 + $0x58] sm:$0xff]
      %v5041 = vld [vmem:[#allocation7 + $0x60] sm:$0xff]
      %v5042 = vld [vmem:[#allocation7 + $0x68] sm:$0xff]
      %v5043 = vld [vmem:[#allocation7 + $0x70] sm:$0xff]
      %v5044 = vld [vmem:[#allocation7 + $0x78] sm:$0xff]
      %v5045 = vld [vmem:[#allocation7 + $0x80] sm:$0xff]
      %v5046 = vld [vmem:[#allocation7 + $0x88] sm:$0xff]
      %v5047 = vld [vmem:[#allocation7 + $0x90] sm:$0xff]
      %v5048 = vld [vmem:[#allocation7 + $0x98] sm:$0xff]
      %v5049 = vld [vmem:[#allocation7 + $0xa0] sm:$0xff]
      %v5050 = vld [vmem:[#allocation7 + $0xa8] sm:$0xff]
      %v5051 = vld [vmem:[#allocation7 + $0xb0] sm:$0xff]
      %v5052 = vld [vmem:[#allocation7 + $0xb8] sm:$0xff]
      %v5053 = vld [vmem:[#allocation7 + $0xc0] sm:$0xff]
      %v5054 = vld [vmem:[#allocation7 + $0xc8] sm:$0xff]
      %v5055 = vld [vmem:[#allocation7 + $0xd0] sm:$0xff]
      %v5056 = vld [vmem:[#allocation7 + $0xd8] sm:$0xff]
      %v5057 = vld [vmem:[#allocation7 + $0xe0] sm:$0xff]
      %v5058 = vld [vmem:[#allocation7 + $0xe8] sm:$0xff]
      %v5059 = vld [vmem:[#allocation7 + $0xf0] sm:$0xff]
      %v5060 = vld [vmem:[#allocation7 + $0xf8] sm:$0xff]
      %v5061 = vld [vmem:[#allocation7 + $0x100] sm:$0xff]
      %v5062 = vld [vmem:[#allocation7 + $0x108] sm:$0xff]
      %v5063 = vld [vmem:[#allocation7 + $0x110] sm:$0xff]
      %v5064 = vld [vmem:[#allocation7 + $0x118] sm:$0xff]
      %v5065 = vld [vmem:[#allocation7 + $0x120] sm:$0xff]
      %v5066 = vld [vmem:[#allocation7 + $0x128] sm:$0xff]
      %v5067 = vld [vmem:[#allocation7 + $0x130] sm:$0xff]
      %v5068 = vld [vmem:[#allocation7 + $0x138] sm:$0xff]
      %v5069 = vld [vmem:[%s5] sm:$0xff]
      %v5070 = vld [vmem:[%s5 + $0x8] sm:$0xff]
      %v5071 = vld [vmem:[%s5 + $0x10] sm:$0xff]
      %v5072 = vld [vmem:[%s5 + $0x18] sm:$0xff]
      %v5073 = vld [vmem:[%s5 + $0x20] sm:$0xff]
      %v5074 = vld [vmem:[%s5 + $0x28] sm:$0xff]
      %v5075 = vld [vmem:[%s5 + $0x30] sm:$0xff]
      %v5076 = vld [vmem:[%s5 + $0x38] sm:$0xff]
      %v5077 = vld [vmem:[%s5 + $0x40] sm:$0xff]
      %v5078 = vld [vmem:[%s5 + $0x48] sm:$0xff]
      %v5079 = vld [vmem:[%s5 + $0x50] sm:$0xff]
      %v5080 = vld [vmem:[%s5 + $0x58] sm:$0xff]
      %v5081 = vld [vmem:[%s5 + $0x60] sm:$0xff]
      %v5082 = vld [vmem:[%s5 + $0x68] sm:$0xff]
      %v5083 = vld [vmem:[%s5 + $0x70] sm:$0xff]
      %v5084 = vld [vmem:[%s5 + $0x78] sm:$0xff]
      %v5085 = vld [vmem:[%s5 + $0x80] sm:$0xff]
      %v5086 = vld [vmem:[%s5 + $0x88] sm:$0xff]
      %v5087 = vld [vmem:[%s5 + $0x90] sm:$0xff]
      %v5088 = vld [vmem:[%s5 + $0x98] sm:$0xff]
      %v5089 = vld [vmem:[%s5 + $0xa0] sm:$0xff]
      %v5090 = vld [vmem:[%s5 + $0xa8] sm:$0xff]
      %v5091 = vld [vmem:[%s5 + $0xb0] sm:$0xff]
      %v5092 = vld [vmem:[%s5 + $0xb8] sm:$0xff]
      %v5093 = vld [vmem:[%s5 + $0xc0] sm:$0xff]
      %v5094 = vld [vmem:[%s5 + $0xc8] sm:$0xff]
      %v5095 = vld [vmem:[%s5 + $0xd0] sm:$0xff]
      %v5096 = vld [vmem:[%s5 + $0xd8] sm:$0xff]
      %v5097 = vld [vmem:[%s5 + $0xe0] sm:$0xff]
      %v5098 = vld [vmem:[%s5 + $0xe8] sm:$0xff]
      %v5099 = vld [vmem:[%s5 + $0xf0] sm:$0xff]
      %v5100 = vld [vmem:[%s5 + $0xf8] sm:$0xff]
      %v5101 = vld [vmem:[%s5 + $0x100] sm:$0xff]
      %v5102 = vld [vmem:[%s5 + $0x108] sm:$0xff]
      %v5103 = vld [vmem:[%s5 + $0x110] sm:$0xff]
      %v5104 = vld [vmem:[%s5 + $0x118] sm:$0xff]
      %v5105 = vld [vmem:[%s5 + $0x120] sm:$0xff]
      %v5106 = vld [vmem:[%s5 + $0x128] sm:$0xff]
      %v5107 = vld [vmem:[%s5 + $0x130] sm:$0xff]
      %v5108 = vld [vmem:[%s5 + $0x138] sm:$0xff]
      %v5109 = vld [vmem:[%s5 + $0x140] sm:$0xff]
      %v5110 = vld [vmem:[%s5 + $0x148] sm:$0xff]
      %v5111 = vld [vmem:[%s5 + $0x150] sm:$0xff]
      %v5112 = vld [vmem:[%s5 + $0x158] sm:$0xff]
      %v5113 = vld [vmem:[%s5 + $0x160] sm:$0xff]
      %v5114 = vld [vmem:[%s5 + $0x168] sm:$0xff]
      %v5115 = vld [vmem:[%s5 + $0x170] sm:$0xff]
      %v5116 = vld [vmem:[%s5 + $0x178] sm:$0xff]
      %v5117 = vld [vmem:[%s5 + $0x180] sm:$0xff]
      %v5118 = vld [vmem:[%s5 + $0x188] sm:$0xff]
      %v5119 = vld [vmem:[%s5 + $0x190] sm:$0xff]
      %v5120 = vld [vmem:[%s5 + $0x198] sm:$0xff]
      %v5121 = vld [vmem:[%s5 + $0x1a0] sm:$0xff]
      %v5122 = vld [vmem:[%s5 + $0x1a8] sm:$0xff]
      %v5123 = vld [vmem:[%s5 + $0x1b0] sm:$0xff]
      %v5124 = vld [vmem:[%s5 + $0x1b8] sm:$0xff]
      %v5125 = vld [vmem:[%s5 + $0x1c0] sm:$0xff]
      %v5126 = vld [vmem:[%s5 + $0x1c8] sm:$0xff]
      %v5127 = vld [vmem:[%s5 + $0x1d0] sm:$0xff]
      %v5128 = vld [vmem:[%s5 + $0x1d8] sm:$0xff]
      %v5129 = vld [vmem:[%s5 + $0x1e0] sm:$0xff]
      %v5130 = vld [vmem:[%s5 + $0x1e8] sm:$0xff]
      %v5131 = vld [vmem:[%s5 + $0x1f0] sm:$0xff]
      %v5132 = vld [vmem:[%s5 + $0x1f8] sm:$0xff]
      %v5133 = vld [vmem:[%s5 + $0x200] sm:$0xff]
      %v5134 = vld [vmem:[%s5 + $0x208] sm:$0xff]
      %v5135 = vld [vmem:[%s5 + $0x210] sm:$0xff]
      %v5136 = vld [vmem:[%s5 + $0x218] sm:$0xff]
      %v5137 = vld [vmem:[%s5 + $0x220] sm:$0xff]
      %v5138 = vld [vmem:[%s5 + $0x228] sm:$0xff]
      %v5139 = vld [vmem:[%s5 + $0x230] sm:$0xff]
      %v5140 = vld [vmem:[%s5 + $0x238] sm:$0xff]
      %v5141 = vld [vmem:[%s6] sm:$0x1]
      %v5143 = vlaneseq
      %v5144 = vshrl.u32 %v5143, 7
      %v5145 = vsub.s32 0, %v5144
      %v5146 = vrot.slane %v5141, %v5145
      %v5149 = vsel %vm333, %v5033, 0
      %v5152 = vsel %vm333, %v5038, 0
      %v5155 = vsel %vm333, %v5043, 0
      %v5158 = vsel %vm333, %v5048, 0
      %v5161 = vsel %vm333, %v5053, 0
      %v5164 = vsel %vm333, %v5058, 0
      %v5167 = vsel %vm333, %v5063, 0
      %v5170 = vsel %vm333, %v5068, 0
      %5172 = vmatprep.subr.mxu0 0.0
      %5173 = vmatpush1.msra.mxu0 %v5069
      %5174 = vmatprep.subr.mxu0 0.0
      %5175 = vmatpush1.msra.mxu0 %v5070
      %5176 = vmatprep.subr.mxu0 0.0
      %5177 = vmatpush1.msra.mxu0 %v5071
      %5178 = vmatprep.subr.mxu0 0.0
      %5179 = vmatpush1.msra.mxu0 %v5072
      %5180 = vmatprep.subr.mxu0 0.0
      %5181 = vmatpush1.msra.mxu0 %v5073
      %5182 = vmatprep.subr.mxu0 0.0
      %5183 = vmatpush1.msra.mxu0 %v5074
      %5184 = vmatprep.subr.mxu0 0.0
      %5185 = vmatpush1.msra.mxu0 %v5075
      %5186 = vmatprep.subr.mxu0 0.0
      %5187 = vmatpush1.msra.mxu0 %v5076
      %5188 = vmatprep.subr.mxu0 0.0
      %5189 = vmatpush1.msra.mxu0 %v5077
      %5190 = vmatprep.subr.mxu0 0.0
      %5191 = vmatpush1.msra.mxu0 %v5078
      %5192 = vmatprep.subr.mxu0 0.0
      %5193 = vmatpush1.msra.mxu0 %v5079
      %5194 = vmatprep.subr.mxu0 0.0
      %5195 = vmatpush1.msra.mxu0 %v5080
      %5196 = vmatprep.subr.mxu0 0.0
      %5197 = vmatpush1.msra.mxu0 %v5081
      %5198 = vmatprep.subr.mxu0 0.0
      %5199 = vmatpush1.msra.mxu0 %v5082
      %5200 = vmatprep.subr.mxu0 0.0
      %5201 = vmatpush1.msra.mxu0 %v5083
      %5202 = vmatprep.subr.mxu0 0.0
      %5203 = vmatpush1.msra.mxu0 %v5084
      %5204 = vmatprep.subr.mxu0 0.0
      %5205 = vmatpush1.msra.mxu0 %v5085
      %5206 = vmatprep.subr.mxu0 0.0
      %5207 = vmatpush1.msra.mxu0 %v5086
      %5208 = vmatprep.subr.mxu0 0.0
      %5209 = vmatpush1.msra.mxu0 %v5087
      %5210 = vmatprep.subr.mxu0 0.0
      %5211 = vmatpush1.msra.mxu0 %v5088
      %5212 = vmatprep.subr.mxu0 0.0
      %5213 = vmatpush1.msra.mxu0 %v5089
      %5214 = vmatprep.subr.mxu0 0.0
      %5215 = vmatpush1.msra.mxu0 %v5090
      %5216 = vmatprep.subr.mxu0 0.0
      %5217 = vmatpush1.msra.mxu0 %v5091
      %5218 = vmatprep.subr.mxu0 0.0
      %5219 = vmatpush1.msra.mxu0 %v5092
      %5220 = vmatprep.subr.mxu0 0.0
      %5221 = vmatpush1.msra.mxu0 %v5093
      %5222 = vmatprep.subr.mxu0 0.0
      %5223 = vmatpush1.msra.mxu0 %v5094
      %5224 = vmatprep.subr.mxu0 0.0
      %5225 = vmatpush1.msra.mxu0 %v5095
      %5226 = vmatprep.subr.mxu0 0.0
      %5227 = vmatpush1.msra.mxu0 %v5096
      %5228 = vmatprep.subr.mxu0 0.0
      %5229 = vmatpush1.msra.mxu0 %v5097
      %5230 = vmatprep.subr.mxu0 0.0
      %5231 = vmatpush1.msra.mxu0 %v5098
      %5232 = vmatprep.subr.mxu0 0.0
      %5233 = vmatpush1.msra.mxu0 %v5099
      %5234 = vmatprep.subr.mxu0 0.0
      %5235 = vmatpush1.msra.mxu0 %v5100
      %5236 = vmatprep.mubr.f32.mxu0 %v5030
      %5237 = vmatmul.mubr.f32.gmra.mrb[0].mxu0 %v5029
      %v5238 = vpop.f32.mrb[0].mxu0
      %v5239 = vadd.f32 %v5146, %v5238
      %v5240 = vpop.f32.mrb[0].mxu0
      %5241 = vmatprep.mubr.f32.mxu0 %v5035
      %5242 = vmatmul.mubr.f32.gmra.mrb[0].mxu0 %v5034
      %v5243 = vpop.f32.mrb[0].mxu0
      %v5244 = vadd.f32 %v5146, %v5243
      %v5245 = vpop.f32.mrb[0].mxu0
      %5246 = vmatprep.mubr.f32.mxu0 %v5040
      %5247 = vmatmul.mubr.f32.gmra.mrb[0].mxu0 %v5039
      %v5248 = vpop.f32.mrb[0].mxu0
      %v5249 = vadd.f32 %v5146, %v5248
      %v5250 = vpop.f32.mrb[0].mxu0
      %5251 = vmatprep.mubr.f32.mxu0 %v5045
      %5252 = vmatmul.mubr.f32.gmra.mrb[0].mxu0 %v5044
      %v5253 = vpop.f32.mrb[0].mxu0
      %v5254 = vadd.f32 %v5146, %v5253
      %v5255 = vpop.f32.mrb[0].mxu0
      %5256 = vmatprep.mubr.f32.mxu0 %v5050
      %5257 = vmatmul.mubr.f32.gmra.mrb[0].mxu0 %v5049
      %v5258 = vpop.f32.mrb[0].mxu0
      %v5259 = vadd.f32 %v5146, %v5258
      %v5260 = vpop.f32.mrb[0].mxu0
      %5261 = vmatprep.mubr.f32.mxu0 %v5055
      %5262 = vmatmul.mubr.f32.gmra.mrb[0].mxu0 %v5054
      %v5263 = vpop.f32.mrb[0].mxu0
      %v5264 = vadd.f32 %v5146, %v5263
      %v5265 = vpop.f32.mrb[0].mxu0
      %5266 = vmatprep.mubr.f32.mxu0 %v5060
      %5267 = vmatmul.mubr.f32.gmra.mrb[0].mxu0 %v5059
      %v5268 = vpop.f32.mrb[0].mxu0
      %v5269 = vadd.f32 %v5146, %v5268
      %v5270 = vpop.f32.mrb[0].mxu0
      %5271 = vmatprep.mubr.f32.mxu0 %v5065
      %5272 = vmatmul.mubr.f32.gmra.mrb[0].mxu0 %v5064
      %v5273 = vpop.f32.mrb[0].mxu0
      %v5274 = vadd.f32 %v5146, %v5273
      %v5275 = vpop.f32.mrb[0].mxu0
      %5276 = vdwg.mxu0
      %5277 = vmatprep.subr.mxu0 0.0
      %5278 = vmatpush1.msra.mxu0 %v5101
      %5279 = vmatprep.subr.mxu0 0.0
      %5280 = vmatpush1.msra.mxu0 %v5102
      %5281 = vmatprep.subr.mxu0 0.0
      %5282 = vmatpush1.msra.mxu0 %v5103
      %5283 = vmatprep.subr.mxu0 0.0
      %5284 = vmatpush1.msra.mxu0 %v5104
      %5285 = vmatprep.subr.mxu0 0.0
      %5286 = vmatpush1.msra.mxu0 %v5105
      %5287 = vmatprep.subr.mxu0 0.0
      %5288 = vmatpush1.msra.mxu0 %v5106
      %5289 = vmatprep.subr.mxu0 0.0
      %5290 = vmatpush1.msra.mxu0 %v5107
      %5291 = vmatprep.subr.mxu0 0.0
      %5292 = vmatpush1.msra.mxu0 %v5108
      %5293 = vmatprep.subr.mxu0 0.0
      %5294 = vmatpush1.msra.mxu0 %v5109
      %5295 = vmatprep.subr.mxu0 0.0
      %5296 = vmatpush1.msra.mxu0 %v5110
      %5297 = vmatprep.subr.mxu0 0.0
      %5298 = vmatpush1.msra.mxu0 %v5111
      %5299 = vmatprep.subr.mxu0 0.0
      %5300 = vmatpush1.msra.mxu0 %v5112
      %5301 = vmatprep.subr.mxu0 0.0
      %5302 = vmatpush1.msra.mxu0 %v5113
      %5303 = vmatprep.subr.mxu0 0.0
      %5304 = vmatpush1.msra.mxu0 %v5114
      %5305 = vmatprep.subr.mxu0 0.0
      %5306 = vmatpush1.msra.mxu0 %v5115
      %5307 = vmatprep.subr.mxu0 0.0
      %5308 = vmatpush1.msra.mxu0 %v5116
      %5309 = vmatprep.subr.mxu0 0.0
      %5310 = vmatpush1.msra.mxu0 %v5117
      %5311 = vmatprep.subr.mxu0 0.0
      %5312 = vmatpush1.msra.mxu0 %v5118
      %5313 = vmatprep.subr.mxu0 0.0
      %5314 = vmatpush1.msra.mxu0 %v5119
      %5315 = vmatprep.subr.mxu0 0.0
      %5316 = vmatpush1.msra.mxu0 %v5120
      %5317 = vmatprep.subr.mxu0 0.0
      %5318 = vmatpush1.msra.mxu0 %v5121
      %5319 = vmatprep.subr.mxu0 0.0
      %5320 = vmatpush1.msra.mxu0 %v5122
      %5321 = vmatprep.subr.mxu0 0.0
      %5322 = vmatpush1.msra.mxu0 %v5123
      %5323 = vmatprep.subr.mxu0 0.0
      %5324 = vmatpush1.msra.mxu0 %v5124
      %5325 = vmatprep.subr.mxu0 0.0
      %5326 = vmatpush1.msra.mxu0 %v5125
      %5327 = vmatprep.subr.mxu0 0.0
      %5328 = vmatpush1.msra.mxu0 %v5126
      %5329 = vmatprep.subr.mxu0 0.0
      %5330 = vmatpush1.msra.mxu0 %v5127
      %5331 = vmatprep.subr.mxu0 0.0
      %5332 = vmatpush1.msra.mxu0 %v5128
      %5333 = vmatprep.subr.mxu0 0.0
      %5334 = vmatpush1.msra.mxu0 %v5129
      %5335 = vmatprep.subr.mxu0 0.0
      %5336 = vmatpush1.msra.mxu0 %v5130
      %5337 = vmatprep.subr.mxu0 0.0
      %5338 = vmatpush1.msra.mxu0 %v5131
      %5339 = vmatprep.subr.mxu0 0.0
      %5340 = vmatpush1.msra.mxu0 %v5132
      %5341 = vmatprep.mubr.f32.mxu0 %v5032
      %5342 = vmatmul.mubr.f32.gmra.mrb[0].mxu0 %v5031
      %v5343 = vpop.f32.mrb[0].mxu0
      %v5344 = vadd.f32 %v5239, %v5343
      %v5345 = vpop.f32.mrb[0].mxu0
      %5346 = vmatprep.mubr.f32.mxu0 %v5037
      %5347 = vmatmul.mubr.f32.gmra.mrb[0].mxu0 %v5036
      %v5348 = vpop.f32.mrb[0].mxu0
      %v5349 = vadd.f32 %v5244, %v5348
      %v5350 = vpop.f32.mrb[0].mxu0
      %5351 = vmatprep.mubr.f32.mxu0 %v5042
      %5352 = vmatmul.mubr.f32.gmra.mrb[0].mxu0 %v5041
      %v5353 = vpop.f32.mrb[0].mxu0
      %v5354 = vadd.f32 %v5249, %v5353
      %v5355 = vpop.f32.mrb[0].mxu0
      %5356 = vmatprep.mubr.f32.mxu0 %v5047
      %5357 = vmatmul.mubr.f32.gmra.mrb[0].mxu0 %v5046
      %v5358 = vpop.f32.mrb[0].mxu0
      %v5359 = vadd.f32 %v5254, %v5358
      %v5360 = vpop.f32.mrb[0].mxu0
      %5361 = vmatprep.mubr.f32.mxu0 %v5052
      %5362 = vmatmul.mubr.f32.gmra.mrb[0].mxu0 %v5051
      %v5363 = vpop.f32.mrb[0].mxu0
      %v5364 = vadd.f32 %v5259, %v5363
      %v5365 = vpop.f32.mrb[0].mxu0
      %5366 = vmatprep.mubr.f32.mxu0 %v5057
      %5367 = vmatmul.mubr.f32.gmra.mrb[0].mxu0 %v5056
      %v5368 = vpop.f32.mrb[0].mxu0
      %v5369 = vadd.f32 %v5264, %v5368
      %v5370 = vpop.f32.mrb[0].mxu0
      %5371 = vmatprep.mubr.f32.mxu0 %v5062
      %5372 = vmatmul.mubr.f32.gmra.mrb[0].mxu0 %v5061
      %v5373 = vpop.f32.mrb[0].mxu0
      %v5374 = vadd.f32 %v5269, %v5373
      %v5375 = vpop.f32.mrb[0].mxu0
      %5376 = vmatprep.mubr.f32.mxu0 %v5067
      %5377 = vmatmul.mubr.f32.gmra.mrb[0].mxu0 %v5066
      %v5378 = vpop.f32.mrb[0].mxu0
      %v5379 = vadd.f32 %v5274, %v5378
      %v5380 = vpop.f32.mrb[0].mxu0
      %5381 = vdwg.mxu0
      %5382 = vmatprep.subr.mxu0 0.0
      %5383 = vmatpush1.msra.mxu0 %v5133
      %5384 = vmatprep.subr.mxu0 0.0
      %5385 = vmatpush1.msra.mxu0 %v5134
      %5386 = vmatprep.subr.mxu0 0.0
      %5387 = vmatpush1.msra.mxu0 %v5135
      %5388 = vmatprep.subr.mxu0 0.0
      %5389 = vmatpush1.msra.mxu0 %v5136
      %5390 = vmatprep.subr.mxu0 0.0
      %5391 = vmatpush1.msra.mxu0 %v5137
      %5392 = vmatprep.subr.mxu0 0.0
      %5393 = vmatpush1.msra.mxu0 %v5138
      %5394 = vmatprep.subr.mxu0 0.0
      %5395 = vmatpush1.msra.mxu0 %v5139
      %5396 = vmatprep.subr.mxu0 0.0
      %5397 = vmatpush1.msra.mxu0 %v5140
      %5398 = vmatprep.subr.mxu0 0.0
      %5399 = vmatpush1.msra.mxu0 0.0
      %5400 = vmatprep.subr.mxu0 0.0
      %5401 = vmatpush1.msra.mxu0 0.0
      %5402 = vmatprep.subr.mxu0 0.0
      %5403 = vmatpush1.msra.mxu0 0.0
      %5404 = vmatprep.subr.mxu0 0.0
      %5405 = vmatpush1.msra.mxu0 0.0
      %5406 = vmatprep.subr.mxu0 0.0
      %5407 = vmatpush1.msra.mxu0 0.0
      %5408 = vmatprep.subr.mxu0 0.0
      %5409 = vmatpush1.msra.mxu0 0.0
      %5410 = vmatprep.subr.mxu0 0.0
      %5411 = vmatpush1.msra.mxu0 0.0
      %5412 = vmatprep.subr.mxu0 0.0
      %5413 = vmatpush1.msra.mxu0 0.0
      %5414 = vmatprep.subr.mxu0 0.0
      %5415 = vmatpush1.msra.mxu0 0.0
      %5416 = vmatprep.subr.mxu0 0.0
      %5417 = vmatpush1.msra.mxu0 0.0
      %5418 = vmatprep.subr.mxu0 0.0
      %5419 = vmatpush1.msra.mxu0 0.0
      %5420 = vmatprep.subr.mxu0 0.0
      %5421 = vmatpush1.msra.mxu0 0.0
      %5422 = vmatprep.subr.mxu0 0.0
      %5423 = vmatpush1.msra.mxu0 0.0
      %5424 = vmatprep.subr.mxu0 0.0
      %5425 = vmatpush1.msra.mxu0 0.0
      %5426 = vmatprep.subr.mxu0 0.0
      %5427 = vmatpush1.msra.mxu0 0.0
      %5428 = vmatprep.subr.mxu0 0.0
      %5429 = vmatpush1.msra.mxu0 0.0
      %5430 = vmatprep.subr.mxu0 0.0
      %5431 = vmatpush1.msra.mxu0 0.0
      %5432 = vmatprep.subr.mxu0 0.0
      %5433 = vmatpush1.msra.mxu0 0.0
      %5434 = vmatprep.subr.mxu0 0.0
      %5435 = vmatpush1.msra.mxu0 0.0
      %5436 = vmatprep.subr.mxu0 0.0
      %5437 = vmatpush1.msra.mxu0 0.0
      %5438 = vmatprep.subr.mxu0 0.0
      %5439 = vmatpush1.msra.mxu0 0.0
      %5440 = vmatprep.subr.mxu0 0.0
      %5441 = vmatpush1.msra.mxu0 0.0
      %5442 = vmatprep.subr.mxu0 0.0
      %5443 = vmatpush1.msra.mxu0 0.0
      %5444 = vmatprep.subr.mxu0 0.0
      %5445 = vmatpush1.msra.mxu0 0.0
      %5446 = vmatprep.mubr.f32.mxu0 0.0
      %5447 = vmatmul.mubr.f32.gmra.mrb[0].mxu0 %v5149
      %v5448 = vpop.f32.mrb[0].mxu0
      %v5449 = vadd.f32 %v5344, %v5448
      %v5450 = vpop.f32.mrb[0].mxu0
      %5451 = vmatprep.mubr.f32.mxu0 0.0
      %5452 = vmatmul.mubr.f32.gmra.mrb[0].mxu0 %v5152
      %v5453 = vpop.f32.mrb[0].mxu0
      %v5454 = vadd.f32 %v5349, %v5453
      %v5455 = vpop.f32.mrb[0].mxu0
      %5456 = vmatprep.mubr.f32.mxu0 0.0
      %5457 = vmatmul.mubr.f32.gmra.mrb[0].mxu0 %v5155
      %v5458 = vpop.f32.mrb[0].mxu0
      %v5459 = vadd.f32 %v5354, %v5458
      %v5460 = vpop.f32.mrb[0].mxu0
      %5461 = vmatprep.mubr.f32.mxu0 0.0
      %5462 = vmatmul.mubr.f32.gmra.mrb[0].mxu0 %v5158
      %v5463 = vpop.f32.mrb[0].mxu0
      %v5464 = vadd.f32 %v5359, %v5463
      %v5465 = vpop.f32.mrb[0].mxu0
      %5466 = vmatprep.mubr.f32.mxu0 0.0
      %5467 = vmatmul.mubr.f32.gmra.mrb[0].mxu0 %v5161
      %v5468 = vpop.f32.mrb[0].mxu0
      %v5469 = vadd.f32 %v5364, %v5468
      %v5470 = vpop.f32.mrb[0].mxu0
      %5471 = vmatprep.mubr.f32.mxu0 0.0
      %5472 = vmatmul.mubr.f32.gmra.mrb[0].mxu0 %v5164
      %v5473 = vpop.f32.mrb[0].mxu0
      %v5474 = vadd.f32 %v5369, %v5473
      %v5475 = vpop.f32.mrb[0].mxu0
      %5476 = vmatprep.mubr.f32.mxu0 0.0
      %5477 = vmatmul.mubr.f32.gmra.mrb[0].mxu0 %v5167
      %v5478 = vpop.f32.mrb[0].mxu0
      %v5479 = vadd.f32 %v5374, %v5478
      %v5480 = vpop.f32.mrb[0].mxu0
      %5481 = vmatprep.mubr.f32.mxu0 0.0
      %5482 = vmatmul.mubr.f32.gmra.mrb[0].mxu0 %v5170
      %v5483 = vpop.f32.mrb[0].mxu0
      %v5484 = vadd.f32 %v5379, %v5483
      %v5485 = vpop.f32.mrb[0].mxu0
      %5486 = vdwg.mxu0
      %v5487 = vmax.f32 %v5449, 0.0
      %v5488 = vmax.f32 %v5454, 0.0
      %v5489 = vmax.f32 %v5459, 0.0
      %v5490 = vmax.f32 %v5464, 0.0
      %v5491 = vmax.f32 %v5469, 0.0
      %v5492 = vmax.f32 %v5474, 0.0
      %v5493 = vmax.f32 %v5479, 0.0
      %v5494 = vmax.f32 %v5484, 0.0
      %s5495 = scalar_lea.vmem [#allocation4], 16
      %5496 = vst.msk [vmem:[%s5495 + $0x1] sm:$0xff] %vm333, %v5487
      %5497 = vst.msk [vmem:[%s5495 + $0x11] sm:$0xff] %vm333, %v5488
      %5498 = vst.msk [vmem:[%s5495 + $0x21] sm:$0xff] %vm333, %v5489
      %5499 = vst.msk [vmem:[%s5495 + $0x31] sm:$0xff] %vm333, %v5490
      %5500 = vst.msk [vmem:[%s5495 + $0x41] sm:$0xff] %vm333, %v5491
      %5501 = vst.msk [vmem:[%s5495 + $0x51] sm:$0xff] %vm333, %v5492
      %5502 = vst.msk [vmem:[%s5495 + $0x61] sm:$0xff] %vm333, %v5493
      %5503 = vst.msk [vmem:[%s5495 + $0x71] sm:$0xff] %vm333, %v5494
      %v5504 = vld [vmem:[#allocation4] sm:$0xff]
      %v5505 = vld [vmem:[#allocation4 + $0x10] sm:$0xff]
      %v5506 = vld [vmem:[#allocation4 + $0x20] sm:$0xff]
      %v5507 = vld [vmem:[#allocation4 + $0x30] sm:$0xff]
      %v5508 = vld [vmem:[#allocation4 + $0x40] sm:$0xff]
      %v5509 = vld [vmem:[#allocation4 + $0x50] sm:$0xff]
      %v5510 = vld [vmem:[#allocation4 + $0x60] sm:$0xff]
      %v5511 = vld [vmem:[#allocation4 + $0x70] sm:$0xff]
      %5512 = vst.msk [vmem:[#allocation7] sm:$0xff] %vm333, %v5504
      %5513 = vst.msk [vmem:[#allocation7 + $0x28] sm:$0xff] %vm333, %v5505
      %5514 = vst.msk [vmem:[#allocation7 + $0x50] sm:$0xff] %vm333, %v5506
      %5515 = vst.msk [vmem:[#allocation7 + $0x78] sm:$0xff] %vm333, %v5507
      %5516 = vst.msk [vmem:[#allocation7 + $0xa0] sm:$0xff] %vm333, %v5508
      %5517 = vst.msk [vmem:[#allocation7 + $0xc8] sm:$0xff] %vm333, %v5509
      %5518 = vst.msk [vmem:[#allocation7 + $0xf0] sm:$0xff] %vm333, %v5510
      %5519 = vst.msk [vmem:[#allocation7 + $0x118] sm:$0xff] %vm333, %v5511
      %v5520 = vld [vmem:[#allocation4 + $0x1] sm:$0xff]
      %v5521 = vld [vmem:[#allocation4 + $0x11] sm:$0xff]
      %v5522 = vld [vmem:[#allocation4 + $0x21] sm:$0xff]
      %v5523 = vld [vmem:[#allocation4 + $0x31] sm:$0xff]
      %v5524 = vld [vmem:[#allocation4 + $0x41] sm:$0xff]
      %v5525 = vld [vmem:[#allocation4 + $0x51] sm:$0xff]
      %v5526 = vld [vmem:[#allocation4 + $0x61] sm:$0xff]
      %v5527 = vld [vmem:[#allocation4 + $0x71] sm:$0xff]
      %5536 = vrot.lane.b32.xlu0 %v5520, 64
      %v5537 = vpop.permute.xlu0 %5536
      %5538 = vrot.lane.b32.xlu0 %v5521, 64
      %v5539 = vpop.permute.xlu0 %5538
      %5540 = vrot.lane.b32.xlu0 %v5522, 64
      %v5541 = vpop.permute.xlu0 %5540
      %5542 = vrot.lane.b32.xlu0 %v5523, 64
      %v5543 = vpop.permute.xlu0 %5542
      %5544 = vrot.lane.b32.xlu0 %v5524, 64
      %v5545 = vpop.permute.xlu0 %5544
      %5546 = vrot.lane.b32.xlu0 %v5525, 64
      %v5547 = vpop.permute.xlu0 %5546
      %5548 = vrot.lane.b32.xlu0 %v5526, 64
      %v5549 = vpop.permute.xlu0 %5548
      %5550 = vrot.lane.b32.xlu0 %v5527, 64
      %v5551 = vpop.permute.xlu0 %5550
      %5560 = vst.msk [vmem:[#allocation7] sm:$0xff] %vm2699, %v5537
      %5561 = vst.msk [vmem:[#allocation7 + $0x28] sm:$0xff] %vm2699, %v5539
      %5562 = vst.msk [vmem:[#allocation7 + $0x50] sm:$0xff] %vm2699, %v5541
      %5563 = vst.msk [vmem:[#allocation7 + $0x78] sm:$0xff] %vm2699, %v5543
      %5564 = vst.msk [vmem:[#allocation7 + $0xa0] sm:$0xff] %vm2699, %v5545
      %5565 = vst.msk [vmem:[#allocation7 + $0xc8] sm:$0xff] %vm2699, %v5547
      %5566 = vst.msk [vmem:[#allocation7 + $0xf0] sm:$0xff] %vm2699, %v5549
      %5567 = vst.msk [vmem:[#allocation7 + $0x118] sm:$0xff] %vm2699, %v5551
      %v5568 = vld [vmem:[#allocation4 + $0x2] sm:$0xff]
      %v5569 = vld [vmem:[#allocation4 + $0x12] sm:$0xff]
      %v5570 = vld [vmem:[#allocation4 + $0x22] sm:$0xff]
      %v5571 = vld [vmem:[#allocation4 + $0x32] sm:$0xff]
      %v5572 = vld [vmem:[#allocation4 + $0x42] sm:$0xff]
      %v5573 = vld [vmem:[#allocation4 + $0x52] sm:$0xff]
      %v5574 = vld [vmem:[#allocation4 + $0x62] sm:$0xff]
      %v5575 = vld [vmem:[#allocation4 + $0x72] sm:$0xff]
      %5576 = vst.msk [vmem:[#allocation7 + $0x8] sm:$0xff] %vm333, %v5568
      %5577 = vst.msk [vmem:[#allocation7 + $0x30] sm:$0xff] %vm333, %v5569
      %5578 = vst.msk [vmem:[#allocation7 + $0x58] sm:$0xff] %vm333, %v5570
      %5579 = vst.msk [vmem:[#allocation7 + $0x80] sm:$0xff] %vm333, %v5571
      %5580 = vst.msk [vmem:[#allocation7 + $0xa8] sm:$0xff] %vm333, %v5572
      %5581 = vst.msk [vmem:[#allocation7 + $0xd0] sm:$0xff] %vm333, %v5573
      %5582 = vst.msk [vmem:[#allocation7 + $0xf8] sm:$0xff] %vm333, %v5574
      %5583 = vst.msk [vmem:[#allocation7 + $0x120] sm:$0xff] %vm333, %v5575
      %v5584 = vld [vmem:[%s5495] sm:$0xff]
      %v5585 = vld [vmem:[%s5495 + $0x10] sm:$0xff]
      %v5586 = vld [vmem:[%s5495 + $0x20] sm:$0xff]
      %v5587 = vld [vmem:[%s5495 + $0x30] sm:$0xff]
      %v5588 = vld [vmem:[%s5495 + $0x40] sm:$0xff]
      %v5589 = vld [vmem:[%s5495 + $0x50] sm:$0xff]
      %v5590 = vld [vmem:[%s5495 + $0x60] sm:$0xff]
      %v5591 = vld [vmem:[%s5495 + $0x70] sm:$0xff]
      %5600 = vrot.lane.b32.xlu0 %v5584, 64
      %v5601 = vpop.permute.xlu0 %5600
      %5602 = vrot.lane.b32.xlu0 %v5585, 64
      %v5603 = vpop.permute.xlu0 %5602
      %5604 = vrot.lane.b32.xlu0 %v5586, 64
      %v5605 = vpop.permute.xlu0 %5604
      %5606 = vrot.lane.b32.xlu0 %v5587, 64
      %v5607 = vpop.permute.xlu0 %5606
      %5608 = vrot.lane.b32.xlu0 %v5588, 64
      %v5609 = vpop.permute.xlu0 %5608
      %5610 = vrot.lane.b32.xlu0 %v5589, 64
      %v5611 = vpop.permute.xlu0 %5610
      %5612 = vrot.lane.b32.xlu0 %v5590, 64
      %v5613 = vpop.permute.xlu0 %5612
      %5614 = vrot.lane.b32.xlu0 %v5591, 64
      %v5615 = vpop.permute.xlu0 %5614
      %5624 = vst.msk [vmem:[#allocation7 + $0x8] sm:$0xff] %vm2699, %v5601
      %5625 = vst.msk [vmem:[#allocation7 + $0x30] sm:$0xff] %vm2699, %v5603
      %5626 = vst.msk [vmem:[#allocation7 + $0x58] sm:$0xff] %vm2699, %v5605
      %5627 = vst.msk [vmem:[#allocation7 + $0x80] sm:$0xff] %vm2699, %v5607
      %5628 = vst.msk [vmem:[#allocation7 + $0xa8] sm:$0xff] %vm2699, %v5609
      %5629 = vst.msk [vmem:[#allocation7 + $0xd0] sm:$0xff] %vm2699, %v5611
      %5630 = vst.msk [vmem:[#allocation7 + $0xf8] sm:$0xff] %vm2699, %v5613
      %5631 = vst.msk [vmem:[#allocation7 + $0x120] sm:$0xff] %vm2699, %v5615
      %v5632 = vld [vmem:[%s5495 + $0x1] sm:$0xff]
      %v5633 = vld [vmem:[%s5495 + $0x11] sm:$0xff]
      %v5634 = vld [vmem:[%s5495 + $0x21] sm:$0xff]
      %v5635 = vld [vmem:[%s5495 + $0x31] sm:$0xff]
      %v5636 = vld [vmem:[%s5495 + $0x41] sm:$0xff]
      %v5637 = vld [vmem:[%s5495 + $0x51] sm:$0xff]
      %v5638 = vld [vmem:[%s5495 + $0x61] sm:$0xff]
      %v5639 = vld [vmem:[%s5495 + $0x71] sm:$0xff]
      %5640 = vst.msk [vmem:[#allocation7 + $0x10] sm:$0xff] %vm333, %v5632
      %5641 = vst.msk [vmem:[#allocation7 + $0x38] sm:$0xff] %vm333, %v5633
      %5642 = vst.msk [vmem:[#allocation7 + $0x60] sm:$0xff] %vm333, %v5634
      %5643 = vst.msk [vmem:[#allocation7 + $0x88] sm:$0xff] %vm333, %v5635
      %5644 = vst.msk [vmem:[#allocation7 + $0xb0] sm:$0xff] %vm333, %v5636
      %5645 = vst.msk [vmem:[#allocation7 + $0xd8] sm:$0xff] %vm333, %v5637
      %5646 = vst.msk [vmem:[#allocation7 + $0x100] sm:$0xff] %vm333, %v5638
      %5647 = vst.msk [vmem:[#allocation7 + $0x128] sm:$0xff] %vm333, %v5639
      %v5648 = vld [vmem:[%s5495 + $0x2] sm:$0xff]
      %v5649 = vld [vmem:[%s5495 + $0x12] sm:$0xff]
      %v5650 = vld [vmem:[%s5495 + $0x22] sm:$0xff]
      %v5651 = vld [vmem:[%s5495 + $0x32] sm:$0xff]
      %v5652 = vld [vmem:[%s5495 + $0x42] sm:$0xff]
      %v5653 = vld [vmem:[%s5495 + $0x52] sm:$0xff]
      %v5654 = vld [vmem:[%s5495 + $0x62] sm:$0xff]
      %v5655 = vld [vmem:[%s5495 + $0x72] sm:$0xff]
      %5664 = vrot.lane.b32.xlu0 %v5648, 64
      %v5665 = vpop.permute.xlu0 %5664
      %5666 = vrot.lane.b32.xlu0 %v5649, 64
      %v5667 = vpop.permute.xlu0 %5666
      %5668 = vrot.lane.b32.xlu0 %v5650, 64
      %v5669 = vpop.permute.xlu0 %5668
      %5670 = vrot.lane.b32.xlu0 %v5651, 64
      %v5671 = vpop.permute.xlu0 %5670
      %5672 = vrot.lane.b32.xlu0 %v5652, 64
      %v5673 = vpop.permute.xlu0 %5672
      %5674 = vrot.lane.b32.xlu0 %v5653, 64
      %v5675 = vpop.permute.xlu0 %5674
      %5676 = vrot.lane.b32.xlu0 %v5654, 64
      %v5677 = vpop.permute.xlu0 %5676
      %5678 = vrot.lane.b32.xlu0 %v5655, 64
      %v5679 = vpop.permute.xlu0 %5678
      %5688 = vst.msk [vmem:[#allocation7 + $0x10] sm:$0xff] %vm2699, %v5665
      %5689 = vst.msk [vmem:[#allocation7 + $0x38] sm:$0xff] %vm2699, %v5667
      %5690 = vst.msk [vmem:[#allocation7 + $0x60] sm:$0xff] %vm2699, %v5669
      %5691 = vst.msk [vmem:[#allocation7 + $0x88] sm:$0xff] %vm2699, %v5671
      %5692 = vst.msk [vmem:[#allocation7 + $0xb0] sm:$0xff] %vm2699, %v5673
      %5693 = vst.msk [vmem:[#allocation7 + $0xd8] sm:$0xff] %vm2699, %v5675
      %5694 = vst.msk [vmem:[#allocation7 + $0x100] sm:$0xff] %vm2699, %v5677
      %5695 = vst.msk [vmem:[#allocation7 + $0x128] sm:$0xff] %vm2699, %v5679
      %s5696 = scalar_lea.vmem [#allocation4], 32
      %v5697 = vld [vmem:[%s5696] sm:$0xff]
      %v5698 = vld [vmem:[%s5696 + $0x10] sm:$0xff]
      %v5699 = vld [vmem:[%s5696 + $0x20] sm:$0xff]
      %v5700 = vld [vmem:[%s5696 + $0x30] sm:$0xff]
      %v5701 = vld [vmem:[%s5696 + $0x40] sm:$0xff]
      %v5702 = vld [vmem:[%s5696 + $0x50] sm:$0xff]
      %v5703 = vld [vmem:[%s5696 + $0x60] sm:$0xff]
      %v5704 = vld [vmem:[%s5696 + $0x70] sm:$0xff]
      %5705 = vst.msk [vmem:[#allocation7 + $0x18] sm:$0xff] %vm333, %v5697
      %5706 = vst.msk [vmem:[#allocation7 + $0x40] sm:$0xff] %vm333, %v5698
      %5707 = vst.msk [vmem:[#allocation7 + $0x68] sm:$0xff] %vm333, %v5699
      %5708 = vst.msk [vmem:[#allocation7 + $0x90] sm:$0xff] %vm333, %v5700
      %5709 = vst.msk [vmem:[#allocation7 + $0xb8] sm:$0xff] %vm333, %v5701
      %5710 = vst.msk [vmem:[#allocation7 + $0xe0] sm:$0xff] %vm333, %v5702
      %5711 = vst.msk [vmem:[#allocation7 + $0x108] sm:$0xff] %vm333, %v5703
      %5712 = vst.msk [vmem:[#allocation7 + $0x130] sm:$0xff] %vm333, %v5704
      %v5713 = vld [vmem:[%s5696 + $0x1] sm:$0xff]
      %v5714 = vld [vmem:[%s5696 + $0x11] sm:$0xff]
      %v5715 = vld [vmem:[%s5696 + $0x21] sm:$0xff]
      %v5716 = vld [vmem:[%s5696 + $0x31] sm:$0xff]
      %v5717 = vld [vmem:[%s5696 + $0x41] sm:$0xff]
      %v5718 = vld [vmem:[%s5696 + $0x51] sm:$0xff]
      %v5719 = vld [vmem:[%s5696 + $0x61] sm:$0xff]
      %v5720 = vld [vmem:[%s5696 + $0x71] sm:$0xff]
      %5729 = vrot.lane.b32.xlu0 %v5713, 64
      %v5730 = vpop.permute.xlu0 %5729
      %5731 = vrot.lane.b32.xlu0 %v5714, 64
      %v5732 = vpop.permute.xlu0 %5731
      %5733 = vrot.lane.b32.xlu0 %v5715, 64
      %v5734 = vpop.permute.xlu0 %5733
      %5735 = vrot.lane.b32.xlu0 %v5716, 64
      %v5736 = vpop.permute.xlu0 %5735
      %5737 = vrot.lane.b32.xlu0 %v5717, 64
      %v5738 = vpop.permute.xlu0 %5737
      %5739 = vrot.lane.b32.xlu0 %v5718, 64
      %v5740 = vpop.permute.xlu0 %5739
      %5741 = vrot.lane.b32.xlu0 %v5719, 64
      %v5742 = vpop.permute.xlu0 %5741
      %5743 = vrot.lane.b32.xlu0 %v5720, 64
      %v5744 = vpop.permute.xlu0 %5743
      %5753 = vst.msk [vmem:[#allocation7 + $0x18] sm:$0xff] %vm2699, %v5730
      %5754 = vst.msk [vmem:[#allocation7 + $0x40] sm:$0xff] %vm2699, %v5732
      %5755 = vst.msk [vmem:[#allocation7 + $0x68] sm:$0xff] %vm2699, %v5734
      %5756 = vst.msk [vmem:[#allocation7 + $0x90] sm:$0xff] %vm2699, %v5736
      %5757 = vst.msk [vmem:[#allocation7 + $0xb8] sm:$0xff] %vm2699, %v5738
      %5758 = vst.msk [vmem:[#allocation7 + $0xe0] sm:$0xff] %vm2699, %v5740
      %5759 = vst.msk [vmem:[#allocation7 + $0x108] sm:$0xff] %vm2699, %v5742
      %5760 = vst.msk [vmem:[#allocation7 + $0x130] sm:$0xff] %vm2699, %v5744
      %v5761 = vld [vmem:[%s5696 + $0x2] sm:$0xff]
      %v5762 = vld [vmem:[%s5696 + $0x12] sm:$0xff]
      %v5763 = vld [vmem:[%s5696 + $0x22] sm:$0xff]
      %v5764 = vld [vmem:[%s5696 + $0x32] sm:$0xff]
      %v5765 = vld [vmem:[%s5696 + $0x42] sm:$0xff]
      %v5766 = vld [vmem:[%s5696 + $0x52] sm:$0xff]
      %v5767 = vld [vmem:[%s5696 + $0x62] sm:$0xff]
      %v5768 = vld [vmem:[%s5696 + $0x72] sm:$0xff]
      %5769 = vst.msk [vmem:[#allocation7 + $0x20] sm:$0xff] %vm333, %v5761
      %5770 = vst.msk [vmem:[#allocation7 + $0x48] sm:$0xff] %vm333, %v5762
      %5771 = vst.msk [vmem:[#allocation7 + $0x70] sm:$0xff] %vm333, %v5763
      %5772 = vst.msk [vmem:[#allocation7 + $0x98] sm:$0xff] %vm333, %v5764
      %5773 = vst.msk [vmem:[#allocation7 + $0xc0] sm:$0xff] %vm333, %v5765
      %5774 = vst.msk [vmem:[#allocation7 + $0xe8] sm:$0xff] %vm333, %v5766
      %5775 = vst.msk [vmem:[#allocation7 + $0x110] sm:$0xff] %vm333, %v5767
      %5776 = vst.msk [vmem:[#allocation7 + $0x138] sm:$0xff] %vm333, %v5768
      %v5777 = vld [vmem:[#allocation7] sm:$0xff]
      %v5778 = vld [vmem:[#allocation7 + $0x8] sm:$0xff]
      %v5779 = vld [vmem:[#allocation7 + $0x10] sm:$0xff]
      %v5780 = vld [vmem:[#allocation7 + $0x18] sm:$0xff]
      %v5781 = vld [vmem:[#allocation7 + $0x20] sm:$0xff]
      %v5782 = vld [vmem:[#allocation7 + $0x28] sm:$0xff]
      %v5783 = vld [vmem:[#allocation7 + $0x30] sm:$0xff]
      %v5784 = vld [vmem:[#allocation7 + $0x38] sm:$0xff]
      %v5785 = vld [vmem:[#allocation7 + $0x40] sm:$0xff]
      %v5786 = vld [vmem:[#allocation7 + $0x48] sm:$0xff]
      %v5787 = vld [vmem:[#allocation7 + $0x50] sm:$0xff]
      %v5788 = vld [vmem:[#allocation7 + $0x58] sm:$0xff]
      %v5789 = vld [vmem:[#allocation7 + $0x60] sm:$0xff]
      %v5790 = vld [vmem:[#allocation7 + $0x68] sm:$0xff]
      %v5791 = vld [vmem:[#allocation7 + $0x70] sm:$0xff]
      %v5792 = vld [vmem:[#allocation7 + $0x78] sm:$0xff]
      %v5793 = vld [vmem:[#allocation7 + $0x80] sm:$0xff]
      %v5794 = vld [vmem:[#allocation7 + $0x88] sm:$0xff]
      %v5795 = vld [vmem:[#allocation7 + $0x90] sm:$0xff]
      %v5796 = vld [vmem:[#allocation7 + $0x98] sm:$0xff]
      %v5797 = vld [vmem:[#allocation7 + $0xa0] sm:$0xff]
      %v5798 = vld [vmem:[#allocation7 + $0xa8] sm:$0xff]
      %v5799 = vld [vmem:[#allocation7 + $0xb0] sm:$0xff]
      %v5800 = vld [vmem:[#allocation7 + $0xb8] sm:$0xff]
      %v5801 = vld [vmem:[#allocation7 + $0xc0] sm:$0xff]
      %v5802 = vld [vmem:[#allocation7 + $0xc8] sm:$0xff]
      %v5803 = vld [vmem:[#allocation7 + $0xd0] sm:$0xff]
      %v5804 = vld [vmem:[#allocation7 + $0xd8] sm:$0xff]
      %v5805 = vld [vmem:[#allocation7 + $0xe0] sm:$0xff]
      %v5806 = vld [vmem:[#allocation7 + $0xe8] sm:$0xff]
      %v5807 = vld [vmem:[#allocation7 + $0xf0] sm:$0xff]
      %v5808 = vld [vmem:[#allocation7 + $0xf8] sm:$0xff]
      %v5809 = vld [vmem:[#allocation7 + $0x100] sm:$0xff]
      %v5810 = vld [vmem:[#allocation7 + $0x108] sm:$0xff]
      %v5811 = vld [vmem:[#allocation7 + $0x110] sm:$0xff]
      %v5812 = vld [vmem:[#allocation7 + $0x118] sm:$0xff]
      %v5813 = vld [vmem:[#allocation7 + $0x120] sm:$0xff]
      %v5814 = vld [vmem:[#allocation7 + $0x128] sm:$0xff]
      %v5815 = vld [vmem:[#allocation7 + $0x130] sm:$0xff]
      %v5816 = vld [vmem:[#allocation7 + $0x138] sm:$0xff]
      %v5817 = vld [vmem:[%s7] sm:$0xff]
      %v5818 = vld [vmem:[%s7 + $0x8] sm:$0xff]
      %v5819 = vld [vmem:[%s7 + $0x10] sm:$0xff]
      %v5820 = vld [vmem:[%s7 + $0x18] sm:$0xff]
      %v5821 = vld [vmem:[%s7 + $0x20] sm:$0xff]
      %v5822 = vld [vmem:[%s7 + $0x28] sm:$0xff]
      %v5823 = vld [vmem:[%s7 + $0x30] sm:$0xff]
      %v5824 = vld [vmem:[%s7 + $0x38] sm:$0xff]
      %v5825 = vld [vmem:[%s7 + $0x40] sm:$0xff]
      %v5826 = vld [vmem:[%s7 + $0x48] sm:$0xff]
      %v5827 = vld [vmem:[%s7 + $0x50] sm:$0xff]
      %v5828 = vld [vmem:[%s7 + $0x58] sm:$0xff]
      %v5829 = vld [vmem:[%s7 + $0x60] sm:$0xff]
      %v5830 = vld [vmem:[%s7 + $0x68] sm:$0xff]
      %v5831 = vld [vmem:[%s7 + $0x70] sm:$0xff]
      %v5832 = vld [vmem:[%s7 + $0x78] sm:$0xff]
      %v5833 = vld [vmem:[%s7 + $0x80] sm:$0xff]
      %v5834 = vld [vmem:[%s7 + $0x88] sm:$0xff]
      %v5835 = vld [vmem:[%s7 + $0x90] sm:$0xff]
      %v5836 = vld [vmem:[%s7 + $0x98] sm:$0xff]
      %v5837 = vld [vmem:[%s7 + $0xa0] sm:$0xff]
      %v5838 = vld [vmem:[%s7 + $0xa8] sm:$0xff]
      %v5839 = vld [vmem:[%s7 + $0xb0] sm:$0xff]
      %v5840 = vld [vmem:[%s7 + $0xb8] sm:$0xff]
      %v5841 = vld [vmem:[%s7 + $0xc0] sm:$0xff]
      %v5842 = vld [vmem:[%s7 + $0xc8] sm:$0xff]
      %v5843 = vld [vmem:[%s7 + $0xd0] sm:$0xff]
      %v5844 = vld [vmem:[%s7 + $0xd8] sm:$0xff]
      %v5845 = vld [vmem:[%s7 + $0xe0] sm:$0xff]
      %v5846 = vld [vmem:[%s7 + $0xe8] sm:$0xff]
      %v5847 = vld [vmem:[%s7 + $0xf0] sm:$0xff]
      %v5848 = vld [vmem:[%s7 + $0xf8] sm:$0xff]
      %v5849 = vld [vmem:[%s7 + $0x100] sm:$0xff]
      %v5850 = vld [vmem:[%s7 + $0x108] sm:$0xff]
      %v5851 = vld [vmem:[%s7 + $0x110] sm:$0xff]
      %v5852 = vld [vmem:[%s7 + $0x118] sm:$0xff]
      %v5853 = vld [vmem:[%s7 + $0x120] sm:$0xff]
      %v5854 = vld [vmem:[%s7 + $0x128] sm:$0xff]
      %v5855 = vld [vmem:[%s7 + $0x130] sm:$0xff]
      %v5856 = vld [vmem:[%s7 + $0x138] sm:$0xff]
      %v5857 = vld [vmem:[%s7 + $0x140] sm:$0xff]
      %v5858 = vld [vmem:[%s7 + $0x148] sm:$0xff]
      %v5859 = vld [vmem:[%s7 + $0x150] sm:$0xff]
      %v5860 = vld [vmem:[%s7 + $0x158] sm:$0xff]
      %v5861 = vld [vmem:[%s7 + $0x160] sm:$0xff]
      %v5862 = vld [vmem:[%s7 + $0x168] sm:$0xff]
      %v5863 = vld [vmem:[%s7 + $0x170] sm:$0xff]
      %v5864 = vld [vmem:[%s7 + $0x178] sm:$0xff]
      %v5865 = vld [vmem:[%s7 + $0x180] sm:$0xff]
      %v5866 = vld [vmem:[%s7 + $0x188] sm:$0xff]
      %v5867 = vld [vmem:[%s7 + $0x190] sm:$0xff]
      %v5868 = vld [vmem:[%s7 + $0x198] sm:$0xff]
      %v5869 = vld [vmem:[%s7 + $0x1a0] sm:$0xff]
      %v5870 = vld [vmem:[%s7 + $0x1a8] sm:$0xff]
      %v5871 = vld [vmem:[%s7 + $0x1b0] sm:$0xff]
      %v5872 = vld [vmem:[%s7 + $0x1b8] sm:$0xff]
      %v5873 = vld [vmem:[%s7 + $0x1c0] sm:$0xff]
      %v5874 = vld [vmem:[%s7 + $0x1c8] sm:$0xff]
      %v5875 = vld [vmem:[%s7 + $0x1d0] sm:$0xff]
      %v5876 = vld [vmem:[%s7 + $0x1d8] sm:$0xff]
      %v5877 = vld [vmem:[%s7 + $0x1e0] sm:$0xff]
      %v5878 = vld [vmem:[%s7 + $0x1e8] sm:$0xff]
      %v5879 = vld [vmem:[%s7 + $0x1f0] sm:$0xff]
      %v5880 = vld [vmem:[%s7 + $0x1f8] sm:$0xff]
      %v5881 = vld [vmem:[%s7 + $0x200] sm:$0xff]
      %v5882 = vld [vmem:[%s7 + $0x208] sm:$0xff]
      %v5883 = vld [vmem:[%s7 + $0x210] sm:$0xff]
      %v5884 = vld [vmem:[%s7 + $0x218] sm:$0xff]
      %v5885 = vld [vmem:[%s7 + $0x220] sm:$0xff]
      %v5886 = vld [vmem:[%s7 + $0x228] sm:$0xff]
      %v5887 = vld [vmem:[%s7 + $0x230] sm:$0xff]
      %v5888 = vld [vmem:[%s7 + $0x238] sm:$0xff]
      %v5889 = vld [vmem:[%s8] sm:$0x1]
      %v5891 = vlaneseq
      %v5892 = vshrl.u32 %v5891, 7
      %v5893 = vsub.s32 0, %v5892
      %v5894 = vrot.slane %v5889, %v5893
      %v5897 = vsel %vm333, %v5781, 0
      %v5900 = vsel %vm333, %v5786, 0
      %v5903 = vsel %vm333, %v5791, 0
      %v5906 = vsel %vm333, %v5796, 0
      %v5909 = vsel %vm333, %v5801, 0
      %v5912 = vsel %vm333, %v5806, 0
      %v5915 = vsel %vm333, %v5811, 0
      %v5918 = vsel %vm333, %v5816, 0
      %5920 = vmatprep.subr.mxu0 0.0
      %5921 = vmatpush1.msra.mxu0 %v5817
      %5922 = vmatprep.subr.mxu0 0.0
      %5923 = vmatpush1.msra.mxu0 %v5818
      %5924 = vmatprep.subr.mxu0 0.0
      %5925 = vmatpush1.msra.mxu0 %v5819
      %5926 = vmatprep.subr.mxu0 0.0
      %5927 = vmatpush1.msra.mxu0 %v5820
      %5928 = vmatprep.subr.mxu0 0.0
      %5929 = vmatpush1.msra.mxu0 %v5821
      %5930 = vmatprep.subr.mxu0 0.0
      %5931 = vmatpush1.msra.mxu0 %v5822
      %5932 = vmatprep.subr.mxu0 0.0
      %5933 = vmatpush1.msra.mxu0 %v5823
      %5934 = vmatprep.subr.mxu0 0.0
      %5935 = vmatpush1.msra.mxu0 %v5824
      %5936 = vmatprep.subr.mxu0 0.0
      %5937 = vmatpush1.msra.mxu0 %v5825
      %5938 = vmatprep.subr.mxu0 0.0
      %5939 = vmatpush1.msra.mxu0 %v5826
      %5940 = vmatprep.subr.mxu0 0.0
      %5941 = vmatpush1.msra.mxu0 %v5827
      %5942 = vmatprep.subr.mxu0 0.0
      %5943 = vmatpush1.msra.mxu0 %v5828
      %5944 = vmatprep.subr.mxu0 0.0
      %5945 = vmatpush1.msra.mxu0 %v5829
      %5946 = vmatprep.subr.mxu0 0.0
      %5947 = vmatpush1.msra.mxu0 %v5830
      %5948 = vmatprep.subr.mxu0 0.0
      %5949 = vmatpush1.msra.mxu0 %v5831
      %5950 = vmatprep.subr.mxu0 0.0
      %5951 = vmatpush1.msra.mxu0 %v5832
      %5952 = vmatprep.subr.mxu0 0.0
      %5953 = vmatpush1.msra.mxu0 %v5833
      %5954 = vmatprep.subr.mxu0 0.0
      %5955 = vmatpush1.msra.mxu0 %v5834
      %5956 = vmatprep.subr.mxu0 0.0
      %5957 = vmatpush1.msra.mxu0 %v5835
      %5958 = vmatprep.subr.mxu0 0.0
      %5959 = vmatpush1.msra.mxu0 %v5836
      %5960 = vmatprep.subr.mxu0 0.0
      %5961 = vmatpush1.msra.mxu0 %v5837
      %5962 = vmatprep.subr.mxu0 0.0
      %5963 = vmatpush1.msra.mxu0 %v5838
      %5964 = vmatprep.subr.mxu0 0.0
      %5965 = vmatpush1.msra.mxu0 %v5839
      %5966 = vmatprep.subr.mxu0 0.0
      %5967 = vmatpush1.msra.mxu0 %v5840
      %5968 = vmatprep.subr.mxu0 0.0
      %5969 = vmatpush1.msra.mxu0 %v5841
      %5970 = vmatprep.subr.mxu0 0.0
      %5971 = vmatpush1.msra.mxu0 %v5842
      %5972 = vmatprep.subr.mxu0 0.0
      %5973 = vmatpush1.msra.mxu0 %v5843
      %5974 = vmatprep.subr.mxu0 0.0
      %5975 = vmatpush1.msra.mxu0 %v5844
      %5976 = vmatprep.subr.mxu0 0.0
      %5977 = vmatpush1.msra.mxu0 %v5845
      %5978 = vmatprep.subr.mxu0 0.0
      %5979 = vmatpush1.msra.mxu0 %v5846
      %5980 = vmatprep.subr.mxu0 0.0
      %5981 = vmatpush1.msra.mxu0 %v5847
      %5982 = vmatprep.subr.mxu0 0.0
      %5983 = vmatpush1.msra.mxu0 %v5848
      %5984 = vmatprep.mubr.f32.mxu0 %v5778
      %5985 = vmatmul.mubr.f32.gmra.mrb[0].mxu0 %v5777
      %v5986 = vpop.f32.mrb[0].mxu0
      %v5987 = vadd.f32 %v5894, %v5986
      %v5988 = vpop.f32.mrb[0].mxu0
      %5989 = vmatprep.mubr.f32.mxu0 %v5783
      %5990 = vmatmul.mubr.f32.gmra.mrb[0].mxu0 %v5782
      %v5991 = vpop.f32.mrb[0].mxu0
      %v5992 = vadd.f32 %v5894, %v5991
      %v5993 = vpop.f32.mrb[0].mxu0
      %5994 = vmatprep.mubr.f32.mxu0 %v5788
      %5995 = vmatmul.mubr.f32.gmra.mrb[0].mxu0 %v5787
      %v5996 = vpop.f32.mrb[0].mxu0
      %v5997 = vadd.f32 %v5894, %v5996
      %v5998 = vpop.f32.mrb[0].mxu0
      %5999 = vmatprep.mubr.f32.mxu0 %v5793
      %6000 = vmatmul.mubr.f32.gmra.mrb[0].mxu0 %v5792
      %v6001 = vpop.f32.mrb[0].mxu0
      %v6002 = vadd.f32 %v5894, %v6001
      %v6003 = vpop.f32.mrb[0].mxu0
      %6004 = vmatprep.mubr.f32.mxu0 %v5798
      %6005 = vmatmul.mubr.f32.gmra.mrb[0].mxu0 %v5797
      %v6006 = vpop.f32.mrb[0].mxu0
      %v6007 = vadd.f32 %v5894, %v6006
      %v6008 = vpop.f32.mrb[0].mxu0
      %6009 = vmatprep.mubr.f32.mxu0 %v5803
      %6010 = vmatmul.mubr.f32.gmra.mrb[0].mxu0 %v5802
      %v6011 = vpop.f32.mrb[0].mxu0
      %v6012 = vadd.f32 %v5894, %v6011
      %v6013 = vpop.f32.mrb[0].mxu0
      %6014 = vmatprep.mubr.f32.mxu0 %v5808
      %6015 = vmatmul.mubr.f32.gmra.mrb[0].mxu0 %v5807
      %v6016 = vpop.f32.mrb[0].mxu0
      %v6017 = vadd.f32 %v5894, %v6016
      %v6018 = vpop.f32.mrb[0].mxu0
      %6019 = vmatprep.mubr.f32.mxu0 %v5813
      %6020 = vmatmul.mubr.f32.gmra.mrb[0].mxu0 %v5812
      %v6021 = vpop.f32.mrb[0].mxu0
      %v6022 = vadd.f32 %v5894, %v6021
      %v6023 = vpop.f32.mrb[0].mxu0
      %6024 = vdwg.mxu0
      %6025 = vmatprep.subr.mxu0 0.0
      %6026 = vmatpush1.msra.mxu0 %v5849
      %6027 = vmatprep.subr.mxu0 0.0
      %6028 = vmatpush1.msra.mxu0 %v5850
      %6029 = vmatprep.subr.mxu0 0.0
      %6030 = vmatpush1.msra.mxu0 %v5851
      %6031 = vmatprep.subr.mxu0 0.0
      %6032 = vmatpush1.msra.mxu0 %v5852
      %6033 = vmatprep.subr.mxu0 0.0
      %6034 = vmatpush1.msra.mxu0 %v5853
      %6035 = vmatprep.subr.mxu0 0.0
      %6036 = vmatpush1.msra.mxu0 %v5854
      %6037 = vmatprep.subr.mxu0 0.0
      %6038 = vmatpush1.msra.mxu0 %v5855
      %6039 = vmatprep.subr.mxu0 0.0
      %6040 = vmatpush1.msra.mxu0 %v5856
      %6041 = vmatprep.subr.mxu0 0.0
      %6042 = vmatpush1.msra.mxu0 %v5857
      %6043 = vmatprep.subr.mxu0 0.0
      %6044 = vmatpush1.msra.mxu0 %v5858
      %6045 = vmatprep.subr.mxu0 0.0
      %6046 = vmatpush1.msra.mxu0 %v5859
      %6047 = vmatprep.subr.mxu0 0.0
      %6048 = vmatpush1.msra.mxu0 %v5860
      %6049 = vmatprep.subr.mxu0 0.0
      %6050 = vmatpush1.msra.mxu0 %v5861
      %6051 = vmatprep.subr.mxu0 0.0
      %6052 = vmatpush1.msra.mxu0 %v5862
      %6053 = vmatprep.subr.mxu0 0.0
      %6054 = vmatpush1.msra.mxu0 %v5863
      %6055 = vmatprep.subr.mxu0 0.0
      %6056 = vmatpush1.msra.mxu0 %v5864
      %6057 = vmatprep.subr.mxu0 0.0
      %6058 = vmatpush1.msra.mxu0 %v5865
      %6059 = vmatprep.subr.mxu0 0.0
      %6060 = vmatpush1.msra.mxu0 %v5866
      %6061 = vmatprep.subr.mxu0 0.0
      %6062 = vmatpush1.msra.mxu0 %v5867
      %6063 = vmatprep.subr.mxu0 0.0
      %6064 = vmatpush1.msra.mxu0 %v5868
      %6065 = vmatprep.subr.mxu0 0.0
      %6066 = vmatpush1.msra.mxu0 %v5869
      %6067 = vmatprep.subr.mxu0 0.0
      %6068 = vmatpush1.msra.mxu0 %v5870
      %6069 = vmatprep.subr.mxu0 0.0
      %6070 = vmatpush1.msra.mxu0 %v5871
      %6071 = vmatprep.subr.mxu0 0.0
      %6072 = vmatpush1.msra.mxu0 %v5872
      %6073 = vmatprep.subr.mxu0 0.0
      %6074 = vmatpush1.msra.mxu0 %v5873
      %6075 = vmatprep.subr.mxu0 0.0
      %6076 = vmatpush1.msra.mxu0 %v5874
      %6077 = vmatprep.subr.mxu0 0.0
      %6078 = vmatpush1.msra.mxu0 %v5875
      %6079 = vmatprep.subr.mxu0 0.0
      %6080 = vmatpush1.msra.mxu0 %v5876
      %6081 = vmatprep.subr.mxu0 0.0
      %6082 = vmatpush1.msra.mxu0 %v5877
      %6083 = vmatprep.subr.mxu0 0.0
      %6084 = vmatpush1.msra.mxu0 %v5878
      %6085 = vmatprep.subr.mxu0 0.0
      %6086 = vmatpush1.msra.mxu0 %v5879
      %6087 = vmatprep.subr.mxu0 0.0
      %6088 = vmatpush1.msra.mxu0 %v5880
      %6089 = vmatprep.mubr.f32.mxu0 %v5780
      %6090 = vmatmul.mubr.f32.gmra.mrb[0].mxu0 %v5779
      %v6091 = vpop.f32.mrb[0].mxu0
      %v6092 = vadd.f32 %v5987, %v6091
      %v6093 = vpop.f32.mrb[0].mxu0
      %6094 = vmatprep.mubr.f32.mxu0 %v5785
      %6095 = vmatmul.mubr.f32.gmra.mrb[0].mxu0 %v5784
      %v6096 = vpop.f32.mrb[0].mxu0
      %v6097 = vadd.f32 %v5992, %v6096
      %v6098 = vpop.f32.mrb[0].mxu0
      %6099 = vmatprep.mubr.f32.mxu0 %v5790
      %6100 = vmatmul.mubr.f32.gmra.mrb[0].mxu0 %v5789
      %v6101 = vpop.f32.mrb[0].mxu0
      %v6102 = vadd.f32 %v5997, %v6101
      %v6103 = vpop.f32.mrb[0].mxu0
      %6104 = vmatprep.mubr.f32.mxu0 %v5795
      %6105 = vmatmul.mubr.f32.gmra.mrb[0].mxu0 %v5794
      %v6106 = vpop.f32.mrb[0].mxu0
      %v6107 = vadd.f32 %v6002, %v6106
      %v6108 = vpop.f32.mrb[0].mxu0
      %6109 = vmatprep.mubr.f32.mxu0 %v5800
      %6110 = vmatmul.mubr.f32.gmra.mrb[0].mxu0 %v5799
      %v6111 = vpop.f32.mrb[0].mxu0
      %v6112 = vadd.f32 %v6007, %v6111
      %v6113 = vpop.f32.mrb[0].mxu0
      %6114 = vmatprep.mubr.f32.mxu0 %v5805
      %6115 = vmatmul.mubr.f32.gmra.mrb[0].mxu0 %v5804
      %v6116 = vpop.f32.mrb[0].mxu0
      %v6117 = vadd.f32 %v6012, %v6116
      %v6118 = vpop.f32.mrb[0].mxu0
      %6119 = vmatprep.mubr.f32.mxu0 %v5810
      %6120 = vmatmul.mubr.f32.gmra.mrb[0].mxu0 %v5809
      %v6121 = vpop.f32.mrb[0].mxu0
      %v6122 = vadd.f32 %v6017, %v6121
      %v6123 = vpop.f32.mrb[0].mxu0
      %6124 = vmatprep.mubr.f32.mxu0 %v5815
      %6125 = vmatmul.mubr.f32.gmra.mrb[0].mxu0 %v5814
      %v6126 = vpop.f32.mrb[0].mxu0
      %v6127 = vadd.f32 %v6022, %v6126
      %v6128 = vpop.f32.mrb[0].mxu0
      %6129 = vdwg.mxu0
      %6130 = vmatprep.subr.mxu0 0.0
      %6131 = vmatpush1.msra.mxu0 %v5881
      %6132 = vmatprep.subr.mxu0 0.0
      %6133 = vmatpush1.msra.mxu0 %v5882
      %6134 = vmatprep.subr.mxu0 0.0
      %6135 = vmatpush1.msra.mxu0 %v5883
      %6136 = vmatprep.subr.mxu0 0.0
      %6137 = vmatpush1.msra.mxu0 %v5884
      %6138 = vmatprep.subr.mxu0 0.0
      %6139 = vmatpush1.msra.mxu0 %v5885
      %6140 = vmatprep.subr.mxu0 0.0
      %6141 = vmatpush1.msra.mxu0 %v5886
      %6142 = vmatprep.subr.mxu0 0.0
      %6143 = vmatpush1.msra.mxu0 %v5887
      %6144 = vmatprep.subr.mxu0 0.0
      %6145 = vmatpush1.msra.mxu0 %v5888
      %6146 = vmatprep.subr.mxu0 0.0
      %6147 = vmatpush1.msra.mxu0 0.0
      %6148 = vmatprep.subr.mxu0 0.0
      %6149 = vmatpush1.msra.mxu0 0.0
      %6150 = vmatprep.subr.mxu0 0.0
      %6151 = vmatpush1.msra.mxu0 0.0
      %6152 = vmatprep.subr.mxu0 0.0
      %6153 = vmatpush1.msra.mxu0 0.0
      %6154 = vmatprep.subr.mxu0 0.0
      %6155 = vmatpush1.msra.mxu0 0.0
      %6156 = vmatprep.subr.mxu0 0.0
      %6157 = vmatpush1.msra.mxu0 0.0
      %6158 = vmatprep.subr.mxu0 0.0
      %6159 = vmatpush1.msra.mxu0 0.0
      %6160 = vmatprep.subr.mxu0 0.0
      %6161 = vmatpush1.msra.mxu0 0.0
      %6162 = vmatprep.subr.mxu0 0.0
      %6163 = vmatpush1.msra.mxu0 0.0
      %6164 = vmatprep.subr.mxu0 0.0
      %6165 = vmatpush1.msra.mxu0 0.0
      %6166 = vmatprep.subr.mxu0 0.0
      %6167 = vmatpush1.msra.mxu0 0.0
      %6168 = vmatprep.subr.mxu0 0.0
      %6169 = vmatpush1.msra.mxu0 0.0
      %6170 = vmatprep.subr.mxu0 0.0
      %6171 = vmatpush1.msra.mxu0 0.0
      %6172 = vmatprep.subr.mxu0 0.0
      %6173 = vmatpush1.msra.mxu0 0.0
      %6174 = vmatprep.subr.mxu0 0.0
      %6175 = vmatpush1.msra.mxu0 0.0
      %6176 = vmatprep.subr.mxu0 0.0
      %6177 = vmatpush1.msra.mxu0 0.0
      %6178 = vmatprep.subr.mxu0 0.0
      %6179 = vmatpush1.msra.mxu0 0.0
      %6180 = vmatprep.subr.mxu0 0.0
      %6181 = vmatpush1.msra.mxu0 0.0
      %6182 = vmatprep.subr.mxu0 0.0
      %6183 = vmatpush1.msra.mxu0 0.0
      %6184 = vmatprep.subr.mxu0 0.0
      %6185 = vmatpush1.msra.mxu0 0.0
      %6186 = vmatprep.subr.mxu0 0.0
      %6187 = vmatpush1.msra.mxu0 0.0
      %6188 = vmatprep.subr.mxu0 0.0
      %6189 = vmatpush1.msra.mxu0 0.0
      %6190 = vmatprep.subr.mxu0 0.0
      %6191 = vmatpush1.msra.mxu0 0.0
      %6192 = vmatprep.subr.mxu0 0.0
      %6193 = vmatpush1.msra.mxu0 0.0
      %6194 = vmatprep.mubr.f32.mxu0 0.0
      %6195 = vmatmul.mubr.f32.gmra.mrb[0].mxu0 %v5897
      %v6196 = vpop.f32.mrb[0].mxu0
      %v6197 = vadd.f32 %v6092, %v6196
      %v6198 = vpop.f32.mrb[0].mxu0
      %6199 = vmatprep.mubr.f32.mxu0 0.0
      %6200 = vmatmul.mubr.f32.gmra.mrb[0].mxu0 %v5900
      %v6201 = vpop.f32.mrb[0].mxu0
      %v6202 = vadd.f32 %v6097, %v6201
      %v6203 = vpop.f32.mrb[0].mxu0
      %6204 = vmatprep.mubr.f32.mxu0 0.0
      %6205 = vmatmul.mubr.f32.gmra.mrb[0].mxu0 %v5903
      %v6206 = vpop.f32.mrb[0].mxu0
      %v6207 = vadd.f32 %v6102, %v6206
      %v6208 = vpop.f32.mrb[0].mxu0
      %6209 = vmatprep.mubr.f32.mxu0 0.0
      %6210 = vmatmul.mubr.f32.gmra.mrb[0].mxu0 %v5906
      %v6211 = vpop.f32.mrb[0].mxu0
      %v6212 = vadd.f32 %v6107, %v6211
      %v6213 = vpop.f32.mrb[0].mxu0
      %6214 = vmatprep.mubr.f32.mxu0 0.0
      %6215 = vmatmul.mubr.f32.gmra.mrb[0].mxu0 %v5909
      %v6216 = vpop.f32.mrb[0].mxu0
      %v6217 = vadd.f32 %v6112, %v6216
      %v6218 = vpop.f32.mrb[0].mxu0
      %6219 = vmatprep.mubr.f32.mxu0 0.0
      %6220 = vmatmul.mubr.f32.gmra.mrb[0].mxu0 %v5912
      %v6221 = vpop.f32.mrb[0].mxu0
      %v6222 = vadd.f32 %v6117, %v6221
      %v6223 = vpop.f32.mrb[0].mxu0
      %6224 = vmatprep.mubr.f32.mxu0 0.0
      %6225 = vmatmul.mubr.f32.gmra.mrb[0].mxu0 %v5915
      %v6226 = vpop.f32.mrb[0].mxu0
      %v6227 = vadd.f32 %v6122, %v6226
      %v6228 = vpop.f32.mrb[0].mxu0
      %6229 = vmatprep.mubr.f32.mxu0 0.0
      %6230 = vmatmul.mubr.f32.gmra.mrb[0].mxu0 %v5918
      %v6231 = vpop.f32.mrb[0].mxu0
      %v6232 = vadd.f32 %v6127, %v6231
      %v6233 = vpop.f32.mrb[0].mxu0
      %6234 = vdwg.mxu0
      %v6235 = vsub.f32 0.0, %v6197
      %v6236 = vsub.f32 0.0, %v6202
      %v6237 = vsub.f32 0.0, %v6207
      %v6238 = vsub.f32 0.0, %v6212
      %v6239 = vsub.f32 0.0, %v6217
      %v6240 = vsub.f32 0.0, %v6222
      %v6241 = vsub.f32 0.0, %v6227
      %v6242 = vsub.f32 0.0, %v6232
      %v6243 = vmul.f32 %v6235, 1.442695
      %v6244 = vpow.pop %v6243
      %v6245 = vmul.f32 %v6236, 1.442695
      %v6246 = vpow.pop %v6245
      %v6247 = vmul.f32 %v6237, 1.442695
      %v6248 = vpow.pop %v6247
      %v6249 = vmul.f32 %v6238, 1.442695
      %v6250 = vpow.pop %v6249
      %v6251 = vmul.f32 %v6239, 1.442695
      %v6252 = vpow.pop %v6251
      %v6253 = vmul.f32 %v6240, 1.442695
      %v6254 = vpow.pop %v6253
      %v6255 = vmul.f32 %v6241, 1.442695
      %v6256 = vpow.pop %v6255
      %v6257 = vmul.f32 %v6242, 1.442695
      %v6258 = vpow.pop %v6257
      %v6259 = vadd.f32 %v6244, 1.0
      %v6260 = vadd.f32 %v6246, 1.0
      %v6261 = vadd.f32 %v6248, 1.0
      %v6262 = vadd.f32 %v6250, 1.0
      %v6263 = vadd.f32 %v6252, 1.0
      %v6264 = vadd.f32 %v6254, 1.0
      %v6265 = vadd.f32 %v6256, 1.0
      %v6266 = vadd.f32 %v6258, 1.0
      %v6267 = vrcp.pop %v6259
      %v6268 = vmul.f32 1.0, %v6267
      %v6269 = vrcp.pop %v6260
      %v6270 = vmul.f32 1.0, %v6269
      %v6271 = vrcp.pop %v6261
      %v6272 = vmul.f32 1.0, %v6271
      %v6273 = vrcp.pop %v6262
      %v6274 = vmul.f32 1.0, %v6273
      %v6275 = vrcp.pop %v6263
      %v6276 = vmul.f32 1.0, %v6275
      %v6277 = vrcp.pop %v6264
      %v6278 = vmul.f32 1.0, %v6277
      %v6279 = vrcp.pop %v6265
      %v6280 = vmul.f32 1.0, %v6279
      %v6281 = vrcp.pop %v6266
      %v6282 = vmul.f32 1.0, %v6281
      %6283 = vst [vmem:[%s332] sm:$0xff] %v6268
      %6284 = vst [vmem:[%s332 + $0x8] sm:$0xff] %v6270
      %6285 = vst [vmem:[%s332 + $0x10] sm:$0xff] %v6272
      %6286 = vst [vmem:[%s332 + $0x18] sm:$0xff] %v6274
      %6287 = vst [vmem:[%s332 + $0x20] sm:$0xff] %v6276
      %6288 = vst [vmem:[%s332 + $0x28] sm:$0xff] %v6278
      %6289 = vst [vmem:[%s332 + $0x30] sm:$0xff] %v6280
      %6290 = vst [vmem:[%s332 + $0x38] sm:$0xff] %v6282
      %p6291 = scmp.lt.s32.totalorder %s20, 1
      %s6292 = scalar_select %p6291, %s20, 1
      %s6293 = smul.addr %s6292, 8
      %s6294 = smul.addr %s6293, 8
      %s6295 = scalar_lea.vmem %s9, %s6294
      // Predicated region
      $region57: #{caries_segunet_forward.1} parent=55 // pred_check
        %p6296 = pneg %p232
      $region58: #{caries_segunet_forward.1} parent=55 // pred_check_branch
        %6298 = sbr.rel (%p6296) target = $region60
      $region59: #{caries_segunet_forward.1} parent=55 // pred_region
        _
      $region60: #{caries_segunet_forward.1} parent=55 // pred_fallthru
        _
    $region56: #{caries_segunet_forward.1} parent=5 // pred_fallthru
      _
    %p6299 = scmp.le.s32.totalorder 2, %s15
    // Predicated region
    $region61: #{caries_segunet_forward.1} parent=5 // pred_check
      %p6300 = pneg %p6299
    $region62: #{caries_segunet_forward.1} parent=5 // pred_check_branch
      %6302 = sbr.rel (%p6300) target = $region64
    $region63: #{caries_segunet_forward.1} parent=5 // pred_region
      %s6303 = ssub.s32 %s15, 2
      // Predicated region
      $region65: #{caries_segunet_forward.1} parent=63 // pred_check
        %p6304 = pneg %p238
      $region66: #{caries_segunet_forward.1} parent=63 // pred_check_branch
        %6306 = sbr.rel (%p6304) target = $region68
      $region67: #{caries_segunet_forward.1} parent=63 // pred_region
        %p6307 = scmp.lt.s32.totalorder %s21, 1
        %s6308 = scalar_select %p6307, %s21, 1
        %s6309 = smul.addr %s6308, 8
        %s6310 = smul.addr %s6309, 8
        %s6311 = scalar_lea.vmem %s9, %s6310
      $region68: #{caries_segunet_forward.1} parent=63 // pred_fallthru
        _
    $region64: #{caries_segunet_forward.1} parent=5 // pred_fallthru
      _
  $region6: #{caries_segunet_forward.1} parent=0 // loop_footer
    %s19 = sadd.s32 1, %s15
  $region7: #{caries_segunet_forward.1} parent=0 // loop_footer_branch
    %14 = sbr.rel target = $region3
  $region8: #{caries_segunet_forward.1} parent=0 // loop_exit
    _

</llo_original>
